<compile_context>
chip_gen: v5e
topology: v5e:2x2
jax: 0.10.0
libtpu: 0.0.40
codegen_flags: <defaults>
</compile_context>

<pallas_src>
import functools

import jax
import jax.numpy as jnp
from jax import lax
from jax.experimental import pallas as pl
from jax.experimental.pallas import tpu as pltpu

NEG_SLOPE = 0.01   # nn.LeakyReLU default negative_slope
CH = 64            # feature channels
N_BLOCKS = 16      # residual blocks


def _leaky(v):
    return jnp.where(v >= 0.0, v, NEG_SLOPE * v)


# -----------------------------------------------------------------------------
# Fused kernel: entire network forward for one batch element per grid step.
# -----------------------------------------------------------------------------
def _fused_network_kernel(x64_ref, xres_ref, w_ref, b_ref, tw_ref, tb_ref,
                          o_ref, fpad_ref, hpad_ref, col_ref, *, H, W, C,
                          n_blocks):
    """
    x64_ref : (1, H, W, C)        f32   input image in channel 0, zeros elsewhere
    xres_ref: (1, H, W)           f32   raw input image (residual for the tail)
    w_ref   : (1+2B, 9*C, C)      bf16  stacked im2col conv weights (head zero-padded)
    b_ref   : (1+2B, 1, C)        f32   stacked biases
    tw_ref  : (9, C)              f32   tail conv weights (Cout == 1, done on VPU)
    tb_ref  : (1, 1)              f32   tail bias (SMEM scalar)
    o_ref   : (1, H, W)           f32   network output
    fpad_ref, hpad_ref: (H+2, W+2, C) f32 VMEM padded activation buffers
    col_ref : (H*W, 9*C)          bf16  VMEM im2col staging buffer
    """
    HW = H * W

    # Zero the padded scratch buffers: this is the "same"-padding halo for every
    # conv layer (interiors are always overwritten before being read).
    fpad_ref[...] = jnp.zeros_like(fpad_ref)
    hpad_ref[...] = jnp.zeros_like(hpad_ref)

    # Load the (channel-padded) input image into the working feature buffer.
    fpad_ref[1:H + 1, 1:W + 1, :] = x64_ref[0]

    def conv(src_ref, w_bf16):
        """3x3 'same' conv as ONE im2col matmul: (HW, 9C) @ (9C, C) -> f32."""
        for kh in range(3):
            for kw in range(3):
                tap = kh * 3 + kw
                patch = src_ref[kh:kh + H, kw:kw + W, :]            # (H, W, C) f32
                col_ref[:, tap * C:(tap + 1) * C] = (
                    patch.astype(jnp.bfloat16).reshape(HW, C))
        return jnp.dot(col_ref[...], w_bf16,
                       preferred_element_type=jnp.float32)          # (HW, C) f32

    # ---- head: conv(1->C) + LeakyReLU (uniform im2col path; the extra K rows
    # multiply the zero channels, contributing exactly 0).
    f0 = _leaky(conv(fpad_ref, w_ref[0]) + b_ref[0])
    fpad_ref[1:H + 1, 1:W + 1, :] = f0.reshape(H, W, C)

    # ---- 16 residual blocks: f = f + conv2(leaky(conv1(f))).
    # Loop stays rolled; weights/biases are dynamically indexed from the
    # VMEM-resident stacks.
    def block(i, carry):
        w1 = w_ref[1 + 2 * i]
        b1 = b_ref[1 + 2 * i]
        w2 = w_ref[2 + 2 * i]
        b2 = b_ref[2 + 2 * i]
        h = _leaky(conv(fpad_ref, w1) + b1)                         # (HW, C) f32
        hpad_ref[1:H + 1, 1:W + 1, :] = h.reshape(H, W, C)
        g = conv(hpad_ref, w2) + b2                                 # (HW, C) f32
        f_new = fpad_ref[1:H + 1, 1:W + 1, :] + g.reshape(H, W, C)  # f32 residual
        fpad_ref[1:H + 1, 1:W + 1, :] = f_new
        return carry

    lax.fori_loop(0, n_blocks, block, 0)

    # ---- tail: conv(C->1) on the VPU/XLU in f32 (a Cout=1 matmul would waste
    # 63/64 of the MXU output lanes), + input residual + clamp to [0, 1].
    tw = tw_ref[...]                                                # (9, C) f32
    tacc = jnp.zeros((H, W, C), jnp.float32)
    for kh in range(3):
        for kw in range(3):
            tacc = tacc + fpad_ref[kh:kh + H, kw:kw + W, :] * tw[kh * 3 + kw]
    tail = jnp.sum(tacc, axis=-1) + tb_ref[0, 0]                    # (H, W) f32
    o_ref[0] = jnp.clip(xres_ref[0] + tail, 0.0, 1.0)


# -----------------------------------------------------------------------------
# Wrapper: stack weights, launch the fused kernel.
# -----------------------------------------------------------------------------
def network_forward(x_nchw, params, n_blocks=N_BLOCKS):
    N, _, H, W = x_nchw.shape
    C = CH
    x_img = x_nchw[:, 0, :, :].astype(jnp.float32)                  # (N, H, W)
    # Zero-pad the 1-channel image to C channels so the head conv shares the
    # body convs' im2col matmul path (extra contraction rows are exactly zero).
    x64 = jnp.zeros((N, H, W, C), jnp.float32).at[..., 0].set(x_img)

    # Stack all 1 + 2*n_blocks conv weights as (L, 9*C, C) bf16 and biases as
    # (L, 1, C) f32.  im2col column ordering is tap-major, then input channel.
    w0 = jnp.zeros((9, C, C), jnp.float32).at[:, 0, :].set(
        params["head_w"].reshape(9, C))
    w_list = [w0]
    b_list = [params["head_b"].reshape(1, C)]
    for i in range(n_blocks):
        w_list.append(params[f"rb{i}_w1"].reshape(9, C, C))
        b_list.append(params[f"rb{i}_b1"].reshape(1, C))
        w_list.append(params[f"rb{i}_w2"].reshape(9, C, C))
        b_list.append(params[f"rb{i}_b2"].reshape(1, C))
    n_layers = 1 + 2 * n_blocks
    w_all = jnp.stack(w_list).reshape(n_layers, 9 * C, C).astype(jnp.bfloat16)
    b_all = jnp.stack(b_list).astype(jnp.float32)                   # (L, 1, C)
    tail_w = params["tail_w"].reshape(9, C).astype(jnp.float32)
    tail_b = params["tail_b"].reshape(1, 1).astype(jnp.float32)

    kernel = functools.partial(_fused_network_kernel, H=H, W=W, C=C,
                               n_blocks=n_blocks)
    out = pl.pallas_call(
        kernel,
        out_shape=jax.ShapeDtypeStruct((N, H, W), jnp.float32),
        grid=(N,),
        in_specs=[
            pl.BlockSpec((1, H, W, C), lambda n: (n, 0, 0, 0)),          # x64
            pl.BlockSpec((1, H, W), lambda n: (n, 0, 0)),                # x residual
            pl.BlockSpec((n_layers, 9 * C, C), lambda n: (0, 0, 0)),     # weights
            pl.BlockSpec((n_layers, 1, C), lambda n: (0, 0, 0)),         # biases
            pl.BlockSpec((9, C), lambda n: (0, 0)),                      # tail w
            pl.BlockSpec(memory_space=pltpu.MemorySpace.SMEM),           # tail b
        ],
        out_specs=pl.BlockSpec((1, H, W), lambda n: (n, 0, 0)),
        scratch_shapes=[
            pltpu.VMEM((H + 2, W + 2, C), jnp.float32),   # fpad (current features)
            pltpu.VMEM((H + 2, W + 2, C), jnp.float32),   # hpad (block hidden)
            pltpu.VMEM((H * W, 9 * C), jnp.bfloat16),     # im2col staging
        ],
        compiler_params=pltpu.CompilerParams(
            dimension_semantics=("parallel",)),
    )(x64, x_img, w_all, b_all, tail_w, tail_b)
    return out[:, None, :, :]                                        # (N, 1, H, W)


# -----------------------------------------------------------------------------
# Parameter init (deterministic, PyTorch-style uniform(-1/sqrt(fan_in), ...)).
# Weight layout: HWIO = (3, 3, Cin, Cout).
# -----------------------------------------------------------------------------
def _init_conv(key, cin, cout):
    kw_, kb = jax.random.split(key)
    bound = 1.0 / jnp.sqrt(cin * 9.0)
    w = jax.random.uniform(kw_, (3, 3, cin, cout), jnp.float32, -bound, bound)
    b = jax.random.uniform(kb, (cout,), jnp.float32, -bound, bound)
    return w, b


def init_params(key, channels=CH, n_blocks=N_BLOCKS):
    params = {}
    keys = jax.random.split(key, 2 + 2 * n_blocks)
    params["head_w"], params["head_b"] = _init_conv(keys[0], 1, channels)
    for i in range(n_blocks):
        params[f"rb{i}_w1"], params[f"rb{i}_b1"] = _init_conv(
            keys[1 + 2 * i], channels, channels)
        params[f"rb{i}_w2"], params[f"rb{i}_b2"] = _init_conv(
            keys[2 + 2 * i], channels, channels)
    params["tail_w"], params["tail_b"] = _init_conv(keys[-1], channels, 1)
    return params


# -----------------------------------------------------------------------------
# Pure-JAX reference with matching numerics (bf16 conv inputs, f32 accumulation,
# f32 tail) used for the correctness check.
# -----------------------------------------------------------------------------
def network_reference(x_nchw, params, n_blocks=N_BLOCKS):
    bf = jnp.bfloat16
    x = jnp.transpose(x_nchw, (0, 2, 3, 1)).astype(jnp.float32)      # (N,H,W,1)

    def conv_bf16(act_f32, w_f32, b_f32):
        y = lax.conv_general_dilated(
            act_f32.astype(bf), w_f32.astype(bf), (1, 1), "SAME",
            dimension_numbers=("NHWC", "HWIO", "NHWC"),
            preferred_element_type=jnp.float32)
        return y + b_f32

    f = _leaky(conv_bf16(x, params["head_w"], params["head_b"]))
    for i in range(n_blocks):
        h = _leaky(conv_bf16(f, params[f"rb{i}_w1"], params[f"rb{i}_b1"]))
        f = f + conv_bf16(h, params[f"rb{i}_w2"], params[f"rb{i}_b2"])
    tail = lax.conv_general_dilated(
        f, params["tail_w"], (1, 1), "SAME",
        dimension_numbers=("NHWC", "HWIO", "NHWC")) + params["tail_b"]
    out = jnp.clip(x + tail, 0.0, 1.0)
    return jnp.transpose(out, (0, 3, 1, 2))


if __name__ == "__main__":
    key = jax.random.PRNGKey(0)
    k_in, k_par = jax.random.split(key)

    # Small shapes consistent with the module: batch=2, 1 input channel, 16x16.
    x = jax.random.uniform(k_in, (2, 1, 16, 16), jnp.float32)
    params = init_params(k_par, channels=CH, n_blocks=N_BLOCKS)

    out = jax.block_until_ready(jax.jit(network_forward)(x, params))
    ref = jax.block_until_ready(jax.jit(network_reference)(x, params))

    assert out.shape == (2, 1, 16, 16), out.shape
    max_err = float(jnp.max(jnp.abs(out - ref)))
    assert jnp.allclose(out, ref, atol=1e-3, rtol=1e-3), max_err
    print("KERNEL_OK")
</pallas_src>

<mosaic_0001>
module attributes {stable_mosaic.version = 11 : i64} {
  func.func @_fused_network_kernel(%arg0: i32, %arg1: memref<1x16x16x64xf32, #tpu.memory_space<vmem>>, %arg2: memref<1x16x16xf32, #tpu.memory_space<vmem>>, %arg3: memref<33x576x64xbf16, #tpu.memory_space<vmem>>, %arg4: memref<33x1x64xf32, #tpu.memory_space<vmem>>, %arg5: memref<9x64xf32, #tpu.memory_space<vmem>>, %arg6: memref<1x1xf32, #tpu.memory_space<smem>>, %arg7: memref<1x16x16xf32, #tpu.memory_space<vmem>>, %arg8: memref<18x18x64xf32, #tpu.memory_space<vmem>>, %arg9: memref<18x18x64xf32, #tpu.memory_space<vmem>>, %arg10: memref<256x576xbf16, #tpu.memory_space<vmem>>) attributes {dimension_semantics = [#tpu.dimension_semantics<parallel>], iteration_bounds = array<i64: 2>, scalar_prefetch = 0 : i64, scratch_operands = 3 : i64, tpu.core_type = #tpu.core_type<tc>, window_params = [{transform_indices = @transform_0, window_bounds = array<i64: 1, 16, 16, 64>}, {transform_indices = @transform_1, window_bounds = array<i64: 1, 16, 16>}, {pipeline_mode = #tpu.pipeline_mode<synchronous>, transform_indices = @transform_2, window_bounds = array<i64: 33, 576, 64>}, {pipeline_mode = #tpu.pipeline_mode<synchronous>, transform_indices = @transform_3, window_bounds = array<i64: 33, 1, 64>}, {pipeline_mode = #tpu.pipeline_mode<synchronous>, transform_indices = @transform_4, window_bounds = array<i64: 9, 64>}, {transform_indices = @transform_5, window_bounds = array<i64: 1, 1>}, {transform_indices = @transform_6, window_bounds = array<i64: 1, 16, 16>}]} {
    %cst = arith.constant 0.000000e+00 : f32
    %0 = vector.broadcast %cst : f32 to vector<18x18x64xf32>
    %c0 = arith.constant 0 : index
    %c0_0 = arith.constant 0 : index
    %c0_1 = arith.constant 0 : index
    %1 = vector.load %arg8[%c0, %c0_0, %c0_1] : memref<18x18x64xf32, #tpu.memory_space<vmem>>, vector<18x18x64xf32>
    tpu.vector_store %arg8[%c0, %c0_0, %c0_1], %0 {strides = array<i32>} : memref<18x18x64xf32, #tpu.memory_space<vmem>>, vector<18x18x64xf32>,
    %cst_2 = arith.constant 0.000000e+00 : f32
    %2 = vector.broadcast %cst_2 : f32 to vector<18x18x64xf32>
    %c0_3 = arith.constant 0 : index
    %c0_4 = arith.constant 0 : index
    %c0_5 = arith.constant 0 : index
    %3 = vector.load %arg9[%c0_3, %c0_4, %c0_5] : memref<18x18x64xf32, #tpu.memory_space<vmem>>, vector<18x18x64xf32>
    tpu.vector_store %arg9[%c0_3, %c0_4, %c0_5], %2 {strides = array<i32>} : memref<18x18x64xf32, #tpu.memory_space<vmem>>, vector<18x18x64xf32>,
    %c0_6 = arith.constant 0 : index
    %c0_7 = arith.constant 0 : index
    %c0_8 = arith.constant 0 : index
    %c0_9 = arith.constant 0 : index
    %4 = vector.load %arg1[%c0_6, %c0_7, %c0_8, %c0_9] : memref<1x16x16x64xf32, #tpu.memory_space<vmem>>, vector<1x16x16x64xf32>
    %5 = vector.shape_cast %4 : vector<1x16x16x64xf32> to vector<16x16x64xf32>
    %c1 = arith.constant 1 : index
    %c1_10 = arith.constant 1 : index
    %c0_11 = arith.constant 0 : index
    %6 = vector.load %arg8[%c1, %c1_10, %c0_11] : memref<18x18x64xf32, #tpu.memory_space<vmem>>, vector<16x16x64xf32>
    tpu.vector_store %arg8[%c1, %c1_10, %c0_11], %5 {strides = array<i32>} : memref<18x18x64xf32, #tpu.memory_space<vmem>>, vector<16x16x64xf32>,
    %c0_12 = arith.constant 0 : index
    %c0_13 = arith.constant 0 : index
    %c0_14 = arith.constant 0 : index
    %7 = vector.load %arg3[%c0_12, %c0_13, %c0_14] : memref<33x576x64xbf16, #tpu.memory_space<vmem>>, vector<1x576x64xbf16>
    %8 = vector.shape_cast %7 : vector<1x576x64xbf16> to vector<576x64xbf16>
    %c0_15 = arith.constant 0 : index
    %c0_16 = arith.constant 0 : index
    %c0_17 = arith.constant 0 : index
    %9 = vector.load %arg8[%c0_15, %c0_16, %c0_17] : memref<18x18x64xf32, #tpu.memory_space<vmem>>, vector<16x16x64xf32>
    %10 = arith.truncf %9 : vector<16x16x64xf32> to vector<16x16x64xbf16>
    %11 = vector.shape_cast %10 : vector<16x16x64xbf16> to vector<256x64xbf16>
    %c0_18 = arith.constant 0 : index
    %c0_19 = arith.constant 0 : index
    %12 = vector.load %arg10[%c0_18, %c0_19] : memref<256x576xbf16, #tpu.memory_space<vmem>>, vector<256x64xbf16>
    tpu.vector_store %arg10[%c0_18, %c0_19], %11 {strides = array<i32>} : memref<256x576xbf16, #tpu.memory_space<vmem>>, vector<256x64xbf16>,
    %c0_20 = arith.constant 0 : index
    %c1_21 = arith.constant 1 : index
    %c0_22 = arith.constant 0 : index
    %13 = vector.load %arg8[%c0_20, %c1_21, %c0_22] : memref<18x18x64xf32, #tpu.memory_space<vmem>>, vector<16x16x64xf32>
    %14 = arith.truncf %13 : vector<16x16x64xf32> to vector<16x16x64xbf16>
    %15 = vector.shape_cast %14 : vector<16x16x64xbf16> to vector<256x64xbf16>
    %c0_23 = arith.constant 0 : index
    %c64 = arith.constant 64 : index
    %16 = vector.load %arg10[%c0_23, %c64] : memref<256x576xbf16, #tpu.memory_space<vmem>>, vector<256x64xbf16>
    tpu.vector_store %arg10[%c0_23, %c64], %15 {strides = array<i32>} : memref<256x576xbf16, #tpu.memory_space<vmem>>, vector<256x64xbf16>,
    %c0_24 = arith.constant 0 : index
    %c2 = arith.constant 2 : index
    %c0_25 = arith.constant 0 : index
    %17 = vector.load %arg8[%c0_24, %c2, %c0_25] : memref<18x18x64xf32, #tpu.memory_space<vmem>>, vector<16x16x64xf32>
    %18 = arith.truncf %17 : vector<16x16x64xf32> to vector<16x16x64xbf16>
    %19 = vector.shape_cast %18 : vector<16x16x64xbf16> to vector<256x64xbf16>
    %c0_26 = arith.constant 0 : index
    %c128 = arith.constant 128 : index
    %20 = vector.load %arg10[%c0_26, %c128] : memref<256x576xbf16, #tpu.memory_space<vmem>>, vector<256x64xbf16>
    tpu.vector_store %arg10[%c0_26, %c128], %19 {strides = array<i32>} : memref<256x576xbf16, #tpu.memory_space<vmem>>, vector<256x64xbf16>,
    %c1_27 = arith.constant 1 : index
    %c0_28 = arith.constant 0 : index
    %c0_29 = arith.constant 0 : index
    %21 = vector.load %arg8[%c1_27, %c0_28, %c0_29] : memref<18x18x64xf32, #tpu.memory_space<vmem>>, vector<16x16x64xf32>
    %22 = arith.truncf %21 : vector<16x16x64xf32> to vector<16x16x64xbf16>
    %23 = vector.shape_cast %22 : vector<16x16x64xbf16> to vector<256x64xbf16>
    %c0_30 = arith.constant 0 : index
    %c192 = arith.constant 192 : index
    %24 = vector.load %arg10[%c0_30, %c192] : memref<256x576xbf16, #tpu.memory_space<vmem>>, vector<256x64xbf16>
    tpu.vector_store %arg10[%c0_30, %c192], %23 {strides = array<i32>} : memref<256x576xbf16, #tpu.memory_space<vmem>>, vector<256x64xbf16>,
    %c1_31 = arith.constant 1 : index
    %c1_32 = arith.constant 1 : index
    %c0_33 = arith.constant 0 : index
    %25 = vector.load %arg8[%c1_31, %c1_32, %c0_33] : memref<18x18x64xf32, #tpu.memory_space<vmem>>, vector<16x16x64xf32>
    %26 = arith.truncf %25 : vector<16x16x64xf32> to vector<16x16x64xbf16>
    %27 = vector.shape_cast %26 : vector<16x16x64xbf16> to vector<256x64xbf16>
    %c0_34 = arith.constant 0 : index
    %c256 = arith.constant 256 : index
    %28 = vector.load %arg10[%c0_34, %c256] : memref<256x576xbf16, #tpu.memory_space<vmem>>, vector<256x64xbf16>
    tpu.vector_store %arg10[%c0_34, %c256], %27 {strides = array<i32>} : memref<256x576xbf16, #tpu.memory_space<vmem>>, vector<256x64xbf16>,
    %c1_35 = arith.constant 1 : index
    %c2_36 = arith.constant 2 : index
    %c0_37 = arith.constant 0 : index
    %29 = vector.load %arg8[%c1_35, %c2_36, %c0_37] : memref<18x18x64xf32, #tpu.memory_space<vmem>>, vector<16x16x64xf32>
    %30 = arith.truncf %29 : vector<16x16x64xf32> to vector<16x16x64xbf16>
    %31 = vector.shape_cast %30 : vector<16x16x64xbf16> to vector<256x64xbf16>
    %c0_38 = arith.constant 0 : index
    %c320 = arith.constant 320 : index
    %32 = vector.load %arg10[%c0_38, %c320] : memref<256x576xbf16, #tpu.memory_space<vmem>>, vector<256x64xbf16>
    tpu.vector_store %arg10[%c0_38, %c320], %31 {strides = array<i32>} : memref<256x576xbf16, #tpu.memory_space<vmem>>, vector<256x64xbf16>,
    %c2_39 = arith.constant 2 : index
    %c0_40 = arith.constant 0 : index
    %c0_41 = arith.constant 0 : index
    %33 = vector.load %arg8[%c2_39, %c0_40, %c0_41] : memref<18x18x64xf32, #tpu.memory_space<vmem>>, vector<16x16x64xf32>
    %34 = arith.truncf %33 : vector<16x16x64xf32> to vector<16x16x64xbf16>
    %35 = vector.shape_cast %34 : vector<16x16x64xbf16> to vector<256x64xbf16>
    %c0_42 = arith.constant 0 : index
    %c384 = arith.constant 384 : index
    %36 = vector.load %arg10[%c0_42, %c384] : memref<256x576xbf16, #tpu.memory_space<vmem>>, vector<256x64xbf16>
    tpu.vector_store %arg10[%c0_42, %c384], %35 {strides = array<i32>} : memref<256x576xbf16, #tpu.memory_space<vmem>>, vector<256x64xbf16>,
    %c2_43 = arith.constant 2 : index
    %c1_44 = arith.constant 1 : index
    %c0_45 = arith.constant 0 : index
    %37 = vector.load %arg8[%c2_43, %c1_44, %c0_45] : memref<18x18x64xf32, #tpu.memory_space<vmem>>, vector<16x16x64xf32>
    %38 = arith.truncf %37 : vector<16x16x64xf32> to vector<16x16x64xbf16>
    %39 = vector.shape_cast %38 : vector<16x16x64xbf16> to vector<256x64xbf16>
    %c0_46 = arith.constant 0 : index
    %c448 = arith.constant 448 : index
    %40 = vector.load %arg10[%c0_46, %c448] : memref<256x576xbf16, #tpu.memory_space<vmem>>, vector<256x64xbf16>
    tpu.vector_store %arg10[%c0_46, %c448], %39 {strides = array<i32>} : memref<256x576xbf16, #tpu.memory_space<vmem>>, vector<256x64xbf16>,
    %c2_47 = arith.constant 2 : index
    %c2_48 = arith.constant 2 : index
    %c0_49 = arith.constant 0 : index
    %41 = vector.load %arg8[%c2_47, %c2_48, %c0_49] : memref<18x18x64xf32, #tpu.memory_space<vmem>>, vector<16x16x64xf32>
    %42 = arith.truncf %41 : vector<16x16x64xf32> to vector<16x16x64xbf16>
    %43 = vector.shape_cast %42 : vector<16x16x64xbf16> to vector<256x64xbf16>
    %c0_50 = arith.constant 0 : index
    %c512 = arith.constant 512 : index
    %44 = vector.load %arg10[%c0_50, %c512] : memref<256x576xbf16, #tpu.memory_space<vmem>>, vector<256x64xbf16>
    tpu.vector_store %arg10[%c0_50, %c512], %43 {strides = array<i32>} : memref<256x576xbf16, #tpu.memory_space<vmem>>, vector<256x64xbf16>,
    %c0_51 = arith.constant 0 : index
    %c0_52 = arith.constant 0 : index
    %45 = vector.load %arg10[%c0_51, %c0_52] : memref<256x576xbf16, #tpu.memory_space<vmem>>, vector<256x576xbf16>
    %cst_53 = arith.constant dense<0.000000e+00> : vector<256x64xf32>
    %46 = tpu.matmul %45, %8, %cst_53 {dimension_numbers = #tpu.dot_dimension_numbers<[1], [0], [0], [1], [0, 0, 1, 1], [], []>} : vector<256x576xbf16>, vector<576x64xbf16>, vector<256x64xf32> -> vector<256x64xf32>
    %c0_54 = arith.constant 0 : index
    %c0_55 = arith.constant 0 : index
    %c0_56 = arith.constant 0 : index
    %47 = vector.load %arg4[%c0_54, %c0_55, %c0_56] : memref<33x1x64xf32, #tpu.memory_space<vmem>>, vector<1x1x64xf32>
    %48 = vector.shape_cast %47 : vector<1x1x64xf32> to vector<1x64xf32>
    %49 = vector.broadcast %48 : vector<1x64xf32> to vector<256x64xf32>
    %50 = arith.addf %46, %49 : vector<256x64xf32>
    %cst_57 = arith.constant 0.000000e+00 : f32
    %51 = vector.broadcast %cst_57 : f32 to vector<256x64xf32>
    %52 = arith.cmpf oge, %50, %51 : vector<256x64xf32>
    %cst_58 = arith.constant 0.00999999977 : f32
    %53 = vector.broadcast %cst_58 : f32 to vector<256x64xf32>
    %54 = arith.mulf %53, %50 : vector<256x64xf32>
    %55 = arith.select %52, %50, %54 : vector<256x64xi1>, vector<256x64xf32>
    %56 = vector.shape_cast %55 : vector<256x64xf32> to vector<16x16x64xf32>
    %c1_59 = arith.constant 1 : index
    %c1_60 = arith.constant 1 : index
    %c0_61 = arith.constant 0 : index
    %57 = vector.load %arg8[%c1_59, %c1_60, %c0_61] : memref<18x18x64xf32, #tpu.memory_space<vmem>>, vector<16x16x64xf32>
    tpu.vector_store %arg8[%c1_59, %c1_60, %c0_61], %56 {strides = array<i32>} : memref<18x18x64xf32, #tpu.memory_space<vmem>>, vector<16x16x64xf32>,
    %c0_i32 = arith.constant 0 : i32
    %c16_i32 = arith.constant 16 : i32
    %58 = arith.addi %c0_i32, %c16_i32 : i32
    %c1_i32 = arith.constant 1 : i32
    scf.for %arg11 = %c0_i32 to %58 step %c1_i32  : i32 {
      %c2_i32 = arith.constant 2 : i32
      %138 = arith.muli %c2_i32, %arg11 : i32
      %c1_i32_104 = arith.constant 1 : i32
      %139 = arith.addi %c1_i32_104, %138 : i32
      %140 = arith.index_cast %139 : i32 to index
      %c0_105 = arith.constant 0 : index
      %c0_106 = arith.constant 0 : index
      %141 = vector.load %arg3[%140, %c0_105, %c0_106] : memref<33x576x64xbf16, #tpu.memory_space<vmem>>, vector<1x576x64xbf16>
      %142 = vector.shape_cast %141 : vector<1x576x64xbf16> to vector<576x64xbf16>
      %c2_i32_107 = arith.constant 2 : i32
      %143 = arith.muli %c2_i32_107, %arg11 : i32
      %c1_i32_108 = arith.constant 1 : i32
      %144 = arith.addi %c1_i32_108, %143 : i32
      %145 = arith.index_cast %144 : i32 to index
      %c0_109 = arith.constant 0 : index
      %c0_110 = arith.constant 0 : index
      %146 = vector.load %arg4[%145, %c0_109, %c0_110] : memref<33x1x64xf32, #tpu.memory_space<vmem>>, vector<1x1x64xf32>
      %147 = vector.shape_cast %146 : vector<1x1x64xf32> to vector<1x64xf32>
      %c2_i32_111 = arith.constant 2 : i32
      %148 = arith.muli %c2_i32_111, %arg11 : i32
      %c2_i32_112 = arith.constant 2 : i32
      %149 = arith.addi %c2_i32_112, %148 : i32
      %150 = arith.index_cast %149 : i32 to index
      %c0_113 = arith.constant 0 : index
      %c0_114 = arith.constant 0 : index
      %151 = vector.load %arg3[%150, %c0_113, %c0_114] : memref<33x576x64xbf16, #tpu.memory_space<vmem>>, vector<1x576x64xbf16>
      %152 = vector.shape_cast %151 : vector<1x576x64xbf16> to vector<576x64xbf16>
      %c2_i32_115 = arith.constant 2 : i32
      %153 = arith.muli %c2_i32_115, %arg11 : i32
      %c2_i32_116 = arith.constant 2 : i32
      %154 = arith.addi %c2_i32_116, %153 : i32
      %155 = arith.index_cast %154 : i32 to index
      %c0_117 = arith.constant 0 : index
      %c0_118 = arith.constant 0 : index
      %156 = vector.load %arg4[%155, %c0_117, %c0_118] : memref<33x1x64xf32, #tpu.memory_space<vmem>>, vector<1x1x64xf32>
      %157 = vector.shape_cast %156 : vector<1x1x64xf32> to vector<1x64xf32>
      %c0_119 = arith.constant 0 : index
      %c0_120 = arith.constant 0 : index
      %c0_121 = arith.constant 0 : index
      %158 = vector.load %arg8[%c0_119, %c0_120, %c0_121] : memref<18x18x64xf32, #tpu.memory_space<vmem>>, vector<16x16x64xf32>
      %159 = arith.truncf %158 : vector<16x16x64xf32> to vector<16x16x64xbf16>
      %160 = vector.shape_cast %159 : vector<16x16x64xbf16> to vector<256x64xbf16>
      %c0_122 = arith.constant 0 : index
      %c0_123 = arith.constant 0 : index
      %161 = vector.load %arg10[%c0_122, %c0_123] : memref<256x576xbf16, #tpu.memory_space<vmem>>, vector<256x64xbf16>
      tpu.vector_store %arg10[%c0_122, %c0_123], %160 {strides = array<i32>} : memref<256x576xbf16, #tpu.memory_space<vmem>>, vector<256x64xbf16>,
      %c0_124 = arith.constant 0 : index
      %c1_125 = arith.constant 1 : index
      %c0_126 = arith.constant 0 : index
      %162 = vector.load %arg8[%c0_124, %c1_125, %c0_126] : memref<18x18x64xf32, #tpu.memory_space<vmem>>, vector<16x16x64xf32>
      %163 = arith.truncf %162 : vector<16x16x64xf32> to vector<16x16x64xbf16>
      %164 = vector.shape_cast %163 : vector<16x16x64xbf16> to vector<256x64xbf16>
      %c0_127 = arith.constant 0 : index
      %c64_128 = arith.constant 64 : index
      %165 = vector.load %arg10[%c0_127, %c64_128] : memref<256x576xbf16, #tpu.memory_space<vmem>>, vector<256x64xbf16>
      tpu.vector_store %arg10[%c0_127, %c64_128], %164 {strides = array<i32>} : memref<256x576xbf16, #tpu.memory_space<vmem>>, vector<256x64xbf16>,
      %c0_129 = arith.constant 0 : index
      %c2_130 = arith.constant 2 : index
      %c0_131 = arith.constant 0 : index
      %166 = vector.load %arg8[%c0_129, %c2_130, %c0_131] : memref<18x18x64xf32, #tpu.memory_space<vmem>>, vector<16x16x64xf32>
      %167 = arith.truncf %166 : vector<16x16x64xf32> to vector<16x16x64xbf16>
      %168 = vector.shape_cast %167 : vector<16x16x64xbf16> to vector<256x64xbf16>
      %c0_132 = arith.constant 0 : index
      %c128_133 = arith.constant 128 : index
      %169 = vector.load %arg10[%c0_132, %c128_133] : memref<256x576xbf16, #tpu.memory_space<vmem>>, vector<256x64xbf16>
      tpu.vector_store %arg10[%c0_132, %c128_133], %168 {strides = array<i32>} : memref<256x576xbf16, #tpu.memory_space<vmem>>, vector<256x64xbf16>,
      %c1_134 = arith.constant 1 : index
      %c0_135 = arith.constant 0 : index
      %c0_136 = arith.constant 0 : index
      %170 = vector.load %arg8[%c1_134, %c0_135, %c0_136] : memref<18x18x64xf32, #tpu.memory_space<vmem>>, vector<16x16x64xf32>
      %171 = arith.truncf %170 : vector<16x16x64xf32> to vector<16x16x64xbf16>
      %172 = vector.shape_cast %171 : vector<16x16x64xbf16> to vector<256x64xbf16>
      %c0_137 = arith.constant 0 : index
      %c192_138 = arith.constant 192 : index
      %173 = vector.load %arg10[%c0_137, %c192_138] : memref<256x576xbf16, #tpu.memory_space<vmem>>, vector<256x64xbf16>
      tpu.vector_store %arg10[%c0_137, %c192_138], %172 {strides = array<i32>} : memref<256x576xbf16, #tpu.memory_space<vmem>>, vector<256x64xbf16>,
      %c1_139 = arith.constant 1 : index
      %c1_140 = arith.constant 1 : index
      %c0_141 = arith.constant 0 : index
      %174 = vector.load %arg8[%c1_139, %c1_140, %c0_141] : memref<18x18x64xf32, #tpu.memory_space<vmem>>, vector<16x16x64xf32>
      %175 = arith.truncf %174 : vector<16x16x64xf32> to vector<16x16x64xbf16>
      %176 = vector.shape_cast %175 : vector<16x16x64xbf16> to vector<256x64xbf16>
      %c0_142 = arith.constant 0 : index
      %c256_143 = arith.constant 256 : index
      %177 = vector.load %arg10[%c0_142, %c256_143] : memref<256x576xbf16, #tpu.memory_space<vmem>>, vector<256x64xbf16>
      tpu.vector_store %arg10[%c0_142, %c256_143], %176 {strides = array<i32>} : memref<256x576xbf16, #tpu.memory_space<vmem>>, vector<256x64xbf16>,
      %c1_144 = arith.constant 1 : index
      %c2_145 = arith.constant 2 : index
      %c0_146 = arith.constant 0 : index
      %178 = vector.load %arg8[%c1_144, %c2_145, %c0_146] : memref<18x18x64xf32, #tpu.memory_space<vmem>>, vector<16x16x64xf32>
      %179 = arith.truncf %178 : vector<16x16x64xf32> to vector<16x16x64xbf16>
      %180 = vector.shape_cast %179 : vector<16x16x64xbf16> to vector<256x64xbf16>
      %c0_147 = arith.constant 0 : index
      %c320_148 = arith.constant 320 : index
      %181 = vector.load %arg10[%c0_147, %c320_148] : memref<256x576xbf16, #tpu.memory_space<vmem>>, vector<256x64xbf16>
      tpu.vector_store %arg10[%c0_147, %c320_148], %180 {strides = array<i32>} : memref<256x576xbf16, #tpu.memory_space<vmem>>, vector<256x64xbf16>,
      %c2_149 = arith.constant 2 : index
      %c0_150 = arith.constant 0 : index
      %c0_151 = arith.constant 0 : index
      %182 = vector.load %arg8[%c2_149, %c0_150, %c0_151] : memref<18x18x64xf32, #tpu.memory_space<vmem>>, vector<16x16x64xf32>
      %183 = arith.truncf %182 : vector<16x16x64xf32> to vector<16x16x64xbf16>
      %184 = vector.shape_cast %183 : vector<16x16x64xbf16> to vector<256x64xbf16>
      %c0_152 = arith.constant 0 : index
      %c384_153 = arith.constant 384 : index
      %185 = vector.load %arg10[%c0_152, %c384_153] : memref<256x576xbf16, #tpu.memory_space<vmem>>, vector<256x64xbf16>
      tpu.vector_store %arg10[%c0_152, %c384_153], %184 {strides = array<i32>} : memref<256x576xbf16, #tpu.memory_space<vmem>>, vector<256x64xbf16>,
      %c2_154 = arith.constant 2 : index
      %c1_155 = arith.constant 1 : index
      %c0_156 = arith.constant 0 : index
      %186 = vector.load %arg8[%c2_154, %c1_155, %c0_156] : memref<18x18x64xf32, #tpu.memory_space<vmem>>, vector<16x16x64xf32>
      %187 = arith.truncf %186 : vector<16x16x64xf32> to vector<16x16x64xbf16>
      %188 = vector.shape_cast %187 : vector<16x16x64xbf16> to vector<256x64xbf16>
      %c0_157 = arith.constant 0 : index
      %c448_158 = arith.constant 448 : index
      %189 = vector.load %arg10[%c0_157, %c448_158] : memref<256x576xbf16, #tpu.memory_space<vmem>>, vector<256x64xbf16>
      tpu.vector_store %arg10[%c0_157, %c448_158], %188 {strides = array<i32>} : memref<256x576xbf16, #tpu.memory_space<vmem>>, vector<256x64xbf16>,
      %c2_159 = arith.constant 2 : index
      %c2_160 = arith.constant 2 : index
      %c0_161 = arith.constant 0 : index
      %190 = vector.load %arg8[%c2_159, %c2_160, %c0_161] : memref<18x18x64xf32, #tpu.memory_space<vmem>>, vector<16x16x64xf32>
      %191 = arith.truncf %190 : vector<16x16x64xf32> to vector<16x16x64xbf16>
      %192 = vector.shape_cast %191 : vector<16x16x64xbf16> to vector<256x64xbf16>
      %c0_162 = arith.constant 0 : index
      %c512_163 = arith.constant 512 : index
      %193 = vector.load %arg10[%c0_162, %c512_163] : memref<256x576xbf16, #tpu.memory_space<vmem>>, vector<256x64xbf16>
      tpu.vector_store %arg10[%c0_162, %c512_163], %192 {strides = array<i32>} : memref<256x576xbf16, #tpu.memory_space<vmem>>, vector<256x64xbf16>,
      %c0_164 = arith.constant 0 : index
      %c0_165 = arith.constant 0 : index
      %194 = vector.load %arg10[%c0_164, %c0_165] : memref<256x576xbf16, #tpu.memory_space<vmem>>, vector<256x576xbf16>
      %cst_166 = arith.constant dense<0.000000e+00> : vector<256x64xf32>
      %195 = tpu.matmul %194, %142, %cst_166 {dimension_numbers = #tpu.dot_dimension_numbers<[1], [0], [0], [1], [0, 0, 1, 1], [], []>} : vector<256x576xbf16>, vector<576x64xbf16>, vector<256x64xf32> -> vector<256x64xf32>
      %196 = vector.broadcast %147 : vector<1x64xf32> to vector<256x64xf32>
      %197 = arith.addf %195, %196 : vector<256x64xf32>
      %cst_167 = arith.constant 0.000000e+00 : f32
      %198 = vector.broadcast %cst_167 : f32 to vector<256x64xf32>
      %199 = arith.cmpf oge, %197, %198 : vector<256x64xf32>
      %cst_168 = arith.constant 0.00999999977 : f32
      %200 = vector.broadcast %cst_168 : f32 to vector<256x64xf32>
      %201 = arith.mulf %200, %197 : vector<256x64xf32>
      %202 = arith.select %199, %197, %201 : vector<256x64xi1>, vector<256x64xf32>
      %203 = vector.shape_cast %202 : vector<256x64xf32> to vector<16x16x64xf32>
      %c1_169 = arith.constant 1 : index
      %c1_170 = arith.constant 1 : index
      %c0_171 = arith.constant 0 : index
      %204 = vector.load %arg9[%c1_169, %c1_170, %c0_171] : memref<18x18x64xf32, #tpu.memory_space<vmem>>, vector<16x16x64xf32>
      tpu.vector_store %arg9[%c1_169, %c1_170, %c0_171], %203 {strides = array<i32>} : memref<18x18x64xf32, #tpu.memory_space<vmem>>, vector<16x16x64xf32>,
      %c0_172 = arith.constant 0 : index
      %c0_173 = arith.constant 0 : index
      %c0_174 = arith.constant 0 : index
      %205 = vector.load %arg9[%c0_172, %c0_173, %c0_174] : memref<18x18x64xf32, #tpu.memory_space<vmem>>, vector<16x16x64xf32>
      %206 = arith.truncf %205 : vector<16x16x64xf32> to vector<16x16x64xbf16>
      %207 = vector.shape_cast %206 : vector<16x16x64xbf16> to vector<256x64xbf16>
      %c0_175 = arith.constant 0 : index
      %c0_176 = arith.constant 0 : index
      %208 = vector.load %arg10[%c0_175, %c0_176] : memref<256x576xbf16, #tpu.memory_space<vmem>>, vector<256x64xbf16>
      tpu.vector_store %arg10[%c0_175, %c0_176], %207 {strides = array<i32>} : memref<256x576xbf16, #tpu.memory_space<vmem>>, vector<256x64xbf16>,
      %c0_177 = arith.constant 0 : index
      %c1_178 = arith.constant 1 : index
      %c0_179 = arith.constant 0 : index
      %209 = vector.load %arg9[%c0_177, %c1_178, %c0_179] : memref<18x18x64xf32, #tpu.memory_space<vmem>>, vector<16x16x64xf32>
      %210 = arith.truncf %209 : vector<16x16x64xf32> to vector<16x16x64xbf16>
      %211 = vector.shape_cast %210 : vector<16x16x64xbf16> to vector<256x64xbf16>
      %c0_180 = arith.constant 0 : index
      %c64_181 = arith.constant 64 : index
      %212 = vector.load %arg10[%c0_180, %c64_181] : memref<256x576xbf16, #tpu.memory_space<vmem>>, vector<256x64xbf16>
      tpu.vector_store %arg10[%c0_180, %c64_181], %211 {strides = array<i32>} : memref<256x576xbf16, #tpu.memory_space<vmem>>, vector<256x64xbf16>,
      %c0_182 = arith.constant 0 : index
      %c2_183 = arith.constant 2 : index
      %c0_184 = arith.constant 0 : index
      %213 = vector.load %arg9[%c0_182, %c2_183, %c0_184] : memref<18x18x64xf32, #tpu.memory_space<vmem>>, vector<16x16x64xf32>
      %214 = arith.truncf %213 : vector<16x16x64xf32> to vector<16x16x64xbf16>
      %215 = vector.shape_cast %214 : vector<16x16x64xbf16> to vector<256x64xbf16>
      %c0_185 = arith.constant 0 : index
      %c128_186 = arith.constant 128 : index
      %216 = vector.load %arg10[%c0_185, %c128_186] : memref<256x576xbf16, #tpu.memory_space<vmem>>, vector<256x64xbf16>
      tpu.vector_store %arg10[%c0_185, %c128_186], %215 {strides = array<i32>} : memref<256x576xbf16, #tpu.memory_space<vmem>>, vector<256x64xbf16>,
      %c1_187 = arith.constant 1 : index
      %c0_188 = arith.constant 0 : index
      %c0_189 = arith.constant 0 : index
      %217 = vector.load %arg9[%c1_187, %c0_188, %c0_189] : memref<18x18x64xf32, #tpu.memory_space<vmem>>, vector<16x16x64xf32>
      %218 = arith.truncf %217 : vector<16x16x64xf32> to vector<16x16x64xbf16>
      %219 = vector.shape_cast %218 : vector<16x16x64xbf16> to vector<256x64xbf16>
      %c0_190 = arith.constant 0 : index
      %c192_191 = arith.constant 192 : index
      %220 = vector.load %arg10[%c0_190, %c192_191] : memref<256x576xbf16, #tpu.memory_space<vmem>>, vector<256x64xbf16>
      tpu.vector_store %arg10[%c0_190, %c192_191], %219 {strides = array<i32>} : memref<256x576xbf16, #tpu.memory_space<vmem>>, vector<256x64xbf16>,
      %c1_192 = arith.constant 1 : index
      %c1_193 = arith.constant 1 : index
      %c0_194 = arith.constant 0 : index
      %221 = vector.load %arg9[%c1_192, %c1_193, %c0_194] : memref<18x18x64xf32, #tpu.memory_space<vmem>>, vector<16x16x64xf32>
      %222 = arith.truncf %221 : vector<16x16x64xf32> to vector<16x16x64xbf16>
      %223 = vector.shape_cast %222 : vector<16x16x64xbf16> to vector<256x64xbf16>
      %c0_195 = arith.constant 0 : index
      %c256_196 = arith.constant 256 : index
      %224 = vector.load %arg10[%c0_195, %c256_196] : memref<256x576xbf16, #tpu.memory_space<vmem>>, vector<256x64xbf16>
      tpu.vector_store %arg10[%c0_195, %c256_196], %223 {strides = array<i32>} : memref<256x576xbf16, #tpu.memory_space<vmem>>, vector<256x64xbf16>,
      %c1_197 = arith.constant 1 : index
      %c2_198 = arith.constant 2 : index
      %c0_199 = arith.constant 0 : index
      %225 = vector.load %arg9[%c1_197, %c2_198, %c0_199] : memref<18x18x64xf32, #tpu.memory_space<vmem>>, vector<16x16x64xf32>
      %226 = arith.truncf %225 : vector<16x16x64xf32> to vector<16x16x64xbf16>
      %227 = vector.shape_cast %226 : vector<16x16x64xbf16> to vector<256x64xbf16>
      %c0_200 = arith.constant 0 : index
      %c320_201 = arith.constant 320 : index
      %228 = vector.load %arg10[%c0_200, %c320_201] : memref<256x576xbf16, #tpu.memory_space<vmem>>, vector<256x64xbf16>
      tpu.vector_store %arg10[%c0_200, %c320_201], %227 {strides = array<i32>} : memref<256x576xbf16, #tpu.memory_space<vmem>>, vector<256x64xbf16>,
      %c2_202 = arith.constant 2 : index
      %c0_203 = arith.constant 0 : index
      %c0_204 = arith.constant 0 : index
      %229 = vector.load %arg9[%c2_202, %c0_203, %c0_204] : memref<18x18x64xf32, #tpu.memory_space<vmem>>, vector<16x16x64xf32>
      %230 = arith.truncf %229 : vector<16x16x64xf32> to vector<16x16x64xbf16>
      %231 = vector.shape_cast %230 : vector<16x16x64xbf16> to vector<256x64xbf16>
      %c0_205 = arith.constant 0 : index
      %c384_206 = arith.constant 384 : index
      %232 = vector.load %arg10[%c0_205, %c384_206] : memref<256x576xbf16, #tpu.memory_space<vmem>>, vector<256x64xbf16>
      tpu.vector_store %arg10[%c0_205, %c384_206], %231 {strides = array<i32>} : memref<256x576xbf16, #tpu.memory_space<vmem>>, vector<256x64xbf16>,
      %c2_207 = arith.constant 2 : index
      %c1_208 = arith.constant 1 : index
      %c0_209 = arith.constant 0 : index
      %233 = vector.load %arg9[%c2_207, %c1_208, %c0_209] : memref<18x18x64xf32, #tpu.memory_space<vmem>>, vector<16x16x64xf32>
      %234 = arith.truncf %233 : vector<16x16x64xf32> to vector<16x16x64xbf16>
      %235 = vector.shape_cast %234 : vector<16x16x64xbf16> to vector<256x64xbf16>
      %c0_210 = arith.constant 0 : index
      %c448_211 = arith.constant 448 : index
      %236 = vector.load %arg10[%c0_210, %c448_211] : memref<256x576xbf16, #tpu.memory_space<vmem>>, vector<256x64xbf16>
      tpu.vector_store %arg10[%c0_210, %c448_211], %235 {strides = array<i32>} : memref<256x576xbf16, #tpu.memory_space<vmem>>, vector<256x64xbf16>,
      %c2_212 = arith.constant 2 : index
      %c2_213 = arith.constant 2 : index
      %c0_214 = arith.constant 0 : index
      %237 = vector.load %arg9[%c2_212, %c2_213, %c0_214] : memref<18x18x64xf32, #tpu.memory_space<vmem>>, vector<16x16x64xf32>
      %238 = arith.truncf %237 : vector<16x16x64xf32> to vector<16x16x64xbf16>
      %239 = vector.shape_cast %238 : vector<16x16x64xbf16> to vector<256x64xbf16>
      %c0_215 = arith.constant 0 : index
      %c512_216 = arith.constant 512 : index
      %240 = vector.load %arg10[%c0_215, %c512_216] : memref<256x576xbf16, #tpu.memory_space<vmem>>, vector<256x64xbf16>
      tpu.vector_store %arg10[%c0_215, %c512_216], %239 {strides = array<i32>} : memref<256x576xbf16, #tpu.memory_space<vmem>>, vector<256x64xbf16>,
      %c0_217 = arith.constant 0 : index
      %c0_218 = arith.constant 0 : index
      %241 = vector.load %arg10[%c0_217, %c0_218] : memref<256x576xbf16, #tpu.memory_space<vmem>>, vector<256x576xbf16>
      %cst_219 = arith.constant dense<0.000000e+00> : vector<256x64xf32>
      %242 = tpu.matmul %241, %152, %cst_219 {dimension_numbers = #tpu.dot_dimension_numbers<[1], [0], [0], [1], [0, 0, 1, 1], [], []>} : vector<256x576xbf16>, vector<576x64xbf16>, vector<256x64xf32> -> vector<256x64xf32>
      %243 = vector.broadcast %157 : vector<1x64xf32> to vector<256x64xf32>
      %244 = arith.addf %242, %243 : vector<256x64xf32>
      %c1_220 = arith.constant 1 : index
      %c1_221 = arith.constant 1 : index
      %c0_222 = arith.constant 0 : index
      %245 = vector.load %arg8[%c1_220, %c1_221, %c0_222] : memref<18x18x64xf32, #tpu.memory_space<vmem>>, vector<16x16x64xf32>
      %246 = vector.shape_cast %244 : vector<256x64xf32> to vector<16x16x64xf32>
      %247 = arith.addf %245, %246 : vector<16x16x64xf32>
      %c1_223 = arith.constant 1 : index
      %c1_224 = arith.constant 1 : index
      %c0_225 = arith.constant 0 : index
      %248 = vector.load %arg8[%c1_223, %c1_224, %c0_225] : memref<18x18x64xf32, #tpu.memory_space<vmem>>, vector<16x16x64xf32>
      tpu.vector_store %arg8[%c1_223, %c1_224, %c0_225], %247 {strides = array<i32>} : memref<18x18x64xf32, #tpu.memory_space<vmem>>, vector<16x16x64xf32>,
    }
    %c16_i32_62 = arith.constant 16 : i32
    %c0_63 = arith.constant 0 : index
    %c0_64 = arith.constant 0 : index
    %59 = vector.load %arg5[%c0_63, %c0_64] : memref<9x64xf32, #tpu.memory_space<vmem>>, vector<9x64xf32>
    %cst_65 = arith.constant 0.000000e+00 : f32
    %60 = vector.broadcast %cst_65 : f32 to vector<16x16x64xf32>
    %c0_66 = arith.constant 0 : index
    %c0_67 = arith.constant 0 : index
    %c0_68 = arith.constant 0 : index
    %61 = vector.load %arg8[%c0_66, %c0_67, %c0_68] : memref<18x18x64xf32, #tpu.memory_space<vmem>>, vector<16x16x64xf32>
    %62 = vector.extract_strided_slice %59 {offsets = [0, 0], sizes = [1, 64], strides = [1, 1]} : vector<9x64xf32> to vector<1x64xf32>
    %63 = vector.shape_cast %62 : vector<1x64xf32> to vector<64xf32>
    %64 = vector.shape_cast %63 : vector<64xf32> to vector<1x1x64xf32>
    %65 = vector.broadcast %64 : vector<1x1x64xf32> to vector<16x16x64xf32>
    %66 = arith.mulf %61, %65 : vector<16x16x64xf32>
    %67 = arith.addf %60, %66 : vector<16x16x64xf32>
    %c0_69 = arith.constant 0 : index
    %c1_70 = arith.constant 1 : index
    %c0_71 = arith.constant 0 : index
    %68 = vector.load %arg8[%c0_69, %c1_70, %c0_71] : memref<18x18x64xf32, #tpu.memory_space<vmem>>, vector<16x16x64xf32>
    %69 = vector.extract_strided_slice %59 {offsets = [1, 0], sizes = [1, 64], strides = [1, 1]} : vector<9x64xf32> to vector<1x64xf32>
    %70 = vector.shape_cast %69 : vector<1x64xf32> to vector<64xf32>
    %71 = vector.shape_cast %70 : vector<64xf32> to vector<1x1x64xf32>
    %72 = vector.broadcast %71 : vector<1x1x64xf32> to vector<16x16x64xf32>
    %73 = arith.mulf %68, %72 : vector<16x16x64xf32>
    %74 = arith.addf %67, %73 : vector<16x16x64xf32>
    %c0_72 = arith.constant 0 : index
    %c2_73 = arith.constant 2 : index
    %c0_74 = arith.constant 0 : index
    %75 = vector.load %arg8[%c0_72, %c2_73, %c0_74] : memref<18x18x64xf32, #tpu.memory_space<vmem>>, vector<16x16x64xf32>
    %76 = vector.extract_strided_slice %59 {offsets = [2, 0], sizes = [1, 64], strides = [1, 1]} : vector<9x64xf32> to vector<1x64xf32>
    %77 = vector.shape_cast %76 : vector<1x64xf32> to vector<64xf32>
    %78 = vector.shape_cast %77 : vector<64xf32> to vector<1x1x64xf32>
    %79 = vector.broadcast %78 : vector<1x1x64xf32> to vector<16x16x64xf32>
    %80 = arith.mulf %75, %79 : vector<16x16x64xf32>
    %81 = arith.addf %74, %80 : vector<16x16x64xf32>
    %c1_75 = arith.constant 1 : index
    %c0_76 = arith.constant 0 : index
    %c0_77 = arith.constant 0 : index
    %82 = vector.load %arg8[%c1_75, %c0_76, %c0_77] : memref<18x18x64xf32, #tpu.memory_space<vmem>>, vector<16x16x64xf32>
    %83 = vector.extract_strided_slice %59 {offsets = [3, 0], sizes = [1, 64], strides = [1, 1]} : vector<9x64xf32> to vector<1x64xf32>
    %84 = vector.shape_cast %83 : vector<1x64xf32> to vector<64xf32>
    %85 = vector.shape_cast %84 : vector<64xf32> to vector<1x1x64xf32>
    %86 = vector.broadcast %85 : vector<1x1x64xf32> to vector<16x16x64xf32>
    %87 = arith.mulf %82, %86 : vector<16x16x64xf32>
    %88 = arith.addf %81, %87 : vector<16x16x64xf32>
    %c1_78 = arith.constant 1 : index
    %c1_79 = arith.constant 1 : index
    %c0_80 = arith.constant 0 : index
    %89 = vector.load %arg8[%c1_78, %c1_79, %c0_80] : memref<18x18x64xf32, #tpu.memory_space<vmem>>, vector<16x16x64xf32>
    %90 = vector.extract_strided_slice %59 {offsets = [4, 0], sizes = [1, 64], strides = [1, 1]} : vector<9x64xf32> to vector<1x64xf32>
    %91 = vector.shape_cast %90 : vector<1x64xf32> to vector<64xf32>
    %92 = vector.shape_cast %91 : vector<64xf32> to vector<1x1x64xf32>
    %93 = vector.broadcast %92 : vector<1x1x64xf32> to vector<16x16x64xf32>
    %94 = arith.mulf %89, %93 : vector<16x16x64xf32>
    %95 = arith.addf %88, %94 : vector<16x16x64xf32>
    %c1_81 = arith.constant 1 : index
    %c2_82 = arith.constant 2 : index
    %c0_83 = arith.constant 0 : index
    %96 = vector.load %arg8[%c1_81, %c2_82, %c0_83] : memref<18x18x64xf32, #tpu.memory_space<vmem>>, vector<16x16x64xf32>
    %97 = vector.extract_strided_slice %59 {offsets = [5, 0], sizes = [1, 64], strides = [1, 1]} : vector<9x64xf32> to vector<1x64xf32>
    %98 = vector.shape_cast %97 : vector<1x64xf32> to vector<64xf32>
    %99 = vector.shape_cast %98 : vector<64xf32> to vector<1x1x64xf32>
    %100 = vector.broadcast %99 : vector<1x1x64xf32> to vector<16x16x64xf32>
    %101 = arith.mulf %96, %100 : vector<16x16x64xf32>
    %102 = arith.addf %95, %101 : vector<16x16x64xf32>
    %c2_84 = arith.constant 2 : index
    %c0_85 = arith.constant 0 : index
    %c0_86 = arith.constant 0 : index
    %103 = vector.load %arg8[%c2_84, %c0_85, %c0_86] : memref<18x18x64xf32, #tpu.memory_space<vmem>>, vector<16x16x64xf32>
    %104 = vector.extract_strided_slice %59 {offsets = [6, 0], sizes = [1, 64], strides = [1, 1]} : vector<9x64xf32> to vector<1x64xf32>
    %105 = vector.shape_cast %104 : vector<1x64xf32> to vector<64xf32>
    %106 = vector.shape_cast %105 : vector<64xf32> to vector<1x1x64xf32>
    %107 = vector.broadcast %106 : vector<1x1x64xf32> to vector<16x16x64xf32>
    %108 = arith.mulf %103, %107 : vector<16x16x64xf32>
    %109 = arith.addf %102, %108 : vector<16x16x64xf32>
    %c2_87 = arith.constant 2 : index
    %c1_88 = arith.constant 1 : index
    %c0_89 = arith.constant 0 : index
    %110 = vector.load %arg8[%c2_87, %c1_88, %c0_89] : memref<18x18x64xf32, #tpu.memory_space<vmem>>, vector<16x16x64xf32>
    %111 = vector.extract_strided_slice %59 {offsets = [7, 0], sizes = [1, 64], strides = [1, 1]} : vector<9x64xf32> to vector<1x64xf32>
    %112 = vector.shape_cast %111 : vector<1x64xf32> to vector<64xf32>
    %113 = vector.shape_cast %112 : vector<64xf32> to vector<1x1x64xf32>
    %114 = vector.broadcast %113 : vector<1x1x64xf32> to vector<16x16x64xf32>
    %115 = arith.mulf %110, %114 : vector<16x16x64xf32>
    %116 = arith.addf %109, %115 : vector<16x16x64xf32>
    %c2_90 = arith.constant 2 : index
    %c2_91 = arith.constant 2 : index
    %c0_92 = arith.constant 0 : index
    %117 = vector.load %arg8[%c2_90, %c2_91, %c0_92] : memref<18x18x64xf32, #tpu.memory_space<vmem>>, vector<16x16x64xf32>
    %118 = vector.extract_strided_slice %59 {offsets = [8, 0], sizes = [1, 64], strides = [1, 1]} : vector<9x64xf32> to vector<1x64xf32>
    %119 = vector.shape_cast %118 : vector<1x64xf32> to vector<64xf32>
    %120 = vector.shape_cast %119 : vector<64xf32> to vector<1x1x64xf32>
    %121 = vector.broadcast %120 : vector<1x1x64xf32> to vector<16x16x64xf32>
    %122 = arith.mulf %117, %121 : vector<16x16x64xf32>
    %123 = arith.addf %116, %122 : vector<16x16x64xf32>
    %cst_93 = arith.constant dense<0.000000e+00> : vector<16x16xf32>
    %124 = vector.multi_reduction <add>, %123, %cst_93 [2] : vector<16x16x64xf32> to vector<16x16xf32>
    %c0_94 = arith.constant 0 : index
    %c0_95 = arith.constant 0 : index
    %125 = memref.load %arg6[%c0_94, %c0_95] : memref<1x1xf32, #tpu.memory_space<smem>>
    %126 = vector.broadcast %125 : f32 to vector<16x16xf32>
    %127 = arith.addf %124, %126 : vector<16x16xf32>
    %c0_96 = arith.constant 0 : index
    %c0_97 = arith.constant 0 : index
    %c0_98 = arith.constant 0 : index
    %128 = vector.load %arg2[%c0_96, %c0_97, %c0_98] : memref<1x16x16xf32, #tpu.memory_space<vmem>>, vector<1x16x16xf32>
    %129 = vector.shape_cast %128 : vector<1x16x16xf32> to vector<16x16xf32>
    %130 = arith.addf %129, %127 : vector<16x16xf32>
    %cst_99 = arith.constant 0.000000e+00 : f32
    %cst_100 = arith.constant 1.000000e+00 : f32
    %131 = vector.broadcast %cst_99 : f32 to vector<16x16xf32>
    %132 = arith.maximumf %131, %130 : vector<16x16xf32>
    %133 = vector.broadcast %cst_100 : f32 to vector<16x16xf32>
    %134 = arith.minimumf %133, %132 : vector<16x16xf32>
    %c0_101 = arith.constant 0 : index
    %c0_102 = arith.constant 0 : index
    %c0_103 = arith.constant 0 : index
    %135 = vector.load %arg7[%c0_101, %c0_102, %c0_103] : memref<1x16x16xf32, #tpu.memory_space<vmem>>, vector<1x16x16xf32>
    %136 = vector.shape_cast %135 : vector<1x16x16xf32> to vector<16x16xf32>
    %137 = vector.shape_cast %134 : vector<16x16xf32> to vector<1x16x16xf32>
    tpu.vector_store %arg7[%c0_101, %c0_102, %c0_103], %137 {strides = array<i32>} : memref<1x16x16xf32, #tpu.memory_space<vmem>>, vector<1x16x16xf32>,
    return
  }
  func.func @transform_0(%arg0: i32) -> (i32, i32, i32, i32) {
    %c0_i32 = arith.constant 0 : i32
    %c0_i32_0 = arith.constant 0 : i32
    %c0_i32_1 = arith.constant 0 : i32
    %c0_i32_2 = arith.constant 0 : i32
    return %arg0, %c0_i32, %c0_i32_0, %c0_i32_1 : i32, i32, i32, i32
  }
  func.func @transform_1(%arg0: i32) -> (i32, i32, i32) {
    %c0_i32 = arith.constant 0 : i32
    %c0_i32_0 = arith.constant 0 : i32
    %c0_i32_1 = arith.constant 0 : i32
    return %arg0, %c0_i32, %c0_i32_0 : i32, i32, i32
  }
  func.func @transform_2(%arg0: i32) -> (i32, i32, i32) {
    %c0_i32 = arith.constant 0 : i32
    %c0_i32_0 = arith.constant 0 : i32
    %c0_i32_1 = arith.constant 0 : i32
    %c0_i32_2 = arith.constant 0 : i32
    return %c0_i32, %c0_i32_0, %c0_i32_1 : i32, i32, i32
  }
  func.func @transform_3(%arg0: i32) -> (i32, i32, i32) {
    %c0_i32 = arith.constant 0 : i32
    %c0_i32_0 = arith.constant 0 : i32
    %c0_i32_1 = arith.constant 0 : i32
    %c0_i32_2 = arith.constant 0 : i32
    return %c0_i32, %c0_i32_0, %c0_i32_1 : i32, i32, i32
  }
  func.func @transform_4(%arg0: i32) -> (i32, i32) {
    %c0_i32 = arith.constant 0 : i32
    %c0_i32_0 = arith.constant 0 : i32
    %c0_i32_1 = arith.constant 0 : i32
    return %c0_i32, %c0_i32_0 : i32, i32
  }
  func.func @transform_5(%arg0: i32) -> (i32, i32) {
    %c0_i32 = arith.constant 0 : i32
    %c0_i32_0 = arith.constant 0 : i32
    %c0_i32_1 = arith.constant 0 : i32
    return %c0_i32, %c0_i32_0 : i32, i32
  }
  func.func @transform_6(%arg0: i32) -> (i32, i32, i32) {
    %c0_i32 = arith.constant 0 : i32
    %c0_i32_0 = arith.constant 0 : i32
    %c0_i32_1 = arith.constant 0 : i32
    return %arg0, %c0_i32, %c0_i32_0 : i32, i32, i32
  }
}

</mosaic_0001>

<llo_original>
// kernel: network_forward.1
$region0: #{network_forward.1}
  #allocation0 [shape = 'u32[]', space=smem, size = 0x4, offset = 0x4, fixed_abs, tag = 'smem constant byte address 0x4 - core index']
  #allocation1 [shape = 'u32[72,128]{1,0:T(1,128)}', space=vmem, size = 0x9000, scoped, tag = 'internal scratch']
  #allocation2 [shape = 'f32[18,18,64]{2,1,0:T(8,128)}', space=vmem, size = 0x36000, scoped, tag = 'scratch operand']
  #allocation3 [shape = 'f32[18,18,64]{2,1,0:T(8,128)}', space=vmem, size = 0x36000, scoped, tag = 'scratch operand']
  #allocation4 [shape = 'bf16[256,576]{1,0:T(8,128)(2,1)}', space=vmem, size = 0x50000, scoped, tag = 'scratch operand']
  #allocation5 [shape = 'f32[1,1]{1,0:T(1,128)S(6)}', space=smem, size = 0x200, scoped, tag = 'scoped memory for network_forward.1']
  %s0 = inlined_call_operand.vmem [shape: f32[2,16,16,64], index: 0, kind: input, shape index: {}]
  %s1 = inlined_call_operand.vmem [shape: f32[2,16,16], index: 1, kind: input, shape index: {}]
  %s2 = inlined_call_operand.vmem [shape: bf16[33,576,64], index: 2, kind: input, shape index: {}]
  %s3 = inlined_call_operand.vmem [shape: f32[33,1,64], index: 3, kind: input, shape index: {}]
  %s4 = inlined_call_operand.vmem [shape: f32[9,64], index: 4, kind: input, shape index: {}]
  %s5 = inlined_call_operand.<no memory space> [shape: f32[1,1], index: 5, kind: input, shape index: {}]
  %s6 = inlined_call_operand.hbm [shape: f32[2,16,16], index: 6, kind: output, shape index: {}]
  %s7 = sld [smem:[#allocation0]]
  $region64: #{network_forward.1} parent=0
    _
  %s9 = ssub.s32 1, %s7
  %s10 = scalar_select 0, %s9, %s7
  %11 = sst [smem:[#allocation5]] %s5
  $region1: #{network_forward.1} parent=0
    #allocation6 [shape = 'u8[16384]{0}', space=vmem, size = 0x4000, scoped, tag = 'output window, operand 0']
    #allocation7 [shape = 's32[2]{0}', space=sflag, size = 0x8, scoped, tag = 'scoped memory for network_forward.1']
    %12 = vsyncpa [#allocation7], 0
    %s13 = scalar_lea.sflag [#allocation7], 1
    %14 = vsyncpa %s13, 0
    loop: start=0, step=1, limit=4
    $region2: #{network_forward.1} parent=1 // loop_pre_header
      _
    $region3: #{network_forward.1} parent=1 // loop_header
      %s16 = sphi 0, %s20
      %p17 = scmp.ge.s32.totalorder %s16, 4
      %s26 = sphi 0, %s28
      %s29 = sphi 0, %s26
      %s30 = sphi 0, %s29
      %s46 = sphi 0, %s30
      %s52 = sphi 0, %s54
      %s55 = sphi 0, %s52
      %s56 = sphi 0, %s55
      %s72 = sphi 0, %s56
      %s76 = sphi 0, %s76
      %s78 = sphi 0, %s76
      %s79 = sphi 0, %s78
      %s93 = sphi 0, %s79
      %s97 = sphi 0, %s97
      %s99 = sphi 0, %s97
      %s100 = sphi 0, %s99
      %s114 = sphi 0, %s100
      %s118 = sphi 0, %s118
      %s120 = sphi 0, %s118
      %s121 = sphi 0, %s120
      %s135 = sphi 0, %s121
      %s139 = sphi 0, %s139
      %s141 = sphi 0, %s139
      %s142 = sphi 0, %s141
      %s156 = sphi 0, %s142
      %s162 = sphi 0, %s164
      %s165 = sphi 0, %s162
      %s166 = sphi 0, %s165
      %s182 = sphi 0, %s166
    $region4: #{network_forward.1} parent=1 // loop_header_branch
      %19 = sbr.rel (%p17) target = $region8
    $region5: #{network_forward.1} parent=1 // loop_body
      %s21 = ssub.s32 %s16, 1
      %s22 = ssub.s32 %s16, 2
      %s23 = sadd.s32 %s16, 1
      %s24 = ssub.s32 %s16, %s23
      %p25 = scmp.eq.s32.totalorder %s24, 0
      %s27 = sadd.s32 %s26, 1
      %s28 = scalar_select %p25, %s26, %s27
      %p31 = pneg %p25
      %p32 = scmp.eq.s32.totalorder %s16, 1
      %p33 = por %p31, %p32
      %p34 = scmp.ne.s32.totalorder %s26, %s29
      %p35 = scmp.eq.s32.totalorder %s16, 0
      %p36 = por %p34, %p35
      %p37 = scmp.ne.s32.totalorder %s26, %s29
      %p38 = scmp.eq.s32.totalorder %s21, 1
      %p39 = por %p37, %p38
      %p40 = scmp.ne.s32.totalorder %s29, %s30
      %p41 = scmp.eq.s32.totalorder %s21, 0
      %p42 = por %p40, %p41
      %p43 = scmp.ne.s32.totalorder %s29, %s30
      %p44 = scmp.eq.s32.totalorder %s22, 1
      %p45 = por %p43, %p44
      %p47 = scmp.ne.s32.totalorder %s30, %s46
      %p48 = scmp.eq.s32.totalorder %s22, 0
      %p49 = por %p47, %p48
      %s50 = ssub.s32 %s16, %s23
      %p51 = scmp.eq.s32.totalorder %s50, 0
      %s53 = sadd.s32 %s52, 1
      %s54 = scalar_select %p51, %s52, %s53
      %p57 = pneg %p51
      %p58 = scmp.eq.s32.totalorder %s16, 1
      %p59 = por %p57, %p58
      %p60 = scmp.ne.s32.totalorder %s52, %s55
      %p61 = scmp.eq.s32.totalorder %s16, 0
      %p62 = por %p60, %p61
      %p63 = scmp.ne.s32.totalorder %s52, %s55
      %p64 = scmp.eq.s32.totalorder %s21, 1
      %p65 = por %p63, %p64
      %p66 = scmp.ne.s32.totalorder %s55, %s56
      %p67 = scmp.eq.s32.totalorder %s21, 0
      %p68 = por %p66, %p67
      %p69 = scmp.ne.s32.totalorder %s55, %s56
      %p70 = scmp.eq.s32.totalorder %s22, 1
      %p71 = por %p69, %p70
      %p73 = scmp.ne.s32.totalorder %s56, %s72
      %p74 = scmp.eq.s32.totalorder %s22, 0
      %p75 = por %p73, %p74
      %s77 = sadd.s32 %s76, 1
      %p80 = scmp.eq.s32.totalorder %s16, 1
      %p81 = scmp.ne.s32.totalorder %s76, %s78
      %p82 = scmp.eq.s32.totalorder %s16, 0
      %p83 = por %p81, %p82
      %p84 = scmp.ne.s32.totalorder %s76, %s78
      %p85 = scmp.eq.s32.totalorder %s21, 1
      %p86 = por %p84, %p85
      %p87 = scmp.ne.s32.totalorder %s78, %s79
      %p88 = scmp.eq.s32.totalorder %s21, 0
      %p89 = por %p87, %p88
      %p90 = scmp.ne.s32.totalorder %s78, %s79
      %p91 = scmp.eq.s32.totalorder %s22, 1
      %p92 = por %p90, %p91
      %p94 = scmp.ne.s32.totalorder %s79, %s93
      %p95 = scmp.eq.s32.totalorder %s22, 0
      %p96 = por %p94, %p95
      %s98 = sadd.s32 %s97, 1
      %p101 = scmp.eq.s32.totalorder %s16, 1
      %p102 = scmp.ne.s32.totalorder %s97, %s99
      %p103 = scmp.eq.s32.totalorder %s16, 0
      %p104 = por %p102, %p103
      %p105 = scmp.ne.s32.totalorder %s97, %s99
      %p106 = scmp.eq.s32.totalorder %s21, 1
      %p107 = por %p105, %p106
      %p108 = scmp.ne.s32.totalorder %s99, %s100
      %p109 = scmp.eq.s32.totalorder %s21, 0
      %p110 = por %p108, %p109
      %p111 = scmp.ne.s32.totalorder %s99, %s100
      %p112 = scmp.eq.s32.totalorder %s22, 1
      %p113 = por %p111, %p112
      %p115 = scmp.ne.s32.totalorder %s100, %s114
      %p116 = scmp.eq.s32.totalorder %s22, 0
      %p117 = por %p115, %p116
      %s119 = sadd.s32 %s118, 1
      %p122 = scmp.eq.s32.totalorder %s16, 1
      %p123 = scmp.ne.s32.totalorder %s118, %s120
      %p124 = scmp.eq.s32.totalorder %s16, 0
      %p125 = por %p123, %p124
      %p126 = scmp.ne.s32.totalorder %s118, %s120
      %p127 = scmp.eq.s32.totalorder %s21, 1
      %p128 = por %p126, %p127
      %p129 = scmp.ne.s32.totalorder %s120, %s121
      %p130 = scmp.eq.s32.totalorder %s21, 0
      %p131 = por %p129, %p130
      %p132 = scmp.ne.s32.totalorder %s120, %s121
      %p133 = scmp.eq.s32.totalorder %s22, 1
      %p134 = por %p132, %p133
      %p136 = scmp.ne.s32.totalorder %s121, %s135
      %p137 = scmp.eq.s32.totalorder %s22, 0
      %p138 = por %p136, %p137
      %s140 = sadd.s32 %s139, 1
      %p143 = scmp.eq.s32.totalorder %s16, 1
      %p144 = scmp.ne.s32.totalorder %s139, %s141
      %p145 = scmp.eq.s32.totalorder %s16, 0
      %p146 = por %p144, %p145
      %p147 = scmp.ne.s32.totalorder %s139, %s141
      %p148 = scmp.eq.s32.totalorder %s21, 1
      %p149 = por %p147, %p148
      %p150 = scmp.ne.s32.totalorder %s141, %s142
      %p151 = scmp.eq.s32.totalorder %s21, 0
      %p152 = por %p150, %p151
      %p153 = scmp.ne.s32.totalorder %s141, %s142
      %p154 = scmp.eq.s32.totalorder %s22, 1
      %p155 = por %p153, %p154
      %p157 = scmp.ne.s32.totalorder %s142, %s156
      %p158 = scmp.eq.s32.totalorder %s22, 0
      %p159 = por %p157, %p158
      %s160 = ssub.s32 %s16, %s23
      %p161 = scmp.eq.s32.totalorder %s160, 0
      %s163 = sadd.s32 %s162, 1
      %s164 = scalar_select %p161, %s162, %s163
      %p167 = pneg %p161
      %p168 = scmp.eq.s32.totalorder %s16, 1
      %p169 = por %p167, %p168
      %p170 = scmp.ne.s32.totalorder %s162, %s165
      %p171 = scmp.eq.s32.totalorder %s16, 0
      %p172 = por %p170, %p171
      %p173 = scmp.ne.s32.totalorder %s162, %s165
      %p174 = scmp.eq.s32.totalorder %s21, 1
      %p175 = por %p173, %p174
      %p176 = scmp.ne.s32.totalorder %s165, %s166
      %p177 = scmp.eq.s32.totalorder %s21, 0
      %p178 = por %p176, %p177
      %p179 = scmp.ne.s32.totalorder %s165, %s166
      %p180 = scmp.eq.s32.totalorder %s22, 1
      %p181 = por %p179, %p180
      %p183 = scmp.ne.s32.totalorder %s166, %s182
      %p184 = scmp.eq.s32.totalorder %s22, 0
      %p185 = por %p183, %p184
      %p186 = scmp.le.s32.totalorder 1, %s16
      %p187 = scmp.lt.s32.totalorder %s16, 3
      %p188 = pnand %p186, %p187
      %p189 = pneg %p188
      // Predicated region
      $region9: #{network_forward.1} parent=5 // pred_check
        _
      $region10: #{network_forward.1} parent=5 // pred_check_branch
        %191 = sbr.rel (%p188) target = $region12
      $region11: #{network_forward.1} parent=5 // pred_region
        %s192 = ssub.s32 %s16, 1
        // Predicated region
        $region13: #{network_forward.1} parent=11 // pred_check
          %p193 = pneg %p89
        $region14: #{network_forward.1} parent=11 // pred_check_branch
          %195 = sbr.rel (%p193) target = $region16
        $region15: #{network_forward.1} parent=11 // pred_region
          _
        $region16: #{network_forward.1} parent=11 // pred_fallthru
          _
        // Predicated region
        $region17: #{network_forward.1} parent=11 // pred_check
          %p196 = pneg %p110
        $region18: #{network_forward.1} parent=11 // pred_check_branch
          %198 = sbr.rel (%p196) target = $region20
        $region19: #{network_forward.1} parent=11 // pred_region
          _
        $region20: #{network_forward.1} parent=11 // pred_fallthru
          _
        // Predicated region
        $region21: #{network_forward.1} parent=11 // pred_check
          %p199 = pneg %p131
        $region22: #{network_forward.1} parent=11 // pred_check_branch
          %201 = sbr.rel (%p199) target = $region24
        $region23: #{network_forward.1} parent=11 // pred_region
          _
        $region24: #{network_forward.1} parent=11 // pred_fallthru
          _
        // Predicated region
        $region25: #{network_forward.1} parent=11 // pred_check
          %p202 = pneg %p152
        $region26: #{network_forward.1} parent=11 // pred_check_branch
          %204 = sbr.rel (%p202) target = $region28
        $region27: #{network_forward.1} parent=11 // pred_region
          _
        $region28: #{network_forward.1} parent=11 // pred_fallthru
          _
      $region12: #{network_forward.1} parent=5 // pred_fallthru
        _
      %p205 = scmp.lt.s32.totalorder %s16, 2
      // Predicated region
      $region29: #{network_forward.1} parent=5 // pred_check
        %p206 = pneg %p205
      $region30: #{network_forward.1} parent=5 // pred_check_branch
        %208 = sbr.rel (%p206) target = $region32
      $region31: #{network_forward.1} parent=5 // pred_region
        // Predicated region
        $region33: #{network_forward.1} parent=31 // pred_check
          %p209 = pneg %p36
        $region34: #{network_forward.1} parent=31 // pred_check_branch
          %211 = sbr.rel (%p209) target = $region36
        $region35: #{network_forward.1} parent=31 // pred_region
          %p212 = scmp.lt.s32.totalorder %s16, 1
          %s213 = scalar_select %p212, %s16, 1
          %s214 = smul.addr %s213, 32
          %s215 = smul.addr %s214, 8
          %s216 = scalar_lea.vmem %s0, %s215
        $region36: #{network_forward.1} parent=31 // pred_fallthru
          _
        // Predicated region
        $region37: #{network_forward.1} parent=31 // pred_check
          %p217 = pneg %p62
        $region38: #{network_forward.1} parent=31 // pred_check_branch
          %219 = sbr.rel (%p217) target = $region40
        $region39: #{network_forward.1} parent=31 // pred_region
          %p220 = scmp.lt.s32.totalorder %s16, 1
          %s221 = scalar_select %p220, %s16, 1
          %s222 = smul.addr %s221, 2
          %s223 = smul.addr %s222, 8
          %s224 = scalar_lea.vmem %s1, %s223
        $region40: #{network_forward.1} parent=31 // pred_fallthru
          _
      $region32: #{network_forward.1} parent=5 // pred_fallthru
        _
      %p225 = scmp.le.s32.totalorder 1, %s16
      %p226 = scmp.lt.s32.totalorder %s16, 3
      %p227 = pnand %p225, %p226
      %p228 = pneg %p227
      // Predicated region
      $region41: #{network_forward.1} parent=5 // pred_check
        _
      $region42: #{network_forward.1} parent=5 // pred_check_branch
        %230 = sbr.rel (%p227) target = $region44
      $region43: #{network_forward.1} parent=5 // pred_region
        %s231 = ssub.s32 %s16, 1
        %p232 = scmp.lt.s32.totalorder %s21, 1
        %s233 = scalar_select %p232, %s21, 1
        %s234 = smul.addr %s233, 32
        %s235 = smul.addr %s234, 8
        %s236 = scalar_lea.vmem %s0, %s235
        %p237 = pneg %p42
        %p238 = pneg %p39
        %p239 = scmp.lt.s32.totalorder %s21, 1
        %s240 = scalar_select %p239, %s21, 1
        %s241 = smul.addr %s240, 2
        %s242 = smul.addr %s241, 8
        %s243 = scalar_lea.vmem %s1, %s242
        %p244 = pneg %p68
        %p245 = pneg %p65
        %p246 = pneg %p89
        %p247 = pneg %p86
        %p248 = pneg %p110
        %p249 = pneg %p107
        %p250 = pneg %p131
        %p251 = pneg %p128
        %p252 = pneg %p152
        %p253 = pneg %p149
        %p254 = pneg %p178
        %p255 = pneg %p175
        %s256 = sand.u32 %s165, 1
        %s257 = scalar_lea.sflag [#allocation7], %s256
        %s258 = sand.u32 %s165, 1
        %s259 = smul.addr %s258, 16
        %s260 = scalar_lea.vmem [#allocation6], %s259
        %p261 = scmp.lt.s32.totalorder %s21, 1
        %s262 = scalar_select %p261, %s21, 1
        %s263 = smul.addr %s262, 32
        %s264 = smul.addr %s263, 8
        %s265 = scalar_lea.vmem %s0, %s264
        %p266 = scmp.lt.s32.totalorder %s21, 1
        %s267 = scalar_select %p266, %s21, 1
        %s268 = smul.addr %s267, 2
        %s269 = smul.addr %s268, 8
        %s270 = scalar_lea.vmem %s1, %s269
        %vm272 = vcmask 523264
        %273 = vst.msk [vmem:[#allocation2] sm:$0xff] %vm272, 0.0
        %274 = vst.msk [vmem:[#allocation2 + $0x8] sm:$0xff] %vm272, 0.0
        %vm275 = vcmask 517120
        %276 = vst.msk [vmem:[#allocation2 + $0x10] sm:$0x3] %vm275, 0.0
        %277 = vst.msk [vmem:[#allocation2 + $0x18] sm:$0xff] %vm272, 0.0
        %278 = vst.msk [vmem:[#allocation2 + $0x20] sm:$0xff] %vm272, 0.0
        %279 = vst.msk [vmem:[#allocation2 + $0x28] sm:$0x3] %vm275, 0.0
        %280 = vst.msk [vmem:[#allocation2 + $0x30] sm:$0xff] %vm272, 0.0
        %281 = vst.msk [vmem:[#allocation2 + $0x38] sm:$0xff] %vm272, 0.0
        %282 = vst.msk [vmem:[#allocation2 + $0x40] sm:$0x3] %vm275, 0.0
        %283 = vst.msk [vmem:[#allocation2 + $0x48] sm:$0xff] %vm272, 0.0
        %284 = vst.msk [vmem:[#allocation2 + $0x50] sm:$0xff] %vm272, 0.0
        %285 = vst.msk [vmem:[#allocation2 + $0x58] sm:$0x3] %vm275, 0.0
        %286 = vst.msk [vmem:[#allocation2 + $0x60] sm:$0xff] %vm272, 0.0
        %287 = vst.msk [vmem:[#allocation2 + $0x68] sm:$0xff] %vm272, 0.0
        %288 = vst.msk [vmem:[#allocation2 + $0x70] sm:$0x3] %vm275, 0.0
        %289 = vst.msk [vmem:[#allocation2 + $0x78] sm:$0xff] %vm272, 0.0
        %290 = vst.msk [vmem:[#allocation2 + $0x80] sm:$0xff] %vm272, 0.0
        %291 = vst.msk [vmem:[#allocation2 + $0x88] sm:$0x3] %vm275, 0.0
        %292 = vst.msk [vmem:[#allocation2 + $0x90] sm:$0xff] %vm272, 0.0
        %293 = vst.msk [vmem:[#allocation2 + $0x98] sm:$0xff] %vm272, 0.0
        %294 = vst.msk [vmem:[#allocation2 + $0xa0] sm:$0x3] %vm275, 0.0
        %295 = vst.msk [vmem:[#allocation2 + $0xa8] sm:$0xff] %vm272, 0.0
        %296 = vst.msk [vmem:[#allocation2 + $0xb0] sm:$0xff] %vm272, 0.0
        %297 = vst.msk [vmem:[#allocation2 + $0xb8] sm:$0x3] %vm275, 0.0
        %298 = vst.msk [vmem:[#allocation2 + $0xc0] sm:$0xff] %vm272, 0.0
        %299 = vst.msk [vmem:[#allocation2 + $0xc8] sm:$0xff] %vm272, 0.0
        %300 = vst.msk [vmem:[#allocation2 + $0xd0] sm:$0x3] %vm275, 0.0
        %301 = vst.msk [vmem:[#allocation2 + $0xd8] sm:$0xff] %vm272, 0.0
        %302 = vst.msk [vmem:[#allocation2 + $0xe0] sm:$0xff] %vm272, 0.0
        %303 = vst.msk [vmem:[#allocation2 + $0xe8] sm:$0x3] %vm275, 0.0
        %304 = vst.msk [vmem:[#allocation2 + $0xf0] sm:$0xff] %vm272, 0.0
        %305 = vst.msk [vmem:[#allocation2 + $0xf8] sm:$0xff] %vm272, 0.0
        %306 = vst.msk [vmem:[#allocation2 + $0x100] sm:$0x3] %vm275, 0.0
        %307 = vst.msk [vmem:[#allocation2 + $0x108] sm:$0xff] %vm272, 0.0
        %308 = vst.msk [vmem:[#allocation2 + $0x110] sm:$0xff] %vm272, 0.0
        %309 = vst.msk [vmem:[#allocation2 + $0x118] sm:$0x3] %vm275, 0.0
        %310 = vst.msk [vmem:[#allocation2 + $0x120] sm:$0xff] %vm272, 0.0
        %311 = vst.msk [vmem:[#allocation2 + $0x128] sm:$0xff] %vm272, 0.0
        %312 = vst.msk [vmem:[#allocation2 + $0x130] sm:$0x3] %vm275, 0.0
        %313 = vst.msk [vmem:[#allocation2 + $0x138] sm:$0xff] %vm272, 0.0
        %314 = vst.msk [vmem:[#allocation2 + $0x140] sm:$0xff] %vm272, 0.0
        %315 = vst.msk [vmem:[#allocation2 + $0x148] sm:$0x3] %vm275, 0.0
        %316 = vst.msk [vmem:[#allocation2 + $0x150] sm:$0xff] %vm272, 0.0
        %317 = vst.msk [vmem:[#allocation2 + $0x158] sm:$0xff] %vm272, 0.0
        %318 = vst.msk [vmem:[#allocation2 + $0x160] sm:$0x3] %vm275, 0.0
        %319 = vst.msk [vmem:[#allocation2 + $0x168] sm:$0xff] %vm272, 0.0
        %320 = vst.msk [vmem:[#allocation2 + $0x170] sm:$0xff] %vm272, 0.0
        %321 = vst.msk [vmem:[#allocation2 + $0x178] sm:$0x3] %vm275, 0.0
        %322 = vst.msk [vmem:[#allocation2 + $0x180] sm:$0xff] %vm272, 0.0
        %323 = vst.msk [vmem:[#allocation2 + $0x188] sm:$0xff] %vm272, 0.0
        %324 = vst.msk [vmem:[#allocation2 + $0x190] sm:$0x3] %vm275, 0.0
        %325 = vst.msk [vmem:[#allocation2 + $0x198] sm:$0xff] %vm272, 0.0
        %326 = vst.msk [vmem:[#allocation2 + $0x1a0] sm:$0xff] %vm272, 0.0
        %327 = vst.msk [vmem:[#allocation2 + $0x1a8] sm:$0x3] %vm275, 0.0
        %328 = vst.msk [vmem:[#allocation3] sm:$0xff] %vm272, 0.0
        %329 = vst.msk [vmem:[#allocation3 + $0x8] sm:$0xff] %vm272, 0.0
        %330 = vst.msk [vmem:[#allocation3 + $0x10] sm:$0x3] %vm275, 0.0
        %331 = vst.msk [vmem:[#allocation3 + $0x18] sm:$0xff] %vm272, 0.0
        %332 = vst.msk [vmem:[#allocation3 + $0x20] sm:$0xff] %vm272, 0.0
        %333 = vst.msk [vmem:[#allocation3 + $0x28] sm:$0x3] %vm275, 0.0
        %334 = vst.msk [vmem:[#allocation3 + $0x30] sm:$0xff] %vm272, 0.0
        %335 = vst.msk [vmem:[#allocation3 + $0x38] sm:$0xff] %vm272, 0.0
        %336 = vst.msk [vmem:[#allocation3 + $0x40] sm:$0x3] %vm275, 0.0
        %337 = vst.msk [vmem:[#allocation3 + $0x48] sm:$0xff] %vm272, 0.0
        %338 = vst.msk [vmem:[#allocation3 + $0x50] sm:$0xff] %vm272, 0.0
        %339 = vst.msk [vmem:[#allocation3 + $0x58] sm:$0x3] %vm275, 0.0
        %340 = vst.msk [vmem:[#allocation3 + $0x60] sm:$0xff] %vm272, 0.0
        %341 = vst.msk [vmem:[#allocation3 + $0x68] sm:$0xff] %vm272, 0.0
        %342 = vst.msk [vmem:[#allocation3 + $0x70] sm:$0x3] %vm275, 0.0
        %343 = vst.msk [vmem:[#allocation3 + $0x78] sm:$0xff] %vm272, 0.0
        %344 = vst.msk [vmem:[#allocation3 + $0x80] sm:$0xff] %vm272, 0.0
        %345 = vst.msk [vmem:[#allocation3 + $0x88] sm:$0x3] %vm275, 0.0
        %346 = vst.msk [vmem:[#allocation3 + $0x90] sm:$0xff] %vm272, 0.0
        %347 = vst.msk [vmem:[#allocation3 + $0x98] sm:$0xff] %vm272, 0.0
        %348 = vst.msk [vmem:[#allocation3 + $0xa0] sm:$0x3] %vm275, 0.0
        %349 = vst.msk [vmem:[#allocation3 + $0xa8] sm:$0xff] %vm272, 0.0
        %350 = vst.msk [vmem:[#allocation3 + $0xb0] sm:$0xff] %vm272, 0.0
        %351 = vst.msk [vmem:[#allocation3 + $0xb8] sm:$0x3] %vm275, 0.0
        %352 = vst.msk [vmem:[#allocation3 + $0xc0] sm:$0xff] %vm272, 0.0
        %353 = vst.msk [vmem:[#allocation3 + $0xc8] sm:$0xff] %vm272, 0.0
        %354 = vst.msk [vmem:[#allocation3 + $0xd0] sm:$0x3] %vm275, 0.0
        %355 = vst.msk [vmem:[#allocation3 + $0xd8] sm:$0xff] %vm272, 0.0
        %356 = vst.msk [vmem:[#allocation3 + $0xe0] sm:$0xff] %vm272, 0.0
        %357 = vst.msk [vmem:[#allocation3 + $0xe8] sm:$0x3] %vm275, 0.0
        %358 = vst.msk [vmem:[#allocation3 + $0xf0] sm:$0xff] %vm272, 0.0
        %359 = vst.msk [vmem:[#allocation3 + $0xf8] sm:$0xff] %vm272, 0.0
        %360 = vst.msk [vmem:[#allocation3 + $0x100] sm:$0x3] %vm275, 0.0
        %361 = vst.msk [vmem:[#allocation3 + $0x108] sm:$0xff] %vm272, 0.0
        %362 = vst.msk [vmem:[#allocation3 + $0x110] sm:$0xff] %vm272, 0.0
        %363 = vst.msk [vmem:[#allocation3 + $0x118] sm:$0x3] %vm275, 0.0
        %364 = vst.msk [vmem:[#allocation3 + $0x120] sm:$0xff] %vm272, 0.0
        %365 = vst.msk [vmem:[#allocation3 + $0x128] sm:$0xff] %vm272, 0.0
        %366 = vst.msk [vmem:[#allocation3 + $0x130] sm:$0x3] %vm275, 0.0
        %367 = vst.msk [vmem:[#allocation3 + $0x138] sm:$0xff] %vm272, 0.0
        %368 = vst.msk [vmem:[#allocation3 + $0x140] sm:$0xff] %vm272, 0.0
        %369 = vst.msk [vmem:[#allocation3 + $0x148] sm:$0x3] %vm275, 0.0
        %370 = vst.msk [vmem:[#allocation3 + $0x150] sm:$0xff] %vm272, 0.0
        %371 = vst.msk [vmem:[#allocation3 + $0x158] sm:$0xff] %vm272, 0.0
        %372 = vst.msk [vmem:[#allocation3 + $0x160] sm:$0x3] %vm275, 0.0
        %373 = vst.msk [vmem:[#allocation3 + $0x168] sm:$0xff] %vm272, 0.0
        %374 = vst.msk [vmem:[#allocation3 + $0x170] sm:$0xff] %vm272, 0.0
        %375 = vst.msk [vmem:[#allocation3 + $0x178] sm:$0x3] %vm275, 0.0
        %376 = vst.msk [vmem:[#allocation3 + $0x180] sm:$0xff] %vm272, 0.0
        %377 = vst.msk [vmem:[#allocation3 + $0x188] sm:$0xff] %vm272, 0.0
        %378 = vst.msk [vmem:[#allocation3 + $0x190] sm:$0x3] %vm275, 0.0
        %379 = vst.msk [vmem:[#allocation3 + $0x198] sm:$0xff] %vm272, 0.0
        %380 = vst.msk [vmem:[#allocation3 + $0x1a0] sm:$0xff] %vm272, 0.0
        %381 = vst.msk [vmem:[#allocation3 + $0x1a8] sm:$0x3] %vm275, 0.0
        %v382 = vld [vmem:[%s265] sm:$0xff]
        %v383 = vld [vmem:[%s265 + $0x8] sm:$0xff]
        %v384 = vld [vmem:[%s265 + $0x10] sm:$0xff]
        %v385 = vld [vmem:[%s265 + $0x18] sm:$0xff]
        %v386 = vld [vmem:[%s265 + $0x20] sm:$0xff]
        %v387 = vld [vmem:[%s265 + $0x28] sm:$0xff]
        %v388 = vld [vmem:[%s265 + $0x30] sm:$0xff]
        %v389 = vld [vmem:[%s265 + $0x38] sm:$0xff]
        %v390 = vld [vmem:[%s265 + $0x40] sm:$0xff]
        %v391 = vld [vmem:[%s265 + $0x48] sm:$0xff]
        %v392 = vld [vmem:[%s265 + $0x50] sm:$0xff]
        %v393 = vld [vmem:[%s265 + $0x58] sm:$0xff]
        %v394 = vld [vmem:[%s265 + $0x60] sm:$0xff]
        %v395 = vld [vmem:[%s265 + $0x68] sm:$0xff]
        %v396 = vld [vmem:[%s265 + $0x70] sm:$0xff]
        %v397 = vld [vmem:[%s265 + $0x78] sm:$0xff]
        %v398 = vld [vmem:[%s265 + $0x80] sm:$0xff]
        %v399 = vld [vmem:[%s265 + $0x88] sm:$0xff]
        %v400 = vld [vmem:[%s265 + $0x90] sm:$0xff]
        %v401 = vld [vmem:[%s265 + $0x98] sm:$0xff]
        %v402 = vld [vmem:[%s265 + $0xa0] sm:$0xff]
        %v403 = vld [vmem:[%s265 + $0xa8] sm:$0xff]
        %v404 = vld [vmem:[%s265 + $0xb0] sm:$0xff]
        %v405 = vld [vmem:[%s265 + $0xb8] sm:$0xff]
        %v406 = vld [vmem:[%s265 + $0xc0] sm:$0xff]
        %v407 = vld [vmem:[%s265 + $0xc8] sm:$0xff]
        %v408 = vld [vmem:[%s265 + $0xd0] sm:$0xff]
        %v409 = vld [vmem:[%s265 + $0xd8] sm:$0xff]
        %v410 = vld [vmem:[%s265 + $0xe0] sm:$0xff]
        %v411 = vld [vmem:[%s265 + $0xe8] sm:$0xff]
        %v412 = vld [vmem:[%s265 + $0xf0] sm:$0xff]
        %v413 = vld [vmem:[%s265 + $0xf8] sm:$0xff]
        %s414 = scalar_lea.vmem [#allocation2], 24
        %415 = vst.msk [vmem:[%s414 + $0x1] sm:$0xff] %vm272, %v382
        %416 = vst.msk [vmem:[%s414 + $0x9] sm:$0xff] %vm272, %v383
        %417 = vst.msk [vmem:[%s414 + $0x19] sm:$0xff] %vm272, %v384
        %418 = vst.msk [vmem:[%s414 + $0x21] sm:$0xff] %vm272, %v385
        %419 = vst.msk [vmem:[%s414 + $0x31] sm:$0xff] %vm272, %v386
        %420 = vst.msk [vmem:[%s414 + $0x39] sm:$0xff] %vm272, %v387
        %421 = vst.msk [vmem:[%s414 + $0x49] sm:$0xff] %vm272, %v388
        %422 = vst.msk [vmem:[%s414 + $0x51] sm:$0xff] %vm272, %v389
        %423 = vst.msk [vmem:[%s414 + $0x61] sm:$0xff] %vm272, %v390
        %424 = vst.msk [vmem:[%s414 + $0x69] sm:$0xff] %vm272, %v391
        %425 = vst.msk [vmem:[%s414 + $0x79] sm:$0xff] %vm272, %v392
        %426 = vst.msk [vmem:[%s414 + $0x81] sm:$0xff] %vm272, %v393
        %427 = vst.msk [vmem:[%s414 + $0x91] sm:$0xff] %vm272, %v394
        %428 = vst.msk [vmem:[%s414 + $0x99] sm:$0xff] %vm272, %v395
        %429 = vst.msk [vmem:[%s414 + $0xa9] sm:$0xff] %vm272, %v396
        %430 = vst.msk [vmem:[%s414 + $0xb1] sm:$0xff] %vm272, %v397
        %431 = vst.msk [vmem:[%s414 + $0xc1] sm:$0xff] %vm272, %v398
        %432 = vst.msk [vmem:[%s414 + $0xc9] sm:$0xff] %vm272, %v399
        %433 = vst.msk [vmem:[%s414 + $0xd9] sm:$0xff] %vm272, %v400
        %434 = vst.msk [vmem:[%s414 + $0xe1] sm:$0xff] %vm272, %v401
        %435 = vst.msk [vmem:[%s414 + $0xf1] sm:$0xff] %vm272, %v402
        %436 = vst.msk [vmem:[%s414 + $0xf9] sm:$0xff] %vm272, %v403
        %437 = vst.msk [vmem:[%s414 + $0x109] sm:$0xff] %vm272, %v404
        %438 = vst.msk [vmem:[%s414 + $0x111] sm:$0xff] %vm272, %v405
        %439 = vst.msk [vmem:[%s414 + $0x121] sm:$0xff] %vm272, %v406
        %440 = vst.msk [vmem:[%s414 + $0x129] sm:$0xff] %vm272, %v407
        %441 = vst.msk [vmem:[%s414 + $0x139] sm:$0xff] %vm272, %v408
        %442 = vst.msk [vmem:[%s414 + $0x141] sm:$0xff] %vm272, %v409
        %443 = vst.msk [vmem:[%s414 + $0x151] sm:$0xff] %vm272, %v410
        %444 = vst.msk [vmem:[%s414 + $0x159] sm:$0xff] %vm272, %v411
        %445 = vst.msk [vmem:[%s414 + $0x169] sm:$0xff] %vm272, %v412
        %446 = vst.msk [vmem:[%s414 + $0x171] sm:$0xff] %vm272, %v413
        %v447 = vld [vmem:[%s2] sm:$0xf]
        %v448 = vld [vmem:[%s2 + $0x4] sm:$0xf]
        %v449 = vld [vmem:[%s2 + $0x8] sm:$0xf]
        %v450 = vld [vmem:[%s2 + $0xc] sm:$0xf]
        %v451 = vld [vmem:[%s2 + $0x10] sm:$0xf]
        %v452 = vld [vmem:[%s2 + $0x14] sm:$0xf]
        %v453 = vld [vmem:[%s2 + $0x18] sm:$0xf]
        %v454 = vld [vmem:[%s2 + $0x1c] sm:$0xf]
        %v455 = vld [vmem:[%s2 + $0x20] sm:$0xf]
        %v456 = vld [vmem:[%s2 + $0x24] sm:$0xf]
        %v457 = vld [vmem:[%s2 + $0x28] sm:$0xf]
        %v458 = vld [vmem:[%s2 + $0x2c] sm:$0xf]
        %v459 = vld [vmem:[%s2 + $0x30] sm:$0xf]
        %v460 = vld [vmem:[%s2 + $0x34] sm:$0xf]
        %v461 = vld [vmem:[%s2 + $0x38] sm:$0xf]
        %v462 = vld [vmem:[%s2 + $0x3c] sm:$0xf]
        %v463 = vld [vmem:[%s2 + $0x40] sm:$0xf]
        %v464 = vld [vmem:[%s2 + $0x44] sm:$0xf]
        %v465 = vld [vmem:[%s2 + $0x48] sm:$0xf]
        %v466 = vld [vmem:[%s2 + $0x4c] sm:$0xf]
        %v467 = vld [vmem:[%s2 + $0x50] sm:$0xf]
        %v468 = vld [vmem:[%s2 + $0x54] sm:$0xf]
        %v469 = vld [vmem:[%s2 + $0x58] sm:$0xf]
        %v470 = vld [vmem:[%s2 + $0x5c] sm:$0xf]
        %v471 = vld [vmem:[%s2 + $0x60] sm:$0xf]
        %v472 = vld [vmem:[%s2 + $0x64] sm:$0xf]
        %v473 = vld [vmem:[%s2 + $0x68] sm:$0xf]
        %v474 = vld [vmem:[%s2 + $0x6c] sm:$0xf]
        %v475 = vld [vmem:[%s2 + $0x70] sm:$0xf]
        %v476 = vld [vmem:[%s2 + $0x74] sm:$0xf]
        %v477 = vld [vmem:[%s2 + $0x78] sm:$0xf]
        %v478 = vld [vmem:[%s2 + $0x7c] sm:$0xf]
        %v479 = vld [vmem:[%s2 + $0x80] sm:$0xf]
        %v480 = vld [vmem:[%s2 + $0x84] sm:$0xf]
        %v481 = vld [vmem:[%s2 + $0x88] sm:$0xf]
        %v482 = vld [vmem:[%s2 + $0x8c] sm:$0xf]
        %v483 = vld [vmem:[%s2 + $0x90] sm:$0xf]
        %v484 = vld [vmem:[%s2 + $0x94] sm:$0xf]
        %v485 = vld [vmem:[%s2 + $0x98] sm:$0xf]
        %v486 = vld [vmem:[%s2 + $0x9c] sm:$0xf]
        %v487 = vld [vmem:[%s2 + $0xa0] sm:$0xf]
        %v488 = vld [vmem:[%s2 + $0xa4] sm:$0xf]
        %v489 = vld [vmem:[%s2 + $0xa8] sm:$0xf]
        %v490 = vld [vmem:[%s2 + $0xac] sm:$0xf]
        %v491 = vld [vmem:[%s2 + $0xb0] sm:$0xf]
        %v492 = vld [vmem:[%s2 + $0xb4] sm:$0xf]
        %v493 = vld [vmem:[%s2 + $0xb8] sm:$0xf]
        %v494 = vld [vmem:[%s2 + $0xbc] sm:$0xf]
        %v495 = vld [vmem:[%s2 + $0xc0] sm:$0xf]
        %v496 = vld [vmem:[%s2 + $0xc4] sm:$0xf]
        %v497 = vld [vmem:[%s2 + $0xc8] sm:$0xf]
        %v498 = vld [vmem:[%s2 + $0xcc] sm:$0xf]
        %v499 = vld [vmem:[%s2 + $0xd0] sm:$0xf]
        %v500 = vld [vmem:[%s2 + $0xd4] sm:$0xf]
        %v501 = vld [vmem:[%s2 + $0xd8] sm:$0xf]
        %v502 = vld [vmem:[%s2 + $0xdc] sm:$0xf]
        %v503 = vld [vmem:[%s2 + $0xe0] sm:$0xf]
        %v504 = vld [vmem:[%s2 + $0xe4] sm:$0xf]
        %v505 = vld [vmem:[%s2 + $0xe8] sm:$0xf]
        %v506 = vld [vmem:[%s2 + $0xec] sm:$0xf]
        %v507 = vld [vmem:[%s2 + $0xf0] sm:$0xf]
        %v508 = vld [vmem:[%s2 + $0xf4] sm:$0xf]
        %v509 = vld [vmem:[%s2 + $0xf8] sm:$0xf]
        %v510 = vld [vmem:[%s2 + $0xfc] sm:$0xf]
        %v511 = vld [vmem:[%s2 + $0x100] sm:$0xf]
        %v512 = vld [vmem:[%s2 + $0x104] sm:$0xf]
        %v513 = vld [vmem:[%s2 + $0x108] sm:$0xf]
        %v514 = vld [vmem:[%s2 + $0x10c] sm:$0xf]
        %v515 = vld [vmem:[%s2 + $0x110] sm:$0xf]
        %v516 = vld [vmem:[%s2 + $0x114] sm:$0xf]
        %v517 = vld [vmem:[%s2 + $0x118] sm:$0xf]
        %v518 = vld [vmem:[%s2 + $0x11c] sm:$0xf]
        %v519 = vld [vmem:[#allocation2] sm:$0xff]
        %v520 = vld [vmem:[#allocation2 + $0x8] sm:$0xff]
        %v521 = vld [vmem:[#allocation2 + $0x18] sm:$0xff]
        %v522 = vld [vmem:[#allocation2 + $0x20] sm:$0xff]
        %v523 = vld [vmem:[#allocation2 + $0x30] sm:$0xff]
        %v524 = vld [vmem:[#allocation2 + $0x38] sm:$0xff]
        %v525 = vld [vmem:[#allocation2 + $0x48] sm:$0xff]
        %v526 = vld [vmem:[#allocation2 + $0x50] sm:$0xff]
        %v527 = vld [vmem:[#allocation2 + $0x60] sm:$0xff]
        %v528 = vld [vmem:[#allocation2 + $0x68] sm:$0xff]
        %v529 = vld [vmem:[#allocation2 + $0x78] sm:$0xff]
        %v530 = vld [vmem:[#allocation2 + $0x80] sm:$0xff]
        %v531 = vld [vmem:[#allocation2 + $0x90] sm:$0xff]
        %v532 = vld [vmem:[#allocation2 + $0x98] sm:$0xff]
        %v533 = vld [vmem:[#allocation2 + $0xa8] sm:$0xff]
        %v534 = vld [vmem:[#allocation2 + $0xb0] sm:$0xff]
        %v535 = vld [vmem:[#allocation2 + $0xc0] sm:$0xff]
        %v536 = vld [vmem:[#allocation2 + $0xc8] sm:$0xff]
        %v537 = vld [vmem:[#allocation2 + $0xd8] sm:$0xff]
        %v538 = vld [vmem:[#allocation2 + $0xe0] sm:$0xff]
        %v539 = vld [vmem:[#allocation2 + $0xf0] sm:$0xff]
        %v540 = vld [vmem:[#allocation2 + $0xf8] sm:$0xff]
        %v541 = vld [vmem:[#allocation2 + $0x108] sm:$0xff]
        %v542 = vld [vmem:[#allocation2 + $0x110] sm:$0xff]
        %v543 = vld [vmem:[#allocation2 + $0x120] sm:$0xff]
        %v544 = vld [vmem:[#allocation2 + $0x128] sm:$0xff]
        %v545 = vld [vmem:[#allocation2 + $0x138] sm:$0xff]
        %v546 = vld [vmem:[#allocation2 + $0x140] sm:$0xff]
        %v547 = vld [vmem:[#allocation2 + $0x150] sm:$0xff]
        %v548 = vld [vmem:[#allocation2 + $0x158] sm:$0xff]
        %v549 = vld [vmem:[#allocation2 + $0x168] sm:$0xff]
        %v550 = vld [vmem:[#allocation2 + $0x170] sm:$0xff]
        %v551 = vpack.c.bf16 %v519, %v519
        %v552 = vpack.c.bf16 %v520, %v520
        %v553 = vpack.c.bf16 %v521, %v521
        %v554 = vpack.c.bf16 %v522, %v522
        %v555 = vpack.c.bf16 %v523, %v523
        %v556 = vpack.c.bf16 %v524, %v524
        %v557 = vpack.c.bf16 %v525, %v525
        %v558 = vpack.c.bf16 %v526, %v526
        %v559 = vpack.c.bf16 %v527, %v527
        %v560 = vpack.c.bf16 %v528, %v528
        %v561 = vpack.c.bf16 %v529, %v529
        %v562 = vpack.c.bf16 %v530, %v530
        %v563 = vpack.c.bf16 %v531, %v531
        %v564 = vpack.c.bf16 %v532, %v532
        %v565 = vpack.c.bf16 %v533, %v533
        %v566 = vpack.c.bf16 %v534, %v534
        %v567 = vpack.c.bf16 %v535, %v535
        %v568 = vpack.c.bf16 %v536, %v536
        %v569 = vpack.c.bf16 %v537, %v537
        %v570 = vpack.c.bf16 %v538, %v538
        %v571 = vpack.c.bf16 %v539, %v539
        %v572 = vpack.c.bf16 %v540, %v540
        %v573 = vpack.c.bf16 %v541, %v541
        %v574 = vpack.c.bf16 %v542, %v542
        %v575 = vpack.c.bf16 %v543, %v543
        %v576 = vpack.c.bf16 %v544, %v544
        %v577 = vpack.c.bf16 %v545, %v545
        %v578 = vpack.c.bf16 %v546, %v546
        %v579 = vpack.c.bf16 %v547, %v547
        %v580 = vpack.c.bf16 %v548, %v548
        %v581 = vpack.c.bf16 %v549, %v549
        %v582 = vpack.c.bf16 %v550, %v550
        %vm583 = vcmask 519168
        %584 = vst.msk [vmem:[#allocation4] sm:$0xf] %vm583, %v551
        %585 = vst.msk [vmem:[#allocation4 + $0x14] sm:$0xf] %vm583, %v552
        %586 = vst.msk [vmem:[#allocation4 + $0x28] sm:$0xf] %vm583, %v553
        %587 = vst.msk [vmem:[#allocation4 + $0x3c] sm:$0xf] %vm583, %v554
        %588 = vst.msk [vmem:[#allocation4 + $0x50] sm:$0xf] %vm583, %v555
        %589 = vst.msk [vmem:[#allocation4 + $0x64] sm:$0xf] %vm583, %v556
        %590 = vst.msk [vmem:[#allocation4 + $0x78] sm:$0xf] %vm583, %v557
        %591 = vst.msk [vmem:[#allocation4 + $0x8c] sm:$0xf] %vm583, %v558
        %592 = vst.msk [vmem:[#allocation4 + $0xa0] sm:$0xf] %vm583, %v559
        %593 = vst.msk [vmem:[#allocation4 + $0xb4] sm:$0xf] %vm583, %v560
        %594 = vst.msk [vmem:[#allocation4 + $0xc8] sm:$0xf] %vm583, %v561
        %595 = vst.msk [vmem:[#allocation4 + $0xdc] sm:$0xf] %vm583, %v562
        %596 = vst.msk [vmem:[#allocation4 + $0xf0] sm:$0xf] %vm583, %v563
        %597 = vst.msk [vmem:[#allocation4 + $0x104] sm:$0xf] %vm583, %v564
        %598 = vst.msk [vmem:[#allocation4 + $0x118] sm:$0xf] %vm583, %v565
        %599 = vst.msk [vmem:[#allocation4 + $0x12c] sm:$0xf] %vm583, %v566
        %600 = vst.msk [vmem:[#allocation4 + $0x140] sm:$0xf] %vm583, %v567
        %601 = vst.msk [vmem:[#allocation4 + $0x154] sm:$0xf] %vm583, %v568
        %602 = vst.msk [vmem:[#allocation4 + $0x168] sm:$0xf] %vm583, %v569
        %603 = vst.msk [vmem:[#allocation4 + $0x17c] sm:$0xf] %vm583, %v570
        %604 = vst.msk [vmem:[#allocation4 + $0x190] sm:$0xf] %vm583, %v571
        %605 = vst.msk [vmem:[#allocation4 + $0x1a4] sm:$0xf] %vm583, %v572
        %606 = vst.msk [vmem:[#allocation4 + $0x1b8] sm:$0xf] %vm583, %v573
        %607 = vst.msk [vmem:[#allocation4 + $0x1cc] sm:$0xf] %vm583, %v574
        %608 = vst.msk [vmem:[#allocation4 + $0x1e0] sm:$0xf] %vm583, %v575
        %609 = vst.msk [vmem:[#allocation4 + $0x1f4] sm:$0xf] %vm583, %v576
        %610 = vst.msk [vmem:[#allocation4 + $0x208] sm:$0xf] %vm583, %v577
        %611 = vst.msk [vmem:[#allocation4 + $0x21c] sm:$0xf] %vm583, %v578
        %612 = vst.msk [vmem:[#allocation4 + $0x230] sm:$0xf] %vm583, %v579
        %613 = vst.msk [vmem:[#allocation4 + $0x244] sm:$0xf] %vm583, %v580
        %614 = vst.msk [vmem:[#allocation4 + $0x258] sm:$0xf] %vm583, %v581
        %615 = vst.msk [vmem:[#allocation4 + $0x26c] sm:$0xf] %vm583, %v582
        %v616 = vld [vmem:[#allocation2 + $0x1] sm:$0xff]
        %v617 = vld [vmem:[#allocation2 + $0x9] sm:$0xff]
        %v618 = vld [vmem:[#allocation2 + $0x19] sm:$0xff]
        %v619 = vld [vmem:[#allocation2 + $0x21] sm:$0xff]
        %v620 = vld [vmem:[#allocation2 + $0x31] sm:$0xff]
        %v621 = vld [vmem:[#allocation2 + $0x39] sm:$0xff]
        %v622 = vld [vmem:[#allocation2 + $0x49] sm:$0xff]
        %v623 = vld [vmem:[#allocation2 + $0x51] sm:$0xff]
        %v624 = vld [vmem:[#allocation2 + $0x61] sm:$0xff]
        %v625 = vld [vmem:[#allocation2 + $0x69] sm:$0xff]
        %v626 = vld [vmem:[#allocation2 + $0x79] sm:$0xff]
        %v627 = vld [vmem:[#allocation2 + $0x81] sm:$0xff]
        %v628 = vld [vmem:[#allocation2 + $0x91] sm:$0xff]
        %v629 = vld [vmem:[#allocation2 + $0x99] sm:$0xff]
        %v630 = vld [vmem:[#allocation2 + $0xa9] sm:$0xff]
        %v631 = vld [vmem:[#allocation2 + $0xb1] sm:$0xff]
        %v632 = vld [vmem:[#allocation2 + $0xc1] sm:$0xff]
        %v633 = vld [vmem:[#allocation2 + $0xc9] sm:$0xff]
        %v634 = vld [vmem:[#allocation2 + $0xd9] sm:$0xff]
        %v635 = vld [vmem:[#allocation2 + $0xe1] sm:$0xff]
        %v636 = vld [vmem:[#allocation2 + $0xf1] sm:$0xff]
        %v637 = vld [vmem:[#allocation2 + $0xf9] sm:$0xff]
        %v638 = vld [vmem:[#allocation2 + $0x109] sm:$0xff]
        %v639 = vld [vmem:[#allocation2 + $0x111] sm:$0xff]
        %v640 = vld [vmem:[#allocation2 + $0x121] sm:$0xff]
        %v641 = vld [vmem:[#allocation2 + $0x129] sm:$0xff]
        %v642 = vld [vmem:[#allocation2 + $0x139] sm:$0xff]
        %v643 = vld [vmem:[#allocation2 + $0x141] sm:$0xff]
        %v644 = vld [vmem:[#allocation2 + $0x151] sm:$0xff]
        %v645 = vld [vmem:[#allocation2 + $0x159] sm:$0xff]
        %v646 = vld [vmem:[#allocation2 + $0x169] sm:$0xff]
        %v647 = vld [vmem:[#allocation2 + $0x171] sm:$0xff]
        %v648 = vpack.c.bf16 %v616, %v616
        %v649 = vpack.c.bf16 %v617, %v617
        %v650 = vpack.c.bf16 %v618, %v618
        %v651 = vpack.c.bf16 %v619, %v619
        %v652 = vpack.c.bf16 %v620, %v620
        %v653 = vpack.c.bf16 %v621, %v621
        %v654 = vpack.c.bf16 %v622, %v622
        %v655 = vpack.c.bf16 %v623, %v623
        %v656 = vpack.c.bf16 %v624, %v624
        %v657 = vpack.c.bf16 %v625, %v625
        %v658 = vpack.c.bf16 %v626, %v626
        %v659 = vpack.c.bf16 %v627, %v627
        %v660 = vpack.c.bf16 %v628, %v628
        %v661 = vpack.c.bf16 %v629, %v629
        %v662 = vpack.c.bf16 %v630, %v630
        %v663 = vpack.c.bf16 %v631, %v631
        %v664 = vpack.c.bf16 %v632, %v632
        %v665 = vpack.c.bf16 %v633, %v633
        %v666 = vpack.c.bf16 %v634, %v634
        %v667 = vpack.c.bf16 %v635, %v635
        %v668 = vpack.c.bf16 %v636, %v636
        %v669 = vpack.c.bf16 %v637, %v637
        %v670 = vpack.c.bf16 %v638, %v638
        %v671 = vpack.c.bf16 %v639, %v639
        %v672 = vpack.c.bf16 %v640, %v640
        %v673 = vpack.c.bf16 %v641, %v641
        %v674 = vpack.c.bf16 %v642, %v642
        %v675 = vpack.c.bf16 %v643, %v643
        %v676 = vpack.c.bf16 %v644, %v644
        %v677 = vpack.c.bf16 %v645, %v645
        %v678 = vpack.c.bf16 %v646, %v646
        %v679 = vpack.c.bf16 %v647, %v647
        %712 = vrot.lane.b32.xlu0 %v648, 64
        %v713 = vpop.permute.xlu0 %712
        %714 = vrot.lane.b32.xlu0 %v649, 64
        %v715 = vpop.permute.xlu0 %714
        %716 = vrot.lane.b32.xlu0 %v650, 64
        %v717 = vpop.permute.xlu0 %716
        %718 = vrot.lane.b32.xlu0 %v651, 64
        %v719 = vpop.permute.xlu0 %718
        %720 = vrot.lane.b32.xlu0 %v652, 64
        %v721 = vpop.permute.xlu0 %720
        %722 = vrot.lane.b32.xlu0 %v653, 64
        %v723 = vpop.permute.xlu0 %722
        %724 = vrot.lane.b32.xlu0 %v654, 64
        %v725 = vpop.permute.xlu0 %724
        %726 = vrot.lane.b32.xlu0 %v655, 64
        %v727 = vpop.permute.xlu0 %726
        %728 = vrot.lane.b32.xlu0 %v656, 64
        %v729 = vpop.permute.xlu0 %728
        %730 = vrot.lane.b32.xlu0 %v657, 64
        %v731 = vpop.permute.xlu0 %730
        %732 = vrot.lane.b32.xlu0 %v658, 64
        %v733 = vpop.permute.xlu0 %732
        %734 = vrot.lane.b32.xlu0 %v659, 64
        %v735 = vpop.permute.xlu0 %734
        %736 = vrot.lane.b32.xlu0 %v660, 64
        %v737 = vpop.permute.xlu0 %736
        %738 = vrot.lane.b32.xlu0 %v661, 64
        %v739 = vpop.permute.xlu0 %738
        %740 = vrot.lane.b32.xlu0 %v662, 64
        %v741 = vpop.permute.xlu0 %740
        %742 = vrot.lane.b32.xlu0 %v663, 64
        %v743 = vpop.permute.xlu0 %742
        %744 = vrot.lane.b32.xlu0 %v664, 64
        %v745 = vpop.permute.xlu0 %744
        %746 = vrot.lane.b32.xlu0 %v665, 64
        %v747 = vpop.permute.xlu0 %746
        %748 = vrot.lane.b32.xlu0 %v666, 64
        %v749 = vpop.permute.xlu0 %748
        %750 = vrot.lane.b32.xlu0 %v667, 64
        %v751 = vpop.permute.xlu0 %750
        %752 = vrot.lane.b32.xlu0 %v668, 64
        %v753 = vpop.permute.xlu0 %752
        %754 = vrot.lane.b32.xlu0 %v669, 64
        %v755 = vpop.permute.xlu0 %754
        %756 = vrot.lane.b32.xlu0 %v670, 64
        %v757 = vpop.permute.xlu0 %756
        %758 = vrot.lane.b32.xlu0 %v671, 64
        %v759 = vpop.permute.xlu0 %758
        %760 = vrot.lane.b32.xlu0 %v672, 64
        %v761 = vpop.permute.xlu0 %760
        %762 = vrot.lane.b32.xlu0 %v673, 64
        %v763 = vpop.permute.xlu0 %762
        %764 = vrot.lane.b32.xlu0 %v674, 64
        %v765 = vpop.permute.xlu0 %764
        %766 = vrot.lane.b32.xlu0 %v675, 64
        %v767 = vpop.permute.xlu0 %766
        %768 = vrot.lane.b32.xlu0 %v676, 64
        %v769 = vpop.permute.xlu0 %768
        %770 = vrot.lane.b32.xlu0 %v677, 64
        %v771 = vpop.permute.xlu0 %770
        %772 = vrot.lane.b32.xlu0 %v678, 64
        %v773 = vpop.permute.xlu0 %772
        %774 = vrot.lane.b32.xlu0 %v679, 64
        %v775 = vpop.permute.xlu0 %774
        %vm808 = vcmask 1043968
        %809 = vst.msk [vmem:[#allocation4] sm:$0xf] %vm808, %v713
        %810 = vst.msk [vmem:[#allocation4 + $0x14] sm:$0xf] %vm808, %v715
        %811 = vst.msk [vmem:[#allocation4 + $0x28] sm:$0xf] %vm808, %v717
        %812 = vst.msk [vmem:[#allocation4 + $0x3c] sm:$0xf] %vm808, %v719
        %813 = vst.msk [vmem:[#allocation4 + $0x50] sm:$0xf] %vm808, %v721
        %814 = vst.msk [vmem:[#allocation4 + $0x64] sm:$0xf] %vm808, %v723
        %815 = vst.msk [vmem:[#allocation4 + $0x78] sm:$0xf] %vm808, %v725
        %816 = vst.msk [vmem:[#allocation4 + $0x8c] sm:$0xf] %vm808, %v727
        %817 = vst.msk [vmem:[#allocation4 + $0xa0] sm:$0xf] %vm808, %v729
        %818 = vst.msk [vmem:[#allocation4 + $0xb4] sm:$0xf] %vm808, %v731
        %819 = vst.msk [vmem:[#allocation4 + $0xc8] sm:$0xf] %vm808, %v733
        %820 = vst.msk [vmem:[#allocation4 + $0xdc] sm:$0xf] %vm808, %v735
        %821 = vst.msk [vmem:[#allocation4 + $0xf0] sm:$0xf] %vm808, %v737
        %822 = vst.msk [vmem:[#allocation4 + $0x104] sm:$0xf] %vm808, %v739
        %823 = vst.msk [vmem:[#allocation4 + $0x118] sm:$0xf] %vm808, %v741
        %824 = vst.msk [vmem:[#allocation4 + $0x12c] sm:$0xf] %vm808, %v743
        %825 = vst.msk [vmem:[#allocation4 + $0x140] sm:$0xf] %vm808, %v745
        %826 = vst.msk [vmem:[#allocation4 + $0x154] sm:$0xf] %vm808, %v747
        %827 = vst.msk [vmem:[#allocation4 + $0x168] sm:$0xf] %vm808, %v749
        %828 = vst.msk [vmem:[#allocation4 + $0x17c] sm:$0xf] %vm808, %v751
        %829 = vst.msk [vmem:[#allocation4 + $0x190] sm:$0xf] %vm808, %v753
        %830 = vst.msk [vmem:[#allocation4 + $0x1a4] sm:$0xf] %vm808, %v755
        %831 = vst.msk [vmem:[#allocation4 + $0x1b8] sm:$0xf] %vm808, %v757
        %832 = vst.msk [vmem:[#allocation4 + $0x1cc] sm:$0xf] %vm808, %v759
        %833 = vst.msk [vmem:[#allocation4 + $0x1e0] sm:$0xf] %vm808, %v761
        %834 = vst.msk [vmem:[#allocation4 + $0x1f4] sm:$0xf] %vm808, %v763
        %835 = vst.msk [vmem:[#allocation4 + $0x208] sm:$0xf] %vm808, %v765
        %836 = vst.msk [vmem:[#allocation4 + $0x21c] sm:$0xf] %vm808, %v767
        %837 = vst.msk [vmem:[#allocation4 + $0x230] sm:$0xf] %vm808, %v769
        %838 = vst.msk [vmem:[#allocation4 + $0x244] sm:$0xf] %vm808, %v771
        %839 = vst.msk [vmem:[#allocation4 + $0x258] sm:$0xf] %vm808, %v773
        %840 = vst.msk [vmem:[#allocation4 + $0x26c] sm:$0xf] %vm808, %v775
        %v841 = vld [vmem:[#allocation2 + $0x2] sm:$0xff]
        %v842 = vld [vmem:[#allocation2 + $0xa] sm:$0xff]
        %v843 = vld [vmem:[#allocation2 + $0x1a] sm:$0xff]
        %v844 = vld [vmem:[#allocation2 + $0x22] sm:$0xff]
        %v845 = vld [vmem:[#allocation2 + $0x32] sm:$0xff]
        %v846 = vld [vmem:[#allocation2 + $0x3a] sm:$0xff]
        %v847 = vld [vmem:[#allocation2 + $0x4a] sm:$0xff]
        %v848 = vld [vmem:[#allocation2 + $0x52] sm:$0xff]
        %v849 = vld [vmem:[#allocation2 + $0x62] sm:$0xff]
        %v850 = vld [vmem:[#allocation2 + $0x6a] sm:$0xff]
        %v851 = vld [vmem:[#allocation2 + $0x7a] sm:$0xff]
        %v852 = vld [vmem:[#allocation2 + $0x82] sm:$0xff]
        %v853 = vld [vmem:[#allocation2 + $0x92] sm:$0xff]
        %v854 = vld [vmem:[#allocation2 + $0x9a] sm:$0xff]
        %v855 = vld [vmem:[#allocation2 + $0xaa] sm:$0xff]
        %v856 = vld [vmem:[#allocation2 + $0xb2] sm:$0xff]
        %v857 = vld [vmem:[#allocation2 + $0xc2] sm:$0xff]
        %v858 = vld [vmem:[#allocation2 + $0xca] sm:$0xff]
        %v859 = vld [vmem:[#allocation2 + $0xda] sm:$0xff]
        %v860 = vld [vmem:[#allocation2 + $0xe2] sm:$0xff]
        %v861 = vld [vmem:[#allocation2 + $0xf2] sm:$0xff]
        %v862 = vld [vmem:[#allocation2 + $0xfa] sm:$0xff]
        %v863 = vld [vmem:[#allocation2 + $0x10a] sm:$0xff]
        %v864 = vld [vmem:[#allocation2 + $0x112] sm:$0xff]
        %v865 = vld [vmem:[#allocation2 + $0x122] sm:$0xff]
        %v866 = vld [vmem:[#allocation2 + $0x12a] sm:$0xff]
        %v867 = vld [vmem:[#allocation2 + $0x13a] sm:$0xff]
        %v868 = vld [vmem:[#allocation2 + $0x142] sm:$0xff]
        %v869 = vld [vmem:[#allocation2 + $0x152] sm:$0xff]
        %v870 = vld [vmem:[#allocation2 + $0x15a] sm:$0xff]
        %v871 = vld [vmem:[#allocation2 + $0x16a] sm:$0xff]
        %v872 = vld [vmem:[#allocation2 + $0x172] sm:$0xff]
        %v873 = vpack.c.bf16 %v841, %v841
        %v874 = vpack.c.bf16 %v842, %v842
        %v875 = vpack.c.bf16 %v843, %v843
        %v876 = vpack.c.bf16 %v844, %v844
        %v877 = vpack.c.bf16 %v845, %v845
        %v878 = vpack.c.bf16 %v846, %v846
        %v879 = vpack.c.bf16 %v847, %v847
        %v880 = vpack.c.bf16 %v848, %v848
        %v881 = vpack.c.bf16 %v849, %v849
        %v882 = vpack.c.bf16 %v850, %v850
        %v883 = vpack.c.bf16 %v851, %v851
        %v884 = vpack.c.bf16 %v852, %v852
        %v885 = vpack.c.bf16 %v853, %v853
        %v886 = vpack.c.bf16 %v854, %v854
        %v887 = vpack.c.bf16 %v855, %v855
        %v888 = vpack.c.bf16 %v856, %v856
        %v889 = vpack.c.bf16 %v857, %v857
        %v890 = vpack.c.bf16 %v858, %v858
        %v891 = vpack.c.bf16 %v859, %v859
        %v892 = vpack.c.bf16 %v860, %v860
        %v893 = vpack.c.bf16 %v861, %v861
        %v894 = vpack.c.bf16 %v862, %v862
        %v895 = vpack.c.bf16 %v863, %v863
        %v896 = vpack.c.bf16 %v864, %v864
        %v897 = vpack.c.bf16 %v865, %v865
        %v898 = vpack.c.bf16 %v866, %v866
        %v899 = vpack.c.bf16 %v867, %v867
        %v900 = vpack.c.bf16 %v868, %v868
        %v901 = vpack.c.bf16 %v869, %v869
        %v902 = vpack.c.bf16 %v870, %v870
        %v903 = vpack.c.bf16 %v871, %v871
        %v904 = vpack.c.bf16 %v872, %v872
        %905 = vst.msk [vmem:[#allocation4 + $0x4] sm:$0xf] %vm583, %v873
        %906 = vst.msk [vmem:[#allocation4 + $0x18] sm:$0xf] %vm583, %v874
        %907 = vst.msk [vmem:[#allocation4 + $0x2c] sm:$0xf] %vm583, %v875
        %908 = vst.msk [vmem:[#allocation4 + $0x40] sm:$0xf] %vm583, %v876
        %909 = vst.msk [vmem:[#allocation4 + $0x54] sm:$0xf] %vm583, %v877
        %910 = vst.msk [vmem:[#allocation4 + $0x68] sm:$0xf] %vm583, %v878
        %911 = vst.msk [vmem:[#allocation4 + $0x7c] sm:$0xf] %vm583, %v879
        %912 = vst.msk [vmem:[#allocation4 + $0x90] sm:$0xf] %vm583, %v880
        %913 = vst.msk [vmem:[#allocation4 + $0xa4] sm:$0xf] %vm583, %v881
        %914 = vst.msk [vmem:[#allocation4 + $0xb8] sm:$0xf] %vm583, %v882
        %915 = vst.msk [vmem:[#allocation4 + $0xcc] sm:$0xf] %vm583, %v883
        %916 = vst.msk [vmem:[#allocation4 + $0xe0] sm:$0xf] %vm583, %v884
        %917 = vst.msk [vmem:[#allocation4 + $0xf4] sm:$0xf] %vm583, %v885
        %918 = vst.msk [vmem:[#allocation4 + $0x108] sm:$0xf] %vm583, %v886
        %919 = vst.msk [vmem:[#allocation4 + $0x11c] sm:$0xf] %vm583, %v887
        %920 = vst.msk [vmem:[#allocation4 + $0x130] sm:$0xf] %vm583, %v888
        %921 = vst.msk [vmem:[#allocation4 + $0x144] sm:$0xf] %vm583, %v889
        %922 = vst.msk [vmem:[#allocation4 + $0x158] sm:$0xf] %vm583, %v890
        %923 = vst.msk [vmem:[#allocation4 + $0x16c] sm:$0xf] %vm583, %v891
        %924 = vst.msk [vmem:[#allocation4 + $0x180] sm:$0xf] %vm583, %v892
        %925 = vst.msk [vmem:[#allocation4 + $0x194] sm:$0xf] %vm583, %v893
        %926 = vst.msk [vmem:[#allocation4 + $0x1a8] sm:$0xf] %vm583, %v894
        %927 = vst.msk [vmem:[#allocation4 + $0x1bc] sm:$0xf] %vm583, %v895
        %928 = vst.msk [vmem:[#allocation4 + $0x1d0] sm:$0xf] %vm583, %v896
        %929 = vst.msk [vmem:[#allocation4 + $0x1e4] sm:$0xf] %vm583, %v897
        %930 = vst.msk [vmem:[#allocation4 + $0x1f8] sm:$0xf] %vm583, %v898
        %931 = vst.msk [vmem:[#allocation4 + $0x20c] sm:$0xf] %vm583, %v899
        %932 = vst.msk [vmem:[#allocation4 + $0x220] sm:$0xf] %vm583, %v900
        %933 = vst.msk [vmem:[#allocation4 + $0x234] sm:$0xf] %vm583, %v901
        %934 = vst.msk [vmem:[#allocation4 + $0x248] sm:$0xf] %vm583, %v902
        %935 = vst.msk [vmem:[#allocation4 + $0x25c] sm:$0xf] %vm583, %v903
        %936 = vst.msk [vmem:[#allocation4 + $0x270] sm:$0xf] %vm583, %v904
        %v937 = vld [vmem:[%s414] sm:$0xff]
        %v938 = vld [vmem:[%s414 + $0x8] sm:$0xff]
        %v939 = vld [vmem:[%s414 + $0x18] sm:$0xff]
        %v940 = vld [vmem:[%s414 + $0x20] sm:$0xff]
        %v941 = vld [vmem:[%s414 + $0x30] sm:$0xff]
        %v942 = vld [vmem:[%s414 + $0x38] sm:$0xff]
        %v943 = vld [vmem:[%s414 + $0x48] sm:$0xff]
        %v944 = vld [vmem:[%s414 + $0x50] sm:$0xff]
        %v945 = vld [vmem:[%s414 + $0x60] sm:$0xff]
        %v946 = vld [vmem:[%s414 + $0x68] sm:$0xff]
        %v947 = vld [vmem:[%s414 + $0x78] sm:$0xff]
        %v948 = vld [vmem:[%s414 + $0x80] sm:$0xff]
        %v949 = vld [vmem:[%s414 + $0x90] sm:$0xff]
        %v950 = vld [vmem:[%s414 + $0x98] sm:$0xff]
        %v951 = vld [vmem:[%s414 + $0xa8] sm:$0xff]
        %v952 = vld [vmem:[%s414 + $0xb0] sm:$0xff]
        %v953 = vld [vmem:[%s414 + $0xc0] sm:$0xff]
        %v954 = vld [vmem:[%s414 + $0xc8] sm:$0xff]
        %v955 = vld [vmem:[%s414 + $0xd8] sm:$0xff]
        %v956 = vld [vmem:[%s414 + $0xe0] sm:$0xff]
        %v957 = vld [vmem:[%s414 + $0xf0] sm:$0xff]
        %v958 = vld [vmem:[%s414 + $0xf8] sm:$0xff]
        %v959 = vld [vmem:[%s414 + $0x108] sm:$0xff]
        %v960 = vld [vmem:[%s414 + $0x110] sm:$0xff]
        %v961 = vld [vmem:[%s414 + $0x120] sm:$0xff]
        %v962 = vld [vmem:[%s414 + $0x128] sm:$0xff]
        %v963 = vld [vmem:[%s414 + $0x138] sm:$0xff]
        %v964 = vld [vmem:[%s414 + $0x140] sm:$0xff]
        %v965 = vld [vmem:[%s414 + $0x150] sm:$0xff]
        %v966 = vld [vmem:[%s414 + $0x158] sm:$0xff]
        %v967 = vld [vmem:[%s414 + $0x168] sm:$0xff]
        %v968 = vld [vmem:[%s414 + $0x170] sm:$0xff]
        %v969 = vpack.c.bf16 %v937, %v937
        %v970 = vpack.c.bf16 %v938, %v938
        %v971 = vpack.c.bf16 %v939, %v939
        %v972 = vpack.c.bf16 %v940, %v940
        %v973 = vpack.c.bf16 %v941, %v941
        %v974 = vpack.c.bf16 %v942, %v942
        %v975 = vpack.c.bf16 %v943, %v943
        %v976 = vpack.c.bf16 %v944, %v944
        %v977 = vpack.c.bf16 %v945, %v945
        %v978 = vpack.c.bf16 %v946, %v946
        %v979 = vpack.c.bf16 %v947, %v947
        %v980 = vpack.c.bf16 %v948, %v948
        %v981 = vpack.c.bf16 %v949, %v949
        %v982 = vpack.c.bf16 %v950, %v950
        %v983 = vpack.c.bf16 %v951, %v951
        %v984 = vpack.c.bf16 %v952, %v952
        %v985 = vpack.c.bf16 %v953, %v953
        %v986 = vpack.c.bf16 %v954, %v954
        %v987 = vpack.c.bf16 %v955, %v955
        %v988 = vpack.c.bf16 %v956, %v956
        %v989 = vpack.c.bf16 %v957, %v957
        %v990 = vpack.c.bf16 %v958, %v958
        %v991 = vpack.c.bf16 %v959, %v959
        %v992 = vpack.c.bf16 %v960, %v960
        %v993 = vpack.c.bf16 %v961, %v961
        %v994 = vpack.c.bf16 %v962, %v962
        %v995 = vpack.c.bf16 %v963, %v963
        %v996 = vpack.c.bf16 %v964, %v964
        %v997 = vpack.c.bf16 %v965, %v965
        %v998 = vpack.c.bf16 %v966, %v966
        %v999 = vpack.c.bf16 %v967, %v967
        %v1000 = vpack.c.bf16 %v968, %v968
        %1033 = vrot.lane.b32.xlu0 %v969, 64
        %v1034 = vpop.permute.xlu0 %1033
        %1035 = vrot.lane.b32.xlu0 %v970, 64
        %v1036 = vpop.permute.xlu0 %1035
        %1037 = vrot.lane.b32.xlu0 %v971, 64
        %v1038 = vpop.permute.xlu0 %1037
        %1039 = vrot.lane.b32.xlu0 %v972, 64
        %v1040 = vpop.permute.xlu0 %1039
        %1041 = vrot.lane.b32.xlu0 %v973, 64
        %v1042 = vpop.permute.xlu0 %1041
        %1043 = vrot.lane.b32.xlu0 %v974, 64
        %v1044 = vpop.permute.xlu0 %1043
        %1045 = vrot.lane.b32.xlu0 %v975, 64
        %v1046 = vpop.permute.xlu0 %1045
        %1047 = vrot.lane.b32.xlu0 %v976, 64
        %v1048 = vpop.permute.xlu0 %1047
        %1049 = vrot.lane.b32.xlu0 %v977, 64
        %v1050 = vpop.permute.xlu0 %1049
        %1051 = vrot.lane.b32.xlu0 %v978, 64
        %v1052 = vpop.permute.xlu0 %1051
        %1053 = vrot.lane.b32.xlu0 %v979, 64
        %v1054 = vpop.permute.xlu0 %1053
        %1055 = vrot.lane.b32.xlu0 %v980, 64
        %v1056 = vpop.permute.xlu0 %1055
        %1057 = vrot.lane.b32.xlu0 %v981, 64
        %v1058 = vpop.permute.xlu0 %1057
        %1059 = vrot.lane.b32.xlu0 %v982, 64
        %v1060 = vpop.permute.xlu0 %1059
        %1061 = vrot.lane.b32.xlu0 %v983, 64
        %v1062 = vpop.permute.xlu0 %1061
        %1063 = vrot.lane.b32.xlu0 %v984, 64
        %v1064 = vpop.permute.xlu0 %1063
        %1065 = vrot.lane.b32.xlu0 %v985, 64
        %v1066 = vpop.permute.xlu0 %1065
        %1067 = vrot.lane.b32.xlu0 %v986, 64
        %v1068 = vpop.permute.xlu0 %1067
        %1069 = vrot.lane.b32.xlu0 %v987, 64
        %v1070 = vpop.permute.xlu0 %1069
        %1071 = vrot.lane.b32.xlu0 %v988, 64
        %v1072 = vpop.permute.xlu0 %1071
        %1073 = vrot.lane.b32.xlu0 %v989, 64
        %v1074 = vpop.permute.xlu0 %1073
        %1075 = vrot.lane.b32.xlu0 %v990, 64
        %v1076 = vpop.permute.xlu0 %1075
        %1077 = vrot.lane.b32.xlu0 %v991, 64
        %v1078 = vpop.permute.xlu0 %1077
        %1079 = vrot.lane.b32.xlu0 %v992, 64
        %v1080 = vpop.permute.xlu0 %1079
        %1081 = vrot.lane.b32.xlu0 %v993, 64
        %v1082 = vpop.permute.xlu0 %1081
        %1083 = vrot.lane.b32.xlu0 %v994, 64
        %v1084 = vpop.permute.xlu0 %1083
        %1085 = vrot.lane.b32.xlu0 %v995, 64
        %v1086 = vpop.permute.xlu0 %1085
        %1087 = vrot.lane.b32.xlu0 %v996, 64
        %v1088 = vpop.permute.xlu0 %1087
        %1089 = vrot.lane.b32.xlu0 %v997, 64
        %v1090 = vpop.permute.xlu0 %1089
        %1091 = vrot.lane.b32.xlu0 %v998, 64
        %v1092 = vpop.permute.xlu0 %1091
        %1093 = vrot.lane.b32.xlu0 %v999, 64
        %v1094 = vpop.permute.xlu0 %1093
        %1095 = vrot.lane.b32.xlu0 %v1000, 64
        %v1096 = vpop.permute.xlu0 %1095
        %1129 = vst.msk [vmem:[#allocation4 + $0x4] sm:$0xf] %vm808, %v1034
        %1130 = vst.msk [vmem:[#allocation4 + $0x18] sm:$0xf] %vm808, %v1036
        %1131 = vst.msk [vmem:[#allocation4 + $0x2c] sm:$0xf] %vm808, %v1038
        %1132 = vst.msk [vmem:[#allocation4 + $0x40] sm:$0xf] %vm808, %v1040
        %1133 = vst.msk [vmem:[#allocation4 + $0x54] sm:$0xf] %vm808, %v1042
        %1134 = vst.msk [vmem:[#allocation4 + $0x68] sm:$0xf] %vm808, %v1044
        %1135 = vst.msk [vmem:[#allocation4 + $0x7c] sm:$0xf] %vm808, %v1046
        %1136 = vst.msk [vmem:[#allocation4 + $0x90] sm:$0xf] %vm808, %v1048
        %1137 = vst.msk [vmem:[#allocation4 + $0xa4] sm:$0xf] %vm808, %v1050
        %1138 = vst.msk [vmem:[#allocation4 + $0xb8] sm:$0xf] %vm808, %v1052
        %1139 = vst.msk [vmem:[#allocation4 + $0xcc] sm:$0xf] %vm808, %v1054
        %1140 = vst.msk [vmem:[#allocation4 + $0xe0] sm:$0xf] %vm808, %v1056
        %1141 = vst.msk [vmem:[#allocation4 + $0xf4] sm:$0xf] %vm808, %v1058
        %1142 = vst.msk [vmem:[#allocation4 + $0x108] sm:$0xf] %vm808, %v1060
        %1143 = vst.msk [vmem:[#allocation4 + $0x11c] sm:$0xf] %vm808, %v1062
        %1144 = vst.msk [vmem:[#allocation4 + $0x130] sm:$0xf] %vm808, %v1064
        %1145 = vst.msk [vmem:[#allocation4 + $0x144] sm:$0xf] %vm808, %v1066
        %1146 = vst.msk [vmem:[#allocation4 + $0x158] sm:$0xf] %vm808, %v1068
        %1147 = vst.msk [vmem:[#allocation4 + $0x16c] sm:$0xf] %vm808, %v1070
        %1148 = vst.msk [vmem:[#allocation4 + $0x180] sm:$0xf] %vm808, %v1072
        %1149 = vst.msk [vmem:[#allocation4 + $0x194] sm:$0xf] %vm808, %v1074
        %1150 = vst.msk [vmem:[#allocation4 + $0x1a8] sm:$0xf] %vm808, %v1076
        %1151 = vst.msk [vmem:[#allocation4 + $0x1bc] sm:$0xf] %vm808, %v1078
        %1152 = vst.msk [vmem:[#allocation4 + $0x1d0] sm:$0xf] %vm808, %v1080
        %1153 = vst.msk [vmem:[#allocation4 + $0x1e4] sm:$0xf] %vm808, %v1082
        %1154 = vst.msk [vmem:[#allocation4 + $0x1f8] sm:$0xf] %vm808, %v1084
        %1155 = vst.msk [vmem:[#allocation4 + $0x20c] sm:$0xf] %vm808, %v1086
        %1156 = vst.msk [vmem:[#allocation4 + $0x220] sm:$0xf] %vm808, %v1088
        %1157 = vst.msk [vmem:[#allocation4 + $0x234] sm:$0xf] %vm808, %v1090
        %1158 = vst.msk [vmem:[#allocation4 + $0x248] sm:$0xf] %vm808, %v1092
        %1159 = vst.msk [vmem:[#allocation4 + $0x25c] sm:$0xf] %vm808, %v1094
        %1160 = vst.msk [vmem:[#allocation4 + $0x270] sm:$0xf] %vm808, %v1096
        %v1161 = vld [vmem:[%s414 + $0x1] sm:$0xff]
        %v1162 = vld [vmem:[%s414 + $0x9] sm:$0xff]
        %v1163 = vld [vmem:[%s414 + $0x19] sm:$0xff]
        %v1164 = vld [vmem:[%s414 + $0x21] sm:$0xff]
        %v1165 = vld [vmem:[%s414 + $0x31] sm:$0xff]
        %v1166 = vld [vmem:[%s414 + $0x39] sm:$0xff]
        %v1167 = vld [vmem:[%s414 + $0x49] sm:$0xff]
        %v1168 = vld [vmem:[%s414 + $0x51] sm:$0xff]
        %v1169 = vld [vmem:[%s414 + $0x61] sm:$0xff]
        %v1170 = vld [vmem:[%s414 + $0x69] sm:$0xff]
        %v1171 = vld [vmem:[%s414 + $0x79] sm:$0xff]
        %v1172 = vld [vmem:[%s414 + $0x81] sm:$0xff]
        %v1173 = vld [vmem:[%s414 + $0x91] sm:$0xff]
        %v1174 = vld [vmem:[%s414 + $0x99] sm:$0xff]
        %v1175 = vld [vmem:[%s414 + $0xa9] sm:$0xff]
        %v1176 = vld [vmem:[%s414 + $0xb1] sm:$0xff]
        %v1177 = vld [vmem:[%s414 + $0xc1] sm:$0xff]
        %v1178 = vld [vmem:[%s414 + $0xc9] sm:$0xff]
        %v1179 = vld [vmem:[%s414 + $0xd9] sm:$0xff]
        %v1180 = vld [vmem:[%s414 + $0xe1] sm:$0xff]
        %v1181 = vld [vmem:[%s414 + $0xf1] sm:$0xff]
        %v1182 = vld [vmem:[%s414 + $0xf9] sm:$0xff]
        %v1183 = vld [vmem:[%s414 + $0x109] sm:$0xff]
        %v1184 = vld [vmem:[%s414 + $0x111] sm:$0xff]
        %v1185 = vld [vmem:[%s414 + $0x121] sm:$0xff]
        %v1186 = vld [vmem:[%s414 + $0x129] sm:$0xff]
        %v1187 = vld [vmem:[%s414 + $0x139] sm:$0xff]
        %v1188 = vld [vmem:[%s414 + $0x141] sm:$0xff]
        %v1189 = vld [vmem:[%s414 + $0x151] sm:$0xff]
        %v1190 = vld [vmem:[%s414 + $0x159] sm:$0xff]
        %v1191 = vld [vmem:[%s414 + $0x169] sm:$0xff]
        %v1192 = vld [vmem:[%s414 + $0x171] sm:$0xff]
        %v1193 = vpack.c.bf16 %v1161, %v1161
        %v1194 = vpack.c.bf16 %v1162, %v1162
        %v1195 = vpack.c.bf16 %v1163, %v1163
        %v1196 = vpack.c.bf16 %v1164, %v1164
        %v1197 = vpack.c.bf16 %v1165, %v1165
        %v1198 = vpack.c.bf16 %v1166, %v1166
        %v1199 = vpack.c.bf16 %v1167, %v1167
        %v1200 = vpack.c.bf16 %v1168, %v1168
        %v1201 = vpack.c.bf16 %v1169, %v1169
        %v1202 = vpack.c.bf16 %v1170, %v1170
        %v1203 = vpack.c.bf16 %v1171, %v1171
        %v1204 = vpack.c.bf16 %v1172, %v1172
        %v1205 = vpack.c.bf16 %v1173, %v1173
        %v1206 = vpack.c.bf16 %v1174, %v1174
        %v1207 = vpack.c.bf16 %v1175, %v1175
        %v1208 = vpack.c.bf16 %v1176, %v1176
        %v1209 = vpack.c.bf16 %v1177, %v1177
        %v1210 = vpack.c.bf16 %v1178, %v1178
        %v1211 = vpack.c.bf16 %v1179, %v1179
        %v1212 = vpack.c.bf16 %v1180, %v1180
        %v1213 = vpack.c.bf16 %v1181, %v1181
        %v1214 = vpack.c.bf16 %v1182, %v1182
        %v1215 = vpack.c.bf16 %v1183, %v1183
        %v1216 = vpack.c.bf16 %v1184, %v1184
        %v1217 = vpack.c.bf16 %v1185, %v1185
        %v1218 = vpack.c.bf16 %v1186, %v1186
        %v1219 = vpack.c.bf16 %v1187, %v1187
        %v1220 = vpack.c.bf16 %v1188, %v1188
        %v1221 = vpack.c.bf16 %v1189, %v1189
        %v1222 = vpack.c.bf16 %v1190, %v1190
        %v1223 = vpack.c.bf16 %v1191, %v1191
        %v1224 = vpack.c.bf16 %v1192, %v1192
        %1225 = vst.msk [vmem:[#allocation4 + $0x8] sm:$0xf] %vm583, %v1193
        %1226 = vst.msk [vmem:[#allocation4 + $0x1c] sm:$0xf] %vm583, %v1194
        %1227 = vst.msk [vmem:[#allocation4 + $0x30] sm:$0xf] %vm583, %v1195
        %1228 = vst.msk [vmem:[#allocation4 + $0x44] sm:$0xf] %vm583, %v1196
        %1229 = vst.msk [vmem:[#allocation4 + $0x58] sm:$0xf] %vm583, %v1197
        %1230 = vst.msk [vmem:[#allocation4 + $0x6c] sm:$0xf] %vm583, %v1198
        %1231 = vst.msk [vmem:[#allocation4 + $0x80] sm:$0xf] %vm583, %v1199
        %1232 = vst.msk [vmem:[#allocation4 + $0x94] sm:$0xf] %vm583, %v1200
        %1233 = vst.msk [vmem:[#allocation4 + $0xa8] sm:$0xf] %vm583, %v1201
        %1234 = vst.msk [vmem:[#allocation4 + $0xbc] sm:$0xf] %vm583, %v1202
        %1235 = vst.msk [vmem:[#allocation4 + $0xd0] sm:$0xf] %vm583, %v1203
        %1236 = vst.msk [vmem:[#allocation4 + $0xe4] sm:$0xf] %vm583, %v1204
        %1237 = vst.msk [vmem:[#allocation4 + $0xf8] sm:$0xf] %vm583, %v1205
        %1238 = vst.msk [vmem:[#allocation4 + $0x10c] sm:$0xf] %vm583, %v1206
        %1239 = vst.msk [vmem:[#allocation4 + $0x120] sm:$0xf] %vm583, %v1207
        %1240 = vst.msk [vmem:[#allocation4 + $0x134] sm:$0xf] %vm583, %v1208
        %1241 = vst.msk [vmem:[#allocation4 + $0x148] sm:$0xf] %vm583, %v1209
        %1242 = vst.msk [vmem:[#allocation4 + $0x15c] sm:$0xf] %vm583, %v1210
        %1243 = vst.msk [vmem:[#allocation4 + $0x170] sm:$0xf] %vm583, %v1211
        %1244 = vst.msk [vmem:[#allocation4 + $0x184] sm:$0xf] %vm583, %v1212
        %1245 = vst.msk [vmem:[#allocation4 + $0x198] sm:$0xf] %vm583, %v1213
        %1246 = vst.msk [vmem:[#allocation4 + $0x1ac] sm:$0xf] %vm583, %v1214
        %1247 = vst.msk [vmem:[#allocation4 + $0x1c0] sm:$0xf] %vm583, %v1215
        %1248 = vst.msk [vmem:[#allocation4 + $0x1d4] sm:$0xf] %vm583, %v1216
        %1249 = vst.msk [vmem:[#allocation4 + $0x1e8] sm:$0xf] %vm583, %v1217
        %1250 = vst.msk [vmem:[#allocation4 + $0x1fc] sm:$0xf] %vm583, %v1218
        %1251 = vst.msk [vmem:[#allocation4 + $0x210] sm:$0xf] %vm583, %v1219
        %1252 = vst.msk [vmem:[#allocation4 + $0x224] sm:$0xf] %vm583, %v1220
        %1253 = vst.msk [vmem:[#allocation4 + $0x238] sm:$0xf] %vm583, %v1221
        %1254 = vst.msk [vmem:[#allocation4 + $0x24c] sm:$0xf] %vm583, %v1222
        %1255 = vst.msk [vmem:[#allocation4 + $0x260] sm:$0xf] %vm583, %v1223
        %1256 = vst.msk [vmem:[#allocation4 + $0x274] sm:$0xf] %vm583, %v1224
        %v1257 = vld [vmem:[%s414 + $0x2] sm:$0xff]
        %v1258 = vld [vmem:[%s414 + $0xa] sm:$0xff]
        %v1259 = vld [vmem:[%s414 + $0x1a] sm:$0xff]
        %v1260 = vld [vmem:[%s414 + $0x22] sm:$0xff]
        %v1261 = vld [vmem:[%s414 + $0x32] sm:$0xff]
        %v1262 = vld [vmem:[%s414 + $0x3a] sm:$0xff]
        %v1263 = vld [vmem:[%s414 + $0x4a] sm:$0xff]
        %v1264 = vld [vmem:[%s414 + $0x52] sm:$0xff]
        %v1265 = vld [vmem:[%s414 + $0x62] sm:$0xff]
        %v1266 = vld [vmem:[%s414 + $0x6a] sm:$0xff]
        %v1267 = vld [vmem:[%s414 + $0x7a] sm:$0xff]
        %v1268 = vld [vmem:[%s414 + $0x82] sm:$0xff]
        %v1269 = vld [vmem:[%s414 + $0x92] sm:$0xff]
        %v1270 = vld [vmem:[%s414 + $0x9a] sm:$0xff]
        %v1271 = vld [vmem:[%s414 + $0xaa] sm:$0xff]
        %v1272 = vld [vmem:[%s414 + $0xb2] sm:$0xff]
        %v1273 = vld [vmem:[%s414 + $0xc2] sm:$0xff]
        %v1274 = vld [vmem:[%s414 + $0xca] sm:$0xff]
        %v1275 = vld [vmem:[%s414 + $0xda] sm:$0xff]
        %v1276 = vld [vmem:[%s414 + $0xe2] sm:$0xff]
        %v1277 = vld [vmem:[%s414 + $0xf2] sm:$0xff]
        %v1278 = vld [vmem:[%s414 + $0xfa] sm:$0xff]
        %v1279 = vld [vmem:[%s414 + $0x10a] sm:$0xff]
        %v1280 = vld [vmem:[%s414 + $0x112] sm:$0xff]
        %v1281 = vld [vmem:[%s414 + $0x122] sm:$0xff]
        %v1282 = vld [vmem:[%s414 + $0x12a] sm:$0xff]
        %v1283 = vld [vmem:[%s414 + $0x13a] sm:$0xff]
        %v1284 = vld [vmem:[%s414 + $0x142] sm:$0xff]
        %v1285 = vld [vmem:[%s414 + $0x152] sm:$0xff]
        %v1286 = vld [vmem:[%s414 + $0x15a] sm:$0xff]
        %v1287 = vld [vmem:[%s414 + $0x16a] sm:$0xff]
        %v1288 = vld [vmem:[%s414 + $0x172] sm:$0xff]
        %v1289 = vpack.c.bf16 %v1257, %v1257
        %v1290 = vpack.c.bf16 %v1258, %v1258
        %v1291 = vpack.c.bf16 %v1259, %v1259
        %v1292 = vpack.c.bf16 %v1260, %v1260
        %v1293 = vpack.c.bf16 %v1261, %v1261
        %v1294 = vpack.c.bf16 %v1262, %v1262
        %v1295 = vpack.c.bf16 %v1263, %v1263
        %v1296 = vpack.c.bf16 %v1264, %v1264
        %v1297 = vpack.c.bf16 %v1265, %v1265
        %v1298 = vpack.c.bf16 %v1266, %v1266
        %v1299 = vpack.c.bf16 %v1267, %v1267
        %v1300 = vpack.c.bf16 %v1268, %v1268
        %v1301 = vpack.c.bf16 %v1269, %v1269
        %v1302 = vpack.c.bf16 %v1270, %v1270
        %v1303 = vpack.c.bf16 %v1271, %v1271
        %v1304 = vpack.c.bf16 %v1272, %v1272
        %v1305 = vpack.c.bf16 %v1273, %v1273
        %v1306 = vpack.c.bf16 %v1274, %v1274
        %v1307 = vpack.c.bf16 %v1275, %v1275
        %v1308 = vpack.c.bf16 %v1276, %v1276
        %v1309 = vpack.c.bf16 %v1277, %v1277
        %v1310 = vpack.c.bf16 %v1278, %v1278
        %v1311 = vpack.c.bf16 %v1279, %v1279
        %v1312 = vpack.c.bf16 %v1280, %v1280
        %v1313 = vpack.c.bf16 %v1281, %v1281
        %v1314 = vpack.c.bf16 %v1282, %v1282
        %v1315 = vpack.c.bf16 %v1283, %v1283
        %v1316 = vpack.c.bf16 %v1284, %v1284
        %v1317 = vpack.c.bf16 %v1285, %v1285
        %v1318 = vpack.c.bf16 %v1286, %v1286
        %v1319 = vpack.c.bf16 %v1287, %v1287
        %v1320 = vpack.c.bf16 %v1288, %v1288
        %1353 = vrot.lane.b32.xlu0 %v1289, 64
        %v1354 = vpop.permute.xlu0 %1353
        %1355 = vrot.lane.b32.xlu0 %v1290, 64
        %v1356 = vpop.permute.xlu0 %1355
        %1357 = vrot.lane.b32.xlu0 %v1291, 64
        %v1358 = vpop.permute.xlu0 %1357
        %1359 = vrot.lane.b32.xlu0 %v1292, 64
        %v1360 = vpop.permute.xlu0 %1359
        %1361 = vrot.lane.b32.xlu0 %v1293, 64
        %v1362 = vpop.permute.xlu0 %1361
        %1363 = vrot.lane.b32.xlu0 %v1294, 64
        %v1364 = vpop.permute.xlu0 %1363
        %1365 = vrot.lane.b32.xlu0 %v1295, 64
        %v1366 = vpop.permute.xlu0 %1365
        %1367 = vrot.lane.b32.xlu0 %v1296, 64
        %v1368 = vpop.permute.xlu0 %1367
        %1369 = vrot.lane.b32.xlu0 %v1297, 64
        %v1370 = vpop.permute.xlu0 %1369
        %1371 = vrot.lane.b32.xlu0 %v1298, 64
        %v1372 = vpop.permute.xlu0 %1371
        %1373 = vrot.lane.b32.xlu0 %v1299, 64
        %v1374 = vpop.permute.xlu0 %1373
        %1375 = vrot.lane.b32.xlu0 %v1300, 64
        %v1376 = vpop.permute.xlu0 %1375
        %1377 = vrot.lane.b32.xlu0 %v1301, 64
        %v1378 = vpop.permute.xlu0 %1377
        %1379 = vrot.lane.b32.xlu0 %v1302, 64
        %v1380 = vpop.permute.xlu0 %1379
        %1381 = vrot.lane.b32.xlu0 %v1303, 64
        %v1382 = vpop.permute.xlu0 %1381
        %1383 = vrot.lane.b32.xlu0 %v1304, 64
        %v1384 = vpop.permute.xlu0 %1383
        %1385 = vrot.lane.b32.xlu0 %v1305, 64
        %v1386 = vpop.permute.xlu0 %1385
        %1387 = vrot.lane.b32.xlu0 %v1306, 64
        %v1388 = vpop.permute.xlu0 %1387
        %1389 = vrot.lane.b32.xlu0 %v1307, 64
        %v1390 = vpop.permute.xlu0 %1389
        %1391 = vrot.lane.b32.xlu0 %v1308, 64
        %v1392 = vpop.permute.xlu0 %1391
        %1393 = vrot.lane.b32.xlu0 %v1309, 64
        %v1394 = vpop.permute.xlu0 %1393
        %1395 = vrot.lane.b32.xlu0 %v1310, 64
        %v1396 = vpop.permute.xlu0 %1395
        %1397 = vrot.lane.b32.xlu0 %v1311, 64
        %v1398 = vpop.permute.xlu0 %1397
        %1399 = vrot.lane.b32.xlu0 %v1312, 64
        %v1400 = vpop.permute.xlu0 %1399
        %1401 = vrot.lane.b32.xlu0 %v1313, 64
        %v1402 = vpop.permute.xlu0 %1401
        %1403 = vrot.lane.b32.xlu0 %v1314, 64
        %v1404 = vpop.permute.xlu0 %1403
        %1405 = vrot.lane.b32.xlu0 %v1315, 64
        %v1406 = vpop.permute.xlu0 %1405
        %1407 = vrot.lane.b32.xlu0 %v1316, 64
        %v1408 = vpop.permute.xlu0 %1407
        %1409 = vrot.lane.b32.xlu0 %v1317, 64
        %v1410 = vpop.permute.xlu0 %1409
        %1411 = vrot.lane.b32.xlu0 %v1318, 64
        %v1412 = vpop.permute.xlu0 %1411
        %1413 = vrot.lane.b32.xlu0 %v1319, 64
        %v1414 = vpop.permute.xlu0 %1413
        %1415 = vrot.lane.b32.xlu0 %v1320, 64
        %v1416 = vpop.permute.xlu0 %1415
        %1449 = vst.msk [vmem:[#allocation4 + $0x8] sm:$0xf] %vm808, %v1354
        %1450 = vst.msk [vmem:[#allocation4 + $0x1c] sm:$0xf] %vm808, %v1356
        %1451 = vst.msk [vmem:[#allocation4 + $0x30] sm:$0xf] %vm808, %v1358
        %1452 = vst.msk [vmem:[#allocation4 + $0x44] sm:$0xf] %vm808, %v1360
        %1453 = vst.msk [vmem:[#allocation4 + $0x58] sm:$0xf] %vm808, %v1362
        %1454 = vst.msk [vmem:[#allocation4 + $0x6c] sm:$0xf] %vm808, %v1364
        %1455 = vst.msk [vmem:[#allocation4 + $0x80] sm:$0xf] %vm808, %v1366
        %1456 = vst.msk [vmem:[#allocation4 + $0x94] sm:$0xf] %vm808, %v1368
        %1457 = vst.msk [vmem:[#allocation4 + $0xa8] sm:$0xf] %vm808, %v1370
        %1458 = vst.msk [vmem:[#allocation4 + $0xbc] sm:$0xf] %vm808, %v1372
        %1459 = vst.msk [vmem:[#allocation4 + $0xd0] sm:$0xf] %vm808, %v1374
        %1460 = vst.msk [vmem:[#allocation4 + $0xe4] sm:$0xf] %vm808, %v1376
        %1461 = vst.msk [vmem:[#allocation4 + $0xf8] sm:$0xf] %vm808, %v1378
        %1462 = vst.msk [vmem:[#allocation4 + $0x10c] sm:$0xf] %vm808, %v1380
        %1463 = vst.msk [vmem:[#allocation4 + $0x120] sm:$0xf] %vm808, %v1382
        %1464 = vst.msk [vmem:[#allocation4 + $0x134] sm:$0xf] %vm808, %v1384
        %1465 = vst.msk [vmem:[#allocation4 + $0x148] sm:$0xf] %vm808, %v1386
        %1466 = vst.msk [vmem:[#allocation4 + $0x15c] sm:$0xf] %vm808, %v1388
        %1467 = vst.msk [vmem:[#allocation4 + $0x170] sm:$0xf] %vm808, %v1390
        %1468 = vst.msk [vmem:[#allocation4 + $0x184] sm:$0xf] %vm808, %v1392
        %1469 = vst.msk [vmem:[#allocation4 + $0x198] sm:$0xf] %vm808, %v1394
        %1470 = vst.msk [vmem:[#allocation4 + $0x1ac] sm:$0xf] %vm808, %v1396
        %1471 = vst.msk [vmem:[#allocation4 + $0x1c0] sm:$0xf] %vm808, %v1398
        %1472 = vst.msk [vmem:[#allocation4 + $0x1d4] sm:$0xf] %vm808, %v1400
        %1473 = vst.msk [vmem:[#allocation4 + $0x1e8] sm:$0xf] %vm808, %v1402
        %1474 = vst.msk [vmem:[#allocation4 + $0x1fc] sm:$0xf] %vm808, %v1404
        %1475 = vst.msk [vmem:[#allocation4 + $0x210] sm:$0xf] %vm808, %v1406
        %1476 = vst.msk [vmem:[#allocation4 + $0x224] sm:$0xf] %vm808, %v1408
        %1477 = vst.msk [vmem:[#allocation4 + $0x238] sm:$0xf] %vm808, %v1410
        %1478 = vst.msk [vmem:[#allocation4 + $0x24c] sm:$0xf] %vm808, %v1412
        %1479 = vst.msk [vmem:[#allocation4 + $0x260] sm:$0xf] %vm808, %v1414
        %1480 = vst.msk [vmem:[#allocation4 + $0x274] sm:$0xf] %vm808, %v1416
        %s1481 = scalar_lea.vmem [#allocation2], 48
        %v1482 = vld [vmem:[%s1481] sm:$0xff]
        %v1483 = vld [vmem:[%s1481 + $0x8] sm:$0xff]
        %v1484 = vld [vmem:[%s1481 + $0x18] sm:$0xff]
        %v1485 = vld [vmem:[%s1481 + $0x20] sm:$0xff]
        %v1486 = vld [vmem:[%s1481 + $0x30] sm:$0xff]
        %v1487 = vld [vmem:[%s1481 + $0x38] sm:$0xff]
        %v1488 = vld [vmem:[%s1481 + $0x48] sm:$0xff]
        %v1489 = vld [vmem:[%s1481 + $0x50] sm:$0xff]
        %v1490 = vld [vmem:[%s1481 + $0x60] sm:$0xff]
        %v1491 = vld [vmem:[%s1481 + $0x68] sm:$0xff]
        %v1492 = vld [vmem:[%s1481 + $0x78] sm:$0xff]
        %v1493 = vld [vmem:[%s1481 + $0x80] sm:$0xff]
        %v1494 = vld [vmem:[%s1481 + $0x90] sm:$0xff]
        %v1495 = vld [vmem:[%s1481 + $0x98] sm:$0xff]
        %v1496 = vld [vmem:[%s1481 + $0xa8] sm:$0xff]
        %v1497 = vld [vmem:[%s1481 + $0xb0] sm:$0xff]
        %v1498 = vld [vmem:[%s1481 + $0xc0] sm:$0xff]
        %v1499 = vld [vmem:[%s1481 + $0xc8] sm:$0xff]
        %v1500 = vld [vmem:[%s1481 + $0xd8] sm:$0xff]
        %v1501 = vld [vmem:[%s1481 + $0xe0] sm:$0xff]
        %v1502 = vld [vmem:[%s1481 + $0xf0] sm:$0xff]
        %v1503 = vld [vmem:[%s1481 + $0xf8] sm:$0xff]
        %v1504 = vld [vmem:[%s1481 + $0x108] sm:$0xff]
        %v1505 = vld [vmem:[%s1481 + $0x110] sm:$0xff]
        %v1506 = vld [vmem:[%s1481 + $0x120] sm:$0xff]
        %v1507 = vld [vmem:[%s1481 + $0x128] sm:$0xff]
        %v1508 = vld [vmem:[%s1481 + $0x138] sm:$0xff]
        %v1509 = vld [vmem:[%s1481 + $0x140] sm:$0xff]
        %v1510 = vld [vmem:[%s1481 + $0x150] sm:$0xff]
        %v1511 = vld [vmem:[%s1481 + $0x158] sm:$0xff]
        %v1512 = vld [vmem:[%s1481 + $0x168] sm:$0xff]
        %v1513 = vld [vmem:[%s1481 + $0x170] sm:$0xff]
        %v1514 = vpack.c.bf16 %v1482, %v1482
        %v1515 = vpack.c.bf16 %v1483, %v1483
        %v1516 = vpack.c.bf16 %v1484, %v1484
        %v1517 = vpack.c.bf16 %v1485, %v1485
        %v1518 = vpack.c.bf16 %v1486, %v1486
        %v1519 = vpack.c.bf16 %v1487, %v1487
        %v1520 = vpack.c.bf16 %v1488, %v1488
        %v1521 = vpack.c.bf16 %v1489, %v1489
        %v1522 = vpack.c.bf16 %v1490, %v1490
        %v1523 = vpack.c.bf16 %v1491, %v1491
        %v1524 = vpack.c.bf16 %v1492, %v1492
        %v1525 = vpack.c.bf16 %v1493, %v1493
        %v1526 = vpack.c.bf16 %v1494, %v1494
        %v1527 = vpack.c.bf16 %v1495, %v1495
        %v1528 = vpack.c.bf16 %v1496, %v1496
        %v1529 = vpack.c.bf16 %v1497, %v1497
        %v1530 = vpack.c.bf16 %v1498, %v1498
        %v1531 = vpack.c.bf16 %v1499, %v1499
        %v1532 = vpack.c.bf16 %v1500, %v1500
        %v1533 = vpack.c.bf16 %v1501, %v1501
        %v1534 = vpack.c.bf16 %v1502, %v1502
        %v1535 = vpack.c.bf16 %v1503, %v1503
        %v1536 = vpack.c.bf16 %v1504, %v1504
        %v1537 = vpack.c.bf16 %v1505, %v1505
        %v1538 = vpack.c.bf16 %v1506, %v1506
        %v1539 = vpack.c.bf16 %v1507, %v1507
        %v1540 = vpack.c.bf16 %v1508, %v1508
        %v1541 = vpack.c.bf16 %v1509, %v1509
        %v1542 = vpack.c.bf16 %v1510, %v1510
        %v1543 = vpack.c.bf16 %v1511, %v1511
        %v1544 = vpack.c.bf16 %v1512, %v1512
        %v1545 = vpack.c.bf16 %v1513, %v1513
        %1546 = vst.msk [vmem:[#allocation4 + $0xc] sm:$0xf] %vm583, %v1514
        %1547 = vst.msk [vmem:[#allocation4 + $0x20] sm:$0xf] %vm583, %v1515
        %1548 = vst.msk [vmem:[#allocation4 + $0x34] sm:$0xf] %vm583, %v1516
        %1549 = vst.msk [vmem:[#allocation4 + $0x48] sm:$0xf] %vm583, %v1517
        %1550 = vst.msk [vmem:[#allocation4 + $0x5c] sm:$0xf] %vm583, %v1518
        %1551 = vst.msk [vmem:[#allocation4 + $0x70] sm:$0xf] %vm583, %v1519
        %1552 = vst.msk [vmem:[#allocation4 + $0x84] sm:$0xf] %vm583, %v1520
        %1553 = vst.msk [vmem:[#allocation4 + $0x98] sm:$0xf] %vm583, %v1521
        %1554 = vst.msk [vmem:[#allocation4 + $0xac] sm:$0xf] %vm583, %v1522
        %1555 = vst.msk [vmem:[#allocation4 + $0xc0] sm:$0xf] %vm583, %v1523
        %1556 = vst.msk [vmem:[#allocation4 + $0xd4] sm:$0xf] %vm583, %v1524
        %1557 = vst.msk [vmem:[#allocation4 + $0xe8] sm:$0xf] %vm583, %v1525
        %1558 = vst.msk [vmem:[#allocation4 + $0xfc] sm:$0xf] %vm583, %v1526
        %1559 = vst.msk [vmem:[#allocation4 + $0x110] sm:$0xf] %vm583, %v1527
        %1560 = vst.msk [vmem:[#allocation4 + $0x124] sm:$0xf] %vm583, %v1528
        %1561 = vst.msk [vmem:[#allocation4 + $0x138] sm:$0xf] %vm583, %v1529
        %1562 = vst.msk [vmem:[#allocation4 + $0x14c] sm:$0xf] %vm583, %v1530
        %1563 = vst.msk [vmem:[#allocation4 + $0x160] sm:$0xf] %vm583, %v1531
        %1564 = vst.msk [vmem:[#allocation4 + $0x174] sm:$0xf] %vm583, %v1532
        %1565 = vst.msk [vmem:[#allocation4 + $0x188] sm:$0xf] %vm583, %v1533
        %1566 = vst.msk [vmem:[#allocation4 + $0x19c] sm:$0xf] %vm583, %v1534
        %1567 = vst.msk [vmem:[#allocation4 + $0x1b0] sm:$0xf] %vm583, %v1535
        %1568 = vst.msk [vmem:[#allocation4 + $0x1c4] sm:$0xf] %vm583, %v1536
        %1569 = vst.msk [vmem:[#allocation4 + $0x1d8] sm:$0xf] %vm583, %v1537
        %1570 = vst.msk [vmem:[#allocation4 + $0x1ec] sm:$0xf] %vm583, %v1538
        %1571 = vst.msk [vmem:[#allocation4 + $0x200] sm:$0xf] %vm583, %v1539
        %1572 = vst.msk [vmem:[#allocation4 + $0x214] sm:$0xf] %vm583, %v1540
        %1573 = vst.msk [vmem:[#allocation4 + $0x228] sm:$0xf] %vm583, %v1541
        %1574 = vst.msk [vmem:[#allocation4 + $0x23c] sm:$0xf] %vm583, %v1542
        %1575 = vst.msk [vmem:[#allocation4 + $0x250] sm:$0xf] %vm583, %v1543
        %1576 = vst.msk [vmem:[#allocation4 + $0x264] sm:$0xf] %vm583, %v1544
        %1577 = vst.msk [vmem:[#allocation4 + $0x278] sm:$0xf] %vm583, %v1545
        %v1578 = vld [vmem:[%s1481 + $0x1] sm:$0xff]
        %v1579 = vld [vmem:[%s1481 + $0x9] sm:$0xff]
        %v1580 = vld [vmem:[%s1481 + $0x19] sm:$0xff]
        %v1581 = vld [vmem:[%s1481 + $0x21] sm:$0xff]
        %v1582 = vld [vmem:[%s1481 + $0x31] sm:$0xff]
        %v1583 = vld [vmem:[%s1481 + $0x39] sm:$0xff]
        %v1584 = vld [vmem:[%s1481 + $0x49] sm:$0xff]
        %v1585 = vld [vmem:[%s1481 + $0x51] sm:$0xff]
        %v1586 = vld [vmem:[%s1481 + $0x61] sm:$0xff]
        %v1587 = vld [vmem:[%s1481 + $0x69] sm:$0xff]
        %v1588 = vld [vmem:[%s1481 + $0x79] sm:$0xff]
        %v1589 = vld [vmem:[%s1481 + $0x81] sm:$0xff]
        %v1590 = vld [vmem:[%s1481 + $0x91] sm:$0xff]
        %v1591 = vld [vmem:[%s1481 + $0x99] sm:$0xff]
        %v1592 = vld [vmem:[%s1481 + $0xa9] sm:$0xff]
        %v1593 = vld [vmem:[%s1481 + $0xb1] sm:$0xff]
        %v1594 = vld [vmem:[%s1481 + $0xc1] sm:$0xff]
        %v1595 = vld [vmem:[%s1481 + $0xc9] sm:$0xff]
        %v1596 = vld [vmem:[%s1481 + $0xd9] sm:$0xff]
        %v1597 = vld [vmem:[%s1481 + $0xe1] sm:$0xff]
        %v1598 = vld [vmem:[%s1481 + $0xf1] sm:$0xff]
        %v1599 = vld [vmem:[%s1481 + $0xf9] sm:$0xff]
        %v1600 = vld [vmem:[%s1481 + $0x109] sm:$0xff]
        %v1601 = vld [vmem:[%s1481 + $0x111] sm:$0xff]
        %v1602 = vld [vmem:[%s1481 + $0x121] sm:$0xff]
        %v1603 = vld [vmem:[%s1481 + $0x129] sm:$0xff]
        %v1604 = vld [vmem:[%s1481 + $0x139] sm:$0xff]
        %v1605 = vld [vmem:[%s1481 + $0x141] sm:$0xff]
        %v1606 = vld [vmem:[%s1481 + $0x151] sm:$0xff]
        %v1607 = vld [vmem:[%s1481 + $0x159] sm:$0xff]
        %v1608 = vld [vmem:[%s1481 + $0x169] sm:$0xff]
        %v1609 = vld [vmem:[%s1481 + $0x171] sm:$0xff]
        %v1610 = vpack.c.bf16 %v1578, %v1578
        %v1611 = vpack.c.bf16 %v1579, %v1579
        %v1612 = vpack.c.bf16 %v1580, %v1580
        %v1613 = vpack.c.bf16 %v1581, %v1581
        %v1614 = vpack.c.bf16 %v1582, %v1582
        %v1615 = vpack.c.bf16 %v1583, %v1583
        %v1616 = vpack.c.bf16 %v1584, %v1584
        %v1617 = vpack.c.bf16 %v1585, %v1585
        %v1618 = vpack.c.bf16 %v1586, %v1586
        %v1619 = vpack.c.bf16 %v1587, %v1587
        %v1620 = vpack.c.bf16 %v1588, %v1588
        %v1621 = vpack.c.bf16 %v1589, %v1589
        %v1622 = vpack.c.bf16 %v1590, %v1590
        %v1623 = vpack.c.bf16 %v1591, %v1591
        %v1624 = vpack.c.bf16 %v1592, %v1592
        %v1625 = vpack.c.bf16 %v1593, %v1593
        %v1626 = vpack.c.bf16 %v1594, %v1594
        %v1627 = vpack.c.bf16 %v1595, %v1595
        %v1628 = vpack.c.bf16 %v1596, %v1596
        %v1629 = vpack.c.bf16 %v1597, %v1597
        %v1630 = vpack.c.bf16 %v1598, %v1598
        %v1631 = vpack.c.bf16 %v1599, %v1599
        %v1632 = vpack.c.bf16 %v1600, %v1600
        %v1633 = vpack.c.bf16 %v1601, %v1601
        %v1634 = vpack.c.bf16 %v1602, %v1602
        %v1635 = vpack.c.bf16 %v1603, %v1603
        %v1636 = vpack.c.bf16 %v1604, %v1604
        %v1637 = vpack.c.bf16 %v1605, %v1605
        %v1638 = vpack.c.bf16 %v1606, %v1606
        %v1639 = vpack.c.bf16 %v1607, %v1607
        %v1640 = vpack.c.bf16 %v1608, %v1608
        %v1641 = vpack.c.bf16 %v1609, %v1609
        %1674 = vrot.lane.b32.xlu0 %v1610, 64
        %v1675 = vpop.permute.xlu0 %1674
        %1676 = vrot.lane.b32.xlu0 %v1611, 64
        %v1677 = vpop.permute.xlu0 %1676
        %1678 = vrot.lane.b32.xlu0 %v1612, 64
        %v1679 = vpop.permute.xlu0 %1678
        %1680 = vrot.lane.b32.xlu0 %v1613, 64
        %v1681 = vpop.permute.xlu0 %1680
        %1682 = vrot.lane.b32.xlu0 %v1614, 64
        %v1683 = vpop.permute.xlu0 %1682
        %1684 = vrot.lane.b32.xlu0 %v1615, 64
        %v1685 = vpop.permute.xlu0 %1684
        %1686 = vrot.lane.b32.xlu0 %v1616, 64
        %v1687 = vpop.permute.xlu0 %1686
        %1688 = vrot.lane.b32.xlu0 %v1617, 64
        %v1689 = vpop.permute.xlu0 %1688
        %1690 = vrot.lane.b32.xlu0 %v1618, 64
        %v1691 = vpop.permute.xlu0 %1690
        %1692 = vrot.lane.b32.xlu0 %v1619, 64
        %v1693 = vpop.permute.xlu0 %1692
        %1694 = vrot.lane.b32.xlu0 %v1620, 64
        %v1695 = vpop.permute.xlu0 %1694
        %1696 = vrot.lane.b32.xlu0 %v1621, 64
        %v1697 = vpop.permute.xlu0 %1696
        %1698 = vrot.lane.b32.xlu0 %v1622, 64
        %v1699 = vpop.permute.xlu0 %1698
        %1700 = vrot.lane.b32.xlu0 %v1623, 64
        %v1701 = vpop.permute.xlu0 %1700
        %1702 = vrot.lane.b32.xlu0 %v1624, 64
        %v1703 = vpop.permute.xlu0 %1702
        %1704 = vrot.lane.b32.xlu0 %v1625, 64
        %v1705 = vpop.permute.xlu0 %1704
        %1706 = vrot.lane.b32.xlu0 %v1626, 64
        %v1707 = vpop.permute.xlu0 %1706
        %1708 = vrot.lane.b32.xlu0 %v1627, 64
        %v1709 = vpop.permute.xlu0 %1708
        %1710 = vrot.lane.b32.xlu0 %v1628, 64
        %v1711 = vpop.permute.xlu0 %1710
        %1712 = vrot.lane.b32.xlu0 %v1629, 64
        %v1713 = vpop.permute.xlu0 %1712
        %1714 = vrot.lane.b32.xlu0 %v1630, 64
        %v1715 = vpop.permute.xlu0 %1714
        %1716 = vrot.lane.b32.xlu0 %v1631, 64
        %v1717 = vpop.permute.xlu0 %1716
        %1718 = vrot.lane.b32.xlu0 %v1632, 64
        %v1719 = vpop.permute.xlu0 %1718
        %1720 = vrot.lane.b32.xlu0 %v1633, 64
        %v1721 = vpop.permute.xlu0 %1720
        %1722 = vrot.lane.b32.xlu0 %v1634, 64
        %v1723 = vpop.permute.xlu0 %1722
        %1724 = vrot.lane.b32.xlu0 %v1635, 64
        %v1725 = vpop.permute.xlu0 %1724
        %1726 = vrot.lane.b32.xlu0 %v1636, 64
        %v1727 = vpop.permute.xlu0 %1726
        %1728 = vrot.lane.b32.xlu0 %v1637, 64
        %v1729 = vpop.permute.xlu0 %1728
        %1730 = vrot.lane.b32.xlu0 %v1638, 64
        %v1731 = vpop.permute.xlu0 %1730
        %1732 = vrot.lane.b32.xlu0 %v1639, 64
        %v1733 = vpop.permute.xlu0 %1732
        %1734 = vrot.lane.b32.xlu0 %v1640, 64
        %v1735 = vpop.permute.xlu0 %1734
        %1736 = vrot.lane.b32.xlu0 %v1641, 64
        %v1737 = vpop.permute.xlu0 %1736
        %1770 = vst.msk [vmem:[#allocation4 + $0xc] sm:$0xf] %vm808, %v1675
        %1771 = vst.msk [vmem:[#allocation4 + $0x20] sm:$0xf] %vm808, %v1677
        %1772 = vst.msk [vmem:[#allocation4 + $0x34] sm:$0xf] %vm808, %v1679
        %1773 = vst.msk [vmem:[#allocation4 + $0x48] sm:$0xf] %vm808, %v1681
        %1774 = vst.msk [vmem:[#allocation4 + $0x5c] sm:$0xf] %vm808, %v1683
        %1775 = vst.msk [vmem:[#allocation4 + $0x70] sm:$0xf] %vm808, %v1685
        %1776 = vst.msk [vmem:[#allocation4 + $0x84] sm:$0xf] %vm808, %v1687
        %1777 = vst.msk [vmem:[#allocation4 + $0x98] sm:$0xf] %vm808, %v1689
        %1778 = vst.msk [vmem:[#allocation4 + $0xac] sm:$0xf] %vm808, %v1691
        %1779 = vst.msk [vmem:[#allocation4 + $0xc0] sm:$0xf] %vm808, %v1693
        %1780 = vst.msk [vmem:[#allocation4 + $0xd4] sm:$0xf] %vm808, %v1695
        %1781 = vst.msk [vmem:[#allocation4 + $0xe8] sm:$0xf] %vm808, %v1697
        %1782 = vst.msk [vmem:[#allocation4 + $0xfc] sm:$0xf] %vm808, %v1699
        %1783 = vst.msk [vmem:[#allocation4 + $0x110] sm:$0xf] %vm808, %v1701
        %1784 = vst.msk [vmem:[#allocation4 + $0x124] sm:$0xf] %vm808, %v1703
        %1785 = vst.msk [vmem:[#allocation4 + $0x138] sm:$0xf] %vm808, %v1705
        %1786 = vst.msk [vmem:[#allocation4 + $0x14c] sm:$0xf] %vm808, %v1707
        %1787 = vst.msk [vmem:[#allocation4 + $0x160] sm:$0xf] %vm808, %v1709
        %1788 = vst.msk [vmem:[#allocation4 + $0x174] sm:$0xf] %vm808, %v1711
        %1789 = vst.msk [vmem:[#allocation4 + $0x188] sm:$0xf] %vm808, %v1713
        %1790 = vst.msk [vmem:[#allocation4 + $0x19c] sm:$0xf] %vm808, %v1715
        %1791 = vst.msk [vmem:[#allocation4 + $0x1b0] sm:$0xf] %vm808, %v1717
        %1792 = vst.msk [vmem:[#allocation4 + $0x1c4] sm:$0xf] %vm808, %v1719
        %1793 = vst.msk [vmem:[#allocation4 + $0x1d8] sm:$0xf] %vm808, %v1721
        %1794 = vst.msk [vmem:[#allocation4 + $0x1ec] sm:$0xf] %vm808, %v1723
        %1795 = vst.msk [vmem:[#allocation4 + $0x200] sm:$0xf] %vm808, %v1725
        %1796 = vst.msk [vmem:[#allocation4 + $0x214] sm:$0xf] %vm808, %v1727
        %1797 = vst.msk [vmem:[#allocation4 + $0x228] sm:$0xf] %vm808, %v1729
        %1798 = vst.msk [vmem:[#allocation4 + $0x23c] sm:$0xf] %vm808, %v1731
        %1799 = vst.msk [vmem:[#allocation4 + $0x250] sm:$0xf] %vm808, %v1733
        %1800 = vst.msk [vmem:[#allocation4 + $0x264] sm:$0xf] %vm808, %v1735
        %1801 = vst.msk [vmem:[#allocation4 + $0x278] sm:$0xf] %vm808, %v1737
        %v1802 = vld [vmem:[%s1481 + $0x2] sm:$0xff]
        %v1803 = vld [vmem:[%s1481 + $0xa] sm:$0xff]
        %v1804 = vld [vmem:[%s1481 + $0x1a] sm:$0xff]
        %v1805 = vld [vmem:[%s1481 + $0x22] sm:$0xff]
        %v1806 = vld [vmem:[%s1481 + $0x32] sm:$0xff]
        %v1807 = vld [vmem:[%s1481 + $0x3a] sm:$0xff]
        %v1808 = vld [vmem:[%s1481 + $0x4a] sm:$0xff]
        %v1809 = vld [vmem:[%s1481 + $0x52] sm:$0xff]
        %v1810 = vld [vmem:[%s1481 + $0x62] sm:$0xff]
        %v1811 = vld [vmem:[%s1481 + $0x6a] sm:$0xff]
        %v1812 = vld [vmem:[%s1481 + $0x7a] sm:$0xff]
        %v1813 = vld [vmem:[%s1481 + $0x82] sm:$0xff]
        %v1814 = vld [vmem:[%s1481 + $0x92] sm:$0xff]
        %v1815 = vld [vmem:[%s1481 + $0x9a] sm:$0xff]
        %v1816 = vld [vmem:[%s1481 + $0xaa] sm:$0xff]
        %v1817 = vld [vmem:[%s1481 + $0xb2] sm:$0xff]
        %v1818 = vld [vmem:[%s1481 + $0xc2] sm:$0xff]
        %v1819 = vld [vmem:[%s1481 + $0xca] sm:$0xff]
        %v1820 = vld [vmem:[%s1481 + $0xda] sm:$0xff]
        %v1821 = vld [vmem:[%s1481 + $0xe2] sm:$0xff]
        %v1822 = vld [vmem:[%s1481 + $0xf2] sm:$0xff]
        %v1823 = vld [vmem:[%s1481 + $0xfa] sm:$0xff]
        %v1824 = vld [vmem:[%s1481 + $0x10a] sm:$0xff]
        %v1825 = vld [vmem:[%s1481 + $0x112] sm:$0xff]
        %v1826 = vld [vmem:[%s1481 + $0x122] sm:$0xff]
        %v1827 = vld [vmem:[%s1481 + $0x12a] sm:$0xff]
        %v1828 = vld [vmem:[%s1481 + $0x13a] sm:$0xff]
        %v1829 = vld [vmem:[%s1481 + $0x142] sm:$0xff]
        %v1830 = vld [vmem:[%s1481 + $0x152] sm:$0xff]
        %v1831 = vld [vmem:[%s1481 + $0x15a] sm:$0xff]
        %v1832 = vld [vmem:[%s1481 + $0x16a] sm:$0xff]
        %v1833 = vld [vmem:[%s1481 + $0x172] sm:$0xff]
        %v1834 = vpack.c.bf16 %v1802, %v1802
        %v1835 = vpack.c.bf16 %v1803, %v1803
        %v1836 = vpack.c.bf16 %v1804, %v1804
        %v1837 = vpack.c.bf16 %v1805, %v1805
        %v1838 = vpack.c.bf16 %v1806, %v1806
        %v1839 = vpack.c.bf16 %v1807, %v1807
        %v1840 = vpack.c.bf16 %v1808, %v1808
        %v1841 = vpack.c.bf16 %v1809, %v1809
        %v1842 = vpack.c.bf16 %v1810, %v1810
        %v1843 = vpack.c.bf16 %v1811, %v1811
        %v1844 = vpack.c.bf16 %v1812, %v1812
        %v1845 = vpack.c.bf16 %v1813, %v1813
        %v1846 = vpack.c.bf16 %v1814, %v1814
        %v1847 = vpack.c.bf16 %v1815, %v1815
        %v1848 = vpack.c.bf16 %v1816, %v1816
        %v1849 = vpack.c.bf16 %v1817, %v1817
        %v1850 = vpack.c.bf16 %v1818, %v1818
        %v1851 = vpack.c.bf16 %v1819, %v1819
        %v1852 = vpack.c.bf16 %v1820, %v1820
        %v1853 = vpack.c.bf16 %v1821, %v1821
        %v1854 = vpack.c.bf16 %v1822, %v1822
        %v1855 = vpack.c.bf16 %v1823, %v1823
        %v1856 = vpack.c.bf16 %v1824, %v1824
        %v1857 = vpack.c.bf16 %v1825, %v1825
        %v1858 = vpack.c.bf16 %v1826, %v1826
        %v1859 = vpack.c.bf16 %v1827, %v1827
        %v1860 = vpack.c.bf16 %v1828, %v1828
        %v1861 = vpack.c.bf16 %v1829, %v1829
        %v1862 = vpack.c.bf16 %v1830, %v1830
        %v1863 = vpack.c.bf16 %v1831, %v1831
        %v1864 = vpack.c.bf16 %v1832, %v1832
        %v1865 = vpack.c.bf16 %v1833, %v1833
        %1866 = vst.msk [vmem:[#allocation4 + $0x10] sm:$0xf] %vm583, %v1834
        %1867 = vst.msk [vmem:[#allocation4 + $0x24] sm:$0xf] %vm583, %v1835
        %1868 = vst.msk [vmem:[#allocation4 + $0x38] sm:$0xf] %vm583, %v1836
        %1869 = vst.msk [vmem:[#allocation4 + $0x4c] sm:$0xf] %vm583, %v1837
        %1870 = vst.msk [vmem:[#allocation4 + $0x60] sm:$0xf] %vm583, %v1838
        %1871 = vst.msk [vmem:[#allocation4 + $0x74] sm:$0xf] %vm583, %v1839
        %1872 = vst.msk [vmem:[#allocation4 + $0x88] sm:$0xf] %vm583, %v1840
        %1873 = vst.msk [vmem:[#allocation4 + $0x9c] sm:$0xf] %vm583, %v1841
        %1874 = vst.msk [vmem:[#allocation4 + $0xb0] sm:$0xf] %vm583, %v1842
        %1875 = vst.msk [vmem:[#allocation4 + $0xc4] sm:$0xf] %vm583, %v1843
        %1876 = vst.msk [vmem:[#allocation4 + $0xd8] sm:$0xf] %vm583, %v1844
        %1877 = vst.msk [vmem:[#allocation4 + $0xec] sm:$0xf] %vm583, %v1845
        %1878 = vst.msk [vmem:[#allocation4 + $0x100] sm:$0xf] %vm583, %v1846
        %1879 = vst.msk [vmem:[#allocation4 + $0x114] sm:$0xf] %vm583, %v1847
        %1880 = vst.msk [vmem:[#allocation4 + $0x128] sm:$0xf] %vm583, %v1848
        %1881 = vst.msk [vmem:[#allocation4 + $0x13c] sm:$0xf] %vm583, %v1849
        %1882 = vst.msk [vmem:[#allocation4 + $0x150] sm:$0xf] %vm583, %v1850
        %1883 = vst.msk [vmem:[#allocation4 + $0x164] sm:$0xf] %vm583, %v1851
        %1884 = vst.msk [vmem:[#allocation4 + $0x178] sm:$0xf] %vm583, %v1852
        %1885 = vst.msk [vmem:[#allocation4 + $0x18c] sm:$0xf] %vm583, %v1853
        %1886 = vst.msk [vmem:[#allocation4 + $0x1a0] sm:$0xf] %vm583, %v1854
        %1887 = vst.msk [vmem:[#allocation4 + $0x1b4] sm:$0xf] %vm583, %v1855
        %1888 = vst.msk [vmem:[#allocation4 + $0x1c8] sm:$0xf] %vm583, %v1856
        %1889 = vst.msk [vmem:[#allocation4 + $0x1dc] sm:$0xf] %vm583, %v1857
        %1890 = vst.msk [vmem:[#allocation4 + $0x1f0] sm:$0xf] %vm583, %v1858
        %1891 = vst.msk [vmem:[#allocation4 + $0x204] sm:$0xf] %vm583, %v1859
        %1892 = vst.msk [vmem:[#allocation4 + $0x218] sm:$0xf] %vm583, %v1860
        %1893 = vst.msk [vmem:[#allocation4 + $0x22c] sm:$0xf] %vm583, %v1861
        %1894 = vst.msk [vmem:[#allocation4 + $0x240] sm:$0xf] %vm583, %v1862
        %1895 = vst.msk [vmem:[#allocation4 + $0x254] sm:$0xf] %vm583, %v1863
        %1896 = vst.msk [vmem:[#allocation4 + $0x268] sm:$0xf] %vm583, %v1864
        %1897 = vst.msk [vmem:[#allocation4 + $0x27c] sm:$0xf] %vm583, %v1865
        %v1898 = vld [vmem:[#allocation4] sm:$0xff]
        %v1899 = vld [vmem:[#allocation4 + $0x8] sm:$0xff]
        %v1900 = vld [vmem:[#allocation4 + $0x10] sm:$0xf]
        %v1901 = vld [vmem:[#allocation4 + $0x14] sm:$0xff]
        %v1902 = vld [vmem:[#allocation4 + $0x1c] sm:$0xff]
        %v1903 = vld [vmem:[#allocation4 + $0x24] sm:$0xf]
        %v1904 = vld [vmem:[#allocation4 + $0x28] sm:$0xff]
        %v1905 = vld [vmem:[#allocation4 + $0x30] sm:$0xff]
        %v1906 = vld [vmem:[#allocation4 + $0x38] sm:$0xf]
        %v1907 = vld [vmem:[#allocation4 + $0x3c] sm:$0xff]
        %v1908 = vld [vmem:[#allocation4 + $0x44] sm:$0xff]
        %v1909 = vld [vmem:[#allocation4 + $0x4c] sm:$0xf]
        %v1910 = vld [vmem:[#allocation4 + $0x50] sm:$0xff]
        %v1911 = vld [vmem:[#allocation4 + $0x58] sm:$0xff]
        %v1912 = vld [vmem:[#allocation4 + $0x60] sm:$0xf]
        %v1913 = vld [vmem:[#allocation4 + $0x64] sm:$0xff]
        %v1914 = vld [vmem:[#allocation4 + $0x6c] sm:$0xff]
        %v1915 = vld [vmem:[#allocation4 + $0x74] sm:$0xf]
        %v1916 = vld [vmem:[#allocation4 + $0x78] sm:$0xff]
        %v1917 = vld [vmem:[#allocation4 + $0x80] sm:$0xff]
        %v1918 = vld [vmem:[#allocation4 + $0x88] sm:$0xf]
        %v1919 = vld [vmem:[#allocation4 + $0x8c] sm:$0xff]
        %v1920 = vld [vmem:[#allocation4 + $0x94] sm:$0xff]
        %v1921 = vld [vmem:[#allocation4 + $0x9c] sm:$0xf]
        %v1922 = vld [vmem:[#allocation4 + $0xa0] sm:$0xff]
        %v1923 = vld [vmem:[#allocation4 + $0xa8] sm:$0xff]
        %v1924 = vld [vmem:[#allocation4 + $0xb0] sm:$0xf]
        %v1925 = vld [vmem:[#allocation4 + $0xb4] sm:$0xff]
        %v1926 = vld [vmem:[#allocation4 + $0xbc] sm:$0xff]
        %v1927 = vld [vmem:[#allocation4 + $0xc4] sm:$0xf]
        %v1928 = vld [vmem:[#allocation4 + $0xc8] sm:$0xff]
        %v1929 = vld [vmem:[#allocation4 + $0xd0] sm:$0xff]
        %v1930 = vld [vmem:[#allocation4 + $0xd8] sm:$0xf]
        %v1931 = vld [vmem:[#allocation4 + $0xdc] sm:$0xff]
        %v1932 = vld [vmem:[#allocation4 + $0xe4] sm:$0xff]
        %v1933 = vld [vmem:[#allocation4 + $0xec] sm:$0xf]
        %v1934 = vld [vmem:[#allocation4 + $0xf0] sm:$0xff]
        %v1935 = vld [vmem:[#allocation4 + $0xf8] sm:$0xff]
        %v1936 = vld [vmem:[#allocation4 + $0x100] sm:$0xf]
        %v1937 = vld [vmem:[#allocation4 + $0x104] sm:$0xff]
        %v1938 = vld [vmem:[#allocation4 + $0x10c] sm:$0xff]
        %v1939 = vld [vmem:[#allocation4 + $0x114] sm:$0xf]
        %v1940 = vld [vmem:[#allocation4 + $0x118] sm:$0xff]
        %v1941 = vld [vmem:[#allocation4 + $0x120] sm:$0xff]
        %v1942 = vld [vmem:[#allocation4 + $0x128] sm:$0xf]
        %v1943 = vld [vmem:[#allocation4 + $0x12c] sm:$0xff]
        %v1944 = vld [vmem:[#allocation4 + $0x134] sm:$0xff]
        %v1945 = vld [vmem:[#allocation4 + $0x13c] sm:$0xf]
        %v1946 = vld [vmem:[#allocation4 + $0x140] sm:$0xff]
        %v1947 = vld [vmem:[#allocation4 + $0x148] sm:$0xff]
        %v1948 = vld [vmem:[#allocation4 + $0x150] sm:$0xf]
        %v1949 = vld [vmem:[#allocation4 + $0x154] sm:$0xff]
        %v1950 = vld [vmem:[#allocation4 + $0x15c] sm:$0xff]
        %v1951 = vld [vmem:[#allocation4 + $0x164] sm:$0xf]
        %v1952 = vld [vmem:[#allocation4 + $0x168] sm:$0xff]
        %v1953 = vld [vmem:[#allocation4 + $0x170] sm:$0xff]
        %v1954 = vld [vmem:[#allocation4 + $0x178] sm:$0xf]
        %v1955 = vld [vmem:[#allocation4 + $0x17c] sm:$0xff]
        %v1956 = vld [vmem:[#allocation4 + $0x184] sm:$0xff]
        %v1957 = vld [vmem:[#allocation4 + $0x18c] sm:$0xf]
        %v1958 = vld [vmem:[#allocation4 + $0x190] sm:$0xff]
        %v1959 = vld [vmem:[#allocation4 + $0x198] sm:$0xff]
        %v1960 = vld [vmem:[#allocation4 + $0x1a0] sm:$0xf]
        %v1961 = vld [vmem:[#allocation4 + $0x1a4] sm:$0xff]
        %v1962 = vld [vmem:[#allocation4 + $0x1ac] sm:$0xff]
        %v1963 = vld [vmem:[#allocation4 + $0x1b4] sm:$0xf]
        %v1964 = vld [vmem:[#allocation4 + $0x1b8] sm:$0xff]
        %v1965 = vld [vmem:[#allocation4 + $0x1c0] sm:$0xff]
        %v1966 = vld [vmem:[#allocation4 + $0x1c8] sm:$0xf]
        %v1967 = vld [vmem:[#allocation4 + $0x1cc] sm:$0xff]
        %v1968 = vld [vmem:[#allocation4 + $0x1d4] sm:$0xff]
        %v1969 = vld [vmem:[#allocation4 + $0x1dc] sm:$0xf]
        %v1970 = vld [vmem:[#allocation4 + $0x1e0] sm:$0xff]
        %v1971 = vld [vmem:[#allocation4 + $0x1e8] sm:$0xff]
        %v1972 = vld [vmem:[#allocation4 + $0x1f0] sm:$0xf]
        %v1973 = vld [vmem:[#allocation4 + $0x1f4] sm:$0xff]
        %v1974 = vld [vmem:[#allocation4 + $0x1fc] sm:$0xff]
        %v1975 = vld [vmem:[#allocation4 + $0x204] sm:$0xf]
        %v1976 = vld [vmem:[#allocation4 + $0x208] sm:$0xff]
        %v1977 = vld [vmem:[#allocation4 + $0x210] sm:$0xff]
        %v1978 = vld [vmem:[#allocation4 + $0x218] sm:$0xf]
        %v1979 = vld [vmem:[#allocation4 + $0x21c] sm:$0xff]
        %v1980 = vld [vmem:[#allocation4 + $0x224] sm:$0xff]
        %v1981 = vld [vmem:[#allocation4 + $0x22c] sm:$0xf]
        %v1982 = vld [vmem:[#allocation4 + $0x230] sm:$0xff]
        %v1983 = vld [vmem:[#allocation4 + $0x238] sm:$0xff]
        %v1984 = vld [vmem:[#allocation4 + $0x240] sm:$0xf]
        %v1985 = vld [vmem:[#allocation4 + $0x244] sm:$0xff]
        %v1986 = vld [vmem:[#allocation4 + $0x24c] sm:$0xff]
        %v1987 = vld [vmem:[#allocation4 + $0x254] sm:$0xf]
        %v1988 = vld [vmem:[#allocation4 + $0x258] sm:$0xff]
        %v1989 = vld [vmem:[#allocation4 + $0x260] sm:$0xff]
        %v1990 = vld [vmem:[#allocation4 + $0x268] sm:$0xf]
        %v1991 = vld [vmem:[#allocation4 + $0x26c] sm:$0xff]
        %v1992 = vld [vmem:[#allocation4 + $0x274] sm:$0xff]
        %v1993 = vld [vmem:[#allocation4 + $0x27c] sm:$0xf]
        %v1994 = vld [vmem:[%s3] sm:$0x1]
        %v1996 = vperm.slane %v1994, 0
        %v2094 = vunpack.c.l.b16 %v1898
        %v2095 = vunpack.c.h.b16 %v1898
        %v2096 = vunpack.c.l.b16 %v1899
        %v2097 = vunpack.c.h.b16 %v1899
        %v2098 = vunpack.c.l.b16 %v1900
        %v2099 = vunpack.c.l.b16 %v1901
        %v2100 = vunpack.c.h.b16 %v1901
        %v2101 = vunpack.c.l.b16 %v1902
        %v2102 = vunpack.c.h.b16 %v1902
        %v2103 = vunpack.c.l.b16 %v1903
        %v2104 = vunpack.c.l.b16 %v1904
        %v2105 = vunpack.c.h.b16 %v1904
        %v2106 = vunpack.c.l.b16 %v1905
        %v2107 = vunpack.c.h.b16 %v1905
        %v2108 = vunpack.c.l.b16 %v1906
        %v2109 = vunpack.c.l.b16 %v1907
        %v2110 = vunpack.c.h.b16 %v1907
        %v2111 = vunpack.c.l.b16 %v1908
        %v2112 = vunpack.c.h.b16 %v1908
        %v2113 = vunpack.c.l.b16 %v1909
        %v2114 = vunpack.c.l.b16 %v1910
        %v2115 = vunpack.c.h.b16 %v1910
        %v2116 = vunpack.c.l.b16 %v1911
        %v2117 = vunpack.c.h.b16 %v1911
        %v2118 = vunpack.c.l.b16 %v1912
        %v2119 = vunpack.c.l.b16 %v1913
        %v2120 = vunpack.c.h.b16 %v1913
        %v2121 = vunpack.c.l.b16 %v1914
        %v2122 = vunpack.c.h.b16 %v1914
        %v2123 = vunpack.c.l.b16 %v1915
        %v2124 = vunpack.c.l.b16 %v1916
        %v2125 = vunpack.c.h.b16 %v1916
        %v2126 = vunpack.c.l.b16 %v1917
        %v2127 = vunpack.c.h.b16 %v1917
        %v2128 = vunpack.c.l.b16 %v1918
        %v2129 = vunpack.c.l.b16 %v1919
        %v2130 = vunpack.c.h.b16 %v1919
        %v2131 = vunpack.c.l.b16 %v1920
        %v2132 = vunpack.c.h.b16 %v1920
        %v2133 = vunpack.c.l.b16 %v1921
        %v2134 = vunpack.c.l.b16 %v1922
        %v2135 = vunpack.c.h.b16 %v1922
        %v2136 = vunpack.c.l.b16 %v1923
        %v2137 = vunpack.c.h.b16 %v1923
        %v2138 = vunpack.c.l.b16 %v1924
        %v2139 = vunpack.c.l.b16 %v1925
        %v2140 = vunpack.c.h.b16 %v1925
        %v2141 = vunpack.c.l.b16 %v1926
        %v2142 = vunpack.c.h.b16 %v1926
        %v2143 = vunpack.c.l.b16 %v1927
        %v2144 = vunpack.c.l.b16 %v1928
        %v2145 = vunpack.c.h.b16 %v1928
        %v2146 = vunpack.c.l.b16 %v1929
        %v2147 = vunpack.c.h.b16 %v1929
        %v2148 = vunpack.c.l.b16 %v1930
        %v2149 = vunpack.c.l.b16 %v1931
        %v2150 = vunpack.c.h.b16 %v1931
        %v2151 = vunpack.c.l.b16 %v1932
        %v2152 = vunpack.c.h.b16 %v1932
        %v2153 = vunpack.c.l.b16 %v1933
        %v2154 = vunpack.c.l.b16 %v1934
        %v2155 = vunpack.c.h.b16 %v1934
        %v2156 = vunpack.c.l.b16 %v1935
        %v2157 = vunpack.c.h.b16 %v1935
        %v2158 = vunpack.c.l.b16 %v1936
        %v2159 = vunpack.c.l.b16 %v1937
        %v2160 = vunpack.c.h.b16 %v1937
        %v2161 = vunpack.c.l.b16 %v1938
        %v2162 = vunpack.c.h.b16 %v1938
        %v2163 = vunpack.c.l.b16 %v1939
        %v2164 = vunpack.c.l.b16 %v1940
        %v2165 = vunpack.c.h.b16 %v1940
        %v2166 = vunpack.c.l.b16 %v1941
        %v2167 = vunpack.c.h.b16 %v1941
        %v2168 = vunpack.c.l.b16 %v1942
        %v2169 = vunpack.c.l.b16 %v1943
        %v2170 = vunpack.c.h.b16 %v1943
        %v2171 = vunpack.c.l.b16 %v1944
        %v2172 = vunpack.c.h.b16 %v1944
        %v2173 = vunpack.c.l.b16 %v1945
        %v2174 = vunpack.c.l.b16 %v1946
        %v2175 = vunpack.c.h.b16 %v1946
        %v2176 = vunpack.c.l.b16 %v1947
        %v2177 = vunpack.c.h.b16 %v1947
        %v2178 = vunpack.c.l.b16 %v1948
        %v2179 = vunpack.c.l.b16 %v1949
        %v2180 = vunpack.c.h.b16 %v1949
        %v2181 = vunpack.c.l.b16 %v1950
        %v2182 = vunpack.c.h.b16 %v1950
        %v2183 = vunpack.c.l.b16 %v1951
        %v2184 = vunpack.c.l.b16 %v1952
        %v2185 = vunpack.c.h.b16 %v1952
        %v2186 = vunpack.c.l.b16 %v1953
        %v2187 = vunpack.c.h.b16 %v1953
        %v2188 = vunpack.c.l.b16 %v1954
        %v2189 = vunpack.c.l.b16 %v1955
        %v2190 = vunpack.c.h.b16 %v1955
        %v2191 = vunpack.c.l.b16 %v1956
        %v2192 = vunpack.c.h.b16 %v1956
        %v2193 = vunpack.c.l.b16 %v1957
        %v2194 = vunpack.c.l.b16 %v1958
        %v2195 = vunpack.c.h.b16 %v1958
        %v2196 = vunpack.c.l.b16 %v1959
        %v2197 = vunpack.c.h.b16 %v1959
        %v2198 = vunpack.c.l.b16 %v1960
        %v2199 = vunpack.c.l.b16 %v1961
        %v2200 = vunpack.c.h.b16 %v1961
        %v2201 = vunpack.c.l.b16 %v1962
        %v2202 = vunpack.c.h.b16 %v1962
        %v2203 = vunpack.c.l.b16 %v1963
        %v2204 = vunpack.c.l.b16 %v1964
        %v2205 = vunpack.c.h.b16 %v1964
        %v2206 = vunpack.c.l.b16 %v1965
        %v2207 = vunpack.c.h.b16 %v1965
        %v2208 = vunpack.c.l.b16 %v1966
        %v2209 = vunpack.c.l.b16 %v1967
        %v2210 = vunpack.c.h.b16 %v1967
        %v2211 = vunpack.c.l.b16 %v1968
        %v2212 = vunpack.c.h.b16 %v1968
        %v2213 = vunpack.c.l.b16 %v1969
        %v2214 = vunpack.c.l.b16 %v1970
        %v2215 = vunpack.c.h.b16 %v1970
        %v2216 = vunpack.c.l.b16 %v1971
        %v2217 = vunpack.c.h.b16 %v1971
        %v2218 = vunpack.c.l.b16 %v1972
        %v2219 = vunpack.c.l.b16 %v1973
        %v2220 = vunpack.c.h.b16 %v1973
        %v2221 = vunpack.c.l.b16 %v1974
        %v2222 = vunpack.c.h.b16 %v1974
        %v2223 = vunpack.c.l.b16 %v1975
        %v2224 = vunpack.c.l.b16 %v1976
        %v2225 = vunpack.c.h.b16 %v1976
        %v2226 = vunpack.c.l.b16 %v1977
        %v2227 = vunpack.c.h.b16 %v1977
        %v2228 = vunpack.c.l.b16 %v1978
        %v2229 = vunpack.c.l.b16 %v1979
        %v2230 = vunpack.c.h.b16 %v1979
        %v2231 = vunpack.c.l.b16 %v1980
        %v2232 = vunpack.c.h.b16 %v1980
        %v2233 = vunpack.c.l.b16 %v1981
        %v2234 = vunpack.c.l.b16 %v1982
        %v2235 = vunpack.c.h.b16 %v1982
        %v2236 = vunpack.c.l.b16 %v1983
        %v2237 = vunpack.c.h.b16 %v1983
        %v2238 = vunpack.c.l.b16 %v1984
        %v2239 = vunpack.c.l.b16 %v1985
        %v2240 = vunpack.c.h.b16 %v1985
        %v2241 = vunpack.c.l.b16 %v1986
        %v2242 = vunpack.c.h.b16 %v1986
        %v2243 = vunpack.c.l.b16 %v1987
        %v2244 = vunpack.c.l.b16 %v1988
        %v2245 = vunpack.c.h.b16 %v1988
        %v2246 = vunpack.c.l.b16 %v1989
        %v2247 = vunpack.c.h.b16 %v1989
        %v2248 = vunpack.c.l.b16 %v1990
        %v2249 = vunpack.c.l.b16 %v1991
        %v2250 = vunpack.c.h.b16 %v1991
        %v2251 = vunpack.c.l.b16 %v1992
        %v2252 = vunpack.c.h.b16 %v1992
        %v2253 = vunpack.c.l.b16 %v1993
        %v2254 = vpack.c.b16 %v2099, %v2094
        %v2255 = vpack.c.b16 %v2100, %v2095
        %v2256 = vpack.c.b16 %v2101, %v2096
        %v2257 = vpack.c.b16 %v2102, %v2097
        %v2258 = vpack.c.b16 %v2103, %v2098
        %v2259 = vpack.c.b16 %v2109, %v2104
        %v2260 = vpack.c.b16 %v2110, %v2105
        %v2261 = vpack.c.b16 %v2111, %v2106
        %v2262 = vpack.c.b16 %v2112, %v2107
        %v2263 = vpack.c.b16 %v2113, %v2108
        %v2264 = vpack.c.b16 %v2119, %v2114
        %v2265 = vpack.c.b16 %v2120, %v2115
        %v2266 = vpack.c.b16 %v2121, %v2116
        %v2267 = vpack.c.b16 %v2122, %v2117
        %v2268 = vpack.c.b16 %v2123, %v2118
        %v2269 = vpack.c.b16 %v2129, %v2124
        %v2270 = vpack.c.b16 %v2130, %v2125
        %v2271 = vpack.c.b16 %v2131, %v2126
        %v2272 = vpack.c.b16 %v2132, %v2127
        %v2273 = vpack.c.b16 %v2133, %v2128
        %v2274 = vpack.c.b16 %v2139, %v2134
        %v2275 = vpack.c.b16 %v2140, %v2135
        %v2276 = vpack.c.b16 %v2141, %v2136
        %v2277 = vpack.c.b16 %v2142, %v2137
        %v2278 = vpack.c.b16 %v2143, %v2138
        %v2279 = vpack.c.b16 %v2149, %v2144
        %v2280 = vpack.c.b16 %v2150, %v2145
        %v2281 = vpack.c.b16 %v2151, %v2146
        %v2282 = vpack.c.b16 %v2152, %v2147
        %v2283 = vpack.c.b16 %v2153, %v2148
        %v2284 = vpack.c.b16 %v2159, %v2154
        %v2285 = vpack.c.b16 %v2160, %v2155
        %v2286 = vpack.c.b16 %v2161, %v2156
        %v2287 = vpack.c.b16 %v2162, %v2157
        %v2288 = vpack.c.b16 %v2163, %v2158
        %v2289 = vpack.c.b16 %v2169, %v2164
        %v2290 = vpack.c.b16 %v2170, %v2165
        %v2291 = vpack.c.b16 %v2171, %v2166
        %v2292 = vpack.c.b16 %v2172, %v2167
        %v2293 = vpack.c.b16 %v2173, %v2168
        %v2294 = vpack.c.b16 %v2179, %v2174
        %v2295 = vpack.c.b16 %v2180, %v2175
        %v2296 = vpack.c.b16 %v2181, %v2176
        %v2297 = vpack.c.b16 %v2182, %v2177
        %v2298 = vpack.c.b16 %v2183, %v2178
        %v2299 = vpack.c.b16 %v2189, %v2184
        %v2300 = vpack.c.b16 %v2190, %v2185
        %v2301 = vpack.c.b16 %v2191, %v2186
        %v2302 = vpack.c.b16 %v2192, %v2187
        %v2303 = vpack.c.b16 %v2193, %v2188
        %v2304 = vpack.c.b16 %v2199, %v2194
        %v2305 = vpack.c.b16 %v2200, %v2195
        %v2306 = vpack.c.b16 %v2201, %v2196
        %v2307 = vpack.c.b16 %v2202, %v2197
        %v2308 = vpack.c.b16 %v2203, %v2198
        %v2309 = vpack.c.b16 %v2209, %v2204
        %v2310 = vpack.c.b16 %v2210, %v2205
        %v2311 = vpack.c.b16 %v2211, %v2206
        %v2312 = vpack.c.b16 %v2212, %v2207
        %v2313 = vpack.c.b16 %v2213, %v2208
        %v2314 = vpack.c.b16 %v2219, %v2214
        %v2315 = vpack.c.b16 %v2220, %v2215
        %v2316 = vpack.c.b16 %v2221, %v2216
        %v2317 = vpack.c.b16 %v2222, %v2217
        %v2318 = vpack.c.b16 %v2223, %v2218
        %v2319 = vpack.c.b16 %v2229, %v2224
        %v2320 = vpack.c.b16 %v2230, %v2225
        %v2321 = vpack.c.b16 %v2231, %v2226
        %v2322 = vpack.c.b16 %v2232, %v2227
        %v2323 = vpack.c.b16 %v2233, %v2228
        %v2324 = vpack.c.b16 %v2239, %v2234
        %v2325 = vpack.c.b16 %v2240, %v2235
        %v2326 = vpack.c.b16 %v2241, %v2236
        %v2327 = vpack.c.b16 %v2242, %v2237
        %v2328 = vpack.c.b16 %v2243, %v2238
        %v2329 = vpack.c.b16 %v2249, %v2244
        %v2330 = vpack.c.b16 %v2250, %v2245
        %v2331 = vpack.c.b16 %v2251, %v2246
        %v2332 = vpack.c.b16 %v2252, %v2247
        %v2333 = vpack.c.b16 %v2253, %v2248
        %v2470 = vunpack.c.l.b16 %v447
        %v2471 = vunpack.c.l.b16 %v448
        %v2472 = vunpack.c.l.b16 %v449
        %v2473 = vunpack.c.l.b16 %v450
        %v2474 = vunpack.c.l.b16 %v451
        %v2475 = vunpack.c.l.b16 %v452
        %v2476 = vunpack.c.l.b16 %v453
        %v2477 = vunpack.c.l.b16 %v454
        %v2478 = vunpack.c.l.b16 %v455
        %v2479 = vunpack.c.l.b16 %v456
        %v2480 = vunpack.c.l.b16 %v457
        %v2481 = vunpack.c.l.b16 %v458
        %v2482 = vunpack.c.l.b16 %v459
        %v2483 = vunpack.c.l.b16 %v460
        %v2484 = vunpack.c.l.b16 %v461
        %v2485 = vunpack.c.l.b16 %v462
        %v2486 = vunpack.c.l.b16 %v463
        %v2487 = vunpack.c.l.b16 %v464
        %v2488 = vunpack.c.l.b16 %v465
        %v2489 = vunpack.c.l.b16 %v466
        %v2490 = vunpack.c.l.b16 %v467
        %v2491 = vunpack.c.l.b16 %v468
        %v2492 = vunpack.c.l.b16 %v469
        %v2493 = vunpack.c.l.b16 %v470
        %v2494 = vunpack.c.l.b16 %v471
        %v2495 = vunpack.c.l.b16 %v472
        %v2496 = vunpack.c.l.b16 %v473
        %v2497 = vunpack.c.l.b16 %v474
        %v2498 = vunpack.c.l.b16 %v475
        %v2499 = vunpack.c.l.b16 %v476
        %v2500 = vunpack.c.l.b16 %v477
        %v2501 = vunpack.c.l.b16 %v478
        %v2502 = vunpack.c.l.b16 %v479
        %v2503 = vunpack.c.l.b16 %v480
        %v2504 = vunpack.c.l.b16 %v481
        %v2505 = vunpack.c.l.b16 %v482
        %v2506 = vunpack.c.l.b16 %v483
        %v2507 = vunpack.c.l.b16 %v484
        %v2508 = vunpack.c.l.b16 %v485
        %v2509 = vunpack.c.l.b16 %v486
        %v2510 = vunpack.c.l.b16 %v487
        %v2511 = vunpack.c.l.b16 %v488
        %v2512 = vunpack.c.l.b16 %v489
        %v2513 = vunpack.c.l.b16 %v490
        %v2514 = vunpack.c.l.b16 %v491
        %v2515 = vunpack.c.l.b16 %v492
        %v2516 = vunpack.c.l.b16 %v493
        %v2517 = vunpack.c.l.b16 %v494
        %v2518 = vunpack.c.l.b16 %v495
        %v2519 = vunpack.c.l.b16 %v496
        %v2520 = vunpack.c.l.b16 %v497
        %v2521 = vunpack.c.l.b16 %v498
        %v2522 = vunpack.c.l.b16 %v499
        %v2523 = vunpack.c.l.b16 %v500
        %v2524 = vunpack.c.l.b16 %v501
        %v2525 = vunpack.c.l.b16 %v502
        %v2526 = vunpack.c.l.b16 %v503
        %v2527 = vunpack.c.l.b16 %v504
        %v2528 = vunpack.c.l.b16 %v505
        %v2529 = vunpack.c.l.b16 %v506
        %v2530 = vunpack.c.l.b16 %v507
        %v2531 = vunpack.c.l.b16 %v508
        %v2532 = vunpack.c.l.b16 %v509
        %v2533 = vunpack.c.l.b16 %v510
        %v2534 = vunpack.c.l.b16 %v511
        %v2535 = vunpack.c.l.b16 %v512
        %v2536 = vunpack.c.l.b16 %v513
        %v2537 = vunpack.c.l.b16 %v514
        %v2538 = vunpack.c.l.b16 %v515
        %v2539 = vunpack.c.l.b16 %v516
        %v2540 = vunpack.c.l.b16 %v517
        %v2541 = vunpack.c.l.b16 %v518
        %v2542 = vpack.c.b16 %v2471, %v2470
        %v2543 = vpack.c.b16 %v2473, %v2472
        %v2544 = vpack.c.b16 %v2475, %v2474
        %v2545 = vpack.c.b16 %v2477, %v2476
        %v2546 = vpack.c.b16 %v2479, %v2478
        %v2547 = vpack.c.b16 %v2481, %v2480
        %v2548 = vpack.c.b16 %v2483, %v2482
        %v2549 = vpack.c.b16 %v2485, %v2484
        %v2550 = vpack.c.b16 %v2487, %v2486
        %v2551 = vpack.c.b16 %v2489, %v2488
        %v2552 = vpack.c.b16 %v2491, %v2490
        %v2553 = vpack.c.b16 %v2493, %v2492
        %v2554 = vpack.c.b16 %v2495, %v2494
        %v2555 = vpack.c.b16 %v2497, %v2496
        %v2556 = vpack.c.b16 %v2499, %v2498
        %v2557 = vpack.c.b16 %v2501, %v2500
        %v2558 = vpack.c.b16 %v2503, %v2502
        %v2559 = vpack.c.b16 %v2505, %v2504
        %v2560 = vpack.c.b16 %v2507, %v2506
        %v2561 = vpack.c.b16 %v2509, %v2508
        %v2562 = vpack.c.b16 %v2511, %v2510
        %v2563 = vpack.c.b16 %v2513, %v2512
        %v2564 = vpack.c.b16 %v2515, %v2514
        %v2565 = vpack.c.b16 %v2517, %v2516
        %v2566 = vpack.c.b16 %v2519, %v2518
        %v2567 = vpack.c.b16 %v2521, %v2520
        %v2568 = vpack.c.b16 %v2523, %v2522
        %v2569 = vpack.c.b16 %v2525, %v2524
        %v2570 = vpack.c.b16 %v2527, %v2526
        %v2571 = vpack.c.b16 %v2529, %v2528
        %v2572 = vpack.c.b16 %v2531, %v2530
        %v2573 = vpack.c.b16 %v2533, %v2532
        %v2574 = vpack.c.b16 %v2535, %v2534
        %v2575 = vpack.c.b16 %v2537, %v2536
        %v2576 = vpack.c.b16 %v2539, %v2538
        %v2577 = vpack.c.b16 %v2541, %v2540
        %v2615 = vsel %vm272, %v2258, 0
        %v2618 = vsel %vm272, %v2263, 0
        %v2621 = vsel %vm272, %v2268, 0
        %v2624 = vsel %vm272, %v2273, 0
        %v2627 = vsel %vm272, %v2278, 0
        %v2630 = vsel %vm272, %v2283, 0
        %v2633 = vsel %vm272, %v2288, 0
        %v2636 = vsel %vm272, %v2293, 0
        %v2639 = vsel %vm272, %v2298, 0
        %v2642 = vsel %vm272, %v2303, 0
        %v2645 = vsel %vm272, %v2308, 0
        %v2648 = vsel %vm272, %v2313, 0
        %v2651 = vsel %vm272, %v2318, 0
        %v2654 = vsel %vm272, %v2323, 0
        %v2657 = vsel %vm272, %v2328, 0
        %v2660 = vsel %vm272, %v2333, 0
        %2662 = vmatpush.bf16.msra.mxu0 %v2549
        %2663 = vmatpush.bf16.msra.mxu0 %v2548
        %2664 = vmatpush.bf16.msra.mxu0 %v2547
        %2665 = vmatpush.bf16.msra.mxu0 %v2546
        %2666 = vmatpush.bf16.msra.mxu0 %v2545
        %2667 = vmatpush.bf16.msra.mxu0 %v2544
        %2668 = vmatpush.bf16.msra.mxu0 %v2543
        %2669 = vmatpush.bf16.msra.mxu0 %v2542
        %2670 = vmatmul.bf16.gmra.mxu0 %v2254
        %v2671 = vpop.f32.mrf.mxu0
        %v2672 = vadd.f32 %v1996, %v2671
        %v2673 = vpop.f32.mrf.mxu0
        %v2674 = vadd.f32 %v1996, %v2673
        %2675 = vmatmul.bf16.gmra.mxu0 %v2259
        %v2676 = vpop.f32.mrf.mxu0
        %v2677 = vadd.f32 %v1996, %v2676
        %v2678 = vpop.f32.mrf.mxu0
        %v2679 = vadd.f32 %v1996, %v2678
        %2680 = vmatmul.bf16.gmra.mxu0 %v2264
        %v2681 = vpop.f32.mrf.mxu0
        %v2682 = vadd.f32 %v1996, %v2681
        %v2683 = vpop.f32.mrf.mxu0
        %v2684 = vadd.f32 %v1996, %v2683
        %2685 = vmatmul.bf16.gmra.mxu0 %v2269
        %v2686 = vpop.f32.mrf.mxu0
        %v2687 = vadd.f32 %v1996, %v2686
        %v2688 = vpop.f32.mrf.mxu0
        %v2689 = vadd.f32 %v1996, %v2688
        %2690 = vmatmul.bf16.gmra.mxu0 %v2274
        %v2691 = vpop.f32.mrf.mxu0
        %v2692 = vadd.f32 %v1996, %v2691
        %v2693 = vpop.f32.mrf.mxu0
        %v2694 = vadd.f32 %v1996, %v2693
        %2695 = vmatmul.bf16.gmra.mxu0 %v2279
        %v2696 = vpop.f32.mrf.mxu0
        %v2697 = vadd.f32 %v1996, %v2696
        %v2698 = vpop.f32.mrf.mxu0
        %v2699 = vadd.f32 %v1996, %v2698
        %2700 = vmatmul.bf16.gmra.mxu0 %v2284
        %v2701 = vpop.f32.mrf.mxu0
        %v2702 = vadd.f32 %v1996, %v2701
        %v2703 = vpop.f32.mrf.mxu0
        %v2704 = vadd.f32 %v1996, %v2703
        %2705 = vmatmul.bf16.gmra.mxu0 %v2289
        %v2706 = vpop.f32.mrf.mxu0
        %v2707 = vadd.f32 %v1996, %v2706
        %v2708 = vpop.f32.mrf.mxu0
        %v2709 = vadd.f32 %v1996, %v2708
        %2710 = vmatmul.bf16.gmra.mxu0 %v2294
        %v2711 = vpop.f32.mrf.mxu0
        %v2712 = vadd.f32 %v1996, %v2711
        %v2713 = vpop.f32.mrf.mxu0
        %v2714 = vadd.f32 %v1996, %v2713
        %2715 = vmatmul.bf16.gmra.mxu0 %v2299
        %v2716 = vpop.f32.mrf.mxu0
        %v2717 = vadd.f32 %v1996, %v2716
        %v2718 = vpop.f32.mrf.mxu0
        %v2719 = vadd.f32 %v1996, %v2718
        %2720 = vmatmul.bf16.gmra.mxu0 %v2304
        %v2721 = vpop.f32.mrf.mxu0
        %v2722 = vadd.f32 %v1996, %v2721
        %v2723 = vpop.f32.mrf.mxu0
        %v2724 = vadd.f32 %v1996, %v2723
        %2725 = vmatmul.bf16.gmra.mxu0 %v2309
        %v2726 = vpop.f32.mrf.mxu0
        %v2727 = vadd.f32 %v1996, %v2726
        %v2728 = vpop.f32.mrf.mxu0
        %v2729 = vadd.f32 %v1996, %v2728
        %2730 = vmatmul.bf16.gmra.mxu0 %v2314
        %v2731 = vpop.f32.mrf.mxu0
        %v2732 = vadd.f32 %v1996, %v2731
        %v2733 = vpop.f32.mrf.mxu0
        %v2734 = vadd.f32 %v1996, %v2733
        %2735 = vmatmul.bf16.gmra.mxu0 %v2319
        %v2736 = vpop.f32.mrf.mxu0
        %v2737 = vadd.f32 %v1996, %v2736
        %v2738 = vpop.f32.mrf.mxu0
        %v2739 = vadd.f32 %v1996, %v2738
        %2740 = vmatmul.bf16.gmra.mxu0 %v2324
        %v2741 = vpop.f32.mrf.mxu0
        %v2742 = vadd.f32 %v1996, %v2741
        %v2743 = vpop.f32.mrf.mxu0
        %v2744 = vadd.f32 %v1996, %v2743
        %2745 = vmatmul.bf16.gmra.mxu0 %v2329
        %v2746 = vpop.f32.mrf.mxu0
        %v2747 = vadd.f32 %v1996, %v2746
        %v2748 = vpop.f32.mrf.mxu0
        %v2749 = vadd.f32 %v1996, %v2748
        %2750 = vdwg.mxu0
        %2751 = vmatpush.bf16.msra.mxu0 %v2557
        %2752 = vmatpush.bf16.msra.mxu0 %v2556
        %2753 = vmatpush.bf16.msra.mxu0 %v2555
        %2754 = vmatpush.bf16.msra.mxu0 %v2554
        %2755 = vmatpush.bf16.msra.mxu0 %v2553
        %2756 = vmatpush.bf16.msra.mxu0 %v2552
        %2757 = vmatpush.bf16.msra.mxu0 %v2551
        %2758 = vmatpush.bf16.msra.mxu0 %v2550
        %2759 = vmatmul.bf16.gmra.mxu0 %v2255
        %v2760 = vpop.f32.mrf.mxu0
        %v2761 = vadd.f32 %v2672, %v2760
        %v2762 = vpop.f32.mrf.mxu0
        %v2763 = vadd.f32 %v2674, %v2762
        %2764 = vmatmul.bf16.gmra.mxu0 %v2260
        %v2765 = vpop.f32.mrf.mxu0
        %v2766 = vadd.f32 %v2677, %v2765
        %v2767 = vpop.f32.mrf.mxu0
        %v2768 = vadd.f32 %v2679, %v2767
        %2769 = vmatmul.bf16.gmra.mxu0 %v2265
        %v2770 = vpop.f32.mrf.mxu0
        %v2771 = vadd.f32 %v2682, %v2770
        %v2772 = vpop.f32.mrf.mxu0
        %v2773 = vadd.f32 %v2684, %v2772
        %2774 = vmatmul.bf16.gmra.mxu0 %v2270
        %v2775 = vpop.f32.mrf.mxu0
        %v2776 = vadd.f32 %v2687, %v2775
        %v2777 = vpop.f32.mrf.mxu0
        %v2778 = vadd.f32 %v2689, %v2777
        %2779 = vmatmul.bf16.gmra.mxu0 %v2275
        %v2780 = vpop.f32.mrf.mxu0
        %v2781 = vadd.f32 %v2692, %v2780
        %v2782 = vpop.f32.mrf.mxu0
        %v2783 = vadd.f32 %v2694, %v2782
        %2784 = vmatmul.bf16.gmra.mxu0 %v2280
        %v2785 = vpop.f32.mrf.mxu0
        %v2786 = vadd.f32 %v2697, %v2785
        %v2787 = vpop.f32.mrf.mxu0
        %v2788 = vadd.f32 %v2699, %v2787
        %2789 = vmatmul.bf16.gmra.mxu0 %v2285
        %v2790 = vpop.f32.mrf.mxu0
        %v2791 = vadd.f32 %v2702, %v2790
        %v2792 = vpop.f32.mrf.mxu0
        %v2793 = vadd.f32 %v2704, %v2792
        %2794 = vmatmul.bf16.gmra.mxu0 %v2290
        %v2795 = vpop.f32.mrf.mxu0
        %v2796 = vadd.f32 %v2707, %v2795
        %v2797 = vpop.f32.mrf.mxu0
        %v2798 = vadd.f32 %v2709, %v2797
        %2799 = vmatmul.bf16.gmra.mxu0 %v2295
        %v2800 = vpop.f32.mrf.mxu0
        %v2801 = vadd.f32 %v2712, %v2800
        %v2802 = vpop.f32.mrf.mxu0
        %v2803 = vadd.f32 %v2714, %v2802
        %2804 = vmatmul.bf16.gmra.mxu0 %v2300
        %v2805 = vpop.f32.mrf.mxu0
        %v2806 = vadd.f32 %v2717, %v2805
        %v2807 = vpop.f32.mrf.mxu0
        %v2808 = vadd.f32 %v2719, %v2807
        %2809 = vmatmul.bf16.gmra.mxu0 %v2305
        %v2810 = vpop.f32.mrf.mxu0
        %v2811 = vadd.f32 %v2722, %v2810
        %v2812 = vpop.f32.mrf.mxu0
        %v2813 = vadd.f32 %v2724, %v2812
        %2814 = vmatmul.bf16.gmra.mxu0 %v2310
        %v2815 = vpop.f32.mrf.mxu0
        %v2816 = vadd.f32 %v2727, %v2815
        %v2817 = vpop.f32.mrf.mxu0
        %v2818 = vadd.f32 %v2729, %v2817
        %2819 = vmatmul.bf16.gmra.mxu0 %v2315
        %v2820 = vpop.f32.mrf.mxu0
        %v2821 = vadd.f32 %v2732, %v2820
        %v2822 = vpop.f32.mrf.mxu0
        %v2823 = vadd.f32 %v2734, %v2822
        %2824 = vmatmul.bf16.gmra.mxu0 %v2320
        %v2825 = vpop.f32.mrf.mxu0
        %v2826 = vadd.f32 %v2737, %v2825
        %v2827 = vpop.f32.mrf.mxu0
        %v2828 = vadd.f32 %v2739, %v2827
        %2829 = vmatmul.bf16.gmra.mxu0 %v2325
        %v2830 = vpop.f32.mrf.mxu0
        %v2831 = vadd.f32 %v2742, %v2830
        %v2832 = vpop.f32.mrf.mxu0
        %v2833 = vadd.f32 %v2744, %v2832
        %2834 = vmatmul.bf16.gmra.mxu0 %v2330
        %v2835 = vpop.f32.mrf.mxu0
        %v2836 = vadd.f32 %v2747, %v2835
        %v2837 = vpop.f32.mrf.mxu0
        %v2838 = vadd.f32 %v2749, %v2837
        %2839 = vdwg.mxu0
        %2840 = vmatpush.bf16.msra.mxu0 %v2565
        %2841 = vmatpush.bf16.msra.mxu0 %v2564
        %2842 = vmatpush.bf16.msra.mxu0 %v2563
        %2843 = vmatpush.bf16.msra.mxu0 %v2562
        %2844 = vmatpush.bf16.msra.mxu0 %v2561
        %2845 = vmatpush.bf16.msra.mxu0 %v2560
        %2846 = vmatpush.bf16.msra.mxu0 %v2559
        %2847 = vmatpush.bf16.msra.mxu0 %v2558
        %2848 = vmatmul.bf16.gmra.mxu0 %v2256
        %v2849 = vpop.f32.mrf.mxu0
        %v2850 = vadd.f32 %v2761, %v2849
        %v2851 = vpop.f32.mrf.mxu0
        %v2852 = vadd.f32 %v2763, %v2851
        %2853 = vmatmul.bf16.gmra.mxu0 %v2261
        %v2854 = vpop.f32.mrf.mxu0
        %v2855 = vadd.f32 %v2766, %v2854
        %v2856 = vpop.f32.mrf.mxu0
        %v2857 = vadd.f32 %v2768, %v2856
        %2858 = vmatmul.bf16.gmra.mxu0 %v2266
        %v2859 = vpop.f32.mrf.mxu0
        %v2860 = vadd.f32 %v2771, %v2859
        %v2861 = vpop.f32.mrf.mxu0
        %v2862 = vadd.f32 %v2773, %v2861
        %2863 = vmatmul.bf16.gmra.mxu0 %v2271
        %v2864 = vpop.f32.mrf.mxu0
        %v2865 = vadd.f32 %v2776, %v2864
        %v2866 = vpop.f32.mrf.mxu0
        %v2867 = vadd.f32 %v2778, %v2866
        %2868 = vmatmul.bf16.gmra.mxu0 %v2276
        %v2869 = vpop.f32.mrf.mxu0
        %v2870 = vadd.f32 %v2781, %v2869
        %v2871 = vpop.f32.mrf.mxu0
        %v2872 = vadd.f32 %v2783, %v2871
        %2873 = vmatmul.bf16.gmra.mxu0 %v2281
        %v2874 = vpop.f32.mrf.mxu0
        %v2875 = vadd.f32 %v2786, %v2874
        %v2876 = vpop.f32.mrf.mxu0
        %v2877 = vadd.f32 %v2788, %v2876
        %2878 = vmatmul.bf16.gmra.mxu0 %v2286
        %v2879 = vpop.f32.mrf.mxu0
        %v2880 = vadd.f32 %v2791, %v2879
        %v2881 = vpop.f32.mrf.mxu0
        %v2882 = vadd.f32 %v2793, %v2881
        %2883 = vmatmul.bf16.gmra.mxu0 %v2291
        %v2884 = vpop.f32.mrf.mxu0
        %v2885 = vadd.f32 %v2796, %v2884
        %v2886 = vpop.f32.mrf.mxu0
        %v2887 = vadd.f32 %v2798, %v2886
        %2888 = vmatmul.bf16.gmra.mxu0 %v2296
        %v2889 = vpop.f32.mrf.mxu0
        %v2890 = vadd.f32 %v2801, %v2889
        %v2891 = vpop.f32.mrf.mxu0
        %v2892 = vadd.f32 %v2803, %v2891
        %2893 = vmatmul.bf16.gmra.mxu0 %v2301
        %v2894 = vpop.f32.mrf.mxu0
        %v2895 = vadd.f32 %v2806, %v2894
        %v2896 = vpop.f32.mrf.mxu0
        %v2897 = vadd.f32 %v2808, %v2896
        %2898 = vmatmul.bf16.gmra.mxu0 %v2306
        %v2899 = vpop.f32.mrf.mxu0
        %v2900 = vadd.f32 %v2811, %v2899
        %v2901 = vpop.f32.mrf.mxu0
        %v2902 = vadd.f32 %v2813, %v2901
        %2903 = vmatmul.bf16.gmra.mxu0 %v2311
        %v2904 = vpop.f32.mrf.mxu0
        %v2905 = vadd.f32 %v2816, %v2904
        %v2906 = vpop.f32.mrf.mxu0
        %v2907 = vadd.f32 %v2818, %v2906
        %2908 = vmatmul.bf16.gmra.mxu0 %v2316
        %v2909 = vpop.f32.mrf.mxu0
        %v2910 = vadd.f32 %v2821, %v2909
        %v2911 = vpop.f32.mrf.mxu0
        %v2912 = vadd.f32 %v2823, %v2911
        %2913 = vmatmul.bf16.gmra.mxu0 %v2321
        %v2914 = vpop.f32.mrf.mxu0
        %v2915 = vadd.f32 %v2826, %v2914
        %v2916 = vpop.f32.mrf.mxu0
        %v2917 = vadd.f32 %v2828, %v2916
        %2918 = vmatmul.bf16.gmra.mxu0 %v2326
        %v2919 = vpop.f32.mrf.mxu0
        %v2920 = vadd.f32 %v2831, %v2919
        %v2921 = vpop.f32.mrf.mxu0
        %v2922 = vadd.f32 %v2833, %v2921
        %2923 = vmatmul.bf16.gmra.mxu0 %v2331
        %v2924 = vpop.f32.mrf.mxu0
        %v2925 = vadd.f32 %v2836, %v2924
        %v2926 = vpop.f32.mrf.mxu0
        %v2927 = vadd.f32 %v2838, %v2926
        %2928 = vdwg.mxu0
        %2929 = vmatpush.bf16.msra.mxu0 %v2573
        %2930 = vmatpush.bf16.msra.mxu0 %v2572
        %2931 = vmatpush.bf16.msra.mxu0 %v2571
        %2932 = vmatpush.bf16.msra.mxu0 %v2570
        %2933 = vmatpush.bf16.msra.mxu0 %v2569
        %2934 = vmatpush.bf16.msra.mxu0 %v2568
        %2935 = vmatpush.bf16.msra.mxu0 %v2567
        %2936 = vmatpush.bf16.msra.mxu0 %v2566
        %2937 = vmatmul.bf16.gmra.mxu0 %v2257
        %v2938 = vpop.f32.mrf.mxu0
        %v2939 = vadd.f32 %v2850, %v2938
        %v2940 = vpop.f32.mrf.mxu0
        %v2941 = vadd.f32 %v2852, %v2940
        %2942 = vmatmul.bf16.gmra.mxu0 %v2262
        %v2943 = vpop.f32.mrf.mxu0
        %v2944 = vadd.f32 %v2855, %v2943
        %v2945 = vpop.f32.mrf.mxu0
        %v2946 = vadd.f32 %v2857, %v2945
        %2947 = vmatmul.bf16.gmra.mxu0 %v2267
        %v2948 = vpop.f32.mrf.mxu0
        %v2949 = vadd.f32 %v2860, %v2948
        %v2950 = vpop.f32.mrf.mxu0
        %v2951 = vadd.f32 %v2862, %v2950
        %2952 = vmatmul.bf16.gmra.mxu0 %v2272
        %v2953 = vpop.f32.mrf.mxu0
        %v2954 = vadd.f32 %v2865, %v2953
        %v2955 = vpop.f32.mrf.mxu0
        %v2956 = vadd.f32 %v2867, %v2955
        %2957 = vmatmul.bf16.gmra.mxu0 %v2277
        %v2958 = vpop.f32.mrf.mxu0
        %v2959 = vadd.f32 %v2870, %v2958
        %v2960 = vpop.f32.mrf.mxu0
        %v2961 = vadd.f32 %v2872, %v2960
        %2962 = vmatmul.bf16.gmra.mxu0 %v2282
        %v2963 = vpop.f32.mrf.mxu0
        %v2964 = vadd.f32 %v2875, %v2963
        %v2965 = vpop.f32.mrf.mxu0
        %v2966 = vadd.f32 %v2877, %v2965
        %2967 = vmatmul.bf16.gmra.mxu0 %v2287
        %v2968 = vpop.f32.mrf.mxu0
        %v2969 = vadd.f32 %v2880, %v2968
        %v2970 = vpop.f32.mrf.mxu0
        %v2971 = vadd.f32 %v2882, %v2970
        %2972 = vmatmul.bf16.gmra.mxu0 %v2292
        %v2973 = vpop.f32.mrf.mxu0
        %v2974 = vadd.f32 %v2885, %v2973
        %v2975 = vpop.f32.mrf.mxu0
        %v2976 = vadd.f32 %v2887, %v2975
        %2977 = vmatmul.bf16.gmra.mxu0 %v2297
        %v2978 = vpop.f32.mrf.mxu0
        %v2979 = vadd.f32 %v2890, %v2978
        %v2980 = vpop.f32.mrf.mxu0
        %v2981 = vadd.f32 %v2892, %v2980
        %2982 = vmatmul.bf16.gmra.mxu0 %v2302
        %v2983 = vpop.f32.mrf.mxu0
        %v2984 = vadd.f32 %v2895, %v2983
        %v2985 = vpop.f32.mrf.mxu0
        %v2986 = vadd.f32 %v2897, %v2985
        %2987 = vmatmul.bf16.gmra.mxu0 %v2307
        %v2988 = vpop.f32.mrf.mxu0
        %v2989 = vadd.f32 %v2900, %v2988
        %v2990 = vpop.f32.mrf.mxu0
        %v2991 = vadd.f32 %v2902, %v2990
        %2992 = vmatmul.bf16.gmra.mxu0 %v2312
        %v2993 = vpop.f32.mrf.mxu0
        %v2994 = vadd.f32 %v2905, %v2993
        %v2995 = vpop.f32.mrf.mxu0
        %v2996 = vadd.f32 %v2907, %v2995
        %2997 = vmatmul.bf16.gmra.mxu0 %v2317
        %v2998 = vpop.f32.mrf.mxu0
        %v2999 = vadd.f32 %v2910, %v2998
        %v3000 = vpop.f32.mrf.mxu0
        %v3001 = vadd.f32 %v2912, %v3000
        %3002 = vmatmul.bf16.gmra.mxu0 %v2322
        %v3003 = vpop.f32.mrf.mxu0
        %v3004 = vadd.f32 %v2915, %v3003
        %v3005 = vpop.f32.mrf.mxu0
        %v3006 = vadd.f32 %v2917, %v3005
        %3007 = vmatmul.bf16.gmra.mxu0 %v2327
        %v3008 = vpop.f32.mrf.mxu0
        %v3009 = vadd.f32 %v2920, %v3008
        %v3010 = vpop.f32.mrf.mxu0
        %v3011 = vadd.f32 %v2922, %v3010
        %3012 = vmatmul.bf16.gmra.mxu0 %v2332
        %v3013 = vpop.f32.mrf.mxu0
        %v3014 = vadd.f32 %v2925, %v3013
        %v3015 = vpop.f32.mrf.mxu0
        %v3016 = vadd.f32 %v2927, %v3015
        %3017 = vdwg.mxu0
        %3018 = vmatpush.bf16.msra.mxu0 0
        %3019 = vmatpush.bf16.msra.mxu0 0
        %3020 = vmatpush.bf16.msra.mxu0 0
        %3021 = vmatpush.bf16.msra.mxu0 0
        %3022 = vmatpush.bf16.msra.mxu0 %v2577
        %3023 = vmatpush.bf16.msra.mxu0 %v2576
        %3024 = vmatpush.bf16.msra.mxu0 %v2575
        %3025 = vmatpush.bf16.msra.mxu0 %v2574
        %3026 = vmatmul.bf16.gmra.mxu0 %v2615
        %v3027 = vpop.f32.mrf.mxu0
        %v3028 = vadd.f32 %v2939, %v3027
        %v3029 = vpop.f32.mrf.mxu0
        %v3030 = vadd.f32 %v2941, %v3029
        %3031 = vmatmul.bf16.gmra.mxu0 %v2618
        %v3032 = vpop.f32.mrf.mxu0
        %v3033 = vadd.f32 %v2944, %v3032
        %v3034 = vpop.f32.mrf.mxu0
        %v3035 = vadd.f32 %v2946, %v3034
        %3036 = vmatmul.bf16.gmra.mxu0 %v2621
        %v3037 = vpop.f32.mrf.mxu0
        %v3038 = vadd.f32 %v2949, %v3037
        %v3039 = vpop.f32.mrf.mxu0
        %v3040 = vadd.f32 %v2951, %v3039
        %3041 = vmatmul.bf16.gmra.mxu0 %v2624
        %v3042 = vpop.f32.mrf.mxu0
        %v3043 = vadd.f32 %v2954, %v3042
        %v3044 = vpop.f32.mrf.mxu0
        %v3045 = vadd.f32 %v2956, %v3044
        %3046 = vmatmul.bf16.gmra.mxu0 %v2627
        %v3047 = vpop.f32.mrf.mxu0
        %v3048 = vadd.f32 %v2959, %v3047
        %v3049 = vpop.f32.mrf.mxu0
        %v3050 = vadd.f32 %v2961, %v3049
        %3051 = vmatmul.bf16.gmra.mxu0 %v2630
        %v3052 = vpop.f32.mrf.mxu0
        %v3053 = vadd.f32 %v2964, %v3052
        %v3054 = vpop.f32.mrf.mxu0
        %v3055 = vadd.f32 %v2966, %v3054
        %3056 = vmatmul.bf16.gmra.mxu0 %v2633
        %v3057 = vpop.f32.mrf.mxu0
        %v3058 = vadd.f32 %v2969, %v3057
        %v3059 = vpop.f32.mrf.mxu0
        %v3060 = vadd.f32 %v2971, %v3059
        %3061 = vmatmul.bf16.gmra.mxu0 %v2636
        %v3062 = vpop.f32.mrf.mxu0
        %v3063 = vadd.f32 %v2974, %v3062
        %v3064 = vpop.f32.mrf.mxu0
        %v3065 = vadd.f32 %v2976, %v3064
        %3066 = vmatmul.bf16.gmra.mxu0 %v2639
        %v3067 = vpop.f32.mrf.mxu0
        %v3068 = vadd.f32 %v2979, %v3067
        %v3069 = vpop.f32.mrf.mxu0
        %v3070 = vadd.f32 %v2981, %v3069
        %3071 = vmatmul.bf16.gmra.mxu0 %v2642
        %v3072 = vpop.f32.mrf.mxu0
        %v3073 = vadd.f32 %v2984, %v3072
        %v3074 = vpop.f32.mrf.mxu0
        %v3075 = vadd.f32 %v2986, %v3074
        %3076 = vmatmul.bf16.gmra.mxu0 %v2645
        %v3077 = vpop.f32.mrf.mxu0
        %v3078 = vadd.f32 %v2989, %v3077
        %v3079 = vpop.f32.mrf.mxu0
        %v3080 = vadd.f32 %v2991, %v3079
        %3081 = vmatmul.bf16.gmra.mxu0 %v2648
        %v3082 = vpop.f32.mrf.mxu0
        %v3083 = vadd.f32 %v2994, %v3082
        %v3084 = vpop.f32.mrf.mxu0
        %v3085 = vadd.f32 %v2996, %v3084
        %3086 = vmatmul.bf16.gmra.mxu0 %v2651
        %v3087 = vpop.f32.mrf.mxu0
        %v3088 = vadd.f32 %v2999, %v3087
        %v3089 = vpop.f32.mrf.mxu0
        %v3090 = vadd.f32 %v3001, %v3089
        %3091 = vmatmul.bf16.gmra.mxu0 %v2654
        %v3092 = vpop.f32.mrf.mxu0
        %v3093 = vadd.f32 %v3004, %v3092
        %v3094 = vpop.f32.mrf.mxu0
        %v3095 = vadd.f32 %v3006, %v3094
        %3096 = vmatmul.bf16.gmra.mxu0 %v2657
        %v3097 = vpop.f32.mrf.mxu0
        %v3098 = vadd.f32 %v3009, %v3097
        %v3099 = vpop.f32.mrf.mxu0
        %v3100 = vadd.f32 %v3011, %v3099
        %3101 = vmatmul.bf16.gmra.mxu0 %v2660
        %v3102 = vpop.f32.mrf.mxu0
        %v3103 = vadd.f32 %v3014, %v3102
        %v3104 = vpop.f32.mrf.mxu0
        %v3105 = vadd.f32 %v3016, %v3104
        %3106 = vdwg.mxu0
        %vm3107 = vcmp.ge.f32.partialorder %v3028, 0.0
        %vm3108 = vcmp.ge.f32.partialorder %v3030, 0.0
        %vm3109 = vcmp.ge.f32.partialorder %v3033, 0.0
        %vm3110 = vcmp.ge.f32.partialorder %v3035, 0.0
        %vm3111 = vcmp.ge.f32.partialorder %v3038, 0.0
        %vm3112 = vcmp.ge.f32.partialorder %v3040, 0.0
        %vm3113 = vcmp.ge.f32.partialorder %v3043, 0.0
        %vm3114 = vcmp.ge.f32.partialorder %v3045, 0.0
        %vm3115 = vcmp.ge.f32.partialorder %v3048, 0.0
        %vm3116 = vcmp.ge.f32.partialorder %v3050, 0.0
        %vm3117 = vcmp.ge.f32.partialorder %v3053, 0.0
        %vm3118 = vcmp.ge.f32.partialorder %v3055, 0.0
        %vm3119 = vcmp.ge.f32.partialorder %v3058, 0.0
        %vm3120 = vcmp.ge.f32.partialorder %v3060, 0.0
        %vm3121 = vcmp.ge.f32.partialorder %v3063, 0.0
        %vm3122 = vcmp.ge.f32.partialorder %v3065, 0.0
        %vm3123 = vcmp.ge.f32.partialorder %v3068, 0.0
        %vm3124 = vcmp.ge.f32.partialorder %v3070, 0.0
        %vm3125 = vcmp.ge.f32.partialorder %v3073, 0.0
        %vm3126 = vcmp.ge.f32.partialorder %v3075, 0.0
        %vm3127 = vcmp.ge.f32.partialorder %v3078, 0.0
        %vm3128 = vcmp.ge.f32.partialorder %v3080, 0.0
        %vm3129 = vcmp.ge.f32.partialorder %v3083, 0.0
        %vm3130 = vcmp.ge.f32.partialorder %v3085, 0.0
        %vm3131 = vcmp.ge.f32.partialorder %v3088, 0.0
        %vm3132 = vcmp.ge.f32.partialorder %v3090, 0.0
        %vm3133 = vcmp.ge.f32.partialorder %v3093, 0.0
        %vm3134 = vcmp.ge.f32.partialorder %v3095, 0.0
        %vm3135 = vcmp.ge.f32.partialorder %v3098, 0.0
        %vm3136 = vcmp.ge.f32.partialorder %v3100, 0.0
        %vm3137 = vcmp.ge.f32.partialorder %v3103, 0.0
        %vm3138 = vcmp.ge.f32.partialorder %v3105, 0.0
        %v3139 = vmul.f32 %v3028, 0.01
        %v3140 = vmul.f32 %v3030, 0.01
        %v3141 = vmul.f32 %v3033, 0.01
        %v3142 = vmul.f32 %v3035, 0.01
        %v3143 = vmul.f32 %v3038, 0.01
        %v3144 = vmul.f32 %v3040, 0.01
        %v3145 = vmul.f32 %v3043, 0.01
        %v3146 = vmul.f32 %v3045, 0.01
        %v3147 = vmul.f32 %v3048, 0.01
        %v3148 = vmul.f32 %v3050, 0.01
        %v3149 = vmul.f32 %v3053, 0.01
        %v3150 = vmul.f32 %v3055, 0.01
        %v3151 = vmul.f32 %v3058, 0.01
        %v3152 = vmul.f32 %v3060, 0.01
        %v3153 = vmul.f32 %v3063, 0.01
        %v3154 = vmul.f32 %v3065, 0.01
        %v3155 = vmul.f32 %v3068, 0.01
        %v3156 = vmul.f32 %v3070, 0.01
        %v3157 = vmul.f32 %v3073, 0.01
        %v3158 = vmul.f32 %v3075, 0.01
        %v3159 = vmul.f32 %v3078, 0.01
        %v3160 = vmul.f32 %v3080, 0.01
        %v3161 = vmul.f32 %v3083, 0.01
        %v3162 = vmul.f32 %v3085, 0.01
        %v3163 = vmul.f32 %v3088, 0.01
        %v3164 = vmul.f32 %v3090, 0.01
        %v3165 = vmul.f32 %v3093, 0.01
        %v3166 = vmul.f32 %v3095, 0.01
        %v3167 = vmul.f32 %v3098, 0.01
        %v3168 = vmul.f32 %v3100, 0.01
        %v3169 = vmul.f32 %v3103, 0.01
        %v3170 = vmul.f32 %v3105, 0.01
        %v3171 = vsel %vm3107, %v3028, %v3139
        %v3172 = vsel %vm3108, %v3030, %v3140
        %v3173 = vsel %vm3109, %v3033, %v3141
        %v3174 = vsel %vm3110, %v3035, %v3142
        %v3175 = vsel %vm3111, %v3038, %v3143
        %v3176 = vsel %vm3112, %v3040, %v3144
        %v3177 = vsel %vm3113, %v3043, %v3145
        %v3178 = vsel %vm3114, %v3045, %v3146
        %v3179 = vsel %vm3115, %v3048, %v3147
        %v3180 = vsel %vm3116, %v3050, %v3148
        %v3181 = vsel %vm3117, %v3053, %v3149
        %v3182 = vsel %vm3118, %v3055, %v3150
        %v3183 = vsel %vm3119, %v3058, %v3151
        %v3184 = vsel %vm3120, %v3060, %v3152
        %v3185 = vsel %vm3121, %v3063, %v3153
        %v3186 = vsel %vm3122, %v3065, %v3154
        %v3187 = vsel %vm3123, %v3068, %v3155
        %v3188 = vsel %vm3124, %v3070, %v3156
        %v3189 = vsel %vm3125, %v3073, %v3157
        %v3190 = vsel %vm3126, %v3075, %v3158
        %v3191 = vsel %vm3127, %v3078, %v3159
        %v3192 = vsel %vm3128, %v3080, %v3160
        %v3193 = vsel %vm3129, %v3083, %v3161
        %v3194 = vsel %vm3130, %v3085, %v3162
        %v3195 = vsel %vm3131, %v3088, %v3163
        %v3196 = vsel %vm3132, %v3090, %v3164
        %v3197 = vsel %vm3133, %v3093, %v3165
        %v3198 = vsel %vm3134, %v3095, %v3166
        %v3199 = vsel %vm3135, %v3098, %v3167
        %v3200 = vsel %vm3136, %v3100, %v3168
        %v3201 = vsel %vm3137, %v3103, %v3169
        %v3202 = vsel %vm3138, %v3105, %v3170
        %3203 = vst.msk [vmem:[%s414 + $0x1] sm:$0xff] %vm272, %v3171
        %3204 = vst.msk [vmem:[%s414 + $0x9] sm:$0xff] %vm272, %v3172
        %3205 = vst.msk [vmem:[%s414 + $0x19] sm:$0xff] %vm272, %v3173
        %3206 = vst.msk [vmem:[%s414 + $0x21] sm:$0xff] %vm272, %v3174
        %3207 = vst.msk [vmem:[%s414 + $0x31] sm:$0xff] %vm272, %v3175
        %3208 = vst.msk [vmem:[%s414 + $0x39] sm:$0xff] %vm272, %v3176
        %3209 = vst.msk [vmem:[%s414 + $0x49] sm:$0xff] %vm272, %v3177
        %3210 = vst.msk [vmem:[%s414 + $0x51] sm:$0xff] %vm272, %v3178
        %3211 = vst.msk [vmem:[%s414 + $0x61] sm:$0xff] %vm272, %v3179
        %3212 = vst.msk [vmem:[%s414 + $0x69] sm:$0xff] %vm272, %v3180
        %3213 = vst.msk [vmem:[%s414 + $0x79] sm:$0xff] %vm272, %v3181
        %3214 = vst.msk [vmem:[%s414 + $0x81] sm:$0xff] %vm272, %v3182
        %3215 = vst.msk [vmem:[%s414 + $0x91] sm:$0xff] %vm272, %v3183
        %3216 = vst.msk [vmem:[%s414 + $0x99] sm:$0xff] %vm272, %v3184
        %3217 = vst.msk [vmem:[%s414 + $0xa9] sm:$0xff] %vm272, %v3185
        %3218 = vst.msk [vmem:[%s414 + $0xb1] sm:$0xff] %vm272, %v3186
        %3219 = vst.msk [vmem:[%s414 + $0xc1] sm:$0xff] %vm272, %v3187
        %3220 = vst.msk [vmem:[%s414 + $0xc9] sm:$0xff] %vm272, %v3188
        %3221 = vst.msk [vmem:[%s414 + $0xd9] sm:$0xff] %vm272, %v3189
        %3222 = vst.msk [vmem:[%s414 + $0xe1] sm:$0xff] %vm272, %v3190
        %3223 = vst.msk [vmem:[%s414 + $0xf1] sm:$0xff] %vm272, %v3191
        %3224 = vst.msk [vmem:[%s414 + $0xf9] sm:$0xff] %vm272, %v3192
        %3225 = vst.msk [vmem:[%s414 + $0x109] sm:$0xff] %vm272, %v3193
        %3226 = vst.msk [vmem:[%s414 + $0x111] sm:$0xff] %vm272, %v3194
        %3227 = vst.msk [vmem:[%s414 + $0x121] sm:$0xff] %vm272, %v3195
        %3228 = vst.msk [vmem:[%s414 + $0x129] sm:$0xff] %vm272, %v3196
        %3229 = vst.msk [vmem:[%s414 + $0x139] sm:$0xff] %vm272, %v3197
        %3230 = vst.msk [vmem:[%s414 + $0x141] sm:$0xff] %vm272, %v3198
        %3231 = vst.msk [vmem:[%s414 + $0x151] sm:$0xff] %vm272, %v3199
        %3232 = vst.msk [vmem:[%s414 + $0x159] sm:$0xff] %vm272, %v3200
        %3233 = vst.msk [vmem:[%s414 + $0x169] sm:$0xff] %vm272, %v3201
        %3234 = vst.msk [vmem:[%s414 + $0x171] sm:$0xff] %vm272, %v3202
        loop: start=0, step=1, limit=16
        $region45: #{network_forward.1} parent=43 // loop_pre_header
          _
        $region46: #{network_forward.1} parent=43 // loop_header
          %s3236 = sphi 0, %s3240
          %p3237 = scmp.ge.s32.totalorder %s3236, 16
        $region47: #{network_forward.1} parent=43 // loop_header_branch
          %3239 = sbr.rel (%p3237) target = $region51
        $region48: #{network_forward.1} parent=43 // loop_body
          %s3241 = smul.u32 %s3236, 2
          %s3242 = sadd.s32 %s3241, 1
          %s3243 = smul.u32 %s3242, 72
          %s3244 = smul.addr %s3243, 4
          %s3245 = scalar_lea.vmem %s2, %s3244
          %v3246 = vld [vmem:[%s3245] sm:$0xf]
          %v3247 = vld [vmem:[%s3245 + $0x4] sm:$0xf]
          %v3248 = vld [vmem:[%s3245 + $0x8] sm:$0xf]
          %v3249 = vld [vmem:[%s3245 + $0xc] sm:$0xf]
          %v3250 = vld [vmem:[%s3245 + $0x10] sm:$0xf]
          %v3251 = vld [vmem:[%s3245 + $0x14] sm:$0xf]
          %v3252 = vld [vmem:[%s3245 + $0x18] sm:$0xf]
          %v3253 = vld [vmem:[%s3245 + $0x1c] sm:$0xf]
          %v3254 = vld [vmem:[%s3245 + $0x20] sm:$0xf]
          %v3255 = vld [vmem:[%s3245 + $0x24] sm:$0xf]
          %v3256 = vld [vmem:[%s3245 + $0x28] sm:$0xf]
          %v3257 = vld [vmem:[%s3245 + $0x2c] sm:$0xf]
          %v3258 = vld [vmem:[%s3245 + $0x30] sm:$0xf]
          %v3259 = vld [vmem:[%s3245 + $0x34] sm:$0xf]
          %v3260 = vld [vmem:[%s3245 + $0x38] sm:$0xf]
          %v3261 = vld [vmem:[%s3245 + $0x3c] sm:$0xf]
          %v3262 = vld [vmem:[%s3245 + $0x40] sm:$0xf]
          %v3263 = vld [vmem:[%s3245 + $0x44] sm:$0xf]
          %v3264 = vld [vmem:[%s3245 + $0x48] sm:$0xf]
          %v3265 = vld [vmem:[%s3245 + $0x4c] sm:$0xf]
          %v3266 = vld [vmem:[%s3245 + $0x50] sm:$0xf]
          %v3267 = vld [vmem:[%s3245 + $0x54] sm:$0xf]
          %v3268 = vld [vmem:[%s3245 + $0x58] sm:$0xf]
          %v3269 = vld [vmem:[%s3245 + $0x5c] sm:$0xf]
          %v3270 = vld [vmem:[%s3245 + $0x60] sm:$0xf]
          %v3271 = vld [vmem:[%s3245 + $0x64] sm:$0xf]
          %v3272 = vld [vmem:[%s3245 + $0x68] sm:$0xf]
          %v3273 = vld [vmem:[%s3245 + $0x6c] sm:$0xf]
          %v3274 = vld [vmem:[%s3245 + $0x70] sm:$0xf]
          %v3275 = vld [vmem:[%s3245 + $0x74] sm:$0xf]
          %v3276 = vld [vmem:[%s3245 + $0x78] sm:$0xf]
          %v3277 = vld [vmem:[%s3245 + $0x7c] sm:$0xf]
          %v3278 = vld [vmem:[%s3245 + $0x80] sm:$0xf]
          %v3279 = vld [vmem:[%s3245 + $0x84] sm:$0xf]
          %v3280 = vld [vmem:[%s3245 + $0x88] sm:$0xf]
          %v3281 = vld [vmem:[%s3245 + $0x8c] sm:$0xf]
          %v3282 = vld [vmem:[%s3245 + $0x90] sm:$0xf]
          %v3283 = vld [vmem:[%s3245 + $0x94] sm:$0xf]
          %v3284 = vld [vmem:[%s3245 + $0x98] sm:$0xf]
          %v3285 = vld [vmem:[%s3245 + $0x9c] sm:$0xf]
          %v3286 = vld [vmem:[%s3245 + $0xa0] sm:$0xf]
          %v3287 = vld [vmem:[%s3245 + $0xa4] sm:$0xf]
          %v3288 = vld [vmem:[%s3245 + $0xa8] sm:$0xf]
          %v3289 = vld [vmem:[%s3245 + $0xac] sm:$0xf]
          %v3290 = vld [vmem:[%s3245 + $0xb0] sm:$0xf]
          %v3291 = vld [vmem:[%s3245 + $0xb4] sm:$0xf]
          %v3292 = vld [vmem:[%s3245 + $0xb8] sm:$0xf]
          %v3293 = vld [vmem:[%s3245 + $0xbc] sm:$0xf]
          %v3294 = vld [vmem:[%s3245 + $0xc0] sm:$0xf]
          %v3295 = vld [vmem:[%s3245 + $0xc4] sm:$0xf]
          %v3296 = vld [vmem:[%s3245 + $0xc8] sm:$0xf]
          %v3297 = vld [vmem:[%s3245 + $0xcc] sm:$0xf]
          %v3298 = vld [vmem:[%s3245 + $0xd0] sm:$0xf]
          %v3299 = vld [vmem:[%s3245 + $0xd4] sm:$0xf]
          %v3300 = vld [vmem:[%s3245 + $0xd8] sm:$0xf]
          %v3301 = vld [vmem:[%s3245 + $0xdc] sm:$0xf]
          %v3302 = vld [vmem:[%s3245 + $0xe0] sm:$0xf]
          %v3303 = vld [vmem:[%s3245 + $0xe4] sm:$0xf]
          %v3304 = vld [vmem:[%s3245 + $0xe8] sm:$0xf]
          %v3305 = vld [vmem:[%s3245 + $0xec] sm:$0xf]
          %v3306 = vld [vmem:[%s3245 + $0xf0] sm:$0xf]
          %v3307 = vld [vmem:[%s3245 + $0xf4] sm:$0xf]
          %v3308 = vld [vmem:[%s3245 + $0xf8] sm:$0xf]
          %v3309 = vld [vmem:[%s3245 + $0xfc] sm:$0xf]
          %v3310 = vld [vmem:[%s3245 + $0x100] sm:$0xf]
          %v3311 = vld [vmem:[%s3245 + $0x104] sm:$0xf]
          %v3312 = vld [vmem:[%s3245 + $0x108] sm:$0xf]
          %v3313 = vld [vmem:[%s3245 + $0x10c] sm:$0xf]
          %v3314 = vld [vmem:[%s3245 + $0x110] sm:$0xf]
          %v3315 = vld [vmem:[%s3245 + $0x114] sm:$0xf]
          %v3316 = vld [vmem:[%s3245 + $0x118] sm:$0xf]
          %v3317 = vld [vmem:[%s3245 + $0x11c] sm:$0xf]
          %s3318 = scalar_lea.vmem %s3, %s3242
          %v3319 = vld [vmem:[%s3318] sm:$0x1]
          %s3320 = sadd.s32 %s3241, 2
          %s3321 = smul.u32 %s3320, 72
          %s3322 = smul.addr %s3321, 4
          %s3323 = scalar_lea.vmem %s2, %s3322
          %v3324 = vld [vmem:[%s3323] sm:$0xf]
          %v3325 = vld [vmem:[%s3323 + $0x4] sm:$0xf]
          %v3326 = vld [vmem:[%s3323 + $0x8] sm:$0xf]
          %v3327 = vld [vmem:[%s3323 + $0xc] sm:$0xf]
          %v3328 = vld [vmem:[%s3323 + $0x10] sm:$0xf]
          %v3329 = vld [vmem:[%s3323 + $0x14] sm:$0xf]
          %v3330 = vld [vmem:[%s3323 + $0x18] sm:$0xf]
          %v3331 = vld [vmem:[%s3323 + $0x1c] sm:$0xf]
          %v3332 = vld [vmem:[%s3323 + $0x20] sm:$0xf]
          %v3333 = vld [vmem:[%s3323 + $0x24] sm:$0xf]
          %v3334 = vld [vmem:[%s3323 + $0x28] sm:$0xf]
          %v3335 = vld [vmem:[%s3323 + $0x2c] sm:$0xf]
          %v3336 = vld [vmem:[%s3323 + $0x30] sm:$0xf]
          %v3337 = vld [vmem:[%s3323 + $0x34] sm:$0xf]
          %v3338 = vld [vmem:[%s3323 + $0x38] sm:$0xf]
          %v3339 = vld [vmem:[%s3323 + $0x3c] sm:$0xf]
          %v3340 = vld [vmem:[%s3323 + $0x40] sm:$0xf]
          %v3341 = vld [vmem:[%s3323 + $0x44] sm:$0xf]
          %v3342 = vld [vmem:[%s3323 + $0x48] sm:$0xf]
          %v3343 = vld [vmem:[%s3323 + $0x4c] sm:$0xf]
          %v3344 = vld [vmem:[%s3323 + $0x50] sm:$0xf]
          %v3345 = vld [vmem:[%s3323 + $0x54] sm:$0xf]
          %v3346 = vld [vmem:[%s3323 + $0x58] sm:$0xf]
          %v3347 = vld [vmem:[%s3323 + $0x5c] sm:$0xf]
          %v3348 = vld [vmem:[%s3323 + $0x60] sm:$0xf]
          %v3349 = vld [vmem:[%s3323 + $0x64] sm:$0xf]
          %v3350 = vld [vmem:[%s3323 + $0x68] sm:$0xf]
          %v3351 = vld [vmem:[%s3323 + $0x6c] sm:$0xf]
          %v3352 = vld [vmem:[%s3323 + $0x70] sm:$0xf]
          %v3353 = vld [vmem:[%s3323 + $0x74] sm:$0xf]
          %v3354 = vld [vmem:[%s3323 + $0x78] sm:$0xf]
          %v3355 = vld [vmem:[%s3323 + $0x7c] sm:$0xf]
          %v3356 = vld [vmem:[%s3323 + $0x80] sm:$0xf]
          %v3357 = vld [vmem:[%s3323 + $0x84] sm:$0xf]
          %v3358 = vld [vmem:[%s3323 + $0x88] sm:$0xf]
          %v3359 = vld [vmem:[%s3323 + $0x8c] sm:$0xf]
          %v3360 = vld [vmem:[%s3323 + $0x90] sm:$0xf]
          %v3361 = vld [vmem:[%s3323 + $0x94] sm:$0xf]
          %v3362 = vld [vmem:[%s3323 + $0x98] sm:$0xf]
          %v3363 = vld [vmem:[%s3323 + $0x9c] sm:$0xf]
          %v3364 = vld [vmem:[%s3323 + $0xa0] sm:$0xf]
          %v3365 = vld [vmem:[%s3323 + $0xa4] sm:$0xf]
          %v3366 = vld [vmem:[%s3323 + $0xa8] sm:$0xf]
          %v3367 = vld [vmem:[%s3323 + $0xac] sm:$0xf]
          %v3368 = vld [vmem:[%s3323 + $0xb0] sm:$0xf]
          %v3369 = vld [vmem:[%s3323 + $0xb4] sm:$0xf]
          %v3370 = vld [vmem:[%s3323 + $0xb8] sm:$0xf]
          %v3371 = vld [vmem:[%s3323 + $0xbc] sm:$0xf]
          %v3372 = vld [vmem:[%s3323 + $0xc0] sm:$0xf]
          %v3373 = vld [vmem:[%s3323 + $0xc4] sm:$0xf]
          %v3374 = vld [vmem:[%s3323 + $0xc8] sm:$0xf]
          %v3375 = vld [vmem:[%s3323 + $0xcc] sm:$0xf]
          %v3376 = vld [vmem:[%s3323 + $0xd0] sm:$0xf]
          %v3377 = vld [vmem:[%s3323 + $0xd4] sm:$0xf]
          %v3378 = vld [vmem:[%s3323 + $0xd8] sm:$0xf]
          %v3379 = vld [vmem:[%s3323 + $0xdc] sm:$0xf]
          %v3380 = vld [vmem:[%s3323 + $0xe0] sm:$0xf]
          %v3381 = vld [vmem:[%s3323 + $0xe4] sm:$0xf]
          %v3382 = vld [vmem:[%s3323 + $0xe8] sm:$0xf]
          %v3383 = vld [vmem:[%s3323 + $0xec] sm:$0xf]
          %v3384 = vld [vmem:[%s3323 + $0xf0] sm:$0xf]
          %v3385 = vld [vmem:[%s3323 + $0xf4] sm:$0xf]
          %v3386 = vld [vmem:[%s3323 + $0xf8] sm:$0xf]
          %v3387 = vld [vmem:[%s3323 + $0xfc] sm:$0xf]
          %v3388 = vld [vmem:[%s3323 + $0x100] sm:$0xf]
          %v3389 = vld [vmem:[%s3323 + $0x104] sm:$0xf]
          %v3390 = vld [vmem:[%s3323 + $0x108] sm:$0xf]
          %v3391 = vld [vmem:[%s3323 + $0x10c] sm:$0xf]
          %v3392 = vld [vmem:[%s3323 + $0x110] sm:$0xf]
          %v3393 = vld [vmem:[%s3323 + $0x114] sm:$0xf]
          %v3394 = vld [vmem:[%s3323 + $0x118] sm:$0xf]
          %v3395 = vld [vmem:[%s3323 + $0x11c] sm:$0xf]
          %s3396 = scalar_lea.vmem %s3, %s3320
          %v3397 = vld [vmem:[%s3396] sm:$0x1]
          %v3398 = vld [vmem:[#allocation2] sm:$0xff]
          %v3399 = vld [vmem:[#allocation2 + $0x8] sm:$0xff]
          %v3400 = vld [vmem:[#allocation2 + $0x18] sm:$0xff]
          %v3401 = vld [vmem:[#allocation2 + $0x20] sm:$0xff]
          %v3402 = vld [vmem:[#allocation2 + $0x30] sm:$0xff]
          %v3403 = vld [vmem:[#allocation2 + $0x38] sm:$0xff]
          %v3404 = vld [vmem:[#allocation2 + $0x48] sm:$0xff]
          %v3405 = vld [vmem:[#allocation2 + $0x50] sm:$0xff]
          %v3406 = vld [vmem:[#allocation2 + $0x60] sm:$0xff]
          %v3407 = vld [vmem:[#allocation2 + $0x68] sm:$0xff]
          %v3408 = vld [vmem:[#allocation2 + $0x78] sm:$0xff]
          %v3409 = vld [vmem:[#allocation2 + $0x80] sm:$0xff]
          %v3410 = vld [vmem:[#allocation2 + $0x90] sm:$0xff]
          %v3411 = vld [vmem:[#allocation2 + $0x98] sm:$0xff]
          %v3412 = vld [vmem:[#allocation2 + $0xa8] sm:$0xff]
          %v3413 = vld [vmem:[#allocation2 + $0xb0] sm:$0xff]
          %v3414 = vld [vmem:[#allocation2 + $0xc0] sm:$0xff]
          %v3415 = vld [vmem:[#allocation2 + $0xc8] sm:$0xff]
          %v3416 = vld [vmem:[#allocation2 + $0xd8] sm:$0xff]
          %v3417 = vld [vmem:[#allocation2 + $0xe0] sm:$0xff]
          %v3418 = vld [vmem:[#allocation2 + $0xf0] sm:$0xff]
          %v3419 = vld [vmem:[#allocation2 + $0xf8] sm:$0xff]
          %v3420 = vld [vmem:[#allocation2 + $0x108] sm:$0xff]
          %v3421 = vld [vmem:[#allocation2 + $0x110] sm:$0xff]
          %v3422 = vld [vmem:[#allocation2 + $0x120] sm:$0xff]
          %v3423 = vld [vmem:[#allocation2 + $0x128] sm:$0xff]
          %v3424 = vld [vmem:[#allocation2 + $0x138] sm:$0xff]
          %v3425 = vld [vmem:[#allocation2 + $0x140] sm:$0xff]
          %v3426 = vld [vmem:[#allocation2 + $0x150] sm:$0xff]
          %v3427 = vld [vmem:[#allocation2 + $0x158] sm:$0xff]
          %v3428 = vld [vmem:[#allocation2 + $0x168] sm:$0xff]
          %v3429 = vld [vmem:[#allocation2 + $0x170] sm:$0xff]
          %v3430 = vpack.c.bf16 %v3398, %v3398
          %v3431 = vpack.c.bf16 %v3399, %v3399
          %v3432 = vpack.c.bf16 %v3400, %v3400
          %v3433 = vpack.c.bf16 %v3401, %v3401
          %v3434 = vpack.c.bf16 %v3402, %v3402
          %v3435 = vpack.c.bf16 %v3403, %v3403
          %v3436 = vpack.c.bf16 %v3404, %v3404
          %v3437 = vpack.c.bf16 %v3405, %v3405
          %v3438 = vpack.c.bf16 %v3406, %v3406
          %v3439 = vpack.c.bf16 %v3407, %v3407
          %v3440 = vpack.c.bf16 %v3408, %v3408
          %v3441 = vpack.c.bf16 %v3409, %v3409
          %v3442 = vpack.c.bf16 %v3410, %v3410
          %v3443 = vpack.c.bf16 %v3411, %v3411
          %v3444 = vpack.c.bf16 %v3412, %v3412
          %v3445 = vpack.c.bf16 %v3413, %v3413
          %v3446 = vpack.c.bf16 %v3414, %v3414
          %v3447 = vpack.c.bf16 %v3415, %v3415
          %v3448 = vpack.c.bf16 %v3416, %v3416
          %v3449 = vpack.c.bf16 %v3417, %v3417
          %v3450 = vpack.c.bf16 %v3418, %v3418
          %v3451 = vpack.c.bf16 %v3419, %v3419
          %v3452 = vpack.c.bf16 %v3420, %v3420
          %v3453 = vpack.c.bf16 %v3421, %v3421
          %v3454 = vpack.c.bf16 %v3422, %v3422
          %v3455 = vpack.c.bf16 %v3423, %v3423
          %v3456 = vpack.c.bf16 %v3424, %v3424
          %v3457 = vpack.c.bf16 %v3425, %v3425
          %v3458 = vpack.c.bf16 %v3426, %v3426
          %v3459 = vpack.c.bf16 %v3427, %v3427
          %v3460 = vpack.c.bf16 %v3428, %v3428
          %v3461 = vpack.c.bf16 %v3429, %v3429
          %3462 = vst.msk [vmem:[#allocation4] sm:$0xf] %vm583, %v3430
          %3463 = vst.msk [vmem:[#allocation4 + $0x14] sm:$0xf] %vm583, %v3431
          %3464 = vst.msk [vmem:[#allocation4 + $0x28] sm:$0xf] %vm583, %v3432
          %3465 = vst.msk [vmem:[#allocation4 + $0x3c] sm:$0xf] %vm583, %v3433
          %3466 = vst.msk [vmem:[#allocation4 + $0x50] sm:$0xf] %vm583, %v3434
          %3467 = vst.msk [vmem:[#allocation4 + $0x64] sm:$0xf] %vm583, %v3435
          %3468 = vst.msk [vmem:[#allocation4 + $0x78] sm:$0xf] %vm583, %v3436
          %3469 = vst.msk [vmem:[#allocation4 + $0x8c] sm:$0xf] %vm583, %v3437
          %3470 = vst.msk [vmem:[#allocation4 + $0xa0] sm:$0xf] %vm583, %v3438
          %3471 = vst.msk [vmem:[#allocation4 + $0xb4] sm:$0xf] %vm583, %v3439
          %3472 = vst.msk [vmem:[#allocation4 + $0xc8] sm:$0xf] %vm583, %v3440
          %3473 = vst.msk [vmem:[#allocation4 + $0xdc] sm:$0xf] %vm583, %v3441
          %3474 = vst.msk [vmem:[#allocation4 + $0xf0] sm:$0xf] %vm583, %v3442
          %3475 = vst.msk [vmem:[#allocation4 + $0x104] sm:$0xf] %vm583, %v3443
          %3476 = vst.msk [vmem:[#allocation4 + $0x118] sm:$0xf] %vm583, %v3444
          %3477 = vst.msk [vmem:[#allocation4 + $0x12c] sm:$0xf] %vm583, %v3445
          %3478 = vst.msk [vmem:[#allocation4 + $0x140] sm:$0xf] %vm583, %v3446
          %3479 = vst.msk [vmem:[#allocation4 + $0x154] sm:$0xf] %vm583, %v3447
          %3480 = vst.msk [vmem:[#allocation4 + $0x168] sm:$0xf] %vm583, %v3448
          %3481 = vst.msk [vmem:[#allocation4 + $0x17c] sm:$0xf] %vm583, %v3449
          %3482 = vst.msk [vmem:[#allocation4 + $0x190] sm:$0xf] %vm583, %v3450
          %3483 = vst.msk [vmem:[#allocation4 + $0x1a4] sm:$0xf] %vm583, %v3451
          %3484 = vst.msk [vmem:[#allocation4 + $0x1b8] sm:$0xf] %vm583, %v3452
          %3485 = vst.msk [vmem:[#allocation4 + $0x1cc] sm:$0xf] %vm583, %v3453
          %3486 = vst.msk [vmem:[#allocation4 + $0x1e0] sm:$0xf] %vm583, %v3454
          %3487 = vst.msk [vmem:[#allocation4 + $0x1f4] sm:$0xf] %vm583, %v3455
          %3488 = vst.msk [vmem:[#allocation4 + $0x208] sm:$0xf] %vm583, %v3456
          %3489 = vst.msk [vmem:[#allocation4 + $0x21c] sm:$0xf] %vm583, %v3457
          %3490 = vst.msk [vmem:[#allocation4 + $0x230] sm:$0xf] %vm583, %v3458
          %3491 = vst.msk [vmem:[#allocation4 + $0x244] sm:$0xf] %vm583, %v3459
          %3492 = vst.msk [vmem:[#allocation4 + $0x258] sm:$0xf] %vm583, %v3460
          %3493 = vst.msk [vmem:[#allocation4 + $0x26c] sm:$0xf] %vm583, %v3461
          %v3494 = vld [vmem:[#allocation2 + $0x1] sm:$0xff]
          %v3495 = vld [vmem:[#allocation2 + $0x9] sm:$0xff]
          %v3496 = vld [vmem:[#allocation2 + $0x19] sm:$0xff]
          %v3497 = vld [vmem:[#allocation2 + $0x21] sm:$0xff]
          %v3498 = vld [vmem:[#allocation2 + $0x31] sm:$0xff]
          %v3499 = vld [vmem:[#allocation2 + $0x39] sm:$0xff]
          %v3500 = vld [vmem:[#allocation2 + $0x49] sm:$0xff]
          %v3501 = vld [vmem:[#allocation2 + $0x51] sm:$0xff]
          %v3502 = vld [vmem:[#allocation2 + $0x61] sm:$0xff]
          %v3503 = vld [vmem:[#allocation2 + $0x69] sm:$0xff]
          %v3504 = vld [vmem:[#allocation2 + $0x79] sm:$0xff]
          %v3505 = vld [vmem:[#allocation2 + $0x81] sm:$0xff]
          %v3506 = vld [vmem:[#allocation2 + $0x91] sm:$0xff]
          %v3507 = vld [vmem:[#allocation2 + $0x99] sm:$0xff]
          %v3508 = vld [vmem:[#allocation2 + $0xa9] sm:$0xff]
          %v3509 = vld [vmem:[#allocation2 + $0xb1] sm:$0xff]
          %v3510 = vld [vmem:[#allocation2 + $0xc1] sm:$0xff]
          %v3511 = vld [vmem:[#allocation2 + $0xc9] sm:$0xff]
          %v3512 = vld [vmem:[#allocation2 + $0xd9] sm:$0xff]
          %v3513 = vld [vmem:[#allocation2 + $0xe1] sm:$0xff]
          %v3514 = vld [vmem:[#allocation2 + $0xf1] sm:$0xff]
          %v3515 = vld [vmem:[#allocation2 + $0xf9] sm:$0xff]
          %v3516 = vld [vmem:[#allocation2 + $0x109] sm:$0xff]
          %v3517 = vld [vmem:[#allocation2 + $0x111] sm:$0xff]
          %v3518 = vld [vmem:[#allocation2 + $0x121] sm:$0xff]
          %v3519 = vld [vmem:[#allocation2 + $0x129] sm:$0xff]
          %v3520 = vld [vmem:[#allocation2 + $0x139] sm:$0xff]
          %v3521 = vld [vmem:[#allocation2 + $0x141] sm:$0xff]
          %v3522 = vld [vmem:[#allocation2 + $0x151] sm:$0xff]
          %v3523 = vld [vmem:[#allocation2 + $0x159] sm:$0xff]
          %v3524 = vld [vmem:[#allocation2 + $0x169] sm:$0xff]
          %v3525 = vld [vmem:[#allocation2 + $0x171] sm:$0xff]
          %v3526 = vpack.c.bf16 %v3494, %v3494
          %v3527 = vpack.c.bf16 %v3495, %v3495
          %v3528 = vpack.c.bf16 %v3496, %v3496
          %v3529 = vpack.c.bf16 %v3497, %v3497
          %v3530 = vpack.c.bf16 %v3498, %v3498
          %v3531 = vpack.c.bf16 %v3499, %v3499
          %v3532 = vpack.c.bf16 %v3500, %v3500
          %v3533 = vpack.c.bf16 %v3501, %v3501
          %v3534 = vpack.c.bf16 %v3502, %v3502
          %v3535 = vpack.c.bf16 %v3503, %v3503
          %v3536 = vpack.c.bf16 %v3504, %v3504
          %v3537 = vpack.c.bf16 %v3505, %v3505
          %v3538 = vpack.c.bf16 %v3506, %v3506
          %v3539 = vpack.c.bf16 %v3507, %v3507
          %v3540 = vpack.c.bf16 %v3508, %v3508
          %v3541 = vpack.c.bf16 %v3509, %v3509
          %v3542 = vpack.c.bf16 %v3510, %v3510
          %v3543 = vpack.c.bf16 %v3511, %v3511
          %v3544 = vpack.c.bf16 %v3512, %v3512
          %v3545 = vpack.c.bf16 %v3513, %v3513
          %v3546 = vpack.c.bf16 %v3514, %v3514
          %v3547 = vpack.c.bf16 %v3515, %v3515
          %v3548 = vpack.c.bf16 %v3516, %v3516
          %v3549 = vpack.c.bf16 %v3517, %v3517
          %v3550 = vpack.c.bf16 %v3518, %v3518
          %v3551 = vpack.c.bf16 %v3519, %v3519
          %v3552 = vpack.c.bf16 %v3520, %v3520
          %v3553 = vpack.c.bf16 %v3521, %v3521
          %v3554 = vpack.c.bf16 %v3522, %v3522
          %v3555 = vpack.c.bf16 %v3523, %v3523
          %v3556 = vpack.c.bf16 %v3524, %v3524
          %v3557 = vpack.c.bf16 %v3525, %v3525
          %3590 = vrot.lane.b32.xlu0 %v3526, 64
          %v3591 = vpop.permute.xlu0 %3590
          %3592 = vrot.lane.b32.xlu0 %v3527, 64
          %v3593 = vpop.permute.xlu0 %3592
          %3594 = vrot.lane.b32.xlu0 %v3528, 64
          %v3595 = vpop.permute.xlu0 %3594
          %3596 = vrot.lane.b32.xlu0 %v3529, 64
          %v3597 = vpop.permute.xlu0 %3596
          %3598 = vrot.lane.b32.xlu0 %v3530, 64
          %v3599 = vpop.permute.xlu0 %3598
          %3600 = vrot.lane.b32.xlu0 %v3531, 64
          %v3601 = vpop.permute.xlu0 %3600
          %3602 = vrot.lane.b32.xlu0 %v3532, 64
          %v3603 = vpop.permute.xlu0 %3602
          %3604 = vrot.lane.b32.xlu0 %v3533, 64
          %v3605 = vpop.permute.xlu0 %3604
          %3606 = vrot.lane.b32.xlu0 %v3534, 64
          %v3607 = vpop.permute.xlu0 %3606
          %3608 = vrot.lane.b32.xlu0 %v3535, 64
          %v3609 = vpop.permute.xlu0 %3608
          %3610 = vrot.lane.b32.xlu0 %v3536, 64
          %v3611 = vpop.permute.xlu0 %3610
          %3612 = vrot.lane.b32.xlu0 %v3537, 64
          %v3613 = vpop.permute.xlu0 %3612
          %3614 = vrot.lane.b32.xlu0 %v3538, 64
          %v3615 = vpop.permute.xlu0 %3614
          %3616 = vrot.lane.b32.xlu0 %v3539, 64
          %v3617 = vpop.permute.xlu0 %3616
          %3618 = vrot.lane.b32.xlu0 %v3540, 64
          %v3619 = vpop.permute.xlu0 %3618
          %3620 = vrot.lane.b32.xlu0 %v3541, 64
          %v3621 = vpop.permute.xlu0 %3620
          %3622 = vrot.lane.b32.xlu0 %v3542, 64
          %v3623 = vpop.permute.xlu0 %3622
          %3624 = vrot.lane.b32.xlu0 %v3543, 64
          %v3625 = vpop.permute.xlu0 %3624
          %3626 = vrot.lane.b32.xlu0 %v3544, 64
          %v3627 = vpop.permute.xlu0 %3626
          %3628 = vrot.lane.b32.xlu0 %v3545, 64
          %v3629 = vpop.permute.xlu0 %3628
          %3630 = vrot.lane.b32.xlu0 %v3546, 64
          %v3631 = vpop.permute.xlu0 %3630
          %3632 = vrot.lane.b32.xlu0 %v3547, 64
          %v3633 = vpop.permute.xlu0 %3632
          %3634 = vrot.lane.b32.xlu0 %v3548, 64
          %v3635 = vpop.permute.xlu0 %3634
          %3636 = vrot.lane.b32.xlu0 %v3549, 64
          %v3637 = vpop.permute.xlu0 %3636
          %3638 = vrot.lane.b32.xlu0 %v3550, 64
          %v3639 = vpop.permute.xlu0 %3638
          %3640 = vrot.lane.b32.xlu0 %v3551, 64
          %v3641 = vpop.permute.xlu0 %3640
          %3642 = vrot.lane.b32.xlu0 %v3552, 64
          %v3643 = vpop.permute.xlu0 %3642
          %3644 = vrot.lane.b32.xlu0 %v3553, 64
          %v3645 = vpop.permute.xlu0 %3644
          %3646 = vrot.lane.b32.xlu0 %v3554, 64
          %v3647 = vpop.permute.xlu0 %3646
          %3648 = vrot.lane.b32.xlu0 %v3555, 64
          %v3649 = vpop.permute.xlu0 %3648
          %3650 = vrot.lane.b32.xlu0 %v3556, 64
          %v3651 = vpop.permute.xlu0 %3650
          %3652 = vrot.lane.b32.xlu0 %v3557, 64
          %v3653 = vpop.permute.xlu0 %3652
          %3686 = vst.msk [vmem:[#allocation4] sm:$0xf] %vm808, %v3591
          %3687 = vst.msk [vmem:[#allocation4 + $0x14] sm:$0xf] %vm808, %v3593
          %3688 = vst.msk [vmem:[#allocation4 + $0x28] sm:$0xf] %vm808, %v3595
          %3689 = vst.msk [vmem:[#allocation4 + $0x3c] sm:$0xf] %vm808, %v3597
          %3690 = vst.msk [vmem:[#allocation4 + $0x50] sm:$0xf] %vm808, %v3599
          %3691 = vst.msk [vmem:[#allocation4 + $0x64] sm:$0xf] %vm808, %v3601
          %3692 = vst.msk [vmem:[#allocation4 + $0x78] sm:$0xf] %vm808, %v3603
          %3693 = vst.msk [vmem:[#allocation4 + $0x8c] sm:$0xf] %vm808, %v3605
          %3694 = vst.msk [vmem:[#allocation4 + $0xa0] sm:$0xf] %vm808, %v3607
          %3695 = vst.msk [vmem:[#allocation4 + $0xb4] sm:$0xf] %vm808, %v3609
          %3696 = vst.msk [vmem:[#allocation4 + $0xc8] sm:$0xf] %vm808, %v3611
          %3697 = vst.msk [vmem:[#allocation4 + $0xdc] sm:$0xf] %vm808, %v3613
          %3698 = vst.msk [vmem:[#allocation4 + $0xf0] sm:$0xf] %vm808, %v3615
          %3699 = vst.msk [vmem:[#allocation4 + $0x104] sm:$0xf] %vm808, %v3617
          %3700 = vst.msk [vmem:[#allocation4 + $0x118] sm:$0xf] %vm808, %v3619
          %3701 = vst.msk [vmem:[#allocation4 + $0x12c] sm:$0xf] %vm808, %v3621
          %3702 = vst.msk [vmem:[#allocation4 + $0x140] sm:$0xf] %vm808, %v3623
          %3703 = vst.msk [vmem:[#allocation4 + $0x154] sm:$0xf] %vm808, %v3625
          %3704 = vst.msk [vmem:[#allocation4 + $0x168] sm:$0xf] %vm808, %v3627
          %3705 = vst.msk [vmem:[#allocation4 + $0x17c] sm:$0xf] %vm808, %v3629
          %3706 = vst.msk [vmem:[#allocation4 + $0x190] sm:$0xf] %vm808, %v3631
          %3707 = vst.msk [vmem:[#allocation4 + $0x1a4] sm:$0xf] %vm808, %v3633
          %3708 = vst.msk [vmem:[#allocation4 + $0x1b8] sm:$0xf] %vm808, %v3635
          %3709 = vst.msk [vmem:[#allocation4 + $0x1cc] sm:$0xf] %vm808, %v3637
          %3710 = vst.msk [vmem:[#allocation4 + $0x1e0] sm:$0xf] %vm808, %v3639
          %3711 = vst.msk [vmem:[#allocation4 + $0x1f4] sm:$0xf] %vm808, %v3641
          %3712 = vst.msk [vmem:[#allocation4 + $0x208] sm:$0xf] %vm808, %v3643
          %3713 = vst.msk [vmem:[#allocation4 + $0x21c] sm:$0xf] %vm808, %v3645
          %3714 = vst.msk [vmem:[#allocation4 + $0x230] sm:$0xf] %vm808, %v3647
          %3715 = vst.msk [vmem:[#allocation4 + $0x244] sm:$0xf] %vm808, %v3649
          %3716 = vst.msk [vmem:[#allocation4 + $0x258] sm:$0xf] %vm808, %v3651
          %3717 = vst.msk [vmem:[#allocation4 + $0x26c] sm:$0xf] %vm808, %v3653
          %v3718 = vld [vmem:[#allocation2 + $0x2] sm:$0xff]
          %v3719 = vld [vmem:[#allocation2 + $0xa] sm:$0xff]
          %v3720 = vld [vmem:[#allocation2 + $0x1a] sm:$0xff]
          %v3721 = vld [vmem:[#allocation2 + $0x22] sm:$0xff]
          %v3722 = vld [vmem:[#allocation2 + $0x32] sm:$0xff]
          %v3723 = vld [vmem:[#allocation2 + $0x3a] sm:$0xff]
          %v3724 = vld [vmem:[#allocation2 + $0x4a] sm:$0xff]
          %v3725 = vld [vmem:[#allocation2 + $0x52] sm:$0xff]
          %v3726 = vld [vmem:[#allocation2 + $0x62] sm:$0xff]
          %v3727 = vld [vmem:[#allocation2 + $0x6a] sm:$0xff]
          %v3728 = vld [vmem:[#allocation2 + $0x7a] sm:$0xff]
          %v3729 = vld [vmem:[#allocation2 + $0x82] sm:$0xff]
          %v3730 = vld [vmem:[#allocation2 + $0x92] sm:$0xff]
          %v3731 = vld [vmem:[#allocation2 + $0x9a] sm:$0xff]
          %v3732 = vld [vmem:[#allocation2 + $0xaa] sm:$0xff]
          %v3733 = vld [vmem:[#allocation2 + $0xb2] sm:$0xff]
          %v3734 = vld [vmem:[#allocation2 + $0xc2] sm:$0xff]
          %v3735 = vld [vmem:[#allocation2 + $0xca] sm:$0xff]
          %v3736 = vld [vmem:[#allocation2 + $0xda] sm:$0xff]
          %v3737 = vld [vmem:[#allocation2 + $0xe2] sm:$0xff]
          %v3738 = vld [vmem:[#allocation2 + $0xf2] sm:$0xff]
          %v3739 = vld [vmem:[#allocation2 + $0xfa] sm:$0xff]
          %v3740 = vld [vmem:[#allocation2 + $0x10a] sm:$0xff]
          %v3741 = vld [vmem:[#allocation2 + $0x112] sm:$0xff]
          %v3742 = vld [vmem:[#allocation2 + $0x122] sm:$0xff]
          %v3743 = vld [vmem:[#allocation2 + $0x12a] sm:$0xff]
          %v3744 = vld [vmem:[#allocation2 + $0x13a] sm:$0xff]
          %v3745 = vld [vmem:[#allocation2 + $0x142] sm:$0xff]
          %v3746 = vld [vmem:[#allocation2 + $0x152] sm:$0xff]
          %v3747 = vld [vmem:[#allocation2 + $0x15a] sm:$0xff]
          %v3748 = vld [vmem:[#allocation2 + $0x16a] sm:$0xff]
          %v3749 = vld [vmem:[#allocation2 + $0x172] sm:$0xff]
          %v3750 = vpack.c.bf16 %v3718, %v3718
          %v3751 = vpack.c.bf16 %v3719, %v3719
          %v3752 = vpack.c.bf16 %v3720, %v3720
          %v3753 = vpack.c.bf16 %v3721, %v3721
          %v3754 = vpack.c.bf16 %v3722, %v3722
          %v3755 = vpack.c.bf16 %v3723, %v3723
          %v3756 = vpack.c.bf16 %v3724, %v3724
          %v3757 = vpack.c.bf16 %v3725, %v3725
          %v3758 = vpack.c.bf16 %v3726, %v3726
          %v3759 = vpack.c.bf16 %v3727, %v3727
          %v3760 = vpack.c.bf16 %v3728, %v3728
          %v3761 = vpack.c.bf16 %v3729, %v3729
          %v3762 = vpack.c.bf16 %v3730, %v3730
          %v3763 = vpack.c.bf16 %v3731, %v3731
          %v3764 = vpack.c.bf16 %v3732, %v3732
          %v3765 = vpack.c.bf16 %v3733, %v3733
          %v3766 = vpack.c.bf16 %v3734, %v3734
          %v3767 = vpack.c.bf16 %v3735, %v3735
          %v3768 = vpack.c.bf16 %v3736, %v3736
          %v3769 = vpack.c.bf16 %v3737, %v3737
          %v3770 = vpack.c.bf16 %v3738, %v3738
          %v3771 = vpack.c.bf16 %v3739, %v3739
          %v3772 = vpack.c.bf16 %v3740, %v3740
          %v3773 = vpack.c.bf16 %v3741, %v3741
          %v3774 = vpack.c.bf16 %v3742, %v3742
          %v3775 = vpack.c.bf16 %v3743, %v3743
          %v3776 = vpack.c.bf16 %v3744, %v3744
          %v3777 = vpack.c.bf16 %v3745, %v3745
          %v3778 = vpack.c.bf16 %v3746, %v3746
          %v3779 = vpack.c.bf16 %v3747, %v3747
          %v3780 = vpack.c.bf16 %v3748, %v3748
          %v3781 = vpack.c.bf16 %v3749, %v3749
          %3782 = vst.msk [vmem:[#allocation4 + $0x4] sm:$0xf] %vm583, %v3750
          %3783 = vst.msk [vmem:[#allocation4 + $0x18] sm:$0xf] %vm583, %v3751
          %3784 = vst.msk [vmem:[#allocation4 + $0x2c] sm:$0xf] %vm583, %v3752
          %3785 = vst.msk [vmem:[#allocation4 + $0x40] sm:$0xf] %vm583, %v3753
          %3786 = vst.msk [vmem:[#allocation4 + $0x54] sm:$0xf] %vm583, %v3754
          %3787 = vst.msk [vmem:[#allocation4 + $0x68] sm:$0xf] %vm583, %v3755
          %3788 = vst.msk [vmem:[#allocation4 + $0x7c] sm:$0xf] %vm583, %v3756
          %3789 = vst.msk [vmem:[#allocation4 + $0x90] sm:$0xf] %vm583, %v3757
          %3790 = vst.msk [vmem:[#allocation4 + $0xa4] sm:$0xf] %vm583, %v3758
          %3791 = vst.msk [vmem:[#allocation4 + $0xb8] sm:$0xf] %vm583, %v3759
          %3792 = vst.msk [vmem:[#allocation4 + $0xcc] sm:$0xf] %vm583, %v3760
          %3793 = vst.msk [vmem:[#allocation4 + $0xe0] sm:$0xf] %vm583, %v3761
          %3794 = vst.msk [vmem:[#allocation4 + $0xf4] sm:$0xf] %vm583, %v3762
          %3795 = vst.msk [vmem:[#allocation4 + $0x108] sm:$0xf] %vm583, %v3763
          %3796 = vst.msk [vmem:[#allocation4 + $0x11c] sm:$0xf] %vm583, %v3764
          %3797 = vst.msk [vmem:[#allocation4 + $0x130] sm:$0xf] %vm583, %v3765
          %3798 = vst.msk [vmem:[#allocation4 + $0x144] sm:$0xf] %vm583, %v3766
          %3799 = vst.msk [vmem:[#allocation4 + $0x158] sm:$0xf] %vm583, %v3767
          %3800 = vst.msk [vmem:[#allocation4 + $0x16c] sm:$0xf] %vm583, %v3768
          %3801 = vst.msk [vmem:[#allocation4 + $0x180] sm:$0xf] %vm583, %v3769
          %3802 = vst.msk [vmem:[#allocation4 + $0x194] sm:$0xf] %vm583, %v3770
          %3803 = vst.msk [vmem:[#allocation4 + $0x1a8] sm:$0xf] %vm583, %v3771
          %3804 = vst.msk [vmem:[#allocation4 + $0x1bc] sm:$0xf] %vm583, %v3772
          %3805 = vst.msk [vmem:[#allocation4 + $0x1d0] sm:$0xf] %vm583, %v3773
          %3806 = vst.msk [vmem:[#allocation4 + $0x1e4] sm:$0xf] %vm583, %v3774
          %3807 = vst.msk [vmem:[#allocation4 + $0x1f8] sm:$0xf] %vm583, %v3775
          %3808 = vst.msk [vmem:[#allocation4 + $0x20c] sm:$0xf] %vm583, %v3776
          %3809 = vst.msk [vmem:[#allocation4 + $0x220] sm:$0xf] %vm583, %v3777
          %3810 = vst.msk [vmem:[#allocation4 + $0x234] sm:$0xf] %vm583, %v3778
          %3811 = vst.msk [vmem:[#allocation4 + $0x248] sm:$0xf] %vm583, %v3779
          %3812 = vst.msk [vmem:[#allocation4 + $0x25c] sm:$0xf] %vm583, %v3780
          %3813 = vst.msk [vmem:[#allocation4 + $0x270] sm:$0xf] %vm583, %v3781
          %v3814 = vld [vmem:[%s414] sm:$0xff]
          %v3815 = vld [vmem:[%s414 + $0x8] sm:$0xff]
          %v3816 = vld [vmem:[%s414 + $0x18] sm:$0xff]
          %v3817 = vld [vmem:[%s414 + $0x20] sm:$0xff]
          %v3818 = vld [vmem:[%s414 + $0x30] sm:$0xff]
          %v3819 = vld [vmem:[%s414 + $0x38] sm:$0xff]
          %v3820 = vld [vmem:[%s414 + $0x48] sm:$0xff]
          %v3821 = vld [vmem:[%s414 + $0x50] sm:$0xff]
          %v3822 = vld [vmem:[%s414 + $0x60] sm:$0xff]
          %v3823 = vld [vmem:[%s414 + $0x68] sm:$0xff]
          %v3824 = vld [vmem:[%s414 + $0x78] sm:$0xff]
          %v3825 = vld [vmem:[%s414 + $0x80] sm:$0xff]
          %v3826 = vld [vmem:[%s414 + $0x90] sm:$0xff]
          %v3827 = vld [vmem:[%s414 + $0x98] sm:$0xff]
          %v3828 = vld [vmem:[%s414 + $0xa8] sm:$0xff]
          %v3829 = vld [vmem:[%s414 + $0xb0] sm:$0xff]
          %v3830 = vld [vmem:[%s414 + $0xc0] sm:$0xff]
          %v3831 = vld [vmem:[%s414 + $0xc8] sm:$0xff]
          %v3832 = vld [vmem:[%s414 + $0xd8] sm:$0xff]
          %v3833 = vld [vmem:[%s414 + $0xe0] sm:$0xff]
          %v3834 = vld [vmem:[%s414 + $0xf0] sm:$0xff]
          %v3835 = vld [vmem:[%s414 + $0xf8] sm:$0xff]
          %v3836 = vld [vmem:[%s414 + $0x108] sm:$0xff]
          %v3837 = vld [vmem:[%s414 + $0x110] sm:$0xff]
          %v3838 = vld [vmem:[%s414 + $0x120] sm:$0xff]
          %v3839 = vld [vmem:[%s414 + $0x128] sm:$0xff]
          %v3840 = vld [vmem:[%s414 + $0x138] sm:$0xff]
          %v3841 = vld [vmem:[%s414 + $0x140] sm:$0xff]
          %v3842 = vld [vmem:[%s414 + $0x150] sm:$0xff]
          %v3843 = vld [vmem:[%s414 + $0x158] sm:$0xff]
          %v3844 = vld [vmem:[%s414 + $0x168] sm:$0xff]
          %v3845 = vld [vmem:[%s414 + $0x170] sm:$0xff]
          %v3846 = vpack.c.bf16 %v3814, %v3814
          %v3847 = vpack.c.bf16 %v3815, %v3815
          %v3848 = vpack.c.bf16 %v3816, %v3816
          %v3849 = vpack.c.bf16 %v3817, %v3817
          %v3850 = vpack.c.bf16 %v3818, %v3818
          %v3851 = vpack.c.bf16 %v3819, %v3819
          %v3852 = vpack.c.bf16 %v3820, %v3820
          %v3853 = vpack.c.bf16 %v3821, %v3821
          %v3854 = vpack.c.bf16 %v3822, %v3822
          %v3855 = vpack.c.bf16 %v3823, %v3823
          %v3856 = vpack.c.bf16 %v3824, %v3824
          %v3857 = vpack.c.bf16 %v3825, %v3825
          %v3858 = vpack.c.bf16 %v3826, %v3826
          %v3859 = vpack.c.bf16 %v3827, %v3827
          %v3860 = vpack.c.bf16 %v3828, %v3828
          %v3861 = vpack.c.bf16 %v3829, %v3829
          %v3862 = vpack.c.bf16 %v3830, %v3830
          %v3863 = vpack.c.bf16 %v3831, %v3831
          %v3864 = vpack.c.bf16 %v3832, %v3832
          %v3865 = vpack.c.bf16 %v3833, %v3833
          %v3866 = vpack.c.bf16 %v3834, %v3834
          %v3867 = vpack.c.bf16 %v3835, %v3835
          %v3868 = vpack.c.bf16 %v3836, %v3836
          %v3869 = vpack.c.bf16 %v3837, %v3837
          %v3870 = vpack.c.bf16 %v3838, %v3838
          %v3871 = vpack.c.bf16 %v3839, %v3839
          %v3872 = vpack.c.bf16 %v3840, %v3840
          %v3873 = vpack.c.bf16 %v3841, %v3841
          %v3874 = vpack.c.bf16 %v3842, %v3842
          %v3875 = vpack.c.bf16 %v3843, %v3843
          %v3876 = vpack.c.bf16 %v3844, %v3844
          %v3877 = vpack.c.bf16 %v3845, %v3845
          %3910 = vrot.lane.b32.xlu0 %v3846, 64
          %v3911 = vpop.permute.xlu0 %3910
          %3912 = vrot.lane.b32.xlu0 %v3847, 64
          %v3913 = vpop.permute.xlu0 %3912
          %3914 = vrot.lane.b32.xlu0 %v3848, 64
          %v3915 = vpop.permute.xlu0 %3914
          %3916 = vrot.lane.b32.xlu0 %v3849, 64
          %v3917 = vpop.permute.xlu0 %3916
          %3918 = vrot.lane.b32.xlu0 %v3850, 64
          %v3919 = vpop.permute.xlu0 %3918
          %3920 = vrot.lane.b32.xlu0 %v3851, 64
          %v3921 = vpop.permute.xlu0 %3920
          %3922 = vrot.lane.b32.xlu0 %v3852, 64
          %v3923 = vpop.permute.xlu0 %3922
          %3924 = vrot.lane.b32.xlu0 %v3853, 64
          %v3925 = vpop.permute.xlu0 %3924
          %3926 = vrot.lane.b32.xlu0 %v3854, 64
          %v3927 = vpop.permute.xlu0 %3926
          %3928 = vrot.lane.b32.xlu0 %v3855, 64
          %v3929 = vpop.permute.xlu0 %3928
          %3930 = vrot.lane.b32.xlu0 %v3856, 64
          %v3931 = vpop.permute.xlu0 %3930
          %3932 = vrot.lane.b32.xlu0 %v3857, 64
          %v3933 = vpop.permute.xlu0 %3932
          %3934 = vrot.lane.b32.xlu0 %v3858, 64
          %v3935 = vpop.permute.xlu0 %3934
          %3936 = vrot.lane.b32.xlu0 %v3859, 64
          %v3937 = vpop.permute.xlu0 %3936
          %3938 = vrot.lane.b32.xlu0 %v3860, 64
          %v3939 = vpop.permute.xlu0 %3938
          %3940 = vrot.lane.b32.xlu0 %v3861, 64
          %v3941 = vpop.permute.xlu0 %3940
          %3942 = vrot.lane.b32.xlu0 %v3862, 64
          %v3943 = vpop.permute.xlu0 %3942
          %3944 = vrot.lane.b32.xlu0 %v3863, 64
          %v3945 = vpop.permute.xlu0 %3944
          %3946 = vrot.lane.b32.xlu0 %v3864, 64
          %v3947 = vpop.permute.xlu0 %3946
          %3948 = vrot.lane.b32.xlu0 %v3865, 64
          %v3949 = vpop.permute.xlu0 %3948
          %3950 = vrot.lane.b32.xlu0 %v3866, 64
          %v3951 = vpop.permute.xlu0 %3950
          %3952 = vrot.lane.b32.xlu0 %v3867, 64
          %v3953 = vpop.permute.xlu0 %3952
          %3954 = vrot.lane.b32.xlu0 %v3868, 64
          %v3955 = vpop.permute.xlu0 %3954
          %3956 = vrot.lane.b32.xlu0 %v3869, 64
          %v3957 = vpop.permute.xlu0 %3956
          %3958 = vrot.lane.b32.xlu0 %v3870, 64
          %v3959 = vpop.permute.xlu0 %3958
          %3960 = vrot.lane.b32.xlu0 %v3871, 64
          %v3961 = vpop.permute.xlu0 %3960
          %3962 = vrot.lane.b32.xlu0 %v3872, 64
          %v3963 = vpop.permute.xlu0 %3962
          %3964 = vrot.lane.b32.xlu0 %v3873, 64
          %v3965 = vpop.permute.xlu0 %3964
          %3966 = vrot.lane.b32.xlu0 %v3874, 64
          %v3967 = vpop.permute.xlu0 %3966
          %3968 = vrot.lane.b32.xlu0 %v3875, 64
          %v3969 = vpop.permute.xlu0 %3968
          %3970 = vrot.lane.b32.xlu0 %v3876, 64
          %v3971 = vpop.permute.xlu0 %3970
          %3972 = vrot.lane.b32.xlu0 %v3877, 64
          %v3973 = vpop.permute.xlu0 %3972
          %4006 = vst.msk [vmem:[#allocation4 + $0x4] sm:$0xf] %vm808, %v3911
          %4007 = vst.msk [vmem:[#allocation4 + $0x18] sm:$0xf] %vm808, %v3913
          %4008 = vst.msk [vmem:[#allocation4 + $0x2c] sm:$0xf] %vm808, %v3915
          %4009 = vst.msk [vmem:[#allocation4 + $0x40] sm:$0xf] %vm808, %v3917
          %4010 = vst.msk [vmem:[#allocation4 + $0x54] sm:$0xf] %vm808, %v3919
          %4011 = vst.msk [vmem:[#allocation4 + $0x68] sm:$0xf] %vm808, %v3921
          %4012 = vst.msk [vmem:[#allocation4 + $0x7c] sm:$0xf] %vm808, %v3923
          %4013 = vst.msk [vmem:[#allocation4 + $0x90] sm:$0xf] %vm808, %v3925
          %4014 = vst.msk [vmem:[#allocation4 + $0xa4] sm:$0xf] %vm808, %v3927
          %4015 = vst.msk [vmem:[#allocation4 + $0xb8] sm:$0xf] %vm808, %v3929
          %4016 = vst.msk [vmem:[#allocation4 + $0xcc] sm:$0xf] %vm808, %v3931
          %4017 = vst.msk [vmem:[#allocation4 + $0xe0] sm:$0xf] %vm808, %v3933
          %4018 = vst.msk [vmem:[#allocation4 + $0xf4] sm:$0xf] %vm808, %v3935
          %4019 = vst.msk [vmem:[#allocation4 + $0x108] sm:$0xf] %vm808, %v3937
          %4020 = vst.msk [vmem:[#allocation4 + $0x11c] sm:$0xf] %vm808, %v3939
          %4021 = vst.msk [vmem:[#allocation4 + $0x130] sm:$0xf] %vm808, %v3941
          %4022 = vst.msk [vmem:[#allocation4 + $0x144] sm:$0xf] %vm808, %v3943
          %4023 = vst.msk [vmem:[#allocation4 + $0x158] sm:$0xf] %vm808, %v3945
          %4024 = vst.msk [vmem:[#allocation4 + $0x16c] sm:$0xf] %vm808, %v3947
          %4025 = vst.msk [vmem:[#allocation4 + $0x180] sm:$0xf] %vm808, %v3949
          %4026 = vst.msk [vmem:[#allocation4 + $0x194] sm:$0xf] %vm808, %v3951
          %4027 = vst.msk [vmem:[#allocation4 + $0x1a8] sm:$0xf] %vm808, %v3953
          %4028 = vst.msk [vmem:[#allocation4 + $0x1bc] sm:$0xf] %vm808, %v3955
          %4029 = vst.msk [vmem:[#allocation4 + $0x1d0] sm:$0xf] %vm808, %v3957
          %4030 = vst.msk [vmem:[#allocation4 + $0x1e4] sm:$0xf] %vm808, %v3959
          %4031 = vst.msk [vmem:[#allocation4 + $0x1f8] sm:$0xf] %vm808, %v3961
          %4032 = vst.msk [vmem:[#allocation4 + $0x20c] sm:$0xf] %vm808, %v3963
          %4033 = vst.msk [vmem:[#allocation4 + $0x220] sm:$0xf] %vm808, %v3965
          %4034 = vst.msk [vmem:[#allocation4 + $0x234] sm:$0xf] %vm808, %v3967
          %4035 = vst.msk [vmem:[#allocation4 + $0x248] sm:$0xf] %vm808, %v3969
          %4036 = vst.msk [vmem:[#allocation4 + $0x25c] sm:$0xf] %vm808, %v3971
          %4037 = vst.msk [vmem:[#allocation4 + $0x270] sm:$0xf] %vm808, %v3973
          %v4038 = vld [vmem:[%s414 + $0x1] sm:$0xff]
          %v4039 = vld [vmem:[%s414 + $0x9] sm:$0xff]
          %v4040 = vld [vmem:[%s414 + $0x19] sm:$0xff]
          %v4041 = vld [vmem:[%s414 + $0x21] sm:$0xff]
          %v4042 = vld [vmem:[%s414 + $0x31] sm:$0xff]
          %v4043 = vld [vmem:[%s414 + $0x39] sm:$0xff]
          %v4044 = vld [vmem:[%s414 + $0x49] sm:$0xff]
          %v4045 = vld [vmem:[%s414 + $0x51] sm:$0xff]
          %v4046 = vld [vmem:[%s414 + $0x61] sm:$0xff]
          %v4047 = vld [vmem:[%s414 + $0x69] sm:$0xff]
          %v4048 = vld [vmem:[%s414 + $0x79] sm:$0xff]
          %v4049 = vld [vmem:[%s414 + $0x81] sm:$0xff]
          %v4050 = vld [vmem:[%s414 + $0x91] sm:$0xff]
          %v4051 = vld [vmem:[%s414 + $0x99] sm:$0xff]
          %v4052 = vld [vmem:[%s414 + $0xa9] sm:$0xff]
          %v4053 = vld [vmem:[%s414 + $0xb1] sm:$0xff]
          %v4054 = vld [vmem:[%s414 + $0xc1] sm:$0xff]
          %v4055 = vld [vmem:[%s414 + $0xc9] sm:$0xff]
          %v4056 = vld [vmem:[%s414 + $0xd9] sm:$0xff]
          %v4057 = vld [vmem:[%s414 + $0xe1] sm:$0xff]
          %v4058 = vld [vmem:[%s414 + $0xf1] sm:$0xff]
          %v4059 = vld [vmem:[%s414 + $0xf9] sm:$0xff]
          %v4060 = vld [vmem:[%s414 + $0x109] sm:$0xff]
          %v4061 = vld [vmem:[%s414 + $0x111] sm:$0xff]
          %v4062 = vld [vmem:[%s414 + $0x121] sm:$0xff]
          %v4063 = vld [vmem:[%s414 + $0x129] sm:$0xff]
          %v4064 = vld [vmem:[%s414 + $0x139] sm:$0xff]
          %v4065 = vld [vmem:[%s414 + $0x141] sm:$0xff]
          %v4066 = vld [vmem:[%s414 + $0x151] sm:$0xff]
          %v4067 = vld [vmem:[%s414 + $0x159] sm:$0xff]
          %v4068 = vld [vmem:[%s414 + $0x169] sm:$0xff]
          %v4069 = vld [vmem:[%s414 + $0x171] sm:$0xff]
          %v4070 = vpack.c.bf16 %v4038, %v4038
          %v4071 = vpack.c.bf16 %v4039, %v4039
          %v4072 = vpack.c.bf16 %v4040, %v4040
          %v4073 = vpack.c.bf16 %v4041, %v4041
          %v4074 = vpack.c.bf16 %v4042, %v4042
          %v4075 = vpack.c.bf16 %v4043, %v4043
          %v4076 = vpack.c.bf16 %v4044, %v4044
          %v4077 = vpack.c.bf16 %v4045, %v4045
          %v4078 = vpack.c.bf16 %v4046, %v4046
          %v4079 = vpack.c.bf16 %v4047, %v4047
          %v4080 = vpack.c.bf16 %v4048, %v4048
          %v4081 = vpack.c.bf16 %v4049, %v4049
          %v4082 = vpack.c.bf16 %v4050, %v4050
          %v4083 = vpack.c.bf16 %v4051, %v4051
          %v4084 = vpack.c.bf16 %v4052, %v4052
          %v4085 = vpack.c.bf16 %v4053, %v4053
          %v4086 = vpack.c.bf16 %v4054, %v4054
          %v4087 = vpack.c.bf16 %v4055, %v4055
          %v4088 = vpack.c.bf16 %v4056, %v4056
          %v4089 = vpack.c.bf16 %v4057, %v4057
          %v4090 = vpack.c.bf16 %v4058, %v4058
          %v4091 = vpack.c.bf16 %v4059, %v4059
          %v4092 = vpack.c.bf16 %v4060, %v4060
          %v4093 = vpack.c.bf16 %v4061, %v4061
          %v4094 = vpack.c.bf16 %v4062, %v4062
          %v4095 = vpack.c.bf16 %v4063, %v4063
          %v4096 = vpack.c.bf16 %v4064, %v4064
          %v4097 = vpack.c.bf16 %v4065, %v4065
          %v4098 = vpack.c.bf16 %v4066, %v4066
          %v4099 = vpack.c.bf16 %v4067, %v4067
          %v4100 = vpack.c.bf16 %v4068, %v4068
          %v4101 = vpack.c.bf16 %v4069, %v4069
          %4102 = vst.msk [vmem:[#allocation4 + $0x8] sm:$0xf] %vm583, %v4070
          %4103 = vst.msk [vmem:[#allocation4 + $0x1c] sm:$0xf] %vm583, %v4071
          %4104 = vst.msk [vmem:[#allocation4 + $0x30] sm:$0xf] %vm583, %v4072
          %4105 = vst.msk [vmem:[#allocation4 + $0x44] sm:$0xf] %vm583, %v4073
          %4106 = vst.msk [vmem:[#allocation4 + $0x58] sm:$0xf] %vm583, %v4074
          %4107 = vst.msk [vmem:[#allocation4 + $0x6c] sm:$0xf] %vm583, %v4075
          %4108 = vst.msk [vmem:[#allocation4 + $0x80] sm:$0xf] %vm583, %v4076
          %4109 = vst.msk [vmem:[#allocation4 + $0x94] sm:$0xf] %vm583, %v4077
          %4110 = vst.msk [vmem:[#allocation4 + $0xa8] sm:$0xf] %vm583, %v4078
          %4111 = vst.msk [vmem:[#allocation4 + $0xbc] sm:$0xf] %vm583, %v4079
          %4112 = vst.msk [vmem:[#allocation4 + $0xd0] sm:$0xf] %vm583, %v4080
          %4113 = vst.msk [vmem:[#allocation4 + $0xe4] sm:$0xf] %vm583, %v4081
          %4114 = vst.msk [vmem:[#allocation4 + $0xf8] sm:$0xf] %vm583, %v4082
          %4115 = vst.msk [vmem:[#allocation4 + $0x10c] sm:$0xf] %vm583, %v4083
          %4116 = vst.msk [vmem:[#allocation4 + $0x120] sm:$0xf] %vm583, %v4084
          %4117 = vst.msk [vmem:[#allocation4 + $0x134] sm:$0xf] %vm583, %v4085
          %4118 = vst.msk [vmem:[#allocation4 + $0x148] sm:$0xf] %vm583, %v4086
          %4119 = vst.msk [vmem:[#allocation4 + $0x15c] sm:$0xf] %vm583, %v4087
          %4120 = vst.msk [vmem:[#allocation4 + $0x170] sm:$0xf] %vm583, %v4088
          %4121 = vst.msk [vmem:[#allocation4 + $0x184] sm:$0xf] %vm583, %v4089
          %4122 = vst.msk [vmem:[#allocation4 + $0x198] sm:$0xf] %vm583, %v4090
          %4123 = vst.msk [vmem:[#allocation4 + $0x1ac] sm:$0xf] %vm583, %v4091
          %4124 = vst.msk [vmem:[#allocation4 + $0x1c0] sm:$0xf] %vm583, %v4092
          %4125 = vst.msk [vmem:[#allocation4 + $0x1d4] sm:$0xf] %vm583, %v4093
          %4126 = vst.msk [vmem:[#allocation4 + $0x1e8] sm:$0xf] %vm583, %v4094
          %4127 = vst.msk [vmem:[#allocation4 + $0x1fc] sm:$0xf] %vm583, %v4095
          %4128 = vst.msk [vmem:[#allocation4 + $0x210] sm:$0xf] %vm583, %v4096
          %4129 = vst.msk [vmem:[#allocation4 + $0x224] sm:$0xf] %vm583, %v4097
          %4130 = vst.msk [vmem:[#allocation4 + $0x238] sm:$0xf] %vm583, %v4098
          %4131 = vst.msk [vmem:[#allocation4 + $0x24c] sm:$0xf] %vm583, %v4099
          %4132 = vst.msk [vmem:[#allocation4 + $0x260] sm:$0xf] %vm583, %v4100
          %4133 = vst.msk [vmem:[#allocation4 + $0x274] sm:$0xf] %vm583, %v4101
          %v4134 = vld [vmem:[%s414 + $0x2] sm:$0xff]
          %v4135 = vld [vmem:[%s414 + $0xa] sm:$0xff]
          %v4136 = vld [vmem:[%s414 + $0x1a] sm:$0xff]
          %v4137 = vld [vmem:[%s414 + $0x22] sm:$0xff]
          %v4138 = vld [vmem:[%s414 + $0x32] sm:$0xff]
          %v4139 = vld [vmem:[%s414 + $0x3a] sm:$0xff]
          %v4140 = vld [vmem:[%s414 + $0x4a] sm:$0xff]
          %v4141 = vld [vmem:[%s414 + $0x52] sm:$0xff]
          %v4142 = vld [vmem:[%s414 + $0x62] sm:$0xff]
          %v4143 = vld [vmem:[%s414 + $0x6a] sm:$0xff]
          %v4144 = vld [vmem:[%s414 + $0x7a] sm:$0xff]
          %v4145 = vld [vmem:[%s414 + $0x82] sm:$0xff]
          %v4146 = vld [vmem:[%s414 + $0x92] sm:$0xff]
          %v4147 = vld [vmem:[%s414 + $0x9a] sm:$0xff]
          %v4148 = vld [vmem:[%s414 + $0xaa] sm:$0xff]
          %v4149 = vld [vmem:[%s414 + $0xb2] sm:$0xff]
          %v4150 = vld [vmem:[%s414 + $0xc2] sm:$0xff]
          %v4151 = vld [vmem:[%s414 + $0xca] sm:$0xff]
          %v4152 = vld [vmem:[%s414 + $0xda] sm:$0xff]
          %v4153 = vld [vmem:[%s414 + $0xe2] sm:$0xff]
          %v4154 = vld [vmem:[%s414 + $0xf2] sm:$0xff]
          %v4155 = vld [vmem:[%s414 + $0xfa] sm:$0xff]
          %v4156 = vld [vmem:[%s414 + $0x10a] sm:$0xff]
          %v4157 = vld [vmem:[%s414 + $0x112] sm:$0xff]
          %v4158 = vld [vmem:[%s414 + $0x122] sm:$0xff]
          %v4159 = vld [vmem:[%s414 + $0x12a] sm:$0xff]
          %v4160 = vld [vmem:[%s414 + $0x13a] sm:$0xff]
          %v4161 = vld [vmem:[%s414 + $0x142] sm:$0xff]
          %v4162 = vld [vmem:[%s414 + $0x152] sm:$0xff]
          %v4163 = vld [vmem:[%s414 + $0x15a] sm:$0xff]
          %v4164 = vld [vmem:[%s414 + $0x16a] sm:$0xff]
          %v4165 = vld [vmem:[%s414 + $0x172] sm:$0xff]
          %v4166 = vpack.c.bf16 %v4134, %v4134
          %v4167 = vpack.c.bf16 %v4135, %v4135
          %v4168 = vpack.c.bf16 %v4136, %v4136
          %v4169 = vpack.c.bf16 %v4137, %v4137
          %v4170 = vpack.c.bf16 %v4138, %v4138
          %v4171 = vpack.c.bf16 %v4139, %v4139
          %v4172 = vpack.c.bf16 %v4140, %v4140
          %v4173 = vpack.c.bf16 %v4141, %v4141
          %v4174 = vpack.c.bf16 %v4142, %v4142
          %v4175 = vpack.c.bf16 %v4143, %v4143
          %v4176 = vpack.c.bf16 %v4144, %v4144
          %v4177 = vpack.c.bf16 %v4145, %v4145
          %v4178 = vpack.c.bf16 %v4146, %v4146
          %v4179 = vpack.c.bf16 %v4147, %v4147
          %v4180 = vpack.c.bf16 %v4148, %v4148
          %v4181 = vpack.c.bf16 %v4149, %v4149
          %v4182 = vpack.c.bf16 %v4150, %v4150
          %v4183 = vpack.c.bf16 %v4151, %v4151
          %v4184 = vpack.c.bf16 %v4152, %v4152
          %v4185 = vpack.c.bf16 %v4153, %v4153
          %v4186 = vpack.c.bf16 %v4154, %v4154
          %v4187 = vpack.c.bf16 %v4155, %v4155
          %v4188 = vpack.c.bf16 %v4156, %v4156
          %v4189 = vpack.c.bf16 %v4157, %v4157
          %v4190 = vpack.c.bf16 %v4158, %v4158
          %v4191 = vpack.c.bf16 %v4159, %v4159
          %v4192 = vpack.c.bf16 %v4160, %v4160
          %v4193 = vpack.c.bf16 %v4161, %v4161
          %v4194 = vpack.c.bf16 %v4162, %v4162
          %v4195 = vpack.c.bf16 %v4163, %v4163
          %v4196 = vpack.c.bf16 %v4164, %v4164
          %v4197 = vpack.c.bf16 %v4165, %v4165
          %4230 = vrot.lane.b32.xlu0 %v4166, 64
          %v4231 = vpop.permute.xlu0 %4230
          %4232 = vrot.lane.b32.xlu0 %v4167, 64
          %v4233 = vpop.permute.xlu0 %4232
          %4234 = vrot.lane.b32.xlu0 %v4168, 64
          %v4235 = vpop.permute.xlu0 %4234
          %4236 = vrot.lane.b32.xlu0 %v4169, 64
          %v4237 = vpop.permute.xlu0 %4236
          %4238 = vrot.lane.b32.xlu0 %v4170, 64
          %v4239 = vpop.permute.xlu0 %4238
          %4240 = vrot.lane.b32.xlu0 %v4171, 64
          %v4241 = vpop.permute.xlu0 %4240
          %4242 = vrot.lane.b32.xlu0 %v4172, 64
          %v4243 = vpop.permute.xlu0 %4242
          %4244 = vrot.lane.b32.xlu0 %v4173, 64
          %v4245 = vpop.permute.xlu0 %4244
          %4246 = vrot.lane.b32.xlu0 %v4174, 64
          %v4247 = vpop.permute.xlu0 %4246
          %4248 = vrot.lane.b32.xlu0 %v4175, 64
          %v4249 = vpop.permute.xlu0 %4248
          %4250 = vrot.lane.b32.xlu0 %v4176, 64
          %v4251 = vpop.permute.xlu0 %4250
          %4252 = vrot.lane.b32.xlu0 %v4177, 64
          %v4253 = vpop.permute.xlu0 %4252
          %4254 = vrot.lane.b32.xlu0 %v4178, 64
          %v4255 = vpop.permute.xlu0 %4254
          %4256 = vrot.lane.b32.xlu0 %v4179, 64
          %v4257 = vpop.permute.xlu0 %4256
          %4258 = vrot.lane.b32.xlu0 %v4180, 64
          %v4259 = vpop.permute.xlu0 %4258
          %4260 = vrot.lane.b32.xlu0 %v4181, 64
          %v4261 = vpop.permute.xlu0 %4260
          %4262 = vrot.lane.b32.xlu0 %v4182, 64
          %v4263 = vpop.permute.xlu0 %4262
          %4264 = vrot.lane.b32.xlu0 %v4183, 64
          %v4265 = vpop.permute.xlu0 %4264
          %4266 = vrot.lane.b32.xlu0 %v4184, 64
          %v4267 = vpop.permute.xlu0 %4266
          %4268 = vrot.lane.b32.xlu0 %v4185, 64
          %v4269 = vpop.permute.xlu0 %4268
          %4270 = vrot.lane.b32.xlu0 %v4186, 64
          %v4271 = vpop.permute.xlu0 %4270
          %4272 = vrot.lane.b32.xlu0 %v4187, 64
          %v4273 = vpop.permute.xlu0 %4272
          %4274 = vrot.lane.b32.xlu0 %v4188, 64
          %v4275 = vpop.permute.xlu0 %4274
          %4276 = vrot.lane.b32.xlu0 %v4189, 64
          %v4277 = vpop.permute.xlu0 %4276
          %4278 = vrot.lane.b32.xlu0 %v4190, 64
          %v4279 = vpop.permute.xlu0 %4278
          %4280 = vrot.lane.b32.xlu0 %v4191, 64
          %v4281 = vpop.permute.xlu0 %4280
          %4282 = vrot.lane.b32.xlu0 %v4192, 64
          %v4283 = vpop.permute.xlu0 %4282
          %4284 = vrot.lane.b32.xlu0 %v4193, 64
          %v4285 = vpop.permute.xlu0 %4284
          %4286 = vrot.lane.b32.xlu0 %v4194, 64
          %v4287 = vpop.permute.xlu0 %4286
          %4288 = vrot.lane.b32.xlu0 %v4195, 64
          %v4289 = vpop.permute.xlu0 %4288
          %4290 = vrot.lane.b32.xlu0 %v4196, 64
          %v4291 = vpop.permute.xlu0 %4290
          %4292 = vrot.lane.b32.xlu0 %v4197, 64
          %v4293 = vpop.permute.xlu0 %4292
          %4326 = vst.msk [vmem:[#allocation4 + $0x8] sm:$0xf] %vm808, %v4231
          %4327 = vst.msk [vmem:[#allocation4 + $0x1c] sm:$0xf] %vm808, %v4233
          %4328 = vst.msk [vmem:[#allocation4 + $0x30] sm:$0xf] %vm808, %v4235
          %4329 = vst.msk [vmem:[#allocation4 + $0x44] sm:$0xf] %vm808, %v4237
          %4330 = vst.msk [vmem:[#allocation4 + $0x58] sm:$0xf] %vm808, %v4239
          %4331 = vst.msk [vmem:[#allocation4 + $0x6c] sm:$0xf] %vm808, %v4241
          %4332 = vst.msk [vmem:[#allocation4 + $0x80] sm:$0xf] %vm808, %v4243
          %4333 = vst.msk [vmem:[#allocation4 + $0x94] sm:$0xf] %vm808, %v4245
          %4334 = vst.msk [vmem:[#allocation4 + $0xa8] sm:$0xf] %vm808, %v4247
          %4335 = vst.msk [vmem:[#allocation4 + $0xbc] sm:$0xf] %vm808, %v4249
          %4336 = vst.msk [vmem:[#allocation4 + $0xd0] sm:$0xf] %vm808, %v4251
          %4337 = vst.msk [vmem:[#allocation4 + $0xe4] sm:$0xf] %vm808, %v4253
          %4338 = vst.msk [vmem:[#allocation4 + $0xf8] sm:$0xf] %vm808, %v4255
          %4339 = vst.msk [vmem:[#allocation4 + $0x10c] sm:$0xf] %vm808, %v4257
          %4340 = vst.msk [vmem:[#allocation4 + $0x120] sm:$0xf] %vm808, %v4259
          %4341 = vst.msk [vmem:[#allocation4 + $0x134] sm:$0xf] %vm808, %v4261
          %4342 = vst.msk [vmem:[#allocation4 + $0x148] sm:$0xf] %vm808, %v4263
          %4343 = vst.msk [vmem:[#allocation4 + $0x15c] sm:$0xf] %vm808, %v4265
          %4344 = vst.msk [vmem:[#allocation4 + $0x170] sm:$0xf] %vm808, %v4267
          %4345 = vst.msk [vmem:[#allocation4 + $0x184] sm:$0xf] %vm808, %v4269
          %4346 = vst.msk [vmem:[#allocation4 + $0x198] sm:$0xf] %vm808, %v4271
          %4347 = vst.msk [vmem:[#allocation4 + $0x1ac] sm:$0xf] %vm808, %v4273
          %4348 = vst.msk [vmem:[#allocation4 + $0x1c0] sm:$0xf] %vm808, %v4275
          %4349 = vst.msk [vmem:[#allocation4 + $0x1d4] sm:$0xf] %vm808, %v4277
          %4350 = vst.msk [vmem:[#allocation4 + $0x1e8] sm:$0xf] %vm808, %v4279
          %4351 = vst.msk [vmem:[#allocation4 + $0x1fc] sm:$0xf] %vm808, %v4281
          %4352 = vst.msk [vmem:[#allocation4 + $0x210] sm:$0xf] %vm808, %v4283
          %4353 = vst.msk [vmem:[#allocation4 + $0x224] sm:$0xf] %vm808, %v4285
          %4354 = vst.msk [vmem:[#allocation4 + $0x238] sm:$0xf] %vm808, %v4287
          %4355 = vst.msk [vmem:[#allocation4 + $0x24c] sm:$0xf] %vm808, %v4289
          %4356 = vst.msk [vmem:[#allocation4 + $0x260] sm:$0xf] %vm808, %v4291
          %4357 = vst.msk [vmem:[#allocation4 + $0x274] sm:$0xf] %vm808, %v4293
          %v4358 = vld [vmem:[%s1481] sm:$0xff]
          %v4359 = vld [vmem:[%s1481 + $0x8] sm:$0xff]
          %v4360 = vld [vmem:[%s1481 + $0x18] sm:$0xff]
          %v4361 = vld [vmem:[%s1481 + $0x20] sm:$0xff]
          %v4362 = vld [vmem:[%s1481 + $0x30] sm:$0xff]
          %v4363 = vld [vmem:[%s1481 + $0x38] sm:$0xff]
          %v4364 = vld [vmem:[%s1481 + $0x48] sm:$0xff]
          %v4365 = vld [vmem:[%s1481 + $0x50] sm:$0xff]
          %v4366 = vld [vmem:[%s1481 + $0x60] sm:$0xff]
          %v4367 = vld [vmem:[%s1481 + $0x68] sm:$0xff]
          %v4368 = vld [vmem:[%s1481 + $0x78] sm:$0xff]
          %v4369 = vld [vmem:[%s1481 + $0x80] sm:$0xff]
          %v4370 = vld [vmem:[%s1481 + $0x90] sm:$0xff]
          %v4371 = vld [vmem:[%s1481 + $0x98] sm:$0xff]
          %v4372 = vld [vmem:[%s1481 + $0xa8] sm:$0xff]
          %v4373 = vld [vmem:[%s1481 + $0xb0] sm:$0xff]
          %v4374 = vld [vmem:[%s1481 + $0xc0] sm:$0xff]
          %v4375 = vld [vmem:[%s1481 + $0xc8] sm:$0xff]
          %v4376 = vld [vmem:[%s1481 + $0xd8] sm:$0xff]
          %v4377 = vld [vmem:[%s1481 + $0xe0] sm:$0xff]
          %v4378 = vld [vmem:[%s1481 + $0xf0] sm:$0xff]
          %v4379 = vld [vmem:[%s1481 + $0xf8] sm:$0xff]
          %v4380 = vld [vmem:[%s1481 + $0x108] sm:$0xff]
          %v4381 = vld [vmem:[%s1481 + $0x110] sm:$0xff]
          %v4382 = vld [vmem:[%s1481 + $0x120] sm:$0xff]
          %v4383 = vld [vmem:[%s1481 + $0x128] sm:$0xff]
          %v4384 = vld [vmem:[%s1481 + $0x138] sm:$0xff]
          %v4385 = vld [vmem:[%s1481 + $0x140] sm:$0xff]
          %v4386 = vld [vmem:[%s1481 + $0x150] sm:$0xff]
          %v4387 = vld [vmem:[%s1481 + $0x158] sm:$0xff]
          %v4388 = vld [vmem:[%s1481 + $0x168] sm:$0xff]
          %v4389 = vld [vmem:[%s1481 + $0x170] sm:$0xff]
          %v4390 = vpack.c.bf16 %v4358, %v4358
          %v4391 = vpack.c.bf16 %v4359, %v4359
          %v4392 = vpack.c.bf16 %v4360, %v4360
          %v4393 = vpack.c.bf16 %v4361, %v4361
          %v4394 = vpack.c.bf16 %v4362, %v4362
          %v4395 = vpack.c.bf16 %v4363, %v4363
          %v4396 = vpack.c.bf16 %v4364, %v4364
          %v4397 = vpack.c.bf16 %v4365, %v4365
          %v4398 = vpack.c.bf16 %v4366, %v4366
          %v4399 = vpack.c.bf16 %v4367, %v4367
          %v4400 = vpack.c.bf16 %v4368, %v4368
          %v4401 = vpack.c.bf16 %v4369, %v4369
          %v4402 = vpack.c.bf16 %v4370, %v4370
          %v4403 = vpack.c.bf16 %v4371, %v4371
          %v4404 = vpack.c.bf16 %v4372, %v4372
          %v4405 = vpack.c.bf16 %v4373, %v4373
          %v4406 = vpack.c.bf16 %v4374, %v4374
          %v4407 = vpack.c.bf16 %v4375, %v4375
          %v4408 = vpack.c.bf16 %v4376, %v4376
          %v4409 = vpack.c.bf16 %v4377, %v4377
          %v4410 = vpack.c.bf16 %v4378, %v4378
          %v4411 = vpack.c.bf16 %v4379, %v4379
          %v4412 = vpack.c.bf16 %v4380, %v4380
          %v4413 = vpack.c.bf16 %v4381, %v4381
          %v4414 = vpack.c.bf16 %v4382, %v4382
          %v4415 = vpack.c.bf16 %v4383, %v4383
          %v4416 = vpack.c.bf16 %v4384, %v4384
          %v4417 = vpack.c.bf16 %v4385, %v4385
          %v4418 = vpack.c.bf16 %v4386, %v4386
          %v4419 = vpack.c.bf16 %v4387, %v4387
          %v4420 = vpack.c.bf16 %v4388, %v4388
          %v4421 = vpack.c.bf16 %v4389, %v4389
          %4422 = vst.msk [vmem:[#allocation4 + $0xc] sm:$0xf] %vm583, %v4390
          %4423 = vst.msk [vmem:[#allocation4 + $0x20] sm:$0xf] %vm583, %v4391
          %4424 = vst.msk [vmem:[#allocation4 + $0x34] sm:$0xf] %vm583, %v4392
          %4425 = vst.msk [vmem:[#allocation4 + $0x48] sm:$0xf] %vm583, %v4393
          %4426 = vst.msk [vmem:[#allocation4 + $0x5c] sm:$0xf] %vm583, %v4394
          %4427 = vst.msk [vmem:[#allocation4 + $0x70] sm:$0xf] %vm583, %v4395
          %4428 = vst.msk [vmem:[#allocation4 + $0x84] sm:$0xf] %vm583, %v4396
          %4429 = vst.msk [vmem:[#allocation4 + $0x98] sm:$0xf] %vm583, %v4397
          %4430 = vst.msk [vmem:[#allocation4 + $0xac] sm:$0xf] %vm583, %v4398
          %4431 = vst.msk [vmem:[#allocation4 + $0xc0] sm:$0xf] %vm583, %v4399
          %4432 = vst.msk [vmem:[#allocation4 + $0xd4] sm:$0xf] %vm583, %v4400
          %4433 = vst.msk [vmem:[#allocation4 + $0xe8] sm:$0xf] %vm583, %v4401
          %4434 = vst.msk [vmem:[#allocation4 + $0xfc] sm:$0xf] %vm583, %v4402
          %4435 = vst.msk [vmem:[#allocation4 + $0x110] sm:$0xf] %vm583, %v4403
          %4436 = vst.msk [vmem:[#allocation4 + $0x124] sm:$0xf] %vm583, %v4404
          %4437 = vst.msk [vmem:[#allocation4 + $0x138] sm:$0xf] %vm583, %v4405
          %4438 = vst.msk [vmem:[#allocation4 + $0x14c] sm:$0xf] %vm583, %v4406
          %4439 = vst.msk [vmem:[#allocation4 + $0x160] sm:$0xf] %vm583, %v4407
          %4440 = vst.msk [vmem:[#allocation4 + $0x174] sm:$0xf] %vm583, %v4408
          %4441 = vst.msk [vmem:[#allocation4 + $0x188] sm:$0xf] %vm583, %v4409
          %4442 = vst.msk [vmem:[#allocation4 + $0x19c] sm:$0xf] %vm583, %v4410
          %4443 = vst.msk [vmem:[#allocation4 + $0x1b0] sm:$0xf] %vm583, %v4411
          %4444 = vst.msk [vmem:[#allocation4 + $0x1c4] sm:$0xf] %vm583, %v4412
          %4445 = vst.msk [vmem:[#allocation4 + $0x1d8] sm:$0xf] %vm583, %v4413
          %4446 = vst.msk [vmem:[#allocation4 + $0x1ec] sm:$0xf] %vm583, %v4414
          %4447 = vst.msk [vmem:[#allocation4 + $0x200] sm:$0xf] %vm583, %v4415
          %4448 = vst.msk [vmem:[#allocation4 + $0x214] sm:$0xf] %vm583, %v4416
          %4449 = vst.msk [vmem:[#allocation4 + $0x228] sm:$0xf] %vm583, %v4417
          %4450 = vst.msk [vmem:[#allocation4 + $0x23c] sm:$0xf] %vm583, %v4418
          %4451 = vst.msk [vmem:[#allocation4 + $0x250] sm:$0xf] %vm583, %v4419
          %4452 = vst.msk [vmem:[#allocation4 + $0x264] sm:$0xf] %vm583, %v4420
          %4453 = vst.msk [vmem:[#allocation4 + $0x278] sm:$0xf] %vm583, %v4421
          %v4454 = vld [vmem:[%s1481 + $0x1] sm:$0xff]
          %v4455 = vld [vmem:[%s1481 + $0x9] sm:$0xff]
          %v4456 = vld [vmem:[%s1481 + $0x19] sm:$0xff]
          %v4457 = vld [vmem:[%s1481 + $0x21] sm:$0xff]
          %v4458 = vld [vmem:[%s1481 + $0x31] sm:$0xff]
          %v4459 = vld [vmem:[%s1481 + $0x39] sm:$0xff]
          %v4460 = vld [vmem:[%s1481 + $0x49] sm:$0xff]
          %v4461 = vld [vmem:[%s1481 + $0x51] sm:$0xff]
          %v4462 = vld [vmem:[%s1481 + $0x61] sm:$0xff]
          %v4463 = vld [vmem:[%s1481 + $0x69] sm:$0xff]
          %v4464 = vld [vmem:[%s1481 + $0x79] sm:$0xff]
          %v4465 = vld [vmem:[%s1481 + $0x81] sm:$0xff]
          %v4466 = vld [vmem:[%s1481 + $0x91] sm:$0xff]
          %v4467 = vld [vmem:[%s1481 + $0x99] sm:$0xff]
          %v4468 = vld [vmem:[%s1481 + $0xa9] sm:$0xff]
          %v4469 = vld [vmem:[%s1481 + $0xb1] sm:$0xff]
          %v4470 = vld [vmem:[%s1481 + $0xc1] sm:$0xff]
          %v4471 = vld [vmem:[%s1481 + $0xc9] sm:$0xff]
          %v4472 = vld [vmem:[%s1481 + $0xd9] sm:$0xff]
          %v4473 = vld [vmem:[%s1481 + $0xe1] sm:$0xff]
          %v4474 = vld [vmem:[%s1481 + $0xf1] sm:$0xff]
          %v4475 = vld [vmem:[%s1481 + $0xf9] sm:$0xff]
          %v4476 = vld [vmem:[%s1481 + $0x109] sm:$0xff]
          %v4477 = vld [vmem:[%s1481 + $0x111] sm:$0xff]
          %v4478 = vld [vmem:[%s1481 + $0x121] sm:$0xff]
          %v4479 = vld [vmem:[%s1481 + $0x129] sm:$0xff]
          %v4480 = vld [vmem:[%s1481 + $0x139] sm:$0xff]
          %v4481 = vld [vmem:[%s1481 + $0x141] sm:$0xff]
          %v4482 = vld [vmem:[%s1481 + $0x151] sm:$0xff]
          %v4483 = vld [vmem:[%s1481 + $0x159] sm:$0xff]
          %v4484 = vld [vmem:[%s1481 + $0x169] sm:$0xff]
          %v4485 = vld [vmem:[%s1481 + $0x171] sm:$0xff]
          %v4486 = vpack.c.bf16 %v4454, %v4454
          %v4487 = vpack.c.bf16 %v4455, %v4455
          %v4488 = vpack.c.bf16 %v4456, %v4456
          %v4489 = vpack.c.bf16 %v4457, %v4457
          %v4490 = vpack.c.bf16 %v4458, %v4458
          %v4491 = vpack.c.bf16 %v4459, %v4459
          %v4492 = vpack.c.bf16 %v4460, %v4460
          %v4493 = vpack.c.bf16 %v4461, %v4461
          %v4494 = vpack.c.bf16 %v4462, %v4462
          %v4495 = vpack.c.bf16 %v4463, %v4463
          %v4496 = vpack.c.bf16 %v4464, %v4464
          %v4497 = vpack.c.bf16 %v4465, %v4465
          %v4498 = vpack.c.bf16 %v4466, %v4466
          %v4499 = vpack.c.bf16 %v4467, %v4467
          %v4500 = vpack.c.bf16 %v4468, %v4468
          %v4501 = vpack.c.bf16 %v4469, %v4469
          %v4502 = vpack.c.bf16 %v4470, %v4470
          %v4503 = vpack.c.bf16 %v4471, %v4471
          %v4504 = vpack.c.bf16 %v4472, %v4472
          %v4505 = vpack.c.bf16 %v4473, %v4473
          %v4506 = vpack.c.bf16 %v4474, %v4474
          %v4507 = vpack.c.bf16 %v4475, %v4475
          %v4508 = vpack.c.bf16 %v4476, %v4476
          %v4509 = vpack.c.bf16 %v4477, %v4477
          %v4510 = vpack.c.bf16 %v4478, %v4478
          %v4511 = vpack.c.bf16 %v4479, %v4479
          %v4512 = vpack.c.bf16 %v4480, %v4480
          %v4513 = vpack.c.bf16 %v4481, %v4481
          %v4514 = vpack.c.bf16 %v4482, %v4482
          %v4515 = vpack.c.bf16 %v4483, %v4483
          %v4516 = vpack.c.bf16 %v4484, %v4484
          %v4517 = vpack.c.bf16 %v4485, %v4485
          %4550 = vrot.lane.b32.xlu0 %v4486, 64
          %v4551 = vpop.permute.xlu0 %4550
          %4552 = vrot.lane.b32.xlu0 %v4487, 64
          %v4553 = vpop.permute.xlu0 %4552
          %4554 = vrot.lane.b32.xlu0 %v4488, 64
          %v4555 = vpop.permute.xlu0 %4554
          %4556 = vrot.lane.b32.xlu0 %v4489, 64
          %v4557 = vpop.permute.xlu0 %4556
          %4558 = vrot.lane.b32.xlu0 %v4490, 64
          %v4559 = vpop.permute.xlu0 %4558
          %4560 = vrot.lane.b32.xlu0 %v4491, 64
          %v4561 = vpop.permute.xlu0 %4560
          %4562 = vrot.lane.b32.xlu0 %v4492, 64
          %v4563 = vpop.permute.xlu0 %4562
          %4564 = vrot.lane.b32.xlu0 %v4493, 64
          %v4565 = vpop.permute.xlu0 %4564
          %4566 = vrot.lane.b32.xlu0 %v4494, 64
          %v4567 = vpop.permute.xlu0 %4566
          %4568 = vrot.lane.b32.xlu0 %v4495, 64
          %v4569 = vpop.permute.xlu0 %4568
          %4570 = vrot.lane.b32.xlu0 %v4496, 64
          %v4571 = vpop.permute.xlu0 %4570
          %4572 = vrot.lane.b32.xlu0 %v4497, 64
          %v4573 = vpop.permute.xlu0 %4572
          %4574 = vrot.lane.b32.xlu0 %v4498, 64
          %v4575 = vpop.permute.xlu0 %4574
          %4576 = vrot.lane.b32.xlu0 %v4499, 64
          %v4577 = vpop.permute.xlu0 %4576
          %4578 = vrot.lane.b32.xlu0 %v4500, 64
          %v4579 = vpop.permute.xlu0 %4578
          %4580 = vrot.lane.b32.xlu0 %v4501, 64
          %v4581 = vpop.permute.xlu0 %4580
          %4582 = vrot.lane.b32.xlu0 %v4502, 64
          %v4583 = vpop.permute.xlu0 %4582
          %4584 = vrot.lane.b32.xlu0 %v4503, 64
          %v4585 = vpop.permute.xlu0 %4584
          %4586 = vrot.lane.b32.xlu0 %v4504, 64
          %v4587 = vpop.permute.xlu0 %4586
          %4588 = vrot.lane.b32.xlu0 %v4505, 64
          %v4589 = vpop.permute.xlu0 %4588
          %4590 = vrot.lane.b32.xlu0 %v4506, 64
          %v4591 = vpop.permute.xlu0 %4590
          %4592 = vrot.lane.b32.xlu0 %v4507, 64
          %v4593 = vpop.permute.xlu0 %4592
          %4594 = vrot.lane.b32.xlu0 %v4508, 64
          %v4595 = vpop.permute.xlu0 %4594
          %4596 = vrot.lane.b32.xlu0 %v4509, 64
          %v4597 = vpop.permute.xlu0 %4596
          %4598 = vrot.lane.b32.xlu0 %v4510, 64
          %v4599 = vpop.permute.xlu0 %4598
          %4600 = vrot.lane.b32.xlu0 %v4511, 64
          %v4601 = vpop.permute.xlu0 %4600
          %4602 = vrot.lane.b32.xlu0 %v4512, 64
          %v4603 = vpop.permute.xlu0 %4602
          %4604 = vrot.lane.b32.xlu0 %v4513, 64
          %v4605 = vpop.permute.xlu0 %4604
          %4606 = vrot.lane.b32.xlu0 %v4514, 64
          %v4607 = vpop.permute.xlu0 %4606
          %4608 = vrot.lane.b32.xlu0 %v4515, 64
          %v4609 = vpop.permute.xlu0 %4608
          %4610 = vrot.lane.b32.xlu0 %v4516, 64
          %v4611 = vpop.permute.xlu0 %4610
          %4612 = vrot.lane.b32.xlu0 %v4517, 64
          %v4613 = vpop.permute.xlu0 %4612
          %4646 = vst.msk [vmem:[#allocation4 + $0xc] sm:$0xf] %vm808, %v4551
          %4647 = vst.msk [vmem:[#allocation4 + $0x20] sm:$0xf] %vm808, %v4553
          %4648 = vst.msk [vmem:[#allocation4 + $0x34] sm:$0xf] %vm808, %v4555
          %4649 = vst.msk [vmem:[#allocation4 + $0x48] sm:$0xf] %vm808, %v4557
          %4650 = vst.msk [vmem:[#allocation4 + $0x5c] sm:$0xf] %vm808, %v4559
          %4651 = vst.msk [vmem:[#allocation4 + $0x70] sm:$0xf] %vm808, %v4561
          %4652 = vst.msk [vmem:[#allocation4 + $0x84] sm:$0xf] %vm808, %v4563
          %4653 = vst.msk [vmem:[#allocation4 + $0x98] sm:$0xf] %vm808, %v4565
          %4654 = vst.msk [vmem:[#allocation4 + $0xac] sm:$0xf] %vm808, %v4567
          %4655 = vst.msk [vmem:[#allocation4 + $0xc0] sm:$0xf] %vm808, %v4569
          %4656 = vst.msk [vmem:[#allocation4 + $0xd4] sm:$0xf] %vm808, %v4571
          %4657 = vst.msk [vmem:[#allocation4 + $0xe8] sm:$0xf] %vm808, %v4573
          %4658 = vst.msk [vmem:[#allocation4 + $0xfc] sm:$0xf] %vm808, %v4575
          %4659 = vst.msk [vmem:[#allocation4 + $0x110] sm:$0xf] %vm808, %v4577
          %4660 = vst.msk [vmem:[#allocation4 + $0x124] sm:$0xf] %vm808, %v4579
          %4661 = vst.msk [vmem:[#allocation4 + $0x138] sm:$0xf] %vm808, %v4581
          %4662 = vst.msk [vmem:[#allocation4 + $0x14c] sm:$0xf] %vm808, %v4583
          %4663 = vst.msk [vmem:[#allocation4 + $0x160] sm:$0xf] %vm808, %v4585
          %4664 = vst.msk [vmem:[#allocation4 + $0x174] sm:$0xf] %vm808, %v4587
          %4665 = vst.msk [vmem:[#allocation4 + $0x188] sm:$0xf] %vm808, %v4589
          %4666 = vst.msk [vmem:[#allocation4 + $0x19c] sm:$0xf] %vm808, %v4591
          %4667 = vst.msk [vmem:[#allocation4 + $0x1b0] sm:$0xf] %vm808, %v4593
          %4668 = vst.msk [vmem:[#allocation4 + $0x1c4] sm:$0xf] %vm808, %v4595
          %4669 = vst.msk [vmem:[#allocation4 + $0x1d8] sm:$0xf] %vm808, %v4597
          %4670 = vst.msk [vmem:[#allocation4 + $0x1ec] sm:$0xf] %vm808, %v4599
          %4671 = vst.msk [vmem:[#allocation4 + $0x200] sm:$0xf] %vm808, %v4601
          %4672 = vst.msk [vmem:[#allocation4 + $0x214] sm:$0xf] %vm808, %v4603
          %4673 = vst.msk [vmem:[#allocation4 + $0x228] sm:$0xf] %vm808, %v4605
          %4674 = vst.msk [vmem:[#allocation4 + $0x23c] sm:$0xf] %vm808, %v4607
          %4675 = vst.msk [vmem:[#allocation4 + $0x250] sm:$0xf] %vm808, %v4609
          %4676 = vst.msk [vmem:[#allocation4 + $0x264] sm:$0xf] %vm808, %v4611
          %4677 = vst.msk [vmem:[#allocation4 + $0x278] sm:$0xf] %vm808, %v4613
          %v4678 = vld [vmem:[%s1481 + $0x2] sm:$0xff]
          %v4679 = vld [vmem:[%s1481 + $0xa] sm:$0xff]
          %v4680 = vld [vmem:[%s1481 + $0x1a] sm:$0xff]
          %v4681 = vld [vmem:[%s1481 + $0x22] sm:$0xff]
          %v4682 = vld [vmem:[%s1481 + $0x32] sm:$0xff]
          %v4683 = vld [vmem:[%s1481 + $0x3a] sm:$0xff]
          %v4684 = vld [vmem:[%s1481 + $0x4a] sm:$0xff]
          %v4685 = vld [vmem:[%s1481 + $0x52] sm:$0xff]
          %v4686 = vld [vmem:[%s1481 + $0x62] sm:$0xff]
          %v4687 = vld [vmem:[%s1481 + $0x6a] sm:$0xff]
          %v4688 = vld [vmem:[%s1481 + $0x7a] sm:$0xff]
          %v4689 = vld [vmem:[%s1481 + $0x82] sm:$0xff]
          %v4690 = vld [vmem:[%s1481 + $0x92] sm:$0xff]
          %v4691 = vld [vmem:[%s1481 + $0x9a] sm:$0xff]
          %v4692 = vld [vmem:[%s1481 + $0xaa] sm:$0xff]
          %v4693 = vld [vmem:[%s1481 + $0xb2] sm:$0xff]
          %v4694 = vld [vmem:[%s1481 + $0xc2] sm:$0xff]
          %v4695 = vld [vmem:[%s1481 + $0xca] sm:$0xff]
          %v4696 = vld [vmem:[%s1481 + $0xda] sm:$0xff]
          %v4697 = vld [vmem:[%s1481 + $0xe2] sm:$0xff]
          %v4698 = vld [vmem:[%s1481 + $0xf2] sm:$0xff]
          %v4699 = vld [vmem:[%s1481 + $0xfa] sm:$0xff]
          %v4700 = vld [vmem:[%s1481 + $0x10a] sm:$0xff]
          %v4701 = vld [vmem:[%s1481 + $0x112] sm:$0xff]
          %v4702 = vld [vmem:[%s1481 + $0x122] sm:$0xff]
          %v4703 = vld [vmem:[%s1481 + $0x12a] sm:$0xff]
          %v4704 = vld [vmem:[%s1481 + $0x13a] sm:$0xff]
          %v4705 = vld [vmem:[%s1481 + $0x142] sm:$0xff]
          %v4706 = vld [vmem:[%s1481 + $0x152] sm:$0xff]
          %v4707 = vld [vmem:[%s1481 + $0x15a] sm:$0xff]
          %v4708 = vld [vmem:[%s1481 + $0x16a] sm:$0xff]
          %v4709 = vld [vmem:[%s1481 + $0x172] sm:$0xff]
          %v4710 = vpack.c.bf16 %v4678, %v4678
          %v4711 = vpack.c.bf16 %v4679, %v4679
          %v4712 = vpack.c.bf16 %v4680, %v4680
          %v4713 = vpack.c.bf16 %v4681, %v4681
          %v4714 = vpack.c.bf16 %v4682, %v4682
          %v4715 = vpack.c.bf16 %v4683, %v4683
          %v4716 = vpack.c.bf16 %v4684, %v4684
          %v4717 = vpack.c.bf16 %v4685, %v4685
          %v4718 = vpack.c.bf16 %v4686, %v4686
          %v4719 = vpack.c.bf16 %v4687, %v4687
          %v4720 = vpack.c.bf16 %v4688, %v4688
          %v4721 = vpack.c.bf16 %v4689, %v4689
          %v4722 = vpack.c.bf16 %v4690, %v4690
          %v4723 = vpack.c.bf16 %v4691, %v4691
          %v4724 = vpack.c.bf16 %v4692, %v4692
          %v4725 = vpack.c.bf16 %v4693, %v4693
          %v4726 = vpack.c.bf16 %v4694, %v4694
          %v4727 = vpack.c.bf16 %v4695, %v4695
          %v4728 = vpack.c.bf16 %v4696, %v4696
          %v4729 = vpack.c.bf16 %v4697, %v4697
          %v4730 = vpack.c.bf16 %v4698, %v4698
          %v4731 = vpack.c.bf16 %v4699, %v4699
          %v4732 = vpack.c.bf16 %v4700, %v4700
          %v4733 = vpack.c.bf16 %v4701, %v4701
          %v4734 = vpack.c.bf16 %v4702, %v4702
          %v4735 = vpack.c.bf16 %v4703, %v4703
          %v4736 = vpack.c.bf16 %v4704, %v4704
          %v4737 = vpack.c.bf16 %v4705, %v4705
          %v4738 = vpack.c.bf16 %v4706, %v4706
          %v4739 = vpack.c.bf16 %v4707, %v4707
          %v4740 = vpack.c.bf16 %v4708, %v4708
          %v4741 = vpack.c.bf16 %v4709, %v4709
          %4742 = vst.msk [vmem:[#allocation4 + $0x10] sm:$0xf] %vm583, %v4710
          %4743 = vst.msk [vmem:[#allocation4 + $0x24] sm:$0xf] %vm583, %v4711
          %4744 = vst.msk [vmem:[#allocation4 + $0x38] sm:$0xf] %vm583, %v4712
          %4745 = vst.msk [vmem:[#allocation4 + $0x4c] sm:$0xf] %vm583, %v4713
          %4746 = vst.msk [vmem:[#allocation4 + $0x60] sm:$0xf] %vm583, %v4714
          %4747 = vst.msk [vmem:[#allocation4 + $0x74] sm:$0xf] %vm583, %v4715
          %4748 = vst.msk [vmem:[#allocation4 + $0x88] sm:$0xf] %vm583, %v4716
          %4749 = vst.msk [vmem:[#allocation4 + $0x9c] sm:$0xf] %vm583, %v4717
          %4750 = vst.msk [vmem:[#allocation4 + $0xb0] sm:$0xf] %vm583, %v4718
          %4751 = vst.msk [vmem:[#allocation4 + $0xc4] sm:$0xf] %vm583, %v4719
          %4752 = vst.msk [vmem:[#allocation4 + $0xd8] sm:$0xf] %vm583, %v4720
          %4753 = vst.msk [vmem:[#allocation4 + $0xec] sm:$0xf] %vm583, %v4721
          %4754 = vst.msk [vmem:[#allocation4 + $0x100] sm:$0xf] %vm583, %v4722
          %4755 = vst.msk [vmem:[#allocation4 + $0x114] sm:$0xf] %vm583, %v4723
          %4756 = vst.msk [vmem:[#allocation4 + $0x128] sm:$0xf] %vm583, %v4724
          %4757 = vst.msk [vmem:[#allocation4 + $0x13c] sm:$0xf] %vm583, %v4725
          %4758 = vst.msk [vmem:[#allocation4 + $0x150] sm:$0xf] %vm583, %v4726
          %4759 = vst.msk [vmem:[#allocation4 + $0x164] sm:$0xf] %vm583, %v4727
          %4760 = vst.msk [vmem:[#allocation4 + $0x178] sm:$0xf] %vm583, %v4728
          %4761 = vst.msk [vmem:[#allocation4 + $0x18c] sm:$0xf] %vm583, %v4729
          %4762 = vst.msk [vmem:[#allocation4 + $0x1a0] sm:$0xf] %vm583, %v4730
          %4763 = vst.msk [vmem:[#allocation4 + $0x1b4] sm:$0xf] %vm583, %v4731
          %4764 = vst.msk [vmem:[#allocation4 + $0x1c8] sm:$0xf] %vm583, %v4732
          %4765 = vst.msk [vmem:[#allocation4 + $0x1dc] sm:$0xf] %vm583, %v4733
          %4766 = vst.msk [vmem:[#allocation4 + $0x1f0] sm:$0xf] %vm583, %v4734
          %4767 = vst.msk [vmem:[#allocation4 + $0x204] sm:$0xf] %vm583, %v4735
          %4768 = vst.msk [vmem:[#allocation4 + $0x218] sm:$0xf] %vm583, %v4736
          %4769 = vst.msk [vmem:[#allocation4 + $0x22c] sm:$0xf] %vm583, %v4737
          %4770 = vst.msk [vmem:[#allocation4 + $0x240] sm:$0xf] %vm583, %v4738
          %4771 = vst.msk [vmem:[#allocation4 + $0x254] sm:$0xf] %vm583, %v4739
          %4772 = vst.msk [vmem:[#allocation4 + $0x268] sm:$0xf] %vm583, %v4740
          %4773 = vst.msk [vmem:[#allocation4 + $0x27c] sm:$0xf] %vm583, %v4741
          %v4774 = vld [vmem:[#allocation4] sm:$0xff]
          %v4775 = vld [vmem:[#allocation4 + $0x8] sm:$0xff]
          %v4776 = vld [vmem:[#allocation4 + $0x10] sm:$0xf]
          %v4777 = vld [vmem:[#allocation4 + $0x14] sm:$0xff]
          %v4778 = vld [vmem:[#allocation4 + $0x1c] sm:$0xff]
          %v4779 = vld [vmem:[#allocation4 + $0x24] sm:$0xf]
          %v4780 = vld [vmem:[#allocation4 + $0x28] sm:$0xff]
          %v4781 = vld [vmem:[#allocation4 + $0x30] sm:$0xff]
          %v4782 = vld [vmem:[#allocation4 + $0x38] sm:$0xf]
          %v4783 = vld [vmem:[#allocation4 + $0x3c] sm:$0xff]
          %v4784 = vld [vmem:[#allocation4 + $0x44] sm:$0xff]
          %v4785 = vld [vmem:[#allocation4 + $0x4c] sm:$0xf]
          %v4786 = vld [vmem:[#allocation4 + $0x50] sm:$0xff]
          %v4787 = vld [vmem:[#allocation4 + $0x58] sm:$0xff]
          %v4788 = vld [vmem:[#allocation4 + $0x60] sm:$0xf]
          %v4789 = vld [vmem:[#allocation4 + $0x64] sm:$0xff]
          %v4790 = vld [vmem:[#allocation4 + $0x6c] sm:$0xff]
          %v4791 = vld [vmem:[#allocation4 + $0x74] sm:$0xf]
          %v4792 = vld [vmem:[#allocation4 + $0x78] sm:$0xff]
          %v4793 = vld [vmem:[#allocation4 + $0x80] sm:$0xff]
          %v4794 = vld [vmem:[#allocation4 + $0x88] sm:$0xf]
          %v4795 = vld [vmem:[#allocation4 + $0x8c] sm:$0xff]
          %v4796 = vld [vmem:[#allocation4 + $0x94] sm:$0xff]
          %v4797 = vld [vmem:[#allocation4 + $0x9c] sm:$0xf]
          %v4798 = vld [vmem:[#allocation4 + $0xa0] sm:$0xff]
          %v4799 = vld [vmem:[#allocation4 + $0xa8] sm:$0xff]
          %v4800 = vld [vmem:[#allocation4 + $0xb0] sm:$0xf]
          %v4801 = vld [vmem:[#allocation4 + $0xb4] sm:$0xff]
          %v4802 = vld [vmem:[#allocation4 + $0xbc] sm:$0xff]
          %v4803 = vld [vmem:[#allocation4 + $0xc4] sm:$0xf]
          %v4804 = vld [vmem:[#allocation4 + $0xc8] sm:$0xff]
          %v4805 = vld [vmem:[#allocation4 + $0xd0] sm:$0xff]
          %v4806 = vld [vmem:[#allocation4 + $0xd8] sm:$0xf]
          %v4807 = vld [vmem:[#allocation4 + $0xdc] sm:$0xff]
          %v4808 = vld [vmem:[#allocation4 + $0xe4] sm:$0xff]
          %v4809 = vld [vmem:[#allocation4 + $0xec] sm:$0xf]
          %v4810 = vld [vmem:[#allocation4 + $0xf0] sm:$0xff]
          %v4811 = vld [vmem:[#allocation4 + $0xf8] sm:$0xff]
          %v4812 = vld [vmem:[#allocation4 + $0x100] sm:$0xf]
          %v4813 = vld [vmem:[#allocation4 + $0x104] sm:$0xff]
          %v4814 = vld [vmem:[#allocation4 + $0x10c] sm:$0xff]
          %v4815 = vld [vmem:[#allocation4 + $0x114] sm:$0xf]
          %v4816 = vld [vmem:[#allocation4 + $0x118] sm:$0xff]
          %v4817 = vld [vmem:[#allocation4 + $0x120] sm:$0xff]
          %v4818 = vld [vmem:[#allocation4 + $0x128] sm:$0xf]
          %v4819 = vld [vmem:[#allocation4 + $0x12c] sm:$0xff]
          %v4820 = vld [vmem:[#allocation4 + $0x134] sm:$0xff]
          %v4821 = vld [vmem:[#allocation4 + $0x13c] sm:$0xf]
          %v4822 = vld [vmem:[#allocation4 + $0x140] sm:$0xff]
          %v4823 = vld [vmem:[#allocation4 + $0x148] sm:$0xff]
          %v4824 = vld [vmem:[#allocation4 + $0x150] sm:$0xf]
          %v4825 = vld [vmem:[#allocation4 + $0x154] sm:$0xff]
          %v4826 = vld [vmem:[#allocation4 + $0x15c] sm:$0xff]
          %v4827 = vld [vmem:[#allocation4 + $0x164] sm:$0xf]
          %v4828 = vld [vmem:[#allocation4 + $0x168] sm:$0xff]
          %v4829 = vld [vmem:[#allocation4 + $0x170] sm:$0xff]
          %v4830 = vld [vmem:[#allocation4 + $0x178] sm:$0xf]
          %v4831 = vld [vmem:[#allocation4 + $0x17c] sm:$0xff]
          %v4832 = vld [vmem:[#allocation4 + $0x184] sm:$0xff]
          %v4833 = vld [vmem:[#allocation4 + $0x18c] sm:$0xf]
          %v4834 = vld [vmem:[#allocation4 + $0x190] sm:$0xff]
          %v4835 = vld [vmem:[#allocation4 + $0x198] sm:$0xff]
          %v4836 = vld [vmem:[#allocation4 + $0x1a0] sm:$0xf]
          %v4837 = vld [vmem:[#allocation4 + $0x1a4] sm:$0xff]
          %v4838 = vld [vmem:[#allocation4 + $0x1ac] sm:$0xff]
          %v4839 = vld [vmem:[#allocation4 + $0x1b4] sm:$0xf]
          %v4840 = vld [vmem:[#allocation4 + $0x1b8] sm:$0xff]
          %v4841 = vld [vmem:[#allocation4 + $0x1c0] sm:$0xff]
          %v4842 = vld [vmem:[#allocation4 + $0x1c8] sm:$0xf]
          %v4843 = vld [vmem:[#allocation4 + $0x1cc] sm:$0xff]
          %v4844 = vld [vmem:[#allocation4 + $0x1d4] sm:$0xff]
          %v4845 = vld [vmem:[#allocation4 + $0x1dc] sm:$0xf]
          %v4846 = vld [vmem:[#allocation4 + $0x1e0] sm:$0xff]
          %v4847 = vld [vmem:[#allocation4 + $0x1e8] sm:$0xff]
          %v4848 = vld [vmem:[#allocation4 + $0x1f0] sm:$0xf]
          %v4849 = vld [vmem:[#allocation4 + $0x1f4] sm:$0xff]
          %v4850 = vld [vmem:[#allocation4 + $0x1fc] sm:$0xff]
          %v4851 = vld [vmem:[#allocation4 + $0x204] sm:$0xf]
          %v4852 = vld [vmem:[#allocation4 + $0x208] sm:$0xff]
          %v4853 = vld [vmem:[#allocation4 + $0x210] sm:$0xff]
          %v4854 = vld [vmem:[#allocation4 + $0x218] sm:$0xf]
          %v4855 = vld [vmem:[#allocation4 + $0x21c] sm:$0xff]
          %v4856 = vld [vmem:[#allocation4 + $0x224] sm:$0xff]
          %v4857 = vld [vmem:[#allocation4 + $0x22c] sm:$0xf]
          %v4858 = vld [vmem:[#allocation4 + $0x230] sm:$0xff]
          %v4859 = vld [vmem:[#allocation4 + $0x238] sm:$0xff]
          %v4860 = vld [vmem:[#allocation4 + $0x240] sm:$0xf]
          %v4861 = vld [vmem:[#allocation4 + $0x244] sm:$0xff]
          %v4862 = vld [vmem:[#allocation4 + $0x24c] sm:$0xff]
          %v4863 = vld [vmem:[#allocation4 + $0x254] sm:$0xf]
          %v4864 = vld [vmem:[#allocation4 + $0x258] sm:$0xff]
          %v4865 = vld [vmem:[#allocation4 + $0x260] sm:$0xff]
          %v4866 = vld [vmem:[#allocation4 + $0x268] sm:$0xf]
          %v4867 = vld [vmem:[#allocation4 + $0x26c] sm:$0xff]
          %v4868 = vld [vmem:[#allocation4 + $0x274] sm:$0xff]
          %v4869 = vld [vmem:[#allocation4 + $0x27c] sm:$0xf]
          %v4871 = vperm.slane %v3319, 0
          %v4969 = vunpack.c.l.b16 %v4774
          %v4970 = vunpack.c.h.b16 %v4774
          %v4971 = vunpack.c.l.b16 %v4775
          %v4972 = vunpack.c.h.b16 %v4775
          %v4973 = vunpack.c.l.b16 %v4776
          %v4974 = vunpack.c.l.b16 %v4777
          %v4975 = vunpack.c.h.b16 %v4777
          %v4976 = vunpack.c.l.b16 %v4778
          %v4977 = vunpack.c.h.b16 %v4778
          %v4978 = vunpack.c.l.b16 %v4779
          %v4979 = vunpack.c.l.b16 %v4780
          %v4980 = vunpack.c.h.b16 %v4780
          %v4981 = vunpack.c.l.b16 %v4781
          %v4982 = vunpack.c.h.b16 %v4781
          %v4983 = vunpack.c.l.b16 %v4782
          %v4984 = vunpack.c.l.b16 %v4783
          %v4985 = vunpack.c.h.b16 %v4783
          %v4986 = vunpack.c.l.b16 %v4784
          %v4987 = vunpack.c.h.b16 %v4784
          %v4988 = vunpack.c.l.b16 %v4785
          %v4989 = vunpack.c.l.b16 %v4786
          %v4990 = vunpack.c.h.b16 %v4786
          %v4991 = vunpack.c.l.b16 %v4787
          %v4992 = vunpack.c.h.b16 %v4787
          %v4993 = vunpack.c.l.b16 %v4788
          %v4994 = vunpack.c.l.b16 %v4789
          %v4995 = vunpack.c.h.b16 %v4789
          %v4996 = vunpack.c.l.b16 %v4790
          %v4997 = vunpack.c.h.b16 %v4790
          %v4998 = vunpack.c.l.b16 %v4791
          %v4999 = vunpack.c.l.b16 %v4792
          %v5000 = vunpack.c.h.b16 %v4792
          %v5001 = vunpack.c.l.b16 %v4793
          %v5002 = vunpack.c.h.b16 %v4793
          %v5003 = vunpack.c.l.b16 %v4794
          %v5004 = vunpack.c.l.b16 %v4795
          %v5005 = vunpack.c.h.b16 %v4795
          %v5006 = vunpack.c.l.b16 %v4796
          %v5007 = vunpack.c.h.b16 %v4796
          %v5008 = vunpack.c.l.b16 %v4797
          %v5009 = vunpack.c.l.b16 %v4798
          %v5010 = vunpack.c.h.b16 %v4798
          %v5011 = vunpack.c.l.b16 %v4799
          %v5012 = vunpack.c.h.b16 %v4799
          %v5013 = vunpack.c.l.b16 %v4800
          %v5014 = vunpack.c.l.b16 %v4801
          %v5015 = vunpack.c.h.b16 %v4801
          %v5016 = vunpack.c.l.b16 %v4802
          %v5017 = vunpack.c.h.b16 %v4802
          %v5018 = vunpack.c.l.b16 %v4803
          %v5019 = vunpack.c.l.b16 %v4804
          %v5020 = vunpack.c.h.b16 %v4804
          %v5021 = vunpack.c.l.b16 %v4805
          %v5022 = vunpack.c.h.b16 %v4805
          %v5023 = vunpack.c.l.b16 %v4806
          %v5024 = vunpack.c.l.b16 %v4807
          %v5025 = vunpack.c.h.b16 %v4807
          %v5026 = vunpack.c.l.b16 %v4808
          %v5027 = vunpack.c.h.b16 %v4808
          %v5028 = vunpack.c.l.b16 %v4809
          %v5029 = vunpack.c.l.b16 %v4810
          %v5030 = vunpack.c.h.b16 %v4810
          %v5031 = vunpack.c.l.b16 %v4811
          %v5032 = vunpack.c.h.b16 %v4811
          %v5033 = vunpack.c.l.b16 %v4812
          %v5034 = vunpack.c.l.b16 %v4813
          %v5035 = vunpack.c.h.b16 %v4813
          %v5036 = vunpack.c.l.b16 %v4814
          %v5037 = vunpack.c.h.b16 %v4814
          %v5038 = vunpack.c.l.b16 %v4815
          %v5039 = vunpack.c.l.b16 %v4816
          %v5040 = vunpack.c.h.b16 %v4816
          %v5041 = vunpack.c.l.b16 %v4817
          %v5042 = vunpack.c.h.b16 %v4817
          %v5043 = vunpack.c.l.b16 %v4818
          %v5044 = vunpack.c.l.b16 %v4819
          %v5045 = vunpack.c.h.b16 %v4819
          %v5046 = vunpack.c.l.b16 %v4820
          %v5047 = vunpack.c.h.b16 %v4820
          %v5048 = vunpack.c.l.b16 %v4821
          %v5049 = vunpack.c.l.b16 %v4822
          %v5050 = vunpack.c.h.b16 %v4822
          %v5051 = vunpack.c.l.b16 %v4823
          %v5052 = vunpack.c.h.b16 %v4823
          %v5053 = vunpack.c.l.b16 %v4824
          %v5054 = vunpack.c.l.b16 %v4825
          %v5055 = vunpack.c.h.b16 %v4825
          %v5056 = vunpack.c.l.b16 %v4826
          %v5057 = vunpack.c.h.b16 %v4826
          %v5058 = vunpack.c.l.b16 %v4827
          %v5059 = vunpack.c.l.b16 %v4828
          %v5060 = vunpack.c.h.b16 %v4828
          %v5061 = vunpack.c.l.b16 %v4829
          %v5062 = vunpack.c.h.b16 %v4829
          %v5063 = vunpack.c.l.b16 %v4830
          %v5064 = vunpack.c.l.b16 %v4831
          %v5065 = vunpack.c.h.b16 %v4831
          %v5066 = vunpack.c.l.b16 %v4832
          %v5067 = vunpack.c.h.b16 %v4832
          %v5068 = vunpack.c.l.b16 %v4833
          %v5069 = vunpack.c.l.b16 %v4834
          %v5070 = vunpack.c.h.b16 %v4834
          %v5071 = vunpack.c.l.b16 %v4835
          %v5072 = vunpack.c.h.b16 %v4835
          %v5073 = vunpack.c.l.b16 %v4836
          %v5074 = vunpack.c.l.b16 %v4837
          %v5075 = vunpack.c.h.b16 %v4837
          %v5076 = vunpack.c.l.b16 %v4838
          %v5077 = vunpack.c.h.b16 %v4838
          %v5078 = vunpack.c.l.b16 %v4839
          %v5079 = vunpack.c.l.b16 %v4840
          %v5080 = vunpack.c.h.b16 %v4840
          %v5081 = vunpack.c.l.b16 %v4841
          %v5082 = vunpack.c.h.b16 %v4841
          %v5083 = vunpack.c.l.b16 %v4842
          %v5084 = vunpack.c.l.b16 %v4843
          %v5085 = vunpack.c.h.b16 %v4843
          %v5086 = vunpack.c.l.b16 %v4844
          %v5087 = vunpack.c.h.b16 %v4844
          %v5088 = vunpack.c.l.b16 %v4845
          %v5089 = vunpack.c.l.b16 %v4846
          %v5090 = vunpack.c.h.b16 %v4846
          %v5091 = vunpack.c.l.b16 %v4847
          %v5092 = vunpack.c.h.b16 %v4847
          %v5093 = vunpack.c.l.b16 %v4848
          %v5094 = vunpack.c.l.b16 %v4849
          %v5095 = vunpack.c.h.b16 %v4849
          %v5096 = vunpack.c.l.b16 %v4850
          %v5097 = vunpack.c.h.b16 %v4850
          %v5098 = vunpack.c.l.b16 %v4851
          %v5099 = vunpack.c.l.b16 %v4852
          %v5100 = vunpack.c.h.b16 %v4852
          %v5101 = vunpack.c.l.b16 %v4853
          %v5102 = vunpack.c.h.b16 %v4853
          %v5103 = vunpack.c.l.b16 %v4854
          %v5104 = vunpack.c.l.b16 %v4855
          %v5105 = vunpack.c.h.b16 %v4855
          %v5106 = vunpack.c.l.b16 %v4856
          %v5107 = vunpack.c.h.b16 %v4856
          %v5108 = vunpack.c.l.b16 %v4857
          %v5109 = vunpack.c.l.b16 %v4858
          %v5110 = vunpack.c.h.b16 %v4858
          %v5111 = vunpack.c.l.b16 %v4859
          %v5112 = vunpack.c.h.b16 %v4859
          %v5113 = vunpack.c.l.b16 %v4860
          %v5114 = vunpack.c.l.b16 %v4861
          %v5115 = vunpack.c.h.b16 %v4861
          %v5116 = vunpack.c.l.b16 %v4862
          %v5117 = vunpack.c.h.b16 %v4862
          %v5118 = vunpack.c.l.b16 %v4863
          %v5119 = vunpack.c.l.b16 %v4864
          %v5120 = vunpack.c.h.b16 %v4864
          %v5121 = vunpack.c.l.b16 %v4865
          %v5122 = vunpack.c.h.b16 %v4865
          %v5123 = vunpack.c.l.b16 %v4866
          %v5124 = vunpack.c.l.b16 %v4867
          %v5125 = vunpack.c.h.b16 %v4867
          %v5126 = vunpack.c.l.b16 %v4868
          %v5127 = vunpack.c.h.b16 %v4868
          %v5128 = vunpack.c.l.b16 %v4869
          %v5129 = vpack.c.b16 %v4974, %v4969
          %v5130 = vpack.c.b16 %v4975, %v4970
          %v5131 = vpack.c.b16 %v4976, %v4971
          %v5132 = vpack.c.b16 %v4977, %v4972
          %v5133 = vpack.c.b16 %v4978, %v4973
          %v5134 = vpack.c.b16 %v4984, %v4979
          %v5135 = vpack.c.b16 %v4985, %v4980
          %v5136 = vpack.c.b16 %v4986, %v4981
          %v5137 = vpack.c.b16 %v4987, %v4982
          %v5138 = vpack.c.b16 %v4988, %v4983
          %v5139 = vpack.c.b16 %v4994, %v4989
          %v5140 = vpack.c.b16 %v4995, %v4990
          %v5141 = vpack.c.b16 %v4996, %v4991
          %v5142 = vpack.c.b16 %v4997, %v4992
          %v5143 = vpack.c.b16 %v4998, %v4993
          %v5144 = vpack.c.b16 %v5004, %v4999
          %v5145 = vpack.c.b16 %v5005, %v5000
          %v5146 = vpack.c.b16 %v5006, %v5001
          %v5147 = vpack.c.b16 %v5007, %v5002
          %v5148 = vpack.c.b16 %v5008, %v5003
          %v5149 = vpack.c.b16 %v5014, %v5009
          %v5150 = vpack.c.b16 %v5015, %v5010
          %v5151 = vpack.c.b16 %v5016, %v5011
          %v5152 = vpack.c.b16 %v5017, %v5012
          %v5153 = vpack.c.b16 %v5018, %v5013
          %v5154 = vpack.c.b16 %v5024, %v5019
          %v5155 = vpack.c.b16 %v5025, %v5020
          %v5156 = vpack.c.b16 %v5026, %v5021
          %v5157 = vpack.c.b16 %v5027, %v5022
          %v5158 = vpack.c.b16 %v5028, %v5023
          %v5159 = vpack.c.b16 %v5034, %v5029
          %v5160 = vpack.c.b16 %v5035, %v5030
          %v5161 = vpack.c.b16 %v5036, %v5031
          %v5162 = vpack.c.b16 %v5037, %v5032
          %v5163 = vpack.c.b16 %v5038, %v5033
          %v5164 = vpack.c.b16 %v5044, %v5039
          %v5165 = vpack.c.b16 %v5045, %v5040
          %v5166 = vpack.c.b16 %v5046, %v5041
          %v5167 = vpack.c.b16 %v5047, %v5042
          %v5168 = vpack.c.b16 %v5048, %v5043
          %v5169 = vpack.c.b16 %v5054, %v5049
          %v5170 = vpack.c.b16 %v5055, %v5050
          %v5171 = vpack.c.b16 %v5056, %v5051
          %v5172 = vpack.c.b16 %v5057, %v5052
          %v5173 = vpack.c.b16 %v5058, %v5053
          %v5174 = vpack.c.b16 %v5064, %v5059
          %v5175 = vpack.c.b16 %v5065, %v5060
          %v5176 = vpack.c.b16 %v5066, %v5061
          %v5177 = vpack.c.b16 %v5067, %v5062
          %v5178 = vpack.c.b16 %v5068, %v5063
          %v5179 = vpack.c.b16 %v5074, %v5069
          %v5180 = vpack.c.b16 %v5075, %v5070
          %v5181 = vpack.c.b16 %v5076, %v5071
          %v5182 = vpack.c.b16 %v5077, %v5072
          %v5183 = vpack.c.b16 %v5078, %v5073
          %v5184 = vpack.c.b16 %v5084, %v5079
          %v5185 = vpack.c.b16 %v5085, %v5080
          %v5186 = vpack.c.b16 %v5086, %v5081
          %v5187 = vpack.c.b16 %v5087, %v5082
          %v5188 = vpack.c.b16 %v5088, %v5083
          %v5189 = vpack.c.b16 %v5094, %v5089
          %v5190 = vpack.c.b16 %v5095, %v5090
          %v5191 = vpack.c.b16 %v5096, %v5091
          %v5192 = vpack.c.b16 %v5097, %v5092
          %v5193 = vpack.c.b16 %v5098, %v5093
          %v5194 = vpack.c.b16 %v5104, %v5099
          %v5195 = vpack.c.b16 %v5105, %v5100
          %v5196 = vpack.c.b16 %v5106, %v5101
          %v5197 = vpack.c.b16 %v5107, %v5102
          %v5198 = vpack.c.b16 %v5108, %v5103
          %v5199 = vpack.c.b16 %v5114, %v5109
          %v5200 = vpack.c.b16 %v5115, %v5110
          %v5201 = vpack.c.b16 %v5116, %v5111
          %v5202 = vpack.c.b16 %v5117, %v5112
          %v5203 = vpack.c.b16 %v5118, %v5113
          %v5204 = vpack.c.b16 %v5124, %v5119
          %v5205 = vpack.c.b16 %v5125, %v5120
          %v5206 = vpack.c.b16 %v5126, %v5121
          %v5207 = vpack.c.b16 %v5127, %v5122
          %v5208 = vpack.c.b16 %v5128, %v5123
          %v5345 = vunpack.c.l.b16 %v3246
          %v5346 = vunpack.c.l.b16 %v3247
          %v5347 = vunpack.c.l.b16 %v3248
          %v5348 = vunpack.c.l.b16 %v3249
          %v5349 = vunpack.c.l.b16 %v3250
          %v5350 = vunpack.c.l.b16 %v3251
          %v5351 = vunpack.c.l.b16 %v3252
          %v5352 = vunpack.c.l.b16 %v3253
          %v5353 = vunpack.c.l.b16 %v3254
          %v5354 = vunpack.c.l.b16 %v3255
          %v5355 = vunpack.c.l.b16 %v3256
          %v5356 = vunpack.c.l.b16 %v3257
          %v5357 = vunpack.c.l.b16 %v3258
          %v5358 = vunpack.c.l.b16 %v3259
          %v5359 = vunpack.c.l.b16 %v3260
          %v5360 = vunpack.c.l.b16 %v3261
          %v5361 = vunpack.c.l.b16 %v3262
          %v5362 = vunpack.c.l.b16 %v3263
          %v5363 = vunpack.c.l.b16 %v3264
          %v5364 = vunpack.c.l.b16 %v3265
          %v5365 = vunpack.c.l.b16 %v3266
          %v5366 = vunpack.c.l.b16 %v3267
          %v5367 = vunpack.c.l.b16 %v3268
          %v5368 = vunpack.c.l.b16 %v3269
          %v5369 = vunpack.c.l.b16 %v3270
          %v5370 = vunpack.c.l.b16 %v3271
          %v5371 = vunpack.c.l.b16 %v3272
          %v5372 = vunpack.c.l.b16 %v3273
          %v5373 = vunpack.c.l.b16 %v3274
          %v5374 = vunpack.c.l.b16 %v3275
          %v5375 = vunpack.c.l.b16 %v3276
          %v5376 = vunpack.c.l.b16 %v3277
          %v5377 = vunpack.c.l.b16 %v3278
          %v5378 = vunpack.c.l.b16 %v3279
          %v5379 = vunpack.c.l.b16 %v3280
          %v5380 = vunpack.c.l.b16 %v3281
          %v5381 = vunpack.c.l.b16 %v3282
          %v5382 = vunpack.c.l.b16 %v3283
          %v5383 = vunpack.c.l.b16 %v3284
          %v5384 = vunpack.c.l.b16 %v3285
          %v5385 = vunpack.c.l.b16 %v3286
          %v5386 = vunpack.c.l.b16 %v3287
          %v5387 = vunpack.c.l.b16 %v3288
          %v5388 = vunpack.c.l.b16 %v3289
          %v5389 = vunpack.c.l.b16 %v3290
          %v5390 = vunpack.c.l.b16 %v3291
          %v5391 = vunpack.c.l.b16 %v3292
          %v5392 = vunpack.c.l.b16 %v3293
          %v5393 = vunpack.c.l.b16 %v3294
          %v5394 = vunpack.c.l.b16 %v3295
          %v5395 = vunpack.c.l.b16 %v3296
          %v5396 = vunpack.c.l.b16 %v3297
          %v5397 = vunpack.c.l.b16 %v3298
          %v5398 = vunpack.c.l.b16 %v3299
          %v5399 = vunpack.c.l.b16 %v3300
          %v5400 = vunpack.c.l.b16 %v3301
          %v5401 = vunpack.c.l.b16 %v3302
          %v5402 = vunpack.c.l.b16 %v3303
          %v5403 = vunpack.c.l.b16 %v3304
          %v5404 = vunpack.c.l.b16 %v3305
          %v5405 = vunpack.c.l.b16 %v3306
          %v5406 = vunpack.c.l.b16 %v3307
          %v5407 = vunpack.c.l.b16 %v3308
          %v5408 = vunpack.c.l.b16 %v3309
          %v5409 = vunpack.c.l.b16 %v3310
          %v5410 = vunpack.c.l.b16 %v3311
          %v5411 = vunpack.c.l.b16 %v3312
          %v5412 = vunpack.c.l.b16 %v3313
          %v5413 = vunpack.c.l.b16 %v3314
          %v5414 = vunpack.c.l.b16 %v3315
          %v5415 = vunpack.c.l.b16 %v3316
          %v5416 = vunpack.c.l.b16 %v3317
          %v5417 = vpack.c.b16 %v5346, %v5345
          %v5418 = vpack.c.b16 %v5348, %v5347
          %v5419 = vpack.c.b16 %v5350, %v5349
          %v5420 = vpack.c.b16 %v5352, %v5351
          %v5421 = vpack.c.b16 %v5354, %v5353
          %v5422 = vpack.c.b16 %v5356, %v5355
          %v5423 = vpack.c.b16 %v5358, %v5357
          %v5424 = vpack.c.b16 %v5360, %v5359
          %v5425 = vpack.c.b16 %v5362, %v5361
          %v5426 = vpack.c.b16 %v5364, %v5363
          %v5427 = vpack.c.b16 %v5366, %v5365
          %v5428 = vpack.c.b16 %v5368, %v5367
          %v5429 = vpack.c.b16 %v5370, %v5369
          %v5430 = vpack.c.b16 %v5372, %v5371
          %v5431 = vpack.c.b16 %v5374, %v5373
          %v5432 = vpack.c.b16 %v5376, %v5375
          %v5433 = vpack.c.b16 %v5378, %v5377
          %v5434 = vpack.c.b16 %v5380, %v5379
          %v5435 = vpack.c.b16 %v5382, %v5381
          %v5436 = vpack.c.b16 %v5384, %v5383
          %v5437 = vpack.c.b16 %v5386, %v5385
          %v5438 = vpack.c.b16 %v5388, %v5387
          %v5439 = vpack.c.b16 %v5390, %v5389
          %v5440 = vpack.c.b16 %v5392, %v5391
          %v5441 = vpack.c.b16 %v5394, %v5393
          %v5442 = vpack.c.b16 %v5396, %v5395
          %v5443 = vpack.c.b16 %v5398, %v5397
          %v5444 = vpack.c.b16 %v5400, %v5399
          %v5445 = vpack.c.b16 %v5402, %v5401
          %v5446 = vpack.c.b16 %v5404, %v5403
          %v5447 = vpack.c.b16 %v5406, %v5405
          %v5448 = vpack.c.b16 %v5408, %v5407
          %v5449 = vpack.c.b16 %v5410, %v5409
          %v5450 = vpack.c.b16 %v5412, %v5411
          %v5451 = vpack.c.b16 %v5414, %v5413
          %v5452 = vpack.c.b16 %v5416, %v5415
          %v5490 = vsel %vm272, %v5133, 0
          %v5493 = vsel %vm272, %v5138, 0
          %v5496 = vsel %vm272, %v5143, 0
          %v5499 = vsel %vm272, %v5148, 0
          %v5502 = vsel %vm272, %v5153, 0
          %v5505 = vsel %vm272, %v5158, 0
          %v5508 = vsel %vm272, %v5163, 0
          %v5511 = vsel %vm272, %v5168, 0
          %v5514 = vsel %vm272, %v5173, 0
          %v5517 = vsel %vm272, %v5178, 0
          %v5520 = vsel %vm272, %v5183, 0
          %v5523 = vsel %vm272, %v5188, 0
          %v5526 = vsel %vm272, %v5193, 0
          %v5529 = vsel %vm272, %v5198, 0
          %v5532 = vsel %vm272, %v5203, 0
          %v5535 = vsel %vm272, %v5208, 0
          %5537 = vmatpush.bf16.msra.mxu0 %v5424
          %5538 = vmatpush.bf16.msra.mxu0 %v5423
          %5539 = vmatpush.bf16.msra.mxu0 %v5422
          %5540 = vmatpush.bf16.msra.mxu0 %v5421
          %5541 = vmatpush.bf16.msra.mxu0 %v5420
          %5542 = vmatpush.bf16.msra.mxu0 %v5419
          %5543 = vmatpush.bf16.msra.mxu0 %v5418
          %5544 = vmatpush.bf16.msra.mxu0 %v5417
          %5545 = vmatmul.bf16.gmra.mxu0 %v5129
          %v5546 = vpop.f32.mrf.mxu0
          %v5547 = vadd.f32 %v4871, %v5546
          %v5548 = vpop.f32.mrf.mxu0
          %v5549 = vadd.f32 %v4871, %v5548
          %5550 = vmatmul.bf16.gmra.mxu0 %v5134
          %v5551 = vpop.f32.mrf.mxu0
          %v5552 = vadd.f32 %v4871, %v5551
          %v5553 = vpop.f32.mrf.mxu0
          %v5554 = vadd.f32 %v4871, %v5553
          %5555 = vmatmul.bf16.gmra.mxu0 %v5139
          %v5556 = vpop.f32.mrf.mxu0
          %v5557 = vadd.f32 %v4871, %v5556
          %v5558 = vpop.f32.mrf.mxu0
          %v5559 = vadd.f32 %v4871, %v5558
          %5560 = vmatmul.bf16.gmra.mxu0 %v5144
          %v5561 = vpop.f32.mrf.mxu0
          %v5562 = vadd.f32 %v4871, %v5561
          %v5563 = vpop.f32.mrf.mxu0
          %v5564 = vadd.f32 %v4871, %v5563
          %5565 = vmatmul.bf16.gmra.mxu0 %v5149
          %v5566 = vpop.f32.mrf.mxu0
          %v5567 = vadd.f32 %v4871, %v5566
          %v5568 = vpop.f32.mrf.mxu0
          %v5569 = vadd.f32 %v4871, %v5568
          %5570 = vmatmul.bf16.gmra.mxu0 %v5154
          %v5571 = vpop.f32.mrf.mxu0
          %v5572 = vadd.f32 %v4871, %v5571
          %v5573 = vpop.f32.mrf.mxu0
          %v5574 = vadd.f32 %v4871, %v5573
          %5575 = vmatmul.bf16.gmra.mxu0 %v5159
          %v5576 = vpop.f32.mrf.mxu0
          %v5577 = vadd.f32 %v4871, %v5576
          %v5578 = vpop.f32.mrf.mxu0
          %v5579 = vadd.f32 %v4871, %v5578
          %5580 = vmatmul.bf16.gmra.mxu0 %v5164
          %v5581 = vpop.f32.mrf.mxu0
          %v5582 = vadd.f32 %v4871, %v5581
          %v5583 = vpop.f32.mrf.mxu0
          %v5584 = vadd.f32 %v4871, %v5583
          %5585 = vmatmul.bf16.gmra.mxu0 %v5169
          %v5586 = vpop.f32.mrf.mxu0
          %v5587 = vadd.f32 %v4871, %v5586
          %v5588 = vpop.f32.mrf.mxu0
          %v5589 = vadd.f32 %v4871, %v5588
          %5590 = vmatmul.bf16.gmra.mxu0 %v5174
          %v5591 = vpop.f32.mrf.mxu0
          %v5592 = vadd.f32 %v4871, %v5591
          %v5593 = vpop.f32.mrf.mxu0
          %v5594 = vadd.f32 %v4871, %v5593
          %5595 = vmatmul.bf16.gmra.mxu0 %v5179
          %v5596 = vpop.f32.mrf.mxu0
          %v5597 = vadd.f32 %v4871, %v5596
          %v5598 = vpop.f32.mrf.mxu0
          %v5599 = vadd.f32 %v4871, %v5598
          %5600 = vmatmul.bf16.gmra.mxu0 %v5184
          %v5601 = vpop.f32.mrf.mxu0
          %v5602 = vadd.f32 %v4871, %v5601
          %v5603 = vpop.f32.mrf.mxu0
          %v5604 = vadd.f32 %v4871, %v5603
          %5605 = vmatmul.bf16.gmra.mxu0 %v5189
          %v5606 = vpop.f32.mrf.mxu0
          %v5607 = vadd.f32 %v4871, %v5606
          %v5608 = vpop.f32.mrf.mxu0
          %v5609 = vadd.f32 %v4871, %v5608
          %5610 = vmatmul.bf16.gmra.mxu0 %v5194
          %v5611 = vpop.f32.mrf.mxu0
          %v5612 = vadd.f32 %v4871, %v5611
          %v5613 = vpop.f32.mrf.mxu0
          %v5614 = vadd.f32 %v4871, %v5613
          %5615 = vmatmul.bf16.gmra.mxu0 %v5199
          %v5616 = vpop.f32.mrf.mxu0
          %v5617 = vadd.f32 %v4871, %v5616
          %v5618 = vpop.f32.mrf.mxu0
          %v5619 = vadd.f32 %v4871, %v5618
          %5620 = vmatmul.bf16.gmra.mxu0 %v5204
          %v5621 = vpop.f32.mrf.mxu0
          %v5622 = vadd.f32 %v4871, %v5621
          %v5623 = vpop.f32.mrf.mxu0
          %v5624 = vadd.f32 %v4871, %v5623
          %5625 = vdwg.mxu0
          %5626 = vmatpush.bf16.msra.mxu0 %v5432
          %5627 = vmatpush.bf16.msra.mxu0 %v5431
          %5628 = vmatpush.bf16.msra.mxu0 %v5430
          %5629 = vmatpush.bf16.msra.mxu0 %v5429
          %5630 = vmatpush.bf16.msra.mxu0 %v5428
          %5631 = vmatpush.bf16.msra.mxu0 %v5427
          %5632 = vmatpush.bf16.msra.mxu0 %v5426
          %5633 = vmatpush.bf16.msra.mxu0 %v5425
          %5634 = vmatmul.bf16.gmra.mxu0 %v5130
          %v5635 = vpop.f32.mrf.mxu0
          %v5636 = vadd.f32 %v5547, %v5635
          %v5637 = vpop.f32.mrf.mxu0
          %v5638 = vadd.f32 %v5549, %v5637
          %5639 = vmatmul.bf16.gmra.mxu0 %v5135
          %v5640 = vpop.f32.mrf.mxu0
          %v5641 = vadd.f32 %v5552, %v5640
          %v5642 = vpop.f32.mrf.mxu0
          %v5643 = vadd.f32 %v5554, %v5642
          %5644 = vmatmul.bf16.gmra.mxu0 %v5140
          %v5645 = vpop.f32.mrf.mxu0
          %v5646 = vadd.f32 %v5557, %v5645
          %v5647 = vpop.f32.mrf.mxu0
          %v5648 = vadd.f32 %v5559, %v5647
          %5649 = vmatmul.bf16.gmra.mxu0 %v5145
          %v5650 = vpop.f32.mrf.mxu0
          %v5651 = vadd.f32 %v5562, %v5650
          %v5652 = vpop.f32.mrf.mxu0
          %v5653 = vadd.f32 %v5564, %v5652
          %5654 = vmatmul.bf16.gmra.mxu0 %v5150
          %v5655 = vpop.f32.mrf.mxu0
          %v5656 = vadd.f32 %v5567, %v5655
          %v5657 = vpop.f32.mrf.mxu0
          %v5658 = vadd.f32 %v5569, %v5657
          %5659 = vmatmul.bf16.gmra.mxu0 %v5155
          %v5660 = vpop.f32.mrf.mxu0
          %v5661 = vadd.f32 %v5572, %v5660
          %v5662 = vpop.f32.mrf.mxu0
          %v5663 = vadd.f32 %v5574, %v5662
          %5664 = vmatmul.bf16.gmra.mxu0 %v5160
          %v5665 = vpop.f32.mrf.mxu0
          %v5666 = vadd.f32 %v5577, %v5665
          %v5667 = vpop.f32.mrf.mxu0
          %v5668 = vadd.f32 %v5579, %v5667
          %5669 = vmatmul.bf16.gmra.mxu0 %v5165
          %v5670 = vpop.f32.mrf.mxu0
          %v5671 = vadd.f32 %v5582, %v5670
          %v5672 = vpop.f32.mrf.mxu0
          %v5673 = vadd.f32 %v5584, %v5672
          %5674 = vmatmul.bf16.gmra.mxu0 %v5170
          %v5675 = vpop.f32.mrf.mxu0
          %v5676 = vadd.f32 %v5587, %v5675
          %v5677 = vpop.f32.mrf.mxu0
          %v5678 = vadd.f32 %v5589, %v5677
          %5679 = vmatmul.bf16.gmra.mxu0 %v5175
          %v5680 = vpop.f32.mrf.mxu0
          %v5681 = vadd.f32 %v5592, %v5680
          %v5682 = vpop.f32.mrf.mxu0
          %v5683 = vadd.f32 %v5594, %v5682
          %5684 = vmatmul.bf16.gmra.mxu0 %v5180
          %v5685 = vpop.f32.mrf.mxu0
          %v5686 = vadd.f32 %v5597, %v5685
          %v5687 = vpop.f32.mrf.mxu0
          %v5688 = vadd.f32 %v5599, %v5687
          %5689 = vmatmul.bf16.gmra.mxu0 %v5185
          %v5690 = vpop.f32.mrf.mxu0
          %v5691 = vadd.f32 %v5602, %v5690
          %v5692 = vpop.f32.mrf.mxu0
          %v5693 = vadd.f32 %v5604, %v5692
          %5694 = vmatmul.bf16.gmra.mxu0 %v5190
          %v5695 = vpop.f32.mrf.mxu0
          %v5696 = vadd.f32 %v5607, %v5695
          %v5697 = vpop.f32.mrf.mxu0
          %v5698 = vadd.f32 %v5609, %v5697
          %5699 = vmatmul.bf16.gmra.mxu0 %v5195
          %v5700 = vpop.f32.mrf.mxu0
          %v5701 = vadd.f32 %v5612, %v5700
          %v5702 = vpop.f32.mrf.mxu0
          %v5703 = vadd.f32 %v5614, %v5702
          %5704 = vmatmul.bf16.gmra.mxu0 %v5200
          %v5705 = vpop.f32.mrf.mxu0
          %v5706 = vadd.f32 %v5617, %v5705
          %v5707 = vpop.f32.mrf.mxu0
          %v5708 = vadd.f32 %v5619, %v5707
          %5709 = vmatmul.bf16.gmra.mxu0 %v5205
          %v5710 = vpop.f32.mrf.mxu0
          %v5711 = vadd.f32 %v5622, %v5710
          %v5712 = vpop.f32.mrf.mxu0
          %v5713 = vadd.f32 %v5624, %v5712
          %5714 = vdwg.mxu0
          %5715 = vmatpush.bf16.msra.mxu0 %v5440
          %5716 = vmatpush.bf16.msra.mxu0 %v5439
          %5717 = vmatpush.bf16.msra.mxu0 %v5438
          %5718 = vmatpush.bf16.msra.mxu0 %v5437
          %5719 = vmatpush.bf16.msra.mxu0 %v5436
          %5720 = vmatpush.bf16.msra.mxu0 %v5435
          %5721 = vmatpush.bf16.msra.mxu0 %v5434
          %5722 = vmatpush.bf16.msra.mxu0 %v5433
          %5723 = vmatmul.bf16.gmra.mxu0 %v5131
          %v5724 = vpop.f32.mrf.mxu0
          %v5725 = vadd.f32 %v5636, %v5724
          %v5726 = vpop.f32.mrf.mxu0
          %v5727 = vadd.f32 %v5638, %v5726
          %5728 = vmatmul.bf16.gmra.mxu0 %v5136
          %v5729 = vpop.f32.mrf.mxu0
          %v5730 = vadd.f32 %v5641, %v5729
          %v5731 = vpop.f32.mrf.mxu0
          %v5732 = vadd.f32 %v5643, %v5731
          %5733 = vmatmul.bf16.gmra.mxu0 %v5141
          %v5734 = vpop.f32.mrf.mxu0
          %v5735 = vadd.f32 %v5646, %v5734
          %v5736 = vpop.f32.mrf.mxu0
          %v5737 = vadd.f32 %v5648, %v5736
          %5738 = vmatmul.bf16.gmra.mxu0 %v5146
          %v5739 = vpop.f32.mrf.mxu0
          %v5740 = vadd.f32 %v5651, %v5739
          %v5741 = vpop.f32.mrf.mxu0
          %v5742 = vadd.f32 %v5653, %v5741
          %5743 = vmatmul.bf16.gmra.mxu0 %v5151
          %v5744 = vpop.f32.mrf.mxu0
          %v5745 = vadd.f32 %v5656, %v5744
          %v5746 = vpop.f32.mrf.mxu0
          %v5747 = vadd.f32 %v5658, %v5746
          %5748 = vmatmul.bf16.gmra.mxu0 %v5156
          %v5749 = vpop.f32.mrf.mxu0
          %v5750 = vadd.f32 %v5661, %v5749
          %v5751 = vpop.f32.mrf.mxu0
          %v5752 = vadd.f32 %v5663, %v5751
          %5753 = vmatmul.bf16.gmra.mxu0 %v5161
          %v5754 = vpop.f32.mrf.mxu0
          %v5755 = vadd.f32 %v5666, %v5754
          %v5756 = vpop.f32.mrf.mxu0
          %v5757 = vadd.f32 %v5668, %v5756
          %5758 = vmatmul.bf16.gmra.mxu0 %v5166
          %v5759 = vpop.f32.mrf.mxu0
          %v5760 = vadd.f32 %v5671, %v5759
          %v5761 = vpop.f32.mrf.mxu0
          %v5762 = vadd.f32 %v5673, %v5761
          %5763 = vmatmul.bf16.gmra.mxu0 %v5171
          %v5764 = vpop.f32.mrf.mxu0
          %v5765 = vadd.f32 %v5676, %v5764
          %v5766 = vpop.f32.mrf.mxu0
          %v5767 = vadd.f32 %v5678, %v5766
          %5768 = vmatmul.bf16.gmra.mxu0 %v5176
          %v5769 = vpop.f32.mrf.mxu0
          %v5770 = vadd.f32 %v5681, %v5769
          %v5771 = vpop.f32.mrf.mxu0
          %v5772 = vadd.f32 %v5683, %v5771
          %5773 = vmatmul.bf16.gmra.mxu0 %v5181
          %v5774 = vpop.f32.mrf.mxu0
          %v5775 = vadd.f32 %v5686, %v5774
          %v5776 = vpop.f32.mrf.mxu0
          %v5777 = vadd.f32 %v5688, %v5776
          %5778 = vmatmul.bf16.gmra.mxu0 %v5186
          %v5779 = vpop.f32.mrf.mxu0
          %v5780 = vadd.f32 %v5691, %v5779
          %v5781 = vpop.f32.mrf.mxu0
          %v5782 = vadd.f32 %v5693, %v5781
          %5783 = vmatmul.bf16.gmra.mxu0 %v5191
          %v5784 = vpop.f32.mrf.mxu0
          %v5785 = vadd.f32 %v5696, %v5784
          %v5786 = vpop.f32.mrf.mxu0
          %v5787 = vadd.f32 %v5698, %v5786
          %5788 = vmatmul.bf16.gmra.mxu0 %v5196
          %v5789 = vpop.f32.mrf.mxu0
          %v5790 = vadd.f32 %v5701, %v5789
          %v5791 = vpop.f32.mrf.mxu0
          %v5792 = vadd.f32 %v5703, %v5791
          %5793 = vmatmul.bf16.gmra.mxu0 %v5201
          %v5794 = vpop.f32.mrf.mxu0
          %v5795 = vadd.f32 %v5706, %v5794
          %v5796 = vpop.f32.mrf.mxu0
          %v5797 = vadd.f32 %v5708, %v5796
          %5798 = vmatmul.bf16.gmra.mxu0 %v5206
          %v5799 = vpop.f32.mrf.mxu0
          %v5800 = vadd.f32 %v5711, %v5799
          %v5801 = vpop.f32.mrf.mxu0
          %v5802 = vadd.f32 %v5713, %v5801
          %5803 = vdwg.mxu0
          %5804 = vmatpush.bf16.msra.mxu0 %v5448
          %5805 = vmatpush.bf16.msra.mxu0 %v5447
          %5806 = vmatpush.bf16.msra.mxu0 %v5446
          %5807 = vmatpush.bf16.msra.mxu0 %v5445
          %5808 = vmatpush.bf16.msra.mxu0 %v5444
          %5809 = vmatpush.bf16.msra.mxu0 %v5443
          %5810 = vmatpush.bf16.msra.mxu0 %v5442
          %5811 = vmatpush.bf16.msra.mxu0 %v5441
          %5812 = vmatmul.bf16.gmra.mxu0 %v5132
          %v5813 = vpop.f32.mrf.mxu0
          %v5814 = vadd.f32 %v5725, %v5813
          %v5815 = vpop.f32.mrf.mxu0
          %v5816 = vadd.f32 %v5727, %v5815
          %5817 = vmatmul.bf16.gmra.mxu0 %v5137
          %v5818 = vpop.f32.mrf.mxu0
          %v5819 = vadd.f32 %v5730, %v5818
          %v5820 = vpop.f32.mrf.mxu0
          %v5821 = vadd.f32 %v5732, %v5820
          %5822 = vmatmul.bf16.gmra.mxu0 %v5142
          %v5823 = vpop.f32.mrf.mxu0
          %v5824 = vadd.f32 %v5735, %v5823
          %v5825 = vpop.f32.mrf.mxu0
          %v5826 = vadd.f32 %v5737, %v5825
          %5827 = vmatmul.bf16.gmra.mxu0 %v5147
          %v5828 = vpop.f32.mrf.mxu0
          %v5829 = vadd.f32 %v5740, %v5828
          %v5830 = vpop.f32.mrf.mxu0
          %v5831 = vadd.f32 %v5742, %v5830
          %5832 = vmatmul.bf16.gmra.mxu0 %v5152
          %v5833 = vpop.f32.mrf.mxu0
          %v5834 = vadd.f32 %v5745, %v5833
          %v5835 = vpop.f32.mrf.mxu0
          %v5836 = vadd.f32 %v5747, %v5835
          %5837 = vmatmul.bf16.gmra.mxu0 %v5157
          %v5838 = vpop.f32.mrf.mxu0
          %v5839 = vadd.f32 %v5750, %v5838
          %v5840 = vpop.f32.mrf.mxu0
          %v5841 = vadd.f32 %v5752, %v5840
          %5842 = vmatmul.bf16.gmra.mxu0 %v5162
          %v5843 = vpop.f32.mrf.mxu0
          %v5844 = vadd.f32 %v5755, %v5843
          %v5845 = vpop.f32.mrf.mxu0
          %v5846 = vadd.f32 %v5757, %v5845
          %5847 = vmatmul.bf16.gmra.mxu0 %v5167
          %v5848 = vpop.f32.mrf.mxu0
          %v5849 = vadd.f32 %v5760, %v5848
          %v5850 = vpop.f32.mrf.mxu0
          %v5851 = vadd.f32 %v5762, %v5850
          %5852 = vmatmul.bf16.gmra.mxu0 %v5172
          %v5853 = vpop.f32.mrf.mxu0
          %v5854 = vadd.f32 %v5765, %v5853
          %v5855 = vpop.f32.mrf.mxu0
          %v5856 = vadd.f32 %v5767, %v5855
          %5857 = vmatmul.bf16.gmra.mxu0 %v5177
          %v5858 = vpop.f32.mrf.mxu0
          %v5859 = vadd.f32 %v5770, %v5858
          %v5860 = vpop.f32.mrf.mxu0
          %v5861 = vadd.f32 %v5772, %v5860
          %5862 = vmatmul.bf16.gmra.mxu0 %v5182
          %v5863 = vpop.f32.mrf.mxu0
          %v5864 = vadd.f32 %v5775, %v5863
          %v5865 = vpop.f32.mrf.mxu0
          %v5866 = vadd.f32 %v5777, %v5865
          %5867 = vmatmul.bf16.gmra.mxu0 %v5187
          %v5868 = vpop.f32.mrf.mxu0
          %v5869 = vadd.f32 %v5780, %v5868
          %v5870 = vpop.f32.mrf.mxu0
          %v5871 = vadd.f32 %v5782, %v5870
          %5872 = vmatmul.bf16.gmra.mxu0 %v5192
          %v5873 = vpop.f32.mrf.mxu0
          %v5874 = vadd.f32 %v5785, %v5873
          %v5875 = vpop.f32.mrf.mxu0
          %v5876 = vadd.f32 %v5787, %v5875
          %5877 = vmatmul.bf16.gmra.mxu0 %v5197
          %v5878 = vpop.f32.mrf.mxu0
          %v5879 = vadd.f32 %v5790, %v5878
          %v5880 = vpop.f32.mrf.mxu0
          %v5881 = vadd.f32 %v5792, %v5880
          %5882 = vmatmul.bf16.gmra.mxu0 %v5202
          %v5883 = vpop.f32.mrf.mxu0
          %v5884 = vadd.f32 %v5795, %v5883
          %v5885 = vpop.f32.mrf.mxu0
          %v5886 = vadd.f32 %v5797, %v5885
          %5887 = vmatmul.bf16.gmra.mxu0 %v5207
          %v5888 = vpop.f32.mrf.mxu0
          %v5889 = vadd.f32 %v5800, %v5888
          %v5890 = vpop.f32.mrf.mxu0
          %v5891 = vadd.f32 %v5802, %v5890
          %5892 = vdwg.mxu0
          %5893 = vmatpush.bf16.msra.mxu0 0
          %5894 = vmatpush.bf16.msra.mxu0 0
          %5895 = vmatpush.bf16.msra.mxu0 0
          %5896 = vmatpush.bf16.msra.mxu0 0
          %5897 = vmatpush.bf16.msra.mxu0 %v5452
          %5898 = vmatpush.bf16.msra.mxu0 %v5451
          %5899 = vmatpush.bf16.msra.mxu0 %v5450
          %5900 = vmatpush.bf16.msra.mxu0 %v5449
          %5901 = vmatmul.bf16.gmra.mxu0 %v5490
          %v5902 = vpop.f32.mrf.mxu0
          %v5903 = vadd.f32 %v5814, %v5902
          %v5904 = vpop.f32.mrf.mxu0
          %v5905 = vadd.f32 %v5816, %v5904
          %5906 = vmatmul.bf16.gmra.mxu0 %v5493
          %v5907 = vpop.f32.mrf.mxu0
          %v5908 = vadd.f32 %v5819, %v5907
          %v5909 = vpop.f32.mrf.mxu0
          %v5910 = vadd.f32 %v5821, %v5909
          %5911 = vmatmul.bf16.gmra.mxu0 %v5496
          %v5912 = vpop.f32.mrf.mxu0
          %v5913 = vadd.f32 %v5824, %v5912
          %v5914 = vpop.f32.mrf.mxu0
          %v5915 = vadd.f32 %v5826, %v5914
          %5916 = vmatmul.bf16.gmra.mxu0 %v5499
          %v5917 = vpop.f32.mrf.mxu0
          %v5918 = vadd.f32 %v5829, %v5917
          %v5919 = vpop.f32.mrf.mxu0
          %v5920 = vadd.f32 %v5831, %v5919
          %5921 = vmatmul.bf16.gmra.mxu0 %v5502
          %v5922 = vpop.f32.mrf.mxu0
          %v5923 = vadd.f32 %v5834, %v5922
          %v5924 = vpop.f32.mrf.mxu0
          %v5925 = vadd.f32 %v5836, %v5924
          %5926 = vmatmul.bf16.gmra.mxu0 %v5505
          %v5927 = vpop.f32.mrf.mxu0
          %v5928 = vadd.f32 %v5839, %v5927
          %v5929 = vpop.f32.mrf.mxu0
          %v5930 = vadd.f32 %v5841, %v5929
          %5931 = vmatmul.bf16.gmra.mxu0 %v5508
          %v5932 = vpop.f32.mrf.mxu0
          %v5933 = vadd.f32 %v5844, %v5932
          %v5934 = vpop.f32.mrf.mxu0
          %v5935 = vadd.f32 %v5846, %v5934
          %5936 = vmatmul.bf16.gmra.mxu0 %v5511
          %v5937 = vpop.f32.mrf.mxu0
          %v5938 = vadd.f32 %v5849, %v5937
          %v5939 = vpop.f32.mrf.mxu0
          %v5940 = vadd.f32 %v5851, %v5939
          %5941 = vmatmul.bf16.gmra.mxu0 %v5514
          %v5942 = vpop.f32.mrf.mxu0
          %v5943 = vadd.f32 %v5854, %v5942
          %v5944 = vpop.f32.mrf.mxu0
          %v5945 = vadd.f32 %v5856, %v5944
          %5946 = vmatmul.bf16.gmra.mxu0 %v5517
          %v5947 = vpop.f32.mrf.mxu0
          %v5948 = vadd.f32 %v5859, %v5947
          %v5949 = vpop.f32.mrf.mxu0
          %v5950 = vadd.f32 %v5861, %v5949
          %5951 = vmatmul.bf16.gmra.mxu0 %v5520
          %v5952 = vpop.f32.mrf.mxu0
          %v5953 = vadd.f32 %v5864, %v5952
          %v5954 = vpop.f32.mrf.mxu0
          %v5955 = vadd.f32 %v5866, %v5954
          %5956 = vmatmul.bf16.gmra.mxu0 %v5523
          %v5957 = vpop.f32.mrf.mxu0
          %v5958 = vadd.f32 %v5869, %v5957
          %v5959 = vpop.f32.mrf.mxu0
          %v5960 = vadd.f32 %v5871, %v5959
          %5961 = vmatmul.bf16.gmra.mxu0 %v5526
          %v5962 = vpop.f32.mrf.mxu0
          %v5963 = vadd.f32 %v5874, %v5962
          %v5964 = vpop.f32.mrf.mxu0
          %v5965 = vadd.f32 %v5876, %v5964
          %5966 = vmatmul.bf16.gmra.mxu0 %v5529
          %v5967 = vpop.f32.mrf.mxu0
          %v5968 = vadd.f32 %v5879, %v5967
          %v5969 = vpop.f32.mrf.mxu0
          %v5970 = vadd.f32 %v5881, %v5969
          %5971 = vmatmul.bf16.gmra.mxu0 %v5532
          %v5972 = vpop.f32.mrf.mxu0
          %v5973 = vadd.f32 %v5884, %v5972
          %v5974 = vpop.f32.mrf.mxu0
          %v5975 = vadd.f32 %v5886, %v5974
          %5976 = vmatmul.bf16.gmra.mxu0 %v5535
          %v5977 = vpop.f32.mrf.mxu0
          %v5978 = vadd.f32 %v5889, %v5977
          %v5979 = vpop.f32.mrf.mxu0
          %v5980 = vadd.f32 %v5891, %v5979
          %5981 = vdwg.mxu0
          %vm5982 = vcmp.ge.f32.partialorder %v5903, 0.0
          %vm5983 = vcmp.ge.f32.partialorder %v5905, 0.0
          %vm5984 = vcmp.ge.f32.partialorder %v5908, 0.0
          %vm5985 = vcmp.ge.f32.partialorder %v5910, 0.0
          %vm5986 = vcmp.ge.f32.partialorder %v5913, 0.0
          %vm5987 = vcmp.ge.f32.partialorder %v5915, 0.0
          %vm5988 = vcmp.ge.f32.partialorder %v5918, 0.0
          %vm5989 = vcmp.ge.f32.partialorder %v5920, 0.0
          %vm5990 = vcmp.ge.f32.partialorder %v5923, 0.0
          %vm5991 = vcmp.ge.f32.partialorder %v5925, 0.0
          %vm5992 = vcmp.ge.f32.partialorder %v5928, 0.0
          %vm5993 = vcmp.ge.f32.partialorder %v5930, 0.0
          %vm5994 = vcmp.ge.f32.partialorder %v5933, 0.0
          %vm5995 = vcmp.ge.f32.partialorder %v5935, 0.0
          %vm5996 = vcmp.ge.f32.partialorder %v5938, 0.0
          %vm5997 = vcmp.ge.f32.partialorder %v5940, 0.0
          %vm5998 = vcmp.ge.f32.partialorder %v5943, 0.0
          %vm5999 = vcmp.ge.f32.partialorder %v5945, 0.0
          %vm6000 = vcmp.ge.f32.partialorder %v5948, 0.0
          %vm6001 = vcmp.ge.f32.partialorder %v5950, 0.0
          %vm6002 = vcmp.ge.f32.partialorder %v5953, 0.0
          %vm6003 = vcmp.ge.f32.partialorder %v5955, 0.0
          %vm6004 = vcmp.ge.f32.partialorder %v5958, 0.0
          %vm6005 = vcmp.ge.f32.partialorder %v5960, 0.0
          %vm6006 = vcmp.ge.f32.partialorder %v5963, 0.0
          %vm6007 = vcmp.ge.f32.partialorder %v5965, 0.0
          %vm6008 = vcmp.ge.f32.partialorder %v5968, 0.0
          %vm6009 = vcmp.ge.f32.partialorder %v5970, 0.0
          %vm6010 = vcmp.ge.f32.partialorder %v5973, 0.0
          %vm6011 = vcmp.ge.f32.partialorder %v5975, 0.0
          %vm6012 = vcmp.ge.f32.partialorder %v5978, 0.0
          %vm6013 = vcmp.ge.f32.partialorder %v5980, 0.0
          %v6014 = vmul.f32 %v5903, 0.01
          %v6015 = vmul.f32 %v5905, 0.01
          %v6016 = vmul.f32 %v5908, 0.01
          %v6017 = vmul.f32 %v5910, 0.01
          %v6018 = vmul.f32 %v5913, 0.01
          %v6019 = vmul.f32 %v5915, 0.01
          %v6020 = vmul.f32 %v5918, 0.01
          %v6021 = vmul.f32 %v5920, 0.01
          %v6022 = vmul.f32 %v5923, 0.01
          %v6023 = vmul.f32 %v5925, 0.01
          %v6024 = vmul.f32 %v5928, 0.01
          %v6025 = vmul.f32 %v5930, 0.01
          %v6026 = vmul.f32 %v5933, 0.01
          %v6027 = vmul.f32 %v5935, 0.01
          %v6028 = vmul.f32 %v5938, 0.01
          %v6029 = vmul.f32 %v5940, 0.01
          %v6030 = vmul.f32 %v5943, 0.01
          %v6031 = vmul.f32 %v5945, 0.01
          %v6032 = vmul.f32 %v5948, 0.01
          %v6033 = vmul.f32 %v5950, 0.01
          %v6034 = vmul.f32 %v5953, 0.01
          %v6035 = vmul.f32 %v5955, 0.01
          %v6036 = vmul.f32 %v5958, 0.01
          %v6037 = vmul.f32 %v5960, 0.01
          %v6038 = vmul.f32 %v5963, 0.01
          %v6039 = vmul.f32 %v5965, 0.01
          %v6040 = vmul.f32 %v5968, 0.01
          %v6041 = vmul.f32 %v5970, 0.01
          %v6042 = vmul.f32 %v5973, 0.01
          %v6043 = vmul.f32 %v5975, 0.01
          %v6044 = vmul.f32 %v5978, 0.01
          %v6045 = vmul.f32 %v5980, 0.01
          %v6046 = vsel %vm5982, %v5903, %v6014
          %v6047 = vsel %vm5983, %v5905, %v6015
          %v6048 = vsel %vm5984, %v5908, %v6016
          %v6049 = vsel %vm5985, %v5910, %v6017
          %v6050 = vsel %vm5986, %v5913, %v6018
          %v6051 = vsel %vm5987, %v5915, %v6019
          %v6052 = vsel %vm5988, %v5918, %v6020
          %v6053 = vsel %vm5989, %v5920, %v6021
          %v6054 = vsel %vm5990, %v5923, %v6022
          %v6055 = vsel %vm5991, %v5925, %v6023
          %v6056 = vsel %vm5992, %v5928, %v6024
          %v6057 = vsel %vm5993, %v5930, %v6025
          %v6058 = vsel %vm5994, %v5933, %v6026
          %v6059 = vsel %vm5995, %v5935, %v6027
          %v6060 = vsel %vm5996, %v5938, %v6028
          %v6061 = vsel %vm5997, %v5940, %v6029
          %v6062 = vsel %vm5998, %v5943, %v6030
          %v6063 = vsel %vm5999, %v5945, %v6031
          %v6064 = vsel %vm6000, %v5948, %v6032
          %v6065 = vsel %vm6001, %v5950, %v6033
          %v6066 = vsel %vm6002, %v5953, %v6034
          %v6067 = vsel %vm6003, %v5955, %v6035
          %v6068 = vsel %vm6004, %v5958, %v6036
          %v6069 = vsel %vm6005, %v5960, %v6037
          %v6070 = vsel %vm6006, %v5963, %v6038
          %v6071 = vsel %vm6007, %v5965, %v6039
          %v6072 = vsel %vm6008, %v5968, %v6040
          %v6073 = vsel %vm6009, %v5970, %v6041
          %v6074 = vsel %vm6010, %v5973, %v6042
          %v6075 = vsel %vm6011, %v5975, %v6043
          %v6076 = vsel %vm6012, %v5978, %v6044
          %v6077 = vsel %vm6013, %v5980, %v6045
          %s6078 = scalar_lea.vmem [#allocation3], 24
          %6079 = vst.msk [vmem:[%s6078 + $0x1] sm:$0xff] %vm272, %v6046
          %6080 = vst.msk [vmem:[%s6078 + $0x9] sm:$0xff] %vm272, %v6047
          %6081 = vst.msk [vmem:[%s6078 + $0x19] sm:$0xff] %vm272, %v6048
          %6082 = vst.msk [vmem:[%s6078 + $0x21] sm:$0xff] %vm272, %v6049
          %6083 = vst.msk [vmem:[%s6078 + $0x31] sm:$0xff] %vm272, %v6050
          %6084 = vst.msk [vmem:[%s6078 + $0x39] sm:$0xff] %vm272, %v6051
          %6085 = vst.msk [vmem:[%s6078 + $0x49] sm:$0xff] %vm272, %v6052
          %6086 = vst.msk [vmem:[%s6078 + $0x51] sm:$0xff] %vm272, %v6053
          %6087 = vst.msk [vmem:[%s6078 + $0x61] sm:$0xff] %vm272, %v6054
          %6088 = vst.msk [vmem:[%s6078 + $0x69] sm:$0xff] %vm272, %v6055
          %6089 = vst.msk [vmem:[%s6078 + $0x79] sm:$0xff] %vm272, %v6056
          %6090 = vst.msk [vmem:[%s6078 + $0x81] sm:$0xff] %vm272, %v6057
          %6091 = vst.msk [vmem:[%s6078 + $0x91] sm:$0xff] %vm272, %v6058
          %6092 = vst.msk [vmem:[%s6078 + $0x99] sm:$0xff] %vm272, %v6059
          %6093 = vst.msk [vmem:[%s6078 + $0xa9] sm:$0xff] %vm272, %v6060
          %6094 = vst.msk [vmem:[%s6078 + $0xb1] sm:$0xff] %vm272, %v6061
          %6095 = vst.msk [vmem:[%s6078 + $0xc1] sm:$0xff] %vm272, %v6062
          %6096 = vst.msk [vmem:[%s6078 + $0xc9] sm:$0xff] %vm272, %v6063
          %6097 = vst.msk [vmem:[%s6078 + $0xd9] sm:$0xff] %vm272, %v6064
          %6098 = vst.msk [vmem:[%s6078 + $0xe1] sm:$0xff] %vm272, %v6065
          %6099 = vst.msk [vmem:[%s6078 + $0xf1] sm:$0xff] %vm272, %v6066
          %6100 = vst.msk [vmem:[%s6078 + $0xf9] sm:$0xff] %vm272, %v6067
          %6101 = vst.msk [vmem:[%s6078 + $0x109] sm:$0xff] %vm272, %v6068
          %6102 = vst.msk [vmem:[%s6078 + $0x111] sm:$0xff] %vm272, %v6069
          %6103 = vst.msk [vmem:[%s6078 + $0x121] sm:$0xff] %vm272, %v6070
          %6104 = vst.msk [vmem:[%s6078 + $0x129] sm:$0xff] %vm272, %v6071
          %6105 = vst.msk [vmem:[%s6078 + $0x139] sm:$0xff] %vm272, %v6072
          %6106 = vst.msk [vmem:[%s6078 + $0x141] sm:$0xff] %vm272, %v6073
          %6107 = vst.msk [vmem:[%s6078 + $0x151] sm:$0xff] %vm272, %v6074
          %6108 = vst.msk [vmem:[%s6078 + $0x159] sm:$0xff] %vm272, %v6075
          %6109 = vst.msk [vmem:[%s6078 + $0x169] sm:$0xff] %vm272, %v6076
          %6110 = vst.msk [vmem:[%s6078 + $0x171] sm:$0xff] %vm272, %v6077
          %v6111 = vld [vmem:[#allocation3] sm:$0xff]
          %v6112 = vld [vmem:[#allocation3 + $0x8] sm:$0xff]
          %v6113 = vld [vmem:[#allocation3 + $0x18] sm:$0xff]
          %v6114 = vld [vmem:[#allocation3 + $0x20] sm:$0xff]
          %v6115 = vld [vmem:[#allocation3 + $0x30] sm:$0xff]
          %v6116 = vld [vmem:[#allocation3 + $0x38] sm:$0xff]
          %v6117 = vld [vmem:[#allocation3 + $0x48] sm:$0xff]
          %v6118 = vld [vmem:[#allocation3 + $0x50] sm:$0xff]
          %v6119 = vld [vmem:[#allocation3 + $0x60] sm:$0xff]
          %v6120 = vld [vmem:[#allocation3 + $0x68] sm:$0xff]
          %v6121 = vld [vmem:[#allocation3 + $0x78] sm:$0xff]
          %v6122 = vld [vmem:[#allocation3 + $0x80] sm:$0xff]
          %v6123 = vld [vmem:[#allocation3 + $0x90] sm:$0xff]
          %v6124 = vld [vmem:[#allocation3 + $0x98] sm:$0xff]
          %v6125 = vld [vmem:[#allocation3 + $0xa8] sm:$0xff]
          %v6126 = vld [vmem:[#allocation3 + $0xb0] sm:$0xff]
          %v6127 = vld [vmem:[#allocation3 + $0xc0] sm:$0xff]
          %v6128 = vld [vmem:[#allocation3 + $0xc8] sm:$0xff]
          %v6129 = vld [vmem:[#allocation3 + $0xd8] sm:$0xff]
          %v6130 = vld [vmem:[#allocation3 + $0xe0] sm:$0xff]
          %v6131 = vld [vmem:[#allocation3 + $0xf0] sm:$0xff]
          %v6132 = vld [vmem:[#allocation3 + $0xf8] sm:$0xff]
          %v6133 = vld [vmem:[#allocation3 + $0x108] sm:$0xff]
          %v6134 = vld [vmem:[#allocation3 + $0x110] sm:$0xff]
          %v6135 = vld [vmem:[#allocation3 + $0x120] sm:$0xff]
          %v6136 = vld [vmem:[#allocation3 + $0x128] sm:$0xff]
          %v6137 = vld [vmem:[#allocation3 + $0x138] sm:$0xff]
          %v6138 = vld [vmem:[#allocation3 + $0x140] sm:$0xff]
          %v6139 = vld [vmem:[#allocation3 + $0x150] sm:$0xff]
          %v6140 = vld [vmem:[#allocation3 + $0x158] sm:$0xff]
          %v6141 = vld [vmem:[#allocation3 + $0x168] sm:$0xff]
          %v6142 = vld [vmem:[#allocation3 + $0x170] sm:$0xff]
          %v6143 = vpack.c.bf16 %v6111, %v6111
          %v6144 = vpack.c.bf16 %v6112, %v6112
          %v6145 = vpack.c.bf16 %v6113, %v6113
          %v6146 = vpack.c.bf16 %v6114, %v6114
          %v6147 = vpack.c.bf16 %v6115, %v6115
          %v6148 = vpack.c.bf16 %v6116, %v6116
          %v6149 = vpack.c.bf16 %v6117, %v6117
          %v6150 = vpack.c.bf16 %v6118, %v6118
          %v6151 = vpack.c.bf16 %v6119, %v6119
          %v6152 = vpack.c.bf16 %v6120, %v6120
          %v6153 = vpack.c.bf16 %v6121, %v6121
          %v6154 = vpack.c.bf16 %v6122, %v6122
          %v6155 = vpack.c.bf16 %v6123, %v6123
          %v6156 = vpack.c.bf16 %v6124, %v6124
          %v6157 = vpack.c.bf16 %v6125, %v6125
          %v6158 = vpack.c.bf16 %v6126, %v6126
          %v6159 = vpack.c.bf16 %v6127, %v6127
          %v6160 = vpack.c.bf16 %v6128, %v6128
          %v6161 = vpack.c.bf16 %v6129, %v6129
          %v6162 = vpack.c.bf16 %v6130, %v6130
          %v6163 = vpack.c.bf16 %v6131, %v6131
          %v6164 = vpack.c.bf16 %v6132, %v6132
          %v6165 = vpack.c.bf16 %v6133, %v6133
          %v6166 = vpack.c.bf16 %v6134, %v6134
          %v6167 = vpack.c.bf16 %v6135, %v6135
          %v6168 = vpack.c.bf16 %v6136, %v6136
          %v6169 = vpack.c.bf16 %v6137, %v6137
          %v6170 = vpack.c.bf16 %v6138, %v6138
          %v6171 = vpack.c.bf16 %v6139, %v6139
          %v6172 = vpack.c.bf16 %v6140, %v6140
          %v6173 = vpack.c.bf16 %v6141, %v6141
          %v6174 = vpack.c.bf16 %v6142, %v6142
          %6175 = vst.msk [vmem:[#allocation4] sm:$0xf] %vm583, %v6143
          %6176 = vst.msk [vmem:[#allocation4 + $0x14] sm:$0xf] %vm583, %v6144
          %6177 = vst.msk [vmem:[#allocation4 + $0x28] sm:$0xf] %vm583, %v6145
          %6178 = vst.msk [vmem:[#allocation4 + $0x3c] sm:$0xf] %vm583, %v6146
          %6179 = vst.msk [vmem:[#allocation4 + $0x50] sm:$0xf] %vm583, %v6147
          %6180 = vst.msk [vmem:[#allocation4 + $0x64] sm:$0xf] %vm583, %v6148
          %6181 = vst.msk [vmem:[#allocation4 + $0x78] sm:$0xf] %vm583, %v6149
          %6182 = vst.msk [vmem:[#allocation4 + $0x8c] sm:$0xf] %vm583, %v6150
          %6183 = vst.msk [vmem:[#allocation4 + $0xa0] sm:$0xf] %vm583, %v6151
          %6184 = vst.msk [vmem:[#allocation4 + $0xb4] sm:$0xf] %vm583, %v6152
          %6185 = vst.msk [vmem:[#allocation4 + $0xc8] sm:$0xf] %vm583, %v6153
          %6186 = vst.msk [vmem:[#allocation4 + $0xdc] sm:$0xf] %vm583, %v6154
          %6187 = vst.msk [vmem:[#allocation4 + $0xf0] sm:$0xf] %vm583, %v6155
          %6188 = vst.msk [vmem:[#allocation4 + $0x104] sm:$0xf] %vm583, %v6156
          %6189 = vst.msk [vmem:[#allocation4 + $0x118] sm:$0xf] %vm583, %v6157
          %6190 = vst.msk [vmem:[#allocation4 + $0x12c] sm:$0xf] %vm583, %v6158
          %6191 = vst.msk [vmem:[#allocation4 + $0x140] sm:$0xf] %vm583, %v6159
          %6192 = vst.msk [vmem:[#allocation4 + $0x154] sm:$0xf] %vm583, %v6160
          %6193 = vst.msk [vmem:[#allocation4 + $0x168] sm:$0xf] %vm583, %v6161
          %6194 = vst.msk [vmem:[#allocation4 + $0x17c] sm:$0xf] %vm583, %v6162
          %6195 = vst.msk [vmem:[#allocation4 + $0x190] sm:$0xf] %vm583, %v6163
          %6196 = vst.msk [vmem:[#allocation4 + $0x1a4] sm:$0xf] %vm583, %v6164
          %6197 = vst.msk [vmem:[#allocation4 + $0x1b8] sm:$0xf] %vm583, %v6165
          %6198 = vst.msk [vmem:[#allocation4 + $0x1cc] sm:$0xf] %vm583, %v6166
          %6199 = vst.msk [vmem:[#allocation4 + $0x1e0] sm:$0xf] %vm583, %v6167
          %6200 = vst.msk [vmem:[#allocation4 + $0x1f4] sm:$0xf] %vm583, %v6168
          %6201 = vst.msk [vmem:[#allocation4 + $0x208] sm:$0xf] %vm583, %v6169
          %6202 = vst.msk [vmem:[#allocation4 + $0x21c] sm:$0xf] %vm583, %v6170
          %6203 = vst.msk [vmem:[#allocation4 + $0x230] sm:$0xf] %vm583, %v6171
          %6204 = vst.msk [vmem:[#allocation4 + $0x244] sm:$0xf] %vm583, %v6172
          %6205 = vst.msk [vmem:[#allocation4 + $0x258] sm:$0xf] %vm583, %v6173
          %6206 = vst.msk [vmem:[#allocation4 + $0x26c] sm:$0xf] %vm583, %v6174
          %v6207 = vld [vmem:[#allocation3 + $0x1] sm:$0xff]
          %v6208 = vld [vmem:[#allocation3 + $0x9] sm:$0xff]
          %v6209 = vld [vmem:[#allocation3 + $0x19] sm:$0xff]
          %v6210 = vld [vmem:[#allocation3 + $0x21] sm:$0xff]
          %v6211 = vld [vmem:[#allocation3 + $0x31] sm:$0xff]
          %v6212 = vld [vmem:[#allocation3 + $0x39] sm:$0xff]
          %v6213 = vld [vmem:[#allocation3 + $0x49] sm:$0xff]
          %v6214 = vld [vmem:[#allocation3 + $0x51] sm:$0xff]
          %v6215 = vld [vmem:[#allocation3 + $0x61] sm:$0xff]
          %v6216 = vld [vmem:[#allocation3 + $0x69] sm:$0xff]
          %v6217 = vld [vmem:[#allocation3 + $0x79] sm:$0xff]
          %v6218 = vld [vmem:[#allocation3 + $0x81] sm:$0xff]
          %v6219 = vld [vmem:[#allocation3 + $0x91] sm:$0xff]
          %v6220 = vld [vmem:[#allocation3 + $0x99] sm:$0xff]
          %v6221 = vld [vmem:[#allocation3 + $0xa9] sm:$0xff]
          %v6222 = vld [vmem:[#allocation3 + $0xb1] sm:$0xff]
          %v6223 = vld [vmem:[#allocation3 + $0xc1] sm:$0xff]
          %v6224 = vld [vmem:[#allocation3 + $0xc9] sm:$0xff]
          %v6225 = vld [vmem:[#allocation3 + $0xd9] sm:$0xff]
          %v6226 = vld [vmem:[#allocation3 + $0xe1] sm:$0xff]
          %v6227 = vld [vmem:[#allocation3 + $0xf1] sm:$0xff]
          %v6228 = vld [vmem:[#allocation3 + $0xf9] sm:$0xff]
          %v6229 = vld [vmem:[#allocation3 + $0x109] sm:$0xff]
          %v6230 = vld [vmem:[#allocation3 + $0x111] sm:$0xff]
          %v6231 = vld [vmem:[#allocation3 + $0x121] sm:$0xff]
          %v6232 = vld [vmem:[#allocation3 + $0x129] sm:$0xff]
          %v6233 = vld [vmem:[#allocation3 + $0x139] sm:$0xff]
          %v6234 = vld [vmem:[#allocation3 + $0x141] sm:$0xff]
          %v6235 = vld [vmem:[#allocation3 + $0x151] sm:$0xff]
          %v6236 = vld [vmem:[#allocation3 + $0x159] sm:$0xff]
          %v6237 = vld [vmem:[#allocation3 + $0x169] sm:$0xff]
          %v6238 = vld [vmem:[#allocation3 + $0x171] sm:$0xff]
          %v6239 = vpack.c.bf16 %v6207, %v6207
          %v6240 = vpack.c.bf16 %v6208, %v6208
          %v6241 = vpack.c.bf16 %v6209, %v6209
          %v6242 = vpack.c.bf16 %v6210, %v6210
          %v6243 = vpack.c.bf16 %v6211, %v6211
          %v6244 = vpack.c.bf16 %v6212, %v6212
          %v6245 = vpack.c.bf16 %v6213, %v6213
          %v6246 = vpack.c.bf16 %v6214, %v6214
          %v6247 = vpack.c.bf16 %v6215, %v6215
          %v6248 = vpack.c.bf16 %v6216, %v6216
          %v6249 = vpack.c.bf16 %v6217, %v6217
          %v6250 = vpack.c.bf16 %v6218, %v6218
          %v6251 = vpack.c.bf16 %v6219, %v6219
          %v6252 = vpack.c.bf16 %v6220, %v6220
          %v6253 = vpack.c.bf16 %v6221, %v6221
          %v6254 = vpack.c.bf16 %v6222, %v6222
          %v6255 = vpack.c.bf16 %v6223, %v6223
          %v6256 = vpack.c.bf16 %v6224, %v6224
          %v6257 = vpack.c.bf16 %v6225, %v6225
          %v6258 = vpack.c.bf16 %v6226, %v6226
          %v6259 = vpack.c.bf16 %v6227, %v6227
          %v6260 = vpack.c.bf16 %v6228, %v6228
          %v6261 = vpack.c.bf16 %v6229, %v6229
          %v6262 = vpack.c.bf16 %v6230, %v6230
          %v6263 = vpack.c.bf16 %v6231, %v6231
          %v6264 = vpack.c.bf16 %v6232, %v6232
          %v6265 = vpack.c.bf16 %v6233, %v6233
          %v6266 = vpack.c.bf16 %v6234, %v6234
          %v6267 = vpack.c.bf16 %v6235, %v6235
          %v6268 = vpack.c.bf16 %v6236, %v6236
          %v6269 = vpack.c.bf16 %v6237, %v6237
          %v6270 = vpack.c.bf16 %v6238, %v6238
          %6303 = vrot.lane.b32.xlu0 %v6239, 64
          %v6304 = vpop.permute.xlu0 %6303
          %6305 = vrot.lane.b32.xlu0 %v6240, 64
          %v6306 = vpop.permute.xlu0 %6305
          %6307 = vrot.lane.b32.xlu0 %v6241, 64
          %v6308 = vpop.permute.xlu0 %6307
          %6309 = vrot.lane.b32.xlu0 %v6242, 64
          %v6310 = vpop.permute.xlu0 %6309
          %6311 = vrot.lane.b32.xlu0 %v6243, 64
          %v6312 = vpop.permute.xlu0 %6311
          %6313 = vrot.lane.b32.xlu0 %v6244, 64
          %v6314 = vpop.permute.xlu0 %6313
          %6315 = vrot.lane.b32.xlu0 %v6245, 64
          %v6316 = vpop.permute.xlu0 %6315
          %6317 = vrot.lane.b32.xlu0 %v6246, 64
          %v6318 = vpop.permute.xlu0 %6317
          %6319 = vrot.lane.b32.xlu0 %v6247, 64
          %v6320 = vpop.permute.xlu0 %6319
          %6321 = vrot.lane.b32.xlu0 %v6248, 64
          %v6322 = vpop.permute.xlu0 %6321
          %6323 = vrot.lane.b32.xlu0 %v6249, 64
          %v6324 = vpop.permute.xlu0 %6323
          %6325 = vrot.lane.b32.xlu0 %v6250, 64
          %v6326 = vpop.permute.xlu0 %6325
          %6327 = vrot.lane.b32.xlu0 %v6251, 64
          %v6328 = vpop.permute.xlu0 %6327
          %6329 = vrot.lane.b32.xlu0 %v6252, 64
          %v6330 = vpop.permute.xlu0 %6329
          %6331 = vrot.lane.b32.xlu0 %v6253, 64
          %v6332 = vpop.permute.xlu0 %6331
          %6333 = vrot.lane.b32.xlu0 %v6254, 64
          %v6334 = vpop.permute.xlu0 %6333
          %6335 = vrot.lane.b32.xlu0 %v6255, 64
          %v6336 = vpop.permute.xlu0 %6335
          %6337 = vrot.lane.b32.xlu0 %v6256, 64
          %v6338 = vpop.permute.xlu0 %6337
          %6339 = vrot.lane.b32.xlu0 %v6257, 64
          %v6340 = vpop.permute.xlu0 %6339
          %6341 = vrot.lane.b32.xlu0 %v6258, 64
          %v6342 = vpop.permute.xlu0 %6341
          %6343 = vrot.lane.b32.xlu0 %v6259, 64
          %v6344 = vpop.permute.xlu0 %6343
          %6345 = vrot.lane.b32.xlu0 %v6260, 64
          %v6346 = vpop.permute.xlu0 %6345
          %6347 = vrot.lane.b32.xlu0 %v6261, 64
          %v6348 = vpop.permute.xlu0 %6347
          %6349 = vrot.lane.b32.xlu0 %v6262, 64
          %v6350 = vpop.permute.xlu0 %6349
          %6351 = vrot.lane.b32.xlu0 %v6263, 64
          %v6352 = vpop.permute.xlu0 %6351
          %6353 = vrot.lane.b32.xlu0 %v6264, 64
          %v6354 = vpop.permute.xlu0 %6353
          %6355 = vrot.lane.b32.xlu0 %v6265, 64
          %v6356 = vpop.permute.xlu0 %6355
          %6357 = vrot.lane.b32.xlu0 %v6266, 64
          %v6358 = vpop.permute.xlu0 %6357
          %6359 = vrot.lane.b32.xlu0 %v6267, 64
          %v6360 = vpop.permute.xlu0 %6359
          %6361 = vrot.lane.b32.xlu0 %v6268, 64
          %v6362 = vpop.permute.xlu0 %6361
          %6363 = vrot.lane.b32.xlu0 %v6269, 64
          %v6364 = vpop.permute.xlu0 %6363
          %6365 = vrot.lane.b32.xlu0 %v6270, 64
          %v6366 = vpop.permute.xlu0 %6365
          %6399 = vst.msk [vmem:[#allocation4] sm:$0xf] %vm808, %v6304
          %6400 = vst.msk [vmem:[#allocation4 + $0x14] sm:$0xf] %vm808, %v6306
          %6401 = vst.msk [vmem:[#allocation4 + $0x28] sm:$0xf] %vm808, %v6308
          %6402 = vst.msk [vmem:[#allocation4 + $0x3c] sm:$0xf] %vm808, %v6310
          %6403 = vst.msk [vmem:[#allocation4 + $0x50] sm:$0xf] %vm808, %v6312
          %6404 = vst.msk [vmem:[#allocation4 + $0x64] sm:$0xf] %vm808, %v6314
          %6405 = vst.msk [vmem:[#allocation4 + $0x78] sm:$0xf] %vm808, %v6316
          %6406 = vst.msk [vmem:[#allocation4 + $0x8c] sm:$0xf] %vm808, %v6318
          %6407 = vst.msk [vmem:[#allocation4 + $0xa0] sm:$0xf] %vm808, %v6320
          %6408 = vst.msk [vmem:[#allocation4 + $0xb4] sm:$0xf] %vm808, %v6322
          %6409 = vst.msk [vmem:[#allocation4 + $0xc8] sm:$0xf] %vm808, %v6324
          %6410 = vst.msk [vmem:[#allocation4 + $0xdc] sm:$0xf] %vm808, %v6326
          %6411 = vst.msk [vmem:[#allocation4 + $0xf0] sm:$0xf] %vm808, %v6328
          %6412 = vst.msk [vmem:[#allocation4 + $0x104] sm:$0xf] %vm808, %v6330
          %6413 = vst.msk [vmem:[#allocation4 + $0x118] sm:$0xf] %vm808, %v6332
          %6414 = vst.msk [vmem:[#allocation4 + $0x12c] sm:$0xf] %vm808, %v6334
          %6415 = vst.msk [vmem:[#allocation4 + $0x140] sm:$0xf] %vm808, %v6336
          %6416 = vst.msk [vmem:[#allocation4 + $0x154] sm:$0xf] %vm808, %v6338
          %6417 = vst.msk [vmem:[#allocation4 + $0x168] sm:$0xf] %vm808, %v6340
          %6418 = vst.msk [vmem:[#allocation4 + $0x17c] sm:$0xf] %vm808, %v6342
          %6419 = vst.msk [vmem:[#allocation4 + $0x190] sm:$0xf] %vm808, %v6344
          %6420 = vst.msk [vmem:[#allocation4 + $0x1a4] sm:$0xf] %vm808, %v6346
          %6421 = vst.msk [vmem:[#allocation4 + $0x1b8] sm:$0xf] %vm808, %v6348
          %6422 = vst.msk [vmem:[#allocation4 + $0x1cc] sm:$0xf] %vm808, %v6350
          %6423 = vst.msk [vmem:[#allocation4 + $0x1e0] sm:$0xf] %vm808, %v6352
          %6424 = vst.msk [vmem:[#allocation4 + $0x1f4] sm:$0xf] %vm808, %v6354
          %6425 = vst.msk [vmem:[#allocation4 + $0x208] sm:$0xf] %vm808, %v6356
          %6426 = vst.msk [vmem:[#allocation4 + $0x21c] sm:$0xf] %vm808, %v6358
          %6427 = vst.msk [vmem:[#allocation4 + $0x230] sm:$0xf] %vm808, %v6360
          %6428 = vst.msk [vmem:[#allocation4 + $0x244] sm:$0xf] %vm808, %v6362
          %6429 = vst.msk [vmem:[#allocation4 + $0x258] sm:$0xf] %vm808, %v6364
          %6430 = vst.msk [vmem:[#allocation4 + $0x26c] sm:$0xf] %vm808, %v6366
          %v6431 = vld [vmem:[#allocation3 + $0x2] sm:$0xff]
          %v6432 = vld [vmem:[#allocation3 + $0xa] sm:$0xff]
          %v6433 = vld [vmem:[#allocation3 + $0x1a] sm:$0xff]
          %v6434 = vld [vmem:[#allocation3 + $0x22] sm:$0xff]
          %v6435 = vld [vmem:[#allocation3 + $0x32] sm:$0xff]
          %v6436 = vld [vmem:[#allocation3 + $0x3a] sm:$0xff]
          %v6437 = vld [vmem:[#allocation3 + $0x4a] sm:$0xff]
          %v6438 = vld [vmem:[#allocation3 + $0x52] sm:$0xff]
          %v6439 = vld [vmem:[#allocation3 + $0x62] sm:$0xff]
          %v6440 = vld [vmem:[#allocation3 + $0x6a] sm:$0xff]
          %v6441 = vld [vmem:[#allocation3 + $0x7a] sm:$0xff]
          %v6442 = vld [vmem:[#allocation3 + $0x82] sm:$0xff]
          %v6443 = vld [vmem:[#allocation3 + $0x92] sm:$0xff]
          %v6444 = vld [vmem:[#allocation3 + $0x9a] sm:$0xff]
          %v6445 = vld [vmem:[#allocation3 + $0xaa] sm:$0xff]
          %v6446 = vld [vmem:[#allocation3 + $0xb2] sm:$0xff]
          %v6447 = vld [vmem:[#allocation3 + $0xc2] sm:$0xff]
          %v6448 = vld [vmem:[#allocation3 + $0xca] sm:$0xff]
          %v6449 = vld [vmem:[#allocation3 + $0xda] sm:$0xff]
          %v6450 = vld [vmem:[#allocation3 + $0xe2] sm:$0xff]
          %v6451 = vld [vmem:[#allocation3 + $0xf2] sm:$0xff]
          %v6452 = vld [vmem:[#allocation3 + $0xfa] sm:$0xff]
          %v6453 = vld [vmem:[#allocation3 + $0x10a] sm:$0xff]
          %v6454 = vld [vmem:[#allocation3 + $0x112] sm:$0xff]
          %v6455 = vld [vmem:[#allocation3 + $0x122] sm:$0xff]
          %v6456 = vld [vmem:[#allocation3 + $0x12a] sm:$0xff]
          %v6457 = vld [vmem:[#allocation3 + $0x13a] sm:$0xff]
          %v6458 = vld [vmem:[#allocation3 + $0x142] sm:$0xff]
          %v6459 = vld [vmem:[#allocation3 + $0x152] sm:$0xff]
          %v6460 = vld [vmem:[#allocation3 + $0x15a] sm:$0xff]
          %v6461 = vld [vmem:[#allocation3 + $0x16a] sm:$0xff]
          %v6462 = vld [vmem:[#allocation3 + $0x172] sm:$0xff]
          %v6463 = vpack.c.bf16 %v6431, %v6431
          %v6464 = vpack.c.bf16 %v6432, %v6432
          %v6465 = vpack.c.bf16 %v6433, %v6433
          %v6466 = vpack.c.bf16 %v6434, %v6434
          %v6467 = vpack.c.bf16 %v6435, %v6435
          %v6468 = vpack.c.bf16 %v6436, %v6436
          %v6469 = vpack.c.bf16 %v6437, %v6437
          %v6470 = vpack.c.bf16 %v6438, %v6438
          %v6471 = vpack.c.bf16 %v6439, %v6439
          %v6472 = vpack.c.bf16 %v6440, %v6440
          %v6473 = vpack.c.bf16 %v6441, %v6441
          %v6474 = vpack.c.bf16 %v6442, %v6442
          %v6475 = vpack.c.bf16 %v6443, %v6443
          %v6476 = vpack.c.bf16 %v6444, %v6444
          %v6477 = vpack.c.bf16 %v6445, %v6445
          %v6478 = vpack.c.bf16 %v6446, %v6446
          %v6479 = vpack.c.bf16 %v6447, %v6447
          %v6480 = vpack.c.bf16 %v6448, %v6448
          %v6481 = vpack.c.bf16 %v6449, %v6449
          %v6482 = vpack.c.bf16 %v6450, %v6450
          %v6483 = vpack.c.bf16 %v6451, %v6451
          %v6484 = vpack.c.bf16 %v6452, %v6452
          %v6485 = vpack.c.bf16 %v6453, %v6453
          %v6486 = vpack.c.bf16 %v6454, %v6454
          %v6487 = vpack.c.bf16 %v6455, %v6455
          %v6488 = vpack.c.bf16 %v6456, %v6456
          %v6489 = vpack.c.bf16 %v6457, %v6457
          %v6490 = vpack.c.bf16 %v6458, %v6458
          %v6491 = vpack.c.bf16 %v6459, %v6459
          %v6492 = vpack.c.bf16 %v6460, %v6460
          %v6493 = vpack.c.bf16 %v6461, %v6461
          %v6494 = vpack.c.bf16 %v6462, %v6462
          %6495 = vst.msk [vmem:[#allocation4 + $0x4] sm:$0xf] %vm583, %v6463
          %6496 = vst.msk [vmem:[#allocation4 + $0x18] sm:$0xf] %vm583, %v6464
          %6497 = vst.msk [vmem:[#allocation4 + $0x2c] sm:$0xf] %vm583, %v6465
          %6498 = vst.msk [vmem:[#allocation4 + $0x40] sm:$0xf] %vm583, %v6466
          %6499 = vst.msk [vmem:[#allocation4 + $0x54] sm:$0xf] %vm583, %v6467
          %6500 = vst.msk [vmem:[#allocation4 + $0x68] sm:$0xf] %vm583, %v6468
          %6501 = vst.msk [vmem:[#allocation4 + $0x7c] sm:$0xf] %vm583, %v6469
          %6502 = vst.msk [vmem:[#allocation4 + $0x90] sm:$0xf] %vm583, %v6470
          %6503 = vst.msk [vmem:[#allocation4 + $0xa4] sm:$0xf] %vm583, %v6471
          %6504 = vst.msk [vmem:[#allocation4 + $0xb8] sm:$0xf] %vm583, %v6472
          %6505 = vst.msk [vmem:[#allocation4 + $0xcc] sm:$0xf] %vm583, %v6473
          %6506 = vst.msk [vmem:[#allocation4 + $0xe0] sm:$0xf] %vm583, %v6474
          %6507 = vst.msk [vmem:[#allocation4 + $0xf4] sm:$0xf] %vm583, %v6475
          %6508 = vst.msk [vmem:[#allocation4 + $0x108] sm:$0xf] %vm583, %v6476
          %6509 = vst.msk [vmem:[#allocation4 + $0x11c] sm:$0xf] %vm583, %v6477
          %6510 = vst.msk [vmem:[#allocation4 + $0x130] sm:$0xf] %vm583, %v6478
          %6511 = vst.msk [vmem:[#allocation4 + $0x144] sm:$0xf] %vm583, %v6479
          %6512 = vst.msk [vmem:[#allocation4 + $0x158] sm:$0xf] %vm583, %v6480
          %6513 = vst.msk [vmem:[#allocation4 + $0x16c] sm:$0xf] %vm583, %v6481
          %6514 = vst.msk [vmem:[#allocation4 + $0x180] sm:$0xf] %vm583, %v6482
          %6515 = vst.msk [vmem:[#allocation4 + $0x194] sm:$0xf] %vm583, %v6483
          %6516 = vst.msk [vmem:[#allocation4 + $0x1a8] sm:$0xf] %vm583, %v6484
          %6517 = vst.msk [vmem:[#allocation4 + $0x1bc] sm:$0xf] %vm583, %v6485
          %6518 = vst.msk [vmem:[#allocation4 + $0x1d0] sm:$0xf] %vm583, %v6486
          %6519 = vst.msk [vmem:[#allocation4 + $0x1e4] sm:$0xf] %vm583, %v6487
          %6520 = vst.msk [vmem:[#allocation4 + $0x1f8] sm:$0xf] %vm583, %v6488
          %6521 = vst.msk [vmem:[#allocation4 + $0x20c] sm:$0xf] %vm583, %v6489
          %6522 = vst.msk [vmem:[#allocation4 + $0x220] sm:$0xf] %vm583, %v6490
          %6523 = vst.msk [vmem:[#allocation4 + $0x234] sm:$0xf] %vm583, %v6491
          %6524 = vst.msk [vmem:[#allocation4 + $0x248] sm:$0xf] %vm583, %v6492
          %6525 = vst.msk [vmem:[#allocation4 + $0x25c] sm:$0xf] %vm583, %v6493
          %6526 = vst.msk [vmem:[#allocation4 + $0x270] sm:$0xf] %vm583, %v6494
          %v6527 = vld [vmem:[%s6078] sm:$0xff]
          %v6528 = vld [vmem:[%s6078 + $0x8] sm:$0xff]
          %v6529 = vld [vmem:[%s6078 + $0x18] sm:$0xff]
          %v6530 = vld [vmem:[%s6078 + $0x20] sm:$0xff]
          %v6531 = vld [vmem:[%s6078 + $0x30] sm:$0xff]
          %v6532 = vld [vmem:[%s6078 + $0x38] sm:$0xff]
          %v6533 = vld [vmem:[%s6078 + $0x48] sm:$0xff]
          %v6534 = vld [vmem:[%s6078 + $0x50] sm:$0xff]
          %v6535 = vld [vmem:[%s6078 + $0x60] sm:$0xff]
          %v6536 = vld [vmem:[%s6078 + $0x68] sm:$0xff]
          %v6537 = vld [vmem:[%s6078 + $0x78] sm:$0xff]
          %v6538 = vld [vmem:[%s6078 + $0x80] sm:$0xff]
          %v6539 = vld [vmem:[%s6078 + $0x90] sm:$0xff]
          %v6540 = vld [vmem:[%s6078 + $0x98] sm:$0xff]
          %v6541 = vld [vmem:[%s6078 + $0xa8] sm:$0xff]
          %v6542 = vld [vmem:[%s6078 + $0xb0] sm:$0xff]
          %v6543 = vld [vmem:[%s6078 + $0xc0] sm:$0xff]
          %v6544 = vld [vmem:[%s6078 + $0xc8] sm:$0xff]
          %v6545 = vld [vmem:[%s6078 + $0xd8] sm:$0xff]
          %v6546 = vld [vmem:[%s6078 + $0xe0] sm:$0xff]
          %v6547 = vld [vmem:[%s6078 + $0xf0] sm:$0xff]
          %v6548 = vld [vmem:[%s6078 + $0xf8] sm:$0xff]
          %v6549 = vld [vmem:[%s6078 + $0x108] sm:$0xff]
          %v6550 = vld [vmem:[%s6078 + $0x110] sm:$0xff]
          %v6551 = vld [vmem:[%s6078 + $0x120] sm:$0xff]
          %v6552 = vld [vmem:[%s6078 + $0x128] sm:$0xff]
          %v6553 = vld [vmem:[%s6078 + $0x138] sm:$0xff]
          %v6554 = vld [vmem:[%s6078 + $0x140] sm:$0xff]
          %v6555 = vld [vmem:[%s6078 + $0x150] sm:$0xff]
          %v6556 = vld [vmem:[%s6078 + $0x158] sm:$0xff]
          %v6557 = vld [vmem:[%s6078 + $0x168] sm:$0xff]
          %v6558 = vld [vmem:[%s6078 + $0x170] sm:$0xff]
          %v6559 = vpack.c.bf16 %v6527, %v6527
          %v6560 = vpack.c.bf16 %v6528, %v6528
          %v6561 = vpack.c.bf16 %v6529, %v6529
          %v6562 = vpack.c.bf16 %v6530, %v6530
          %v6563 = vpack.c.bf16 %v6531, %v6531
          %v6564 = vpack.c.bf16 %v6532, %v6532
          %v6565 = vpack.c.bf16 %v6533, %v6533
          %v6566 = vpack.c.bf16 %v6534, %v6534
          %v6567 = vpack.c.bf16 %v6535, %v6535
          %v6568 = vpack.c.bf16 %v6536, %v6536
          %v6569 = vpack.c.bf16 %v6537, %v6537
          %v6570 = vpack.c.bf16 %v6538, %v6538
          %v6571 = vpack.c.bf16 %v6539, %v6539
          %v6572 = vpack.c.bf16 %v6540, %v6540
          %v6573 = vpack.c.bf16 %v6541, %v6541
          %v6574 = vpack.c.bf16 %v6542, %v6542
          %v6575 = vpack.c.bf16 %v6543, %v6543
          %v6576 = vpack.c.bf16 %v6544, %v6544
          %v6577 = vpack.c.bf16 %v6545, %v6545
          %v6578 = vpack.c.bf16 %v6546, %v6546
          %v6579 = vpack.c.bf16 %v6547, %v6547
          %v6580 = vpack.c.bf16 %v6548, %v6548
          %v6581 = vpack.c.bf16 %v6549, %v6549
          %v6582 = vpack.c.bf16 %v6550, %v6550
          %v6583 = vpack.c.bf16 %v6551, %v6551
          %v6584 = vpack.c.bf16 %v6552, %v6552
          %v6585 = vpack.c.bf16 %v6553, %v6553
          %v6586 = vpack.c.bf16 %v6554, %v6554
          %v6587 = vpack.c.bf16 %v6555, %v6555
          %v6588 = vpack.c.bf16 %v6556, %v6556
          %v6589 = vpack.c.bf16 %v6557, %v6557
          %v6590 = vpack.c.bf16 %v6558, %v6558
          %6623 = vrot.lane.b32.xlu0 %v6559, 64
          %v6624 = vpop.permute.xlu0 %6623
          %6625 = vrot.lane.b32.xlu0 %v6560, 64
          %v6626 = vpop.permute.xlu0 %6625
          %6627 = vrot.lane.b32.xlu0 %v6561, 64
          %v6628 = vpop.permute.xlu0 %6627
          %6629 = vrot.lane.b32.xlu0 %v6562, 64
          %v6630 = vpop.permute.xlu0 %6629
          %6631 = vrot.lane.b32.xlu0 %v6563, 64
          %v6632 = vpop.permute.xlu0 %6631
          %6633 = vrot.lane.b32.xlu0 %v6564, 64
          %v6634 = vpop.permute.xlu0 %6633
          %6635 = vrot.lane.b32.xlu0 %v6565, 64
          %v6636 = vpop.permute.xlu0 %6635
          %6637 = vrot.lane.b32.xlu0 %v6566, 64
          %v6638 = vpop.permute.xlu0 %6637
          %6639 = vrot.lane.b32.xlu0 %v6567, 64
          %v6640 = vpop.permute.xlu0 %6639
          %6641 = vrot.lane.b32.xlu0 %v6568, 64
          %v6642 = vpop.permute.xlu0 %6641
          %6643 = vrot.lane.b32.xlu0 %v6569, 64
          %v6644 = vpop.permute.xlu0 %6643
          %6645 = vrot.lane.b32.xlu0 %v6570, 64
          %v6646 = vpop.permute.xlu0 %6645
          %6647 = vrot.lane.b32.xlu0 %v6571, 64
          %v6648 = vpop.permute.xlu0 %6647
          %6649 = vrot.lane.b32.xlu0 %v6572, 64
          %v6650 = vpop.permute.xlu0 %6649
          %6651 = vrot.lane.b32.xlu0 %v6573, 64
          %v6652 = vpop.permute.xlu0 %6651
          %6653 = vrot.lane.b32.xlu0 %v6574, 64
          %v6654 = vpop.permute.xlu0 %6653
          %6655 = vrot.lane.b32.xlu0 %v6575, 64
          %v6656 = vpop.permute.xlu0 %6655
          %6657 = vrot.lane.b32.xlu0 %v6576, 64
          %v6658 = vpop.permute.xlu0 %6657
          %6659 = vrot.lane.b32.xlu0 %v6577, 64
          %v6660 = vpop.permute.xlu0 %6659
          %6661 = vrot.lane.b32.xlu0 %v6578, 64
          %v6662 = vpop.permute.xlu0 %6661
          %6663 = vrot.lane.b32.xlu0 %v6579, 64
          %v6664 = vpop.permute.xlu0 %6663
          %6665 = vrot.lane.b32.xlu0 %v6580, 64
          %v6666 = vpop.permute.xlu0 %6665
          %6667 = vrot.lane.b32.xlu0 %v6581, 64
          %v6668 = vpop.permute.xlu0 %6667
          %6669 = vrot.lane.b32.xlu0 %v6582, 64
          %v6670 = vpop.permute.xlu0 %6669
          %6671 = vrot.lane.b32.xlu0 %v6583, 64
          %v6672 = vpop.permute.xlu0 %6671
          %6673 = vrot.lane.b32.xlu0 %v6584, 64
          %v6674 = vpop.permute.xlu0 %6673
          %6675 = vrot.lane.b32.xlu0 %v6585, 64
          %v6676 = vpop.permute.xlu0 %6675
          %6677 = vrot.lane.b32.xlu0 %v6586, 64
          %v6678 = vpop.permute.xlu0 %6677
          %6679 = vrot.lane.b32.xlu0 %v6587, 64
          %v6680 = vpop.permute.xlu0 %6679
          %6681 = vrot.lane.b32.xlu0 %v6588, 64
          %v6682 = vpop.permute.xlu0 %6681
          %6683 = vrot.lane.b32.xlu0 %v6589, 64
          %v6684 = vpop.permute.xlu0 %6683
          %6685 = vrot.lane.b32.xlu0 %v6590, 64
          %v6686 = vpop.permute.xlu0 %6685
          %6719 = vst.msk [vmem:[#allocation4 + $0x4] sm:$0xf] %vm808, %v6624
          %6720 = vst.msk [vmem:[#allocation4 + $0x18] sm:$0xf] %vm808, %v6626
          %6721 = vst.msk [vmem:[#allocation4 + $0x2c] sm:$0xf] %vm808, %v6628
          %6722 = vst.msk [vmem:[#allocation4 + $0x40] sm:$0xf] %vm808, %v6630
          %6723 = vst.msk [vmem:[#allocation4 + $0x54] sm:$0xf] %vm808, %v6632
          %6724 = vst.msk [vmem:[#allocation4 + $0x68] sm:$0xf] %vm808, %v6634
          %6725 = vst.msk [vmem:[#allocation4 + $0x7c] sm:$0xf] %vm808, %v6636
          %6726 = vst.msk [vmem:[#allocation4 + $0x90] sm:$0xf] %vm808, %v6638
          %6727 = vst.msk [vmem:[#allocation4 + $0xa4] sm:$0xf] %vm808, %v6640
          %6728 = vst.msk [vmem:[#allocation4 + $0xb8] sm:$0xf] %vm808, %v6642
          %6729 = vst.msk [vmem:[#allocation4 + $0xcc] sm:$0xf] %vm808, %v6644
          %6730 = vst.msk [vmem:[#allocation4 + $0xe0] sm:$0xf] %vm808, %v6646
          %6731 = vst.msk [vmem:[#allocation4 + $0xf4] sm:$0xf] %vm808, %v6648
          %6732 = vst.msk [vmem:[#allocation4 + $0x108] sm:$0xf] %vm808, %v6650
          %6733 = vst.msk [vmem:[#allocation4 + $0x11c] sm:$0xf] %vm808, %v6652
          %6734 = vst.msk [vmem:[#allocation4 + $0x130] sm:$0xf] %vm808, %v6654
          %6735 = vst.msk [vmem:[#allocation4 + $0x144] sm:$0xf] %vm808, %v6656
          %6736 = vst.msk [vmem:[#allocation4 + $0x158] sm:$0xf] %vm808, %v6658
          %6737 = vst.msk [vmem:[#allocation4 + $0x16c] sm:$0xf] %vm808, %v6660
          %6738 = vst.msk [vmem:[#allocation4 + $0x180] sm:$0xf] %vm808, %v6662
          %6739 = vst.msk [vmem:[#allocation4 + $0x194] sm:$0xf] %vm808, %v6664
          %6740 = vst.msk [vmem:[#allocation4 + $0x1a8] sm:$0xf] %vm808, %v6666
          %6741 = vst.msk [vmem:[#allocation4 + $0x1bc] sm:$0xf] %vm808, %v6668
          %6742 = vst.msk [vmem:[#allocation4 + $0x1d0] sm:$0xf] %vm808, %v6670
          %6743 = vst.msk [vmem:[#allocation4 + $0x1e4] sm:$0xf] %vm808, %v6672
          %6744 = vst.msk [vmem:[#allocation4 + $0x1f8] sm:$0xf] %vm808, %v6674
          %6745 = vst.msk [vmem:[#allocation4 + $0x20c] sm:$0xf] %vm808, %v6676
          %6746 = vst.msk [vmem:[#allocation4 + $0x220] sm:$0xf] %vm808, %v6678
          %6747 = vst.msk [vmem:[#allocation4 + $0x234] sm:$0xf] %vm808, %v6680
          %6748 = vst.msk [vmem:[#allocation4 + $0x248] sm:$0xf] %vm808, %v6682
          %6749 = vst.msk [vmem:[#allocation4 + $0x25c] sm:$0xf] %vm808, %v6684
          %6750 = vst.msk [vmem:[#allocation4 + $0x270] sm:$0xf] %vm808, %v6686
          %v6751 = vld [vmem:[%s6078 + $0x1] sm:$0xff]
          %v6752 = vld [vmem:[%s6078 + $0x9] sm:$0xff]
          %v6753 = vld [vmem:[%s6078 + $0x19] sm:$0xff]
          %v6754 = vld [vmem:[%s6078 + $0x21] sm:$0xff]
          %v6755 = vld [vmem:[%s6078 + $0x31] sm:$0xff]
          %v6756 = vld [vmem:[%s6078 + $0x39] sm:$0xff]
          %v6757 = vld [vmem:[%s6078 + $0x49] sm:$0xff]
          %v6758 = vld [vmem:[%s6078 + $0x51] sm:$0xff]
          %v6759 = vld [vmem:[%s6078 + $0x61] sm:$0xff]
          %v6760 = vld [vmem:[%s6078 + $0x69] sm:$0xff]
          %v6761 = vld [vmem:[%s6078 + $0x79] sm:$0xff]
          %v6762 = vld [vmem:[%s6078 + $0x81] sm:$0xff]
          %v6763 = vld [vmem:[%s6078 + $0x91] sm:$0xff]
          %v6764 = vld [vmem:[%s6078 + $0x99] sm:$0xff]
          %v6765 = vld [vmem:[%s6078 + $0xa9] sm:$0xff]
          %v6766 = vld [vmem:[%s6078 + $0xb1] sm:$0xff]
          %v6767 = vld [vmem:[%s6078 + $0xc1] sm:$0xff]
          %v6768 = vld [vmem:[%s6078 + $0xc9] sm:$0xff]
          %v6769 = vld [vmem:[%s6078 + $0xd9] sm:$0xff]
          %v6770 = vld [vmem:[%s6078 + $0xe1] sm:$0xff]
          %v6771 = vld [vmem:[%s6078 + $0xf1] sm:$0xff]
          %v6772 = vld [vmem:[%s6078 + $0xf9] sm:$0xff]
          %v6773 = vld [vmem:[%s6078 + $0x109] sm:$0xff]
          %v6774 = vld [vmem:[%s6078 + $0x111] sm:$0xff]
          %v6775 = vld [vmem:[%s6078 + $0x121] sm:$0xff]
          %v6776 = vld [vmem:[%s6078 + $0x129] sm:$0xff]
          %v6777 = vld [vmem:[%s6078 + $0x139] sm:$0xff]
          %v6778 = vld [vmem:[%s6078 + $0x141] sm:$0xff]
          %v6779 = vld [vmem:[%s6078 + $0x151] sm:$0xff]
          %v6780 = vld [vmem:[%s6078 + $0x159] sm:$0xff]
          %v6781 = vld [vmem:[%s6078 + $0x169] sm:$0xff]
          %v6782 = vld [vmem:[%s6078 + $0x171] sm:$0xff]
          %v6783 = vpack.c.bf16 %v6751, %v6751
          %v6784 = vpack.c.bf16 %v6752, %v6752
          %v6785 = vpack.c.bf16 %v6753, %v6753
          %v6786 = vpack.c.bf16 %v6754, %v6754
          %v6787 = vpack.c.bf16 %v6755, %v6755
          %v6788 = vpack.c.bf16 %v6756, %v6756
          %v6789 = vpack.c.bf16 %v6757, %v6757
          %v6790 = vpack.c.bf16 %v6758, %v6758
          %v6791 = vpack.c.bf16 %v6759, %v6759
          %v6792 = vpack.c.bf16 %v6760, %v6760
          %v6793 = vpack.c.bf16 %v6761, %v6761
          %v6794 = vpack.c.bf16 %v6762, %v6762
          %v6795 = vpack.c.bf16 %v6763, %v6763
          %v6796 = vpack.c.bf16 %v6764, %v6764
          %v6797 = vpack.c.bf16 %v6765, %v6765
          %v6798 = vpack.c.bf16 %v6766, %v6766
          %v6799 = vpack.c.bf16 %v6767, %v6767
          %v6800 = vpack.c.bf16 %v6768, %v6768
          %v6801 = vpack.c.bf16 %v6769, %v6769
          %v6802 = vpack.c.bf16 %v6770, %v6770
          %v6803 = vpack.c.bf16 %v6771, %v6771
          %v6804 = vpack.c.bf16 %v6772, %v6772
          %v6805 = vpack.c.bf16 %v6773, %v6773
          %v6806 = vpack.c.bf16 %v6774, %v6774
          %v6807 = vpack.c.bf16 %v6775, %v6775
          %v6808 = vpack.c.bf16 %v6776, %v6776
          %v6809 = vpack.c.bf16 %v6777, %v6777
          %v6810 = vpack.c.bf16 %v6778, %v6778
          %v6811 = vpack.c.bf16 %v6779, %v6779
          %v6812 = vpack.c.bf16 %v6780, %v6780
          %v6813 = vpack.c.bf16 %v6781, %v6781
          %v6814 = vpack.c.bf16 %v6782, %v6782
          %6815 = vst.msk [vmem:[#allocation4 + $0x8] sm:$0xf] %vm583, %v6783
          %6816 = vst.msk [vmem:[#allocation4 + $0x1c] sm:$0xf] %vm583, %v6784
          %6817 = vst.msk [vmem:[#allocation4 + $0x30] sm:$0xf] %vm583, %v6785
          %6818 = vst.msk [vmem:[#allocation4 + $0x44] sm:$0xf] %vm583, %v6786
          %6819 = vst.msk [vmem:[#allocation4 + $0x58] sm:$0xf] %vm583, %v6787
          %6820 = vst.msk [vmem:[#allocation4 + $0x6c] sm:$0xf] %vm583, %v6788
          %6821 = vst.msk [vmem:[#allocation4 + $0x80] sm:$0xf] %vm583, %v6789
          %6822 = vst.msk [vmem:[#allocation4 + $0x94] sm:$0xf] %vm583, %v6790
          %6823 = vst.msk [vmem:[#allocation4 + $0xa8] sm:$0xf] %vm583, %v6791
          %6824 = vst.msk [vmem:[#allocation4 + $0xbc] sm:$0xf] %vm583, %v6792
          %6825 = vst.msk [vmem:[#allocation4 + $0xd0] sm:$0xf] %vm583, %v6793
          %6826 = vst.msk [vmem:[#allocation4 + $0xe4] sm:$0xf] %vm583, %v6794
          %6827 = vst.msk [vmem:[#allocation4 + $0xf8] sm:$0xf] %vm583, %v6795
          %6828 = vst.msk [vmem:[#allocation4 + $0x10c] sm:$0xf] %vm583, %v6796
          %6829 = vst.msk [vmem:[#allocation4 + $0x120] sm:$0xf] %vm583, %v6797
          %6830 = vst.msk [vmem:[#allocation4 + $0x134] sm:$0xf] %vm583, %v6798
          %6831 = vst.msk [vmem:[#allocation4 + $0x148] sm:$0xf] %vm583, %v6799
          %6832 = vst.msk [vmem:[#allocation4 + $0x15c] sm:$0xf] %vm583, %v6800
          %6833 = vst.msk [vmem:[#allocation4 + $0x170] sm:$0xf] %vm583, %v6801
          %6834 = vst.msk [vmem:[#allocation4 + $0x184] sm:$0xf] %vm583, %v6802
          %6835 = vst.msk [vmem:[#allocation4 + $0x198] sm:$0xf] %vm583, %v6803
          %6836 = vst.msk [vmem:[#allocation4 + $0x1ac] sm:$0xf] %vm583, %v6804
          %6837 = vst.msk [vmem:[#allocation4 + $0x1c0] sm:$0xf] %vm583, %v6805
          %6838 = vst.msk [vmem:[#allocation4 + $0x1d4] sm:$0xf] %vm583, %v6806
          %6839 = vst.msk [vmem:[#allocation4 + $0x1e8] sm:$0xf] %vm583, %v6807
          %6840 = vst.msk [vmem:[#allocation4 + $0x1fc] sm:$0xf] %vm583, %v6808
          %6841 = vst.msk [vmem:[#allocation4 + $0x210] sm:$0xf] %vm583, %v6809
          %6842 = vst.msk [vmem:[#allocation4 + $0x224] sm:$0xf] %vm583, %v6810
          %6843 = vst.msk [vmem:[#allocation4 + $0x238] sm:$0xf] %vm583, %v6811
          %6844 = vst.msk [vmem:[#allocation4 + $0x24c] sm:$0xf] %vm583, %v6812
          %6845 = vst.msk [vmem:[#allocation4 + $0x260] sm:$0xf] %vm583, %v6813
          %6846 = vst.msk [vmem:[#allocation4 + $0x274] sm:$0xf] %vm583, %v6814
          %v6847 = vld [vmem:[%s6078 + $0x2] sm:$0xff]
          %v6848 = vld [vmem:[%s6078 + $0xa] sm:$0xff]
          %v6849 = vld [vmem:[%s6078 + $0x1a] sm:$0xff]
          %v6850 = vld [vmem:[%s6078 + $0x22] sm:$0xff]
          %v6851 = vld [vmem:[%s6078 + $0x32] sm:$0xff]
          %v6852 = vld [vmem:[%s6078 + $0x3a] sm:$0xff]
          %v6853 = vld [vmem:[%s6078 + $0x4a] sm:$0xff]
          %v6854 = vld [vmem:[%s6078 + $0x52] sm:$0xff]
          %v6855 = vld [vmem:[%s6078 + $0x62] sm:$0xff]
          %v6856 = vld [vmem:[%s6078 + $0x6a] sm:$0xff]
          %v6857 = vld [vmem:[%s6078 + $0x7a] sm:$0xff]
          %v6858 = vld [vmem:[%s6078 + $0x82] sm:$0xff]
          %v6859 = vld [vmem:[%s6078 + $0x92] sm:$0xff]
          %v6860 = vld [vmem:[%s6078 + $0x9a] sm:$0xff]
          %v6861 = vld [vmem:[%s6078 + $0xaa] sm:$0xff]
          %v6862 = vld [vmem:[%s6078 + $0xb2] sm:$0xff]
          %v6863 = vld [vmem:[%s6078 + $0xc2] sm:$0xff]
          %v6864 = vld [vmem:[%s6078 + $0xca] sm:$0xff]
          %v6865 = vld [vmem:[%s6078 + $0xda] sm:$0xff]
          %v6866 = vld [vmem:[%s6078 + $0xe2] sm:$0xff]
          %v6867 = vld [vmem:[%s6078 + $0xf2] sm:$0xff]
          %v6868 = vld [vmem:[%s6078 + $0xfa] sm:$0xff]
          %v6869 = vld [vmem:[%s6078 + $0x10a] sm:$0xff]
          %v6870 = vld [vmem:[%s6078 + $0x112] sm:$0xff]
          %v6871 = vld [vmem:[%s6078 + $0x122] sm:$0xff]
          %v6872 = vld [vmem:[%s6078 + $0x12a] sm:$0xff]
          %v6873 = vld [vmem:[%s6078 + $0x13a] sm:$0xff]
          %v6874 = vld [vmem:[%s6078 + $0x142] sm:$0xff]
          %v6875 = vld [vmem:[%s6078 + $0x152] sm:$0xff]
          %v6876 = vld [vmem:[%s6078 + $0x15a] sm:$0xff]
          %v6877 = vld [vmem:[%s6078 + $0x16a] sm:$0xff]
          %v6878 = vld [vmem:[%s6078 + $0x172] sm:$0xff]
          %v6879 = vpack.c.bf16 %v6847, %v6847
          %v6880 = vpack.c.bf16 %v6848, %v6848
          %v6881 = vpack.c.bf16 %v6849, %v6849
          %v6882 = vpack.c.bf16 %v6850, %v6850
          %v6883 = vpack.c.bf16 %v6851, %v6851
          %v6884 = vpack.c.bf16 %v6852, %v6852
          %v6885 = vpack.c.bf16 %v6853, %v6853
          %v6886 = vpack.c.bf16 %v6854, %v6854
          %v6887 = vpack.c.bf16 %v6855, %v6855
          %v6888 = vpack.c.bf16 %v6856, %v6856
          %v6889 = vpack.c.bf16 %v6857, %v6857
          %v6890 = vpack.c.bf16 %v6858, %v6858
          %v6891 = vpack.c.bf16 %v6859, %v6859
          %v6892 = vpack.c.bf16 %v6860, %v6860
          %v6893 = vpack.c.bf16 %v6861, %v6861
          %v6894 = vpack.c.bf16 %v6862, %v6862
          %v6895 = vpack.c.bf16 %v6863, %v6863
          %v6896 = vpack.c.bf16 %v6864, %v6864
          %v6897 = vpack.c.bf16 %v6865, %v6865
          %v6898 = vpack.c.bf16 %v6866, %v6866
          %v6899 = vpack.c.bf16 %v6867, %v6867
          %v6900 = vpack.c.bf16 %v6868, %v6868
          %v6901 = vpack.c.bf16 %v6869, %v6869
          %v6902 = vpack.c.bf16 %v6870, %v6870
          %v6903 = vpack.c.bf16 %v6871, %v6871
          %v6904 = vpack.c.bf16 %v6872, %v6872
          %v6905 = vpack.c.bf16 %v6873, %v6873
          %v6906 = vpack.c.bf16 %v6874, %v6874
          %v6907 = vpack.c.bf16 %v6875, %v6875
          %v6908 = vpack.c.bf16 %v6876, %v6876
          %v6909 = vpack.c.bf16 %v6877, %v6877
          %v6910 = vpack.c.bf16 %v6878, %v6878
          %6943 = vrot.lane.b32.xlu0 %v6879, 64
          %v6944 = vpop.permute.xlu0 %6943
          %6945 = vrot.lane.b32.xlu0 %v6880, 64
          %v6946 = vpop.permute.xlu0 %6945
          %6947 = vrot.lane.b32.xlu0 %v6881, 64
          %v6948 = vpop.permute.xlu0 %6947
          %6949 = vrot.lane.b32.xlu0 %v6882, 64
          %v6950 = vpop.permute.xlu0 %6949
          %6951 = vrot.lane.b32.xlu0 %v6883, 64
          %v6952 = vpop.permute.xlu0 %6951
          %6953 = vrot.lane.b32.xlu0 %v6884, 64
          %v6954 = vpop.permute.xlu0 %6953
          %6955 = vrot.lane.b32.xlu0 %v6885, 64
          %v6956 = vpop.permute.xlu0 %6955
          %6957 = vrot.lane.b32.xlu0 %v6886, 64
          %v6958 = vpop.permute.xlu0 %6957
          %6959 = vrot.lane.b32.xlu0 %v6887, 64
          %v6960 = vpop.permute.xlu0 %6959
          %6961 = vrot.lane.b32.xlu0 %v6888, 64
          %v6962 = vpop.permute.xlu0 %6961
          %6963 = vrot.lane.b32.xlu0 %v6889, 64
          %v6964 = vpop.permute.xlu0 %6963
          %6965 = vrot.lane.b32.xlu0 %v6890, 64
          %v6966 = vpop.permute.xlu0 %6965
          %6967 = vrot.lane.b32.xlu0 %v6891, 64
          %v6968 = vpop.permute.xlu0 %6967
          %6969 = vrot.lane.b32.xlu0 %v6892, 64
          %v6970 = vpop.permute.xlu0 %6969
          %6971 = vrot.lane.b32.xlu0 %v6893, 64
          %v6972 = vpop.permute.xlu0 %6971
          %6973 = vrot.lane.b32.xlu0 %v6894, 64
          %v6974 = vpop.permute.xlu0 %6973
          %6975 = vrot.lane.b32.xlu0 %v6895, 64
          %v6976 = vpop.permute.xlu0 %6975
          %6977 = vrot.lane.b32.xlu0 %v6896, 64
          %v6978 = vpop.permute.xlu0 %6977
          %6979 = vrot.lane.b32.xlu0 %v6897, 64
          %v6980 = vpop.permute.xlu0 %6979
          %6981 = vrot.lane.b32.xlu0 %v6898, 64
          %v6982 = vpop.permute.xlu0 %6981
          %6983 = vrot.lane.b32.xlu0 %v6899, 64
          %v6984 = vpop.permute.xlu0 %6983
          %6985 = vrot.lane.b32.xlu0 %v6900, 64
          %v6986 = vpop.permute.xlu0 %6985
          %6987 = vrot.lane.b32.xlu0 %v6901, 64
          %v6988 = vpop.permute.xlu0 %6987
          %6989 = vrot.lane.b32.xlu0 %v6902, 64
          %v6990 = vpop.permute.xlu0 %6989
          %6991 = vrot.lane.b32.xlu0 %v6903, 64
          %v6992 = vpop.permute.xlu0 %6991
          %6993 = vrot.lane.b32.xlu0 %v6904, 64
          %v6994 = vpop.permute.xlu0 %6993
          %6995 = vrot.lane.b32.xlu0 %v6905, 64
          %v6996 = vpop.permute.xlu0 %6995
          %6997 = vrot.lane.b32.xlu0 %v6906, 64
          %v6998 = vpop.permute.xlu0 %6997
          %6999 = vrot.lane.b32.xlu0 %v6907, 64
          %v7000 = vpop.permute.xlu0 %6999
          %7001 = vrot.lane.b32.xlu0 %v6908, 64
          %v7002 = vpop.permute.xlu0 %7001
          %7003 = vrot.lane.b32.xlu0 %v6909, 64
          %v7004 = vpop.permute.xlu0 %7003
          %7005 = vrot.lane.b32.xlu0 %v6910, 64
          %v7006 = vpop.permute.xlu0 %7005
          %7039 = vst.msk [vmem:[#allocation4 + $0x8] sm:$0xf] %vm808, %v6944
          %7040 = vst.msk [vmem:[#allocation4 + $0x1c] sm:$0xf] %vm808, %v6946
          %7041 = vst.msk [vmem:[#allocation4 + $0x30] sm:$0xf] %vm808, %v6948
          %7042 = vst.msk [vmem:[#allocation4 + $0x44] sm:$0xf] %vm808, %v6950
          %7043 = vst.msk [vmem:[#allocation4 + $0x58] sm:$0xf] %vm808, %v6952
          %7044 = vst.msk [vmem:[#allocation4 + $0x6c] sm:$0xf] %vm808, %v6954
          %7045 = vst.msk [vmem:[#allocation4 + $0x80] sm:$0xf] %vm808, %v6956
          %7046 = vst.msk [vmem:[#allocation4 + $0x94] sm:$0xf] %vm808, %v6958
          %7047 = vst.msk [vmem:[#allocation4 + $0xa8] sm:$0xf] %vm808, %v6960
          %7048 = vst.msk [vmem:[#allocation4 + $0xbc] sm:$0xf] %vm808, %v6962
          %7049 = vst.msk [vmem:[#allocation4 + $0xd0] sm:$0xf] %vm808, %v6964
          %7050 = vst.msk [vmem:[#allocation4 + $0xe4] sm:$0xf] %vm808, %v6966
          %7051 = vst.msk [vmem:[#allocation4 + $0xf8] sm:$0xf] %vm808, %v6968
          %7052 = vst.msk [vmem:[#allocation4 + $0x10c] sm:$0xf] %vm808, %v6970
          %7053 = vst.msk [vmem:[#allocation4 + $0x120] sm:$0xf] %vm808, %v6972
          %7054 = vst.msk [vmem:[#allocation4 + $0x134] sm:$0xf] %vm808, %v6974
          %7055 = vst.msk [vmem:[#allocation4 + $0x148] sm:$0xf] %vm808, %v6976
          %7056 = vst.msk [vmem:[#allocation4 + $0x15c] sm:$0xf] %vm808, %v6978
          %7057 = vst.msk [vmem:[#allocation4 + $0x170] sm:$0xf] %vm808, %v6980
          %7058 = vst.msk [vmem:[#allocation4 + $0x184] sm:$0xf] %vm808, %v6982
          %7059 = vst.msk [vmem:[#allocation4 + $0x198] sm:$0xf] %vm808, %v6984
          %7060 = vst.msk [vmem:[#allocation4 + $0x1ac] sm:$0xf] %vm808, %v6986
          %7061 = vst.msk [vmem:[#allocation4 + $0x1c0] sm:$0xf] %vm808, %v6988
          %7062 = vst.msk [vmem:[#allocation4 + $0x1d4] sm:$0xf] %vm808, %v6990
          %7063 = vst.msk [vmem:[#allocation4 + $0x1e8] sm:$0xf] %vm808, %v6992
          %7064 = vst.msk [vmem:[#allocation4 + $0x1fc] sm:$0xf] %vm808, %v6994
          %7065 = vst.msk [vmem:[#allocation4 + $0x210] sm:$0xf] %vm808, %v6996
          %7066 = vst.msk [vmem:[#allocation4 + $0x224] sm:$0xf] %vm808, %v6998
          %7067 = vst.msk [vmem:[#allocation4 + $0x238] sm:$0xf] %vm808, %v7000
          %7068 = vst.msk [vmem:[#allocation4 + $0x24c] sm:$0xf] %vm808, %v7002
          %7069 = vst.msk [vmem:[#allocation4 + $0x260] sm:$0xf] %vm808, %v7004
          %7070 = vst.msk [vmem:[#allocation4 + $0x274] sm:$0xf] %vm808, %v7006
          %s7071 = scalar_lea.vmem [#allocation3], 48
          %v7072 = vld [vmem:[%s7071] sm:$0xff]
          %v7073 = vld [vmem:[%s7071 + $0x8] sm:$0xff]
          %v7074 = vld [vmem:[%s7071 + $0x18] sm:$0xff]
          %v7075 = vld [vmem:[%s7071 + $0x20] sm:$0xff]
          %v7076 = vld [vmem:[%s7071 + $0x30] sm:$0xff]
          %v7077 = vld [vmem:[%s7071 + $0x38] sm:$0xff]
          %v7078 = vld [vmem:[%s7071 + $0x48] sm:$0xff]
          %v7079 = vld [vmem:[%s7071 + $0x50] sm:$0xff]
          %v7080 = vld [vmem:[%s7071 + $0x60] sm:$0xff]
          %v7081 = vld [vmem:[%s7071 + $0x68] sm:$0xff]
          %v7082 = vld [vmem:[%s7071 + $0x78] sm:$0xff]
          %v7083 = vld [vmem:[%s7071 + $0x80] sm:$0xff]
          %v7084 = vld [vmem:[%s7071 + $0x90] sm:$0xff]
          %v7085 = vld [vmem:[%s7071 + $0x98] sm:$0xff]
          %v7086 = vld [vmem:[%s7071 + $0xa8] sm:$0xff]
          %v7087 = vld [vmem:[%s7071 + $0xb0] sm:$0xff]
          %v7088 = vld [vmem:[%s7071 + $0xc0] sm:$0xff]
          %v7089 = vld [vmem:[%s7071 + $0xc8] sm:$0xff]
          %v7090 = vld [vmem:[%s7071 + $0xd8] sm:$0xff]
          %v7091 = vld [vmem:[%s7071 + $0xe0] sm:$0xff]
          %v7092 = vld [vmem:[%s7071 + $0xf0] sm:$0xff]
          %v7093 = vld [vmem:[%s7071 + $0xf8] sm:$0xff]
          %v7094 = vld [vmem:[%s7071 + $0x108] sm:$0xff]
          %v7095 = vld [vmem:[%s7071 + $0x110] sm:$0xff]
          %v7096 = vld [vmem:[%s7071 + $0x120] sm:$0xff]
          %v7097 = vld [vmem:[%s7071 + $0x128] sm:$0xff]
          %v7098 = vld [vmem:[%s7071 + $0x138] sm:$0xff]
          %v7099 = vld [vmem:[%s7071 + $0x140] sm:$0xff]
          %v7100 = vld [vmem:[%s7071 + $0x150] sm:$0xff]
          %v7101 = vld [vmem:[%s7071 + $0x158] sm:$0xff]
          %v7102 = vld [vmem:[%s7071 + $0x168] sm:$0xff]
          %v7103 = vld [vmem:[%s7071 + $0x170] sm:$0xff]
          %v7104 = vpack.c.bf16 %v7072, %v7072
          %v7105 = vpack.c.bf16 %v7073, %v7073
          %v7106 = vpack.c.bf16 %v7074, %v7074
          %v7107 = vpack.c.bf16 %v7075, %v7075
          %v7108 = vpack.c.bf16 %v7076, %v7076
          %v7109 = vpack.c.bf16 %v7077, %v7077
          %v7110 = vpack.c.bf16 %v7078, %v7078
          %v7111 = vpack.c.bf16 %v7079, %v7079
          %v7112 = vpack.c.bf16 %v7080, %v7080
          %v7113 = vpack.c.bf16 %v7081, %v7081
          %v7114 = vpack.c.bf16 %v7082, %v7082
          %v7115 = vpack.c.bf16 %v7083, %v7083
          %v7116 = vpack.c.bf16 %v7084, %v7084
          %v7117 = vpack.c.bf16 %v7085, %v7085
          %v7118 = vpack.c.bf16 %v7086, %v7086
          %v7119 = vpack.c.bf16 %v7087, %v7087
          %v7120 = vpack.c.bf16 %v7088, %v7088
          %v7121 = vpack.c.bf16 %v7089, %v7089
          %v7122 = vpack.c.bf16 %v7090, %v7090
          %v7123 = vpack.c.bf16 %v7091, %v7091
          %v7124 = vpack.c.bf16 %v7092, %v7092
          %v7125 = vpack.c.bf16 %v7093, %v7093
          %v7126 = vpack.c.bf16 %v7094, %v7094
          %v7127 = vpack.c.bf16 %v7095, %v7095
          %v7128 = vpack.c.bf16 %v7096, %v7096
          %v7129 = vpack.c.bf16 %v7097, %v7097
          %v7130 = vpack.c.bf16 %v7098, %v7098
          %v7131 = vpack.c.bf16 %v7099, %v7099
          %v7132 = vpack.c.bf16 %v7100, %v7100
          %v7133 = vpack.c.bf16 %v7101, %v7101
          %v7134 = vpack.c.bf16 %v7102, %v7102
          %v7135 = vpack.c.bf16 %v7103, %v7103
          %7136 = vst.msk [vmem:[#allocation4 + $0xc] sm:$0xf] %vm583, %v7104
          %7137 = vst.msk [vmem:[#allocation4 + $0x20] sm:$0xf] %vm583, %v7105
          %7138 = vst.msk [vmem:[#allocation4 + $0x34] sm:$0xf] %vm583, %v7106
          %7139 = vst.msk [vmem:[#allocation4 + $0x48] sm:$0xf] %vm583, %v7107
          %7140 = vst.msk [vmem:[#allocation4 + $0x5c] sm:$0xf] %vm583, %v7108
          %7141 = vst.msk [vmem:[#allocation4 + $0x70] sm:$0xf] %vm583, %v7109
          %7142 = vst.msk [vmem:[#allocation4 + $0x84] sm:$0xf] %vm583, %v7110
          %7143 = vst.msk [vmem:[#allocation4 + $0x98] sm:$0xf] %vm583, %v7111
          %7144 = vst.msk [vmem:[#allocation4 + $0xac] sm:$0xf] %vm583, %v7112
          %7145 = vst.msk [vmem:[#allocation4 + $0xc0] sm:$0xf] %vm583, %v7113
          %7146 = vst.msk [vmem:[#allocation4 + $0xd4] sm:$0xf] %vm583, %v7114
          %7147 = vst.msk [vmem:[#allocation4 + $0xe8] sm:$0xf] %vm583, %v7115
          %7148 = vst.msk [vmem:[#allocation4 + $0xfc] sm:$0xf] %vm583, %v7116
          %7149 = vst.msk [vmem:[#allocation4 + $0x110] sm:$0xf] %vm583, %v7117
          %7150 = vst.msk [vmem:[#allocation4 + $0x124] sm:$0xf] %vm583, %v7118
          %7151 = vst.msk [vmem:[#allocation4 + $0x138] sm:$0xf] %vm583, %v7119
          %7152 = vst.msk [vmem:[#allocation4 + $0x14c] sm:$0xf] %vm583, %v7120
          %7153 = vst.msk [vmem:[#allocation4 + $0x160] sm:$0xf] %vm583, %v7121
          %7154 = vst.msk [vmem:[#allocation4 + $0x174] sm:$0xf] %vm583, %v7122
          %7155 = vst.msk [vmem:[#allocation4 + $0x188] sm:$0xf] %vm583, %v7123
          %7156 = vst.msk [vmem:[#allocation4 + $0x19c] sm:$0xf] %vm583, %v7124
          %7157 = vst.msk [vmem:[#allocation4 + $0x1b0] sm:$0xf] %vm583, %v7125
          %7158 = vst.msk [vmem:[#allocation4 + $0x1c4] sm:$0xf] %vm583, %v7126
          %7159 = vst.msk [vmem:[#allocation4 + $0x1d8] sm:$0xf] %vm583, %v7127
          %7160 = vst.msk [vmem:[#allocation4 + $0x1ec] sm:$0xf] %vm583, %v7128
          %7161 = vst.msk [vmem:[#allocation4 + $0x200] sm:$0xf] %vm583, %v7129
          %7162 = vst.msk [vmem:[#allocation4 + $0x214] sm:$0xf] %vm583, %v7130
          %7163 = vst.msk [vmem:[#allocation4 + $0x228] sm:$0xf] %vm583, %v7131
          %7164 = vst.msk [vmem:[#allocation4 + $0x23c] sm:$0xf] %vm583, %v7132
          %7165 = vst.msk [vmem:[#allocation4 + $0x250] sm:$0xf] %vm583, %v7133
          %7166 = vst.msk [vmem:[#allocation4 + $0x264] sm:$0xf] %vm583, %v7134
          %7167 = vst.msk [vmem:[#allocation4 + $0x278] sm:$0xf] %vm583, %v7135
          %v7168 = vld [vmem:[%s7071 + $0x1] sm:$0xff]
          %v7169 = vld [vmem:[%s7071 + $0x9] sm:$0xff]
          %v7170 = vld [vmem:[%s7071 + $0x19] sm:$0xff]
          %v7171 = vld [vmem:[%s7071 + $0x21] sm:$0xff]
          %v7172 = vld [vmem:[%s7071 + $0x31] sm:$0xff]
          %v7173 = vld [vmem:[%s7071 + $0x39] sm:$0xff]
          %v7174 = vld [vmem:[%s7071 + $0x49] sm:$0xff]
          %v7175 = vld [vmem:[%s7071 + $0x51] sm:$0xff]
          %v7176 = vld [vmem:[%s7071 + $0x61] sm:$0xff]
          %v7177 = vld [vmem:[%s7071 + $0x69] sm:$0xff]
          %v7178 = vld [vmem:[%s7071 + $0x79] sm:$0xff]
          %v7179 = vld [vmem:[%s7071 + $0x81] sm:$0xff]
          %v7180 = vld [vmem:[%s7071 + $0x91] sm:$0xff]
          %v7181 = vld [vmem:[%s7071 + $0x99] sm:$0xff]
          %v7182 = vld [vmem:[%s7071 + $0xa9] sm:$0xff]
          %v7183 = vld [vmem:[%s7071 + $0xb1] sm:$0xff]
          %v7184 = vld [vmem:[%s7071 + $0xc1] sm:$0xff]
          %v7185 = vld [vmem:[%s7071 + $0xc9] sm:$0xff]
          %v7186 = vld [vmem:[%s7071 + $0xd9] sm:$0xff]
          %v7187 = vld [vmem:[%s7071 + $0xe1] sm:$0xff]
          %v7188 = vld [vmem:[%s7071 + $0xf1] sm:$0xff]
          %v7189 = vld [vmem:[%s7071 + $0xf9] sm:$0xff]
          %v7190 = vld [vmem:[%s7071 + $0x109] sm:$0xff]
          %v7191 = vld [vmem:[%s7071 + $0x111] sm:$0xff]
          %v7192 = vld [vmem:[%s7071 + $0x121] sm:$0xff]
          %v7193 = vld [vmem:[%s7071 + $0x129] sm:$0xff]
          %v7194 = vld [vmem:[%s7071 + $0x139] sm:$0xff]
          %v7195 = vld [vmem:[%s7071 + $0x141] sm:$0xff]
          %v7196 = vld [vmem:[%s7071 + $0x151] sm:$0xff]
          %v7197 = vld [vmem:[%s7071 + $0x159] sm:$0xff]
          %v7198 = vld [vmem:[%s7071 + $0x169] sm:$0xff]
          %v7199 = vld [vmem:[%s7071 + $0x171] sm:$0xff]
          %v7200 = vpack.c.bf16 %v7168, %v7168
          %v7201 = vpack.c.bf16 %v7169, %v7169
          %v7202 = vpack.c.bf16 %v7170, %v7170
          %v7203 = vpack.c.bf16 %v7171, %v7171
          %v7204 = vpack.c.bf16 %v7172, %v7172
          %v7205 = vpack.c.bf16 %v7173, %v7173
          %v7206 = vpack.c.bf16 %v7174, %v7174
          %v7207 = vpack.c.bf16 %v7175, %v7175
          %v7208 = vpack.c.bf16 %v7176, %v7176
          %v7209 = vpack.c.bf16 %v7177, %v7177
          %v7210 = vpack.c.bf16 %v7178, %v7178
          %v7211 = vpack.c.bf16 %v7179, %v7179
          %v7212 = vpack.c.bf16 %v7180, %v7180
          %v7213 = vpack.c.bf16 %v7181, %v7181
          %v7214 = vpack.c.bf16 %v7182, %v7182
          %v7215 = vpack.c.bf16 %v7183, %v7183
          %v7216 = vpack.c.bf16 %v7184, %v7184
          %v7217 = vpack.c.bf16 %v7185, %v7185
          %v7218 = vpack.c.bf16 %v7186, %v7186
          %v7219 = vpack.c.bf16 %v7187, %v7187
          %v7220 = vpack.c.bf16 %v7188, %v7188
          %v7221 = vpack.c.bf16 %v7189, %v7189
          %v7222 = vpack.c.bf16 %v7190, %v7190
          %v7223 = vpack.c.bf16 %v7191, %v7191
          %v7224 = vpack.c.bf16 %v7192, %v7192
          %v7225 = vpack.c.bf16 %v7193, %v7193
          %v7226 = vpack.c.bf16 %v7194, %v7194
          %v7227 = vpack.c.bf16 %v7195, %v7195
          %v7228 = vpack.c.bf16 %v7196, %v7196
          %v7229 = vpack.c.bf16 %v7197, %v7197
          %v7230 = vpack.c.bf16 %v7198, %v7198
          %v7231 = vpack.c.bf16 %v7199, %v7199
          %7264 = vrot.lane.b32.xlu0 %v7200, 64
          %v7265 = vpop.permute.xlu0 %7264
          %7266 = vrot.lane.b32.xlu0 %v7201, 64
          %v7267 = vpop.permute.xlu0 %7266
          %7268 = vrot.lane.b32.xlu0 %v7202, 64
          %v7269 = vpop.permute.xlu0 %7268
          %7270 = vrot.lane.b32.xlu0 %v7203, 64
          %v7271 = vpop.permute.xlu0 %7270
          %7272 = vrot.lane.b32.xlu0 %v7204, 64
          %v7273 = vpop.permute.xlu0 %7272
          %7274 = vrot.lane.b32.xlu0 %v7205, 64
          %v7275 = vpop.permute.xlu0 %7274
          %7276 = vrot.lane.b32.xlu0 %v7206, 64
          %v7277 = vpop.permute.xlu0 %7276
          %7278 = vrot.lane.b32.xlu0 %v7207, 64
          %v7279 = vpop.permute.xlu0 %7278
          %7280 = vrot.lane.b32.xlu0 %v7208, 64
          %v7281 = vpop.permute.xlu0 %7280
          %7282 = vrot.lane.b32.xlu0 %v7209, 64
          %v7283 = vpop.permute.xlu0 %7282
          %7284 = vrot.lane.b32.xlu0 %v7210, 64
          %v7285 = vpop.permute.xlu0 %7284
          %7286 = vrot.lane.b32.xlu0 %v7211, 64
          %v7287 = vpop.permute.xlu0 %7286
          %7288 = vrot.lane.b32.xlu0 %v7212, 64
          %v7289 = vpop.permute.xlu0 %7288
          %7290 = vrot.lane.b32.xlu0 %v7213, 64
          %v7291 = vpop.permute.xlu0 %7290
          %7292 = vrot.lane.b32.xlu0 %v7214, 64
          %v7293 = vpop.permute.xlu0 %7292
          %7294 = vrot.lane.b32.xlu0 %v7215, 64
          %v7295 = vpop.permute.xlu0 %7294
          %7296 = vrot.lane.b32.xlu0 %v7216, 64
          %v7297 = vpop.permute.xlu0 %7296
          %7298 = vrot.lane.b32.xlu0 %v7217, 64
          %v7299 = vpop.permute.xlu0 %7298
          %7300 = vrot.lane.b32.xlu0 %v7218, 64
          %v7301 = vpop.permute.xlu0 %7300
          %7302 = vrot.lane.b32.xlu0 %v7219, 64
          %v7303 = vpop.permute.xlu0 %7302
          %7304 = vrot.lane.b32.xlu0 %v7220, 64
          %v7305 = vpop.permute.xlu0 %7304
          %7306 = vrot.lane.b32.xlu0 %v7221, 64
          %v7307 = vpop.permute.xlu0 %7306
          %7308 = vrot.lane.b32.xlu0 %v7222, 64
          %v7309 = vpop.permute.xlu0 %7308
          %7310 = vrot.lane.b32.xlu0 %v7223, 64
          %v7311 = vpop.permute.xlu0 %7310
          %7312 = vrot.lane.b32.xlu0 %v7224, 64
          %v7313 = vpop.permute.xlu0 %7312
          %7314 = vrot.lane.b32.xlu0 %v7225, 64
          %v7315 = vpop.permute.xlu0 %7314
          %7316 = vrot.lane.b32.xlu0 %v7226, 64
          %v7317 = vpop.permute.xlu0 %7316
          %7318 = vrot.lane.b32.xlu0 %v7227, 64
          %v7319 = vpop.permute.xlu0 %7318
          %7320 = vrot.lane.b32.xlu0 %v7228, 64
          %v7321 = vpop.permute.xlu0 %7320
          %7322 = vrot.lane.b32.xlu0 %v7229, 64
          %v7323 = vpop.permute.xlu0 %7322
          %7324 = vrot.lane.b32.xlu0 %v7230, 64
          %v7325 = vpop.permute.xlu0 %7324
          %7326 = vrot.lane.b32.xlu0 %v7231, 64
          %v7327 = vpop.permute.xlu0 %7326
          %7360 = vst.msk [vmem:[#allocation4 + $0xc] sm:$0xf] %vm808, %v7265
          %7361 = vst.msk [vmem:[#allocation4 + $0x20] sm:$0xf] %vm808, %v7267
          %7362 = vst.msk [vmem:[#allocation4 + $0x34] sm:$0xf] %vm808, %v7269
          %7363 = vst.msk [vmem:[#allocation4 + $0x48] sm:$0xf] %vm808, %v7271
          %7364 = vst.msk [vmem:[#allocation4 + $0x5c] sm:$0xf] %vm808, %v7273
          %7365 = vst.msk [vmem:[#allocation4 + $0x70] sm:$0xf] %vm808, %v7275
          %7366 = vst.msk [vmem:[#allocation4 + $0x84] sm:$0xf] %vm808, %v7277
          %7367 = vst.msk [vmem:[#allocation4 + $0x98] sm:$0xf] %vm808, %v7279
          %7368 = vst.msk [vmem:[#allocation4 + $0xac] sm:$0xf] %vm808, %v7281
          %7369 = vst.msk [vmem:[#allocation4 + $0xc0] sm:$0xf] %vm808, %v7283
          %7370 = vst.msk [vmem:[#allocation4 + $0xd4] sm:$0xf] %vm808, %v7285
          %7371 = vst.msk [vmem:[#allocation4 + $0xe8] sm:$0xf] %vm808, %v7287
          %7372 = vst.msk [vmem:[#allocation4 + $0xfc] sm:$0xf] %vm808, %v7289
          %7373 = vst.msk [vmem:[#allocation4 + $0x110] sm:$0xf] %vm808, %v7291
          %7374 = vst.msk [vmem:[#allocation4 + $0x124] sm:$0xf] %vm808, %v7293
          %7375 = vst.msk [vmem:[#allocation4 + $0x138] sm:$0xf] %vm808, %v7295
          %7376 = vst.msk [vmem:[#allocation4 + $0x14c] sm:$0xf] %vm808, %v7297
          %7377 = vst.msk [vmem:[#allocation4 + $0x160] sm:$0xf] %vm808, %v7299
          %7378 = vst.msk [vmem:[#allocation4 + $0x174] sm:$0xf] %vm808, %v7301
          %7379 = vst.msk [vmem:[#allocation4 + $0x188] sm:$0xf] %vm808, %v7303
          %7380 = vst.msk [vmem:[#allocation4 + $0x19c] sm:$0xf] %vm808, %v7305
          %7381 = vst.msk [vmem:[#allocation4 + $0x1b0] sm:$0xf] %vm808, %v7307
          %7382 = vst.msk [vmem:[#allocation4 + $0x1c4] sm:$0xf] %vm808, %v7309
          %7383 = vst.msk [vmem:[#allocation4 + $0x1d8] sm:$0xf] %vm808, %v7311
          %7384 = vst.msk [vmem:[#allocation4 + $0x1ec] sm:$0xf] %vm808, %v7313
          %7385 = vst.msk [vmem:[#allocation4 + $0x200] sm:$0xf] %vm808, %v7315
          %7386 = vst.msk [vmem:[#allocation4 + $0x214] sm:$0xf] %vm808, %v7317
          %7387 = vst.msk [vmem:[#allocation4 + $0x228] sm:$0xf] %vm808, %v7319
          %7388 = vst.msk [vmem:[#allocation4 + $0x23c] sm:$0xf] %vm808, %v7321
          %7389 = vst.msk [vmem:[#allocation4 + $0x250] sm:$0xf] %vm808, %v7323
          %7390 = vst.msk [vmem:[#allocation4 + $0x264] sm:$0xf] %vm808, %v7325
          %7391 = vst.msk [vmem:[#allocation4 + $0x278] sm:$0xf] %vm808, %v7327
          %v7392 = vld [vmem:[%s7071 + $0x2] sm:$0xff]
          %v7393 = vld [vmem:[%s7071 + $0xa] sm:$0xff]
          %v7394 = vld [vmem:[%s7071 + $0x1a] sm:$0xff]
          %v7395 = vld [vmem:[%s7071 + $0x22] sm:$0xff]
          %v7396 = vld [vmem:[%s7071 + $0x32] sm:$0xff]
          %v7397 = vld [vmem:[%s7071 + $0x3a] sm:$0xff]
          %v7398 = vld [vmem:[%s7071 + $0x4a] sm:$0xff]
          %v7399 = vld [vmem:[%s7071 + $0x52] sm:$0xff]
          %v7400 = vld [vmem:[%s7071 + $0x62] sm:$0xff]
          %v7401 = vld [vmem:[%s7071 + $0x6a] sm:$0xff]
          %v7402 = vld [vmem:[%s7071 + $0x7a] sm:$0xff]
          %v7403 = vld [vmem:[%s7071 + $0x82] sm:$0xff]
          %v7404 = vld [vmem:[%s7071 + $0x92] sm:$0xff]
          %v7405 = vld [vmem:[%s7071 + $0x9a] sm:$0xff]
          %v7406 = vld [vmem:[%s7071 + $0xaa] sm:$0xff]
          %v7407 = vld [vmem:[%s7071 + $0xb2] sm:$0xff]
          %v7408 = vld [vmem:[%s7071 + $0xc2] sm:$0xff]
          %v7409 = vld [vmem:[%s7071 + $0xca] sm:$0xff]
          %v7410 = vld [vmem:[%s7071 + $0xda] sm:$0xff]
          %v7411 = vld [vmem:[%s7071 + $0xe2] sm:$0xff]
          %v7412 = vld [vmem:[%s7071 + $0xf2] sm:$0xff]
          %v7413 = vld [vmem:[%s7071 + $0xfa] sm:$0xff]
          %v7414 = vld [vmem:[%s7071 + $0x10a] sm:$0xff]
          %v7415 = vld [vmem:[%s7071 + $0x112] sm:$0xff]
          %v7416 = vld [vmem:[%s7071 + $0x122] sm:$0xff]
          %v7417 = vld [vmem:[%s7071 + $0x12a] sm:$0xff]
          %v7418 = vld [vmem:[%s7071 + $0x13a] sm:$0xff]
          %v7419 = vld [vmem:[%s7071 + $0x142] sm:$0xff]
          %v7420 = vld [vmem:[%s7071 + $0x152] sm:$0xff]
          %v7421 = vld [vmem:[%s7071 + $0x15a] sm:$0xff]
          %v7422 = vld [vmem:[%s7071 + $0x16a] sm:$0xff]
          %v7423 = vld [vmem:[%s7071 + $0x172] sm:$0xff]
          %v7424 = vpack.c.bf16 %v7392, %v7392
          %v7425 = vpack.c.bf16 %v7393, %v7393
          %v7426 = vpack.c.bf16 %v7394, %v7394
          %v7427 = vpack.c.bf16 %v7395, %v7395
          %v7428 = vpack.c.bf16 %v7396, %v7396
          %v7429 = vpack.c.bf16 %v7397, %v7397
          %v7430 = vpack.c.bf16 %v7398, %v7398
          %v7431 = vpack.c.bf16 %v7399, %v7399
          %v7432 = vpack.c.bf16 %v7400, %v7400
          %v7433 = vpack.c.bf16 %v7401, %v7401
          %v7434 = vpack.c.bf16 %v7402, %v7402
          %v7435 = vpack.c.bf16 %v7403, %v7403
          %v7436 = vpack.c.bf16 %v7404, %v7404
          %v7437 = vpack.c.bf16 %v7405, %v7405
          %v7438 = vpack.c.bf16 %v7406, %v7406
          %v7439 = vpack.c.bf16 %v7407, %v7407
          %v7440 = vpack.c.bf16 %v7408, %v7408
          %v7441 = vpack.c.bf16 %v7409, %v7409
          %v7442 = vpack.c.bf16 %v7410, %v7410
          %v7443 = vpack.c.bf16 %v7411, %v7411
          %v7444 = vpack.c.bf16 %v7412, %v7412
          %v7445 = vpack.c.bf16 %v7413, %v7413
          %v7446 = vpack.c.bf16 %v7414, %v7414
          %v7447 = vpack.c.bf16 %v7415, %v7415
          %v7448 = vpack.c.bf16 %v7416, %v7416
          %v7449 = vpack.c.bf16 %v7417, %v7417
          %v7450 = vpack.c.bf16 %v7418, %v7418
          %v7451 = vpack.c.bf16 %v7419, %v7419
          %v7452 = vpack.c.bf16 %v7420, %v7420
          %v7453 = vpack.c.bf16 %v7421, %v7421
          %v7454 = vpack.c.bf16 %v7422, %v7422
          %v7455 = vpack.c.bf16 %v7423, %v7423
          %7456 = vst.msk [vmem:[#allocation4 + $0x10] sm:$0xf] %vm583, %v7424
          %7457 = vst.msk [vmem:[#allocation4 + $0x24] sm:$0xf] %vm583, %v7425
          %7458 = vst.msk [vmem:[#allocation4 + $0x38] sm:$0xf] %vm583, %v7426
          %7459 = vst.msk [vmem:[#allocation4 + $0x4c] sm:$0xf] %vm583, %v7427
          %7460 = vst.msk [vmem:[#allocation4 + $0x60] sm:$0xf] %vm583, %v7428
          %7461 = vst.msk [vmem:[#allocation4 + $0x74] sm:$0xf] %vm583, %v7429
          %7462 = vst.msk [vmem:[#allocation4 + $0x88] sm:$0xf] %vm583, %v7430
          %7463 = vst.msk [vmem:[#allocation4 + $0x9c] sm:$0xf] %vm583, %v7431
          %7464 = vst.msk [vmem:[#allocation4 + $0xb0] sm:$0xf] %vm583, %v7432
          %7465 = vst.msk [vmem:[#allocation4 + $0xc4] sm:$0xf] %vm583, %v7433
          %7466 = vst.msk [vmem:[#allocation4 + $0xd8] sm:$0xf] %vm583, %v7434
          %7467 = vst.msk [vmem:[#allocation4 + $0xec] sm:$0xf] %vm583, %v7435
          %7468 = vst.msk [vmem:[#allocation4 + $0x100] sm:$0xf] %vm583, %v7436
          %7469 = vst.msk [vmem:[#allocation4 + $0x114] sm:$0xf] %vm583, %v7437
          %7470 = vst.msk [vmem:[#allocation4 + $0x128] sm:$0xf] %vm583, %v7438
          %7471 = vst.msk [vmem:[#allocation4 + $0x13c] sm:$0xf] %vm583, %v7439
          %7472 = vst.msk [vmem:[#allocation4 + $0x150] sm:$0xf] %vm583, %v7440
          %7473 = vst.msk [vmem:[#allocation4 + $0x164] sm:$0xf] %vm583, %v7441
          %7474 = vst.msk [vmem:[#allocation4 + $0x178] sm:$0xf] %vm583, %v7442
          %7475 = vst.msk [vmem:[#allocation4 + $0x18c] sm:$0xf] %vm583, %v7443
          %7476 = vst.msk [vmem:[#allocation4 + $0x1a0] sm:$0xf] %vm583, %v7444
          %7477 = vst.msk [vmem:[#allocation4 + $0x1b4] sm:$0xf] %vm583, %v7445
          %7478 = vst.msk [vmem:[#allocation4 + $0x1c8] sm:$0xf] %vm583, %v7446
          %7479 = vst.msk [vmem:[#allocation4 + $0x1dc] sm:$0xf] %vm583, %v7447
          %7480 = vst.msk [vmem:[#allocation4 + $0x1f0] sm:$0xf] %vm583, %v7448
          %7481 = vst.msk [vmem:[#allocation4 + $0x204] sm:$0xf] %vm583, %v7449
          %7482 = vst.msk [vmem:[#allocation4 + $0x218] sm:$0xf] %vm583, %v7450
          %7483 = vst.msk [vmem:[#allocation4 + $0x22c] sm:$0xf] %vm583, %v7451
          %7484 = vst.msk [vmem:[#allocation4 + $0x240] sm:$0xf] %vm583, %v7452
          %7485 = vst.msk [vmem:[#allocation4 + $0x254] sm:$0xf] %vm583, %v7453
          %7486 = vst.msk [vmem:[#allocation4 + $0x268] sm:$0xf] %vm583, %v7454
          %7487 = vst.msk [vmem:[#allocation4 + $0x27c] sm:$0xf] %vm583, %v7455
          %v7488 = vld [vmem:[#allocation4] sm:$0xff]
          %v7489 = vld [vmem:[#allocation4 + $0x8] sm:$0xff]
          %v7490 = vld [vmem:[#allocation4 + $0x10] sm:$0xf]
          %v7491 = vld [vmem:[#allocation4 + $0x14] sm:$0xff]
          %v7492 = vld [vmem:[#allocation4 + $0x1c] sm:$0xff]
          %v7493 = vld [vmem:[#allocation4 + $0x24] sm:$0xf]
          %v7494 = vld [vmem:[#allocation4 + $0x28] sm:$0xff]
          %v7495 = vld [vmem:[#allocation4 + $0x30] sm:$0xff]
          %v7496 = vld [vmem:[#allocation4 + $0x38] sm:$0xf]
          %v7497 = vld [vmem:[#allocation4 + $0x3c] sm:$0xff]
          %v7498 = vld [vmem:[#allocation4 + $0x44] sm:$0xff]
          %v7499 = vld [vmem:[#allocation4 + $0x4c] sm:$0xf]
          %v7500 = vld [vmem:[#allocation4 + $0x50] sm:$0xff]
          %v7501 = vld [vmem:[#allocation4 + $0x58] sm:$0xff]
          %v7502 = vld [vmem:[#allocation4 + $0x60] sm:$0xf]
          %v7503 = vld [vmem:[#allocation4 + $0x64] sm:$0xff]
          %v7504 = vld [vmem:[#allocation4 + $0x6c] sm:$0xff]
          %v7505 = vld [vmem:[#allocation4 + $0x74] sm:$0xf]
          %v7506 = vld [vmem:[#allocation4 + $0x78] sm:$0xff]
          %v7507 = vld [vmem:[#allocation4 + $0x80] sm:$0xff]
          %v7508 = vld [vmem:[#allocation4 + $0x88] sm:$0xf]
          %v7509 = vld [vmem:[#allocation4 + $0x8c] sm:$0xff]
          %v7510 = vld [vmem:[#allocation4 + $0x94] sm:$0xff]
          %v7511 = vld [vmem:[#allocation4 + $0x9c] sm:$0xf]
          %v7512 = vld [vmem:[#allocation4 + $0xa0] sm:$0xff]
          %v7513 = vld [vmem:[#allocation4 + $0xa8] sm:$0xff]
          %v7514 = vld [vmem:[#allocation4 + $0xb0] sm:$0xf]
          %v7515 = vld [vmem:[#allocation4 + $0xb4] sm:$0xff]
          %v7516 = vld [vmem:[#allocation4 + $0xbc] sm:$0xff]
          %v7517 = vld [vmem:[#allocation4 + $0xc4] sm:$0xf]
          %v7518 = vld [vmem:[#allocation4 + $0xc8] sm:$0xff]
          %v7519 = vld [vmem:[#allocation4 + $0xd0] sm:$0xff]
          %v7520 = vld [vmem:[#allocation4 + $0xd8] sm:$0xf]
          %v7521 = vld [vmem:[#allocation4 + $0xdc] sm:$0xff]
          %v7522 = vld [vmem:[#allocation4 + $0xe4] sm:$0xff]
          %v7523 = vld [vmem:[#allocation4 + $0xec] sm:$0xf]
          %v7524 = vld [vmem:[#allocation4 + $0xf0] sm:$0xff]
          %v7525 = vld [vmem:[#allocation4 + $0xf8] sm:$0xff]
          %v7526 = vld [vmem:[#allocation4 + $0x100] sm:$0xf]
          %v7527 = vld [vmem:[#allocation4 + $0x104] sm:$0xff]
          %v7528 = vld [vmem:[#allocation4 + $0x10c] sm:$0xff]
          %v7529 = vld [vmem:[#allocation4 + $0x114] sm:$0xf]
          %v7530 = vld [vmem:[#allocation4 + $0x118] sm:$0xff]
          %v7531 = vld [vmem:[#allocation4 + $0x120] sm:$0xff]
          %v7532 = vld [vmem:[#allocation4 + $0x128] sm:$0xf]
          %v7533 = vld [vmem:[#allocation4 + $0x12c] sm:$0xff]
          %v7534 = vld [vmem:[#allocation4 + $0x134] sm:$0xff]
          %v7535 = vld [vmem:[#allocation4 + $0x13c] sm:$0xf]
          %v7536 = vld [vmem:[#allocation4 + $0x140] sm:$0xff]
          %v7537 = vld [vmem:[#allocation4 + $0x148] sm:$0xff]
          %v7538 = vld [vmem:[#allocation4 + $0x150] sm:$0xf]
          %v7539 = vld [vmem:[#allocation4 + $0x154] sm:$0xff]
          %v7540 = vld [vmem:[#allocation4 + $0x15c] sm:$0xff]
          %v7541 = vld [vmem:[#allocation4 + $0x164] sm:$0xf]
          %v7542 = vld [vmem:[#allocation4 + $0x168] sm:$0xff]
          %v7543 = vld [vmem:[#allocation4 + $0x170] sm:$0xff]
          %v7544 = vld [vmem:[#allocation4 + $0x178] sm:$0xf]
          %v7545 = vld [vmem:[#allocation4 + $0x17c] sm:$0xff]
          %v7546 = vld [vmem:[#allocation4 + $0x184] sm:$0xff]
          %v7547 = vld [vmem:[#allocation4 + $0x18c] sm:$0xf]
          %v7548 = vld [vmem:[#allocation4 + $0x190] sm:$0xff]
          %v7549 = vld [vmem:[#allocation4 + $0x198] sm:$0xff]
          %v7550 = vld [vmem:[#allocation4 + $0x1a0] sm:$0xf]
          %v7551 = vld [vmem:[#allocation4 + $0x1a4] sm:$0xff]
          %v7552 = vld [vmem:[#allocation4 + $0x1ac] sm:$0xff]
          %v7553 = vld [vmem:[#allocation4 + $0x1b4] sm:$0xf]
          %v7554 = vld [vmem:[#allocation4 + $0x1b8] sm:$0xff]
          %v7555 = vld [vmem:[#allocation4 + $0x1c0] sm:$0xff]
          %v7556 = vld [vmem:[#allocation4 + $0x1c8] sm:$0xf]
          %v7557 = vld [vmem:[#allocation4 + $0x1cc] sm:$0xff]
          %v7558 = vld [vmem:[#allocation4 + $0x1d4] sm:$0xff]
          %v7559 = vld [vmem:[#allocation4 + $0x1dc] sm:$0xf]
          %v7560 = vld [vmem:[#allocation4 + $0x1e0] sm:$0xff]
          %v7561 = vld [vmem:[#allocation4 + $0x1e8] sm:$0xff]
          %v7562 = vld [vmem:[#allocation4 + $0x1f0] sm:$0xf]
          %v7563 = vld [vmem:[#allocation4 + $0x1f4] sm:$0xff]
          %v7564 = vld [vmem:[#allocation4 + $0x1fc] sm:$0xff]
          %v7565 = vld [vmem:[#allocation4 + $0x204] sm:$0xf]
          %v7566 = vld [vmem:[#allocation4 + $0x208] sm:$0xff]
          %v7567 = vld [vmem:[#allocation4 + $0x210] sm:$0xff]
          %v7568 = vld [vmem:[#allocation4 + $0x218] sm:$0xf]
          %v7569 = vld [vmem:[#allocation4 + $0x21c] sm:$0xff]
          %v7570 = vld [vmem:[#allocation4 + $0x224] sm:$0xff]
          %v7571 = vld [vmem:[#allocation4 + $0x22c] sm:$0xf]
          %v7572 = vld [vmem:[#allocation4 + $0x230] sm:$0xff]
          %v7573 = vld [vmem:[#allocation4 + $0x238] sm:$0xff]
          %v7574 = vld [vmem:[#allocation4 + $0x240] sm:$0xf]
          %v7575 = vld [vmem:[#allocation4 + $0x244] sm:$0xff]
          %v7576 = vld [vmem:[#allocation4 + $0x24c] sm:$0xff]
          %v7577 = vld [vmem:[#allocation4 + $0x254] sm:$0xf]
          %v7578 = vld [vmem:[#allocation4 + $0x258] sm:$0xff]
          %v7579 = vld [vmem:[#allocation4 + $0x260] sm:$0xff]
          %v7580 = vld [vmem:[#allocation4 + $0x268] sm:$0xf]
          %v7581 = vld [vmem:[#allocation4 + $0x26c] sm:$0xff]
          %v7582 = vld [vmem:[#allocation4 + $0x274] sm:$0xff]
          %v7583 = vld [vmem:[#allocation4 + $0x27c] sm:$0xf]
          %v7585 = vperm.slane %v3397, 0
          %v7683 = vunpack.c.l.b16 %v7488
          %v7684 = vunpack.c.h.b16 %v7488
          %v7685 = vunpack.c.l.b16 %v7489
          %v7686 = vunpack.c.h.b16 %v7489
          %v7687 = vunpack.c.l.b16 %v7490
          %v7688 = vunpack.c.l.b16 %v7491
          %v7689 = vunpack.c.h.b16 %v7491
          %v7690 = vunpack.c.l.b16 %v7492
          %v7691 = vunpack.c.h.b16 %v7492
          %v7692 = vunpack.c.l.b16 %v7493
          %v7693 = vunpack.c.l.b16 %v7494
          %v7694 = vunpack.c.h.b16 %v7494
          %v7695 = vunpack.c.l.b16 %v7495
          %v7696 = vunpack.c.h.b16 %v7495
          %v7697 = vunpack.c.l.b16 %v7496
          %v7698 = vunpack.c.l.b16 %v7497
          %v7699 = vunpack.c.h.b16 %v7497
          %v7700 = vunpack.c.l.b16 %v7498
          %v7701 = vunpack.c.h.b16 %v7498
          %v7702 = vunpack.c.l.b16 %v7499
          %v7703 = vunpack.c.l.b16 %v7500
          %v7704 = vunpack.c.h.b16 %v7500
          %v7705 = vunpack.c.l.b16 %v7501
          %v7706 = vunpack.c.h.b16 %v7501
          %v7707 = vunpack.c.l.b16 %v7502
          %v7708 = vunpack.c.l.b16 %v7503
          %v7709 = vunpack.c.h.b16 %v7503
          %v7710 = vunpack.c.l.b16 %v7504
          %v7711 = vunpack.c.h.b16 %v7504
          %v7712 = vunpack.c.l.b16 %v7505
          %v7713 = vunpack.c.l.b16 %v7506
          %v7714 = vunpack.c.h.b16 %v7506
          %v7715 = vunpack.c.l.b16 %v7507
          %v7716 = vunpack.c.h.b16 %v7507
          %v7717 = vunpack.c.l.b16 %v7508
          %v7718 = vunpack.c.l.b16 %v7509
          %v7719 = vunpack.c.h.b16 %v7509
          %v7720 = vunpack.c.l.b16 %v7510
          %v7721 = vunpack.c.h.b16 %v7510
          %v7722 = vunpack.c.l.b16 %v7511
          %v7723 = vunpack.c.l.b16 %v7512
          %v7724 = vunpack.c.h.b16 %v7512
          %v7725 = vunpack.c.l.b16 %v7513
          %v7726 = vunpack.c.h.b16 %v7513
          %v7727 = vunpack.c.l.b16 %v7514
          %v7728 = vunpack.c.l.b16 %v7515
          %v7729 = vunpack.c.h.b16 %v7515
          %v7730 = vunpack.c.l.b16 %v7516
          %v7731 = vunpack.c.h.b16 %v7516
          %v7732 = vunpack.c.l.b16 %v7517
          %v7733 = vunpack.c.l.b16 %v7518
          %v7734 = vunpack.c.h.b16 %v7518
          %v7735 = vunpack.c.l.b16 %v7519
          %v7736 = vunpack.c.h.b16 %v7519
          %v7737 = vunpack.c.l.b16 %v7520
          %v7738 = vunpack.c.l.b16 %v7521
          %v7739 = vunpack.c.h.b16 %v7521
          %v7740 = vunpack.c.l.b16 %v7522
          %v7741 = vunpack.c.h.b16 %v7522
          %v7742 = vunpack.c.l.b16 %v7523
          %v7743 = vunpack.c.l.b16 %v7524
          %v7744 = vunpack.c.h.b16 %v7524
          %v7745 = vunpack.c.l.b16 %v7525
          %v7746 = vunpack.c.h.b16 %v7525
          %v7747 = vunpack.c.l.b16 %v7526
          %v7748 = vunpack.c.l.b16 %v7527
          %v7749 = vunpack.c.h.b16 %v7527
          %v7750 = vunpack.c.l.b16 %v7528
          %v7751 = vunpack.c.h.b16 %v7528
          %v7752 = vunpack.c.l.b16 %v7529
          %v7753 = vunpack.c.l.b16 %v7530
          %v7754 = vunpack.c.h.b16 %v7530
          %v7755 = vunpack.c.l.b16 %v7531
          %v7756 = vunpack.c.h.b16 %v7531
          %v7757 = vunpack.c.l.b16 %v7532
          %v7758 = vunpack.c.l.b16 %v7533
          %v7759 = vunpack.c.h.b16 %v7533
          %v7760 = vunpack.c.l.b16 %v7534
          %v7761 = vunpack.c.h.b16 %v7534
          %v7762 = vunpack.c.l.b16 %v7535
          %v7763 = vunpack.c.l.b16 %v7536
          %v7764 = vunpack.c.h.b16 %v7536
          %v7765 = vunpack.c.l.b16 %v7537
          %v7766 = vunpack.c.h.b16 %v7537
          %v7767 = vunpack.c.l.b16 %v7538
          %v7768 = vunpack.c.l.b16 %v7539
          %v7769 = vunpack.c.h.b16 %v7539
          %v7770 = vunpack.c.l.b16 %v7540
          %v7771 = vunpack.c.h.b16 %v7540
          %v7772 = vunpack.c.l.b16 %v7541
          %v7773 = vunpack.c.l.b16 %v7542
          %v7774 = vunpack.c.h.b16 %v7542
          %v7775 = vunpack.c.l.b16 %v7543
          %v7776 = vunpack.c.h.b16 %v7543
          %v7777 = vunpack.c.l.b16 %v7544
          %v7778 = vunpack.c.l.b16 %v7545
          %v7779 = vunpack.c.h.b16 %v7545
          %v7780 = vunpack.c.l.b16 %v7546
          %v7781 = vunpack.c.h.b16 %v7546
          %v7782 = vunpack.c.l.b16 %v7547
          %v7783 = vunpack.c.l.b16 %v7548
          %v7784 = vunpack.c.h.b16 %v7548
          %v7785 = vunpack.c.l.b16 %v7549
          %v7786 = vunpack.c.h.b16 %v7549
          %v7787 = vunpack.c.l.b16 %v7550
          %v7788 = vunpack.c.l.b16 %v7551
          %v7789 = vunpack.c.h.b16 %v7551
          %v7790 = vunpack.c.l.b16 %v7552
          %v7791 = vunpack.c.h.b16 %v7552
          %v7792 = vunpack.c.l.b16 %v7553
          %v7793 = vunpack.c.l.b16 %v7554
          %v7794 = vunpack.c.h.b16 %v7554
          %v7795 = vunpack.c.l.b16 %v7555
          %v7796 = vunpack.c.h.b16 %v7555
          %v7797 = vunpack.c.l.b16 %v7556
          %v7798 = vunpack.c.l.b16 %v7557
          %v7799 = vunpack.c.h.b16 %v7557
          %v7800 = vunpack.c.l.b16 %v7558
          %v7801 = vunpack.c.h.b16 %v7558
          %v7802 = vunpack.c.l.b16 %v7559
          %v7803 = vunpack.c.l.b16 %v7560
          %v7804 = vunpack.c.h.b16 %v7560
          %v7805 = vunpack.c.l.b16 %v7561
          %v7806 = vunpack.c.h.b16 %v7561
          %v7807 = vunpack.c.l.b16 %v7562
          %v7808 = vunpack.c.l.b16 %v7563
          %v7809 = vunpack.c.h.b16 %v7563
          %v7810 = vunpack.c.l.b16 %v7564
          %v7811 = vunpack.c.h.b16 %v7564
          %v7812 = vunpack.c.l.b16 %v7565
          %v7813 = vunpack.c.l.b16 %v7566
          %v7814 = vunpack.c.h.b16 %v7566
          %v7815 = vunpack.c.l.b16 %v7567
          %v7816 = vunpack.c.h.b16 %v7567
          %v7817 = vunpack.c.l.b16 %v7568
          %v7818 = vunpack.c.l.b16 %v7569
          %v7819 = vunpack.c.h.b16 %v7569
          %v7820 = vunpack.c.l.b16 %v7570
          %v7821 = vunpack.c.h.b16 %v7570
          %v7822 = vunpack.c.l.b16 %v7571
          %v7823 = vunpack.c.l.b16 %v7572
          %v7824 = vunpack.c.h.b16 %v7572
          %v7825 = vunpack.c.l.b16 %v7573
          %v7826 = vunpack.c.h.b16 %v7573
          %v7827 = vunpack.c.l.b16 %v7574
          %v7828 = vunpack.c.l.b16 %v7575
          %v7829 = vunpack.c.h.b16 %v7575
          %v7830 = vunpack.c.l.b16 %v7576
          %v7831 = vunpack.c.h.b16 %v7576
          %v7832 = vunpack.c.l.b16 %v7577
          %v7833 = vunpack.c.l.b16 %v7578
          %v7834 = vunpack.c.h.b16 %v7578
          %v7835 = vunpack.c.l.b16 %v7579
          %v7836 = vunpack.c.h.b16 %v7579
          %v7837 = vunpack.c.l.b16 %v7580
          %v7838 = vunpack.c.l.b16 %v7581
          %v7839 = vunpack.c.h.b16 %v7581
          %v7840 = vunpack.c.l.b16 %v7582
          %v7841 = vunpack.c.h.b16 %v7582
          %v7842 = vunpack.c.l.b16 %v7583
          %v7843 = vpack.c.b16 %v7688, %v7683
          %v7844 = vpack.c.b16 %v7689, %v7684
          %v7845 = vpack.c.b16 %v7690, %v7685
          %v7846 = vpack.c.b16 %v7691, %v7686
          %v7847 = vpack.c.b16 %v7692, %v7687
          %v7848 = vpack.c.b16 %v7698, %v7693
          %v7849 = vpack.c.b16 %v7699, %v7694
          %v7850 = vpack.c.b16 %v7700, %v7695
          %v7851 = vpack.c.b16 %v7701, %v7696
          %v7852 = vpack.c.b16 %v7702, %v7697
          %v7853 = vpack.c.b16 %v7708, %v7703
          %v7854 = vpack.c.b16 %v7709, %v7704
          %v7855 = vpack.c.b16 %v7710, %v7705
          %v7856 = vpack.c.b16 %v7711, %v7706
          %v7857 = vpack.c.b16 %v7712, %v7707
          %v7858 = vpack.c.b16 %v7718, %v7713
          %v7859 = vpack.c.b16 %v7719, %v7714
          %v7860 = vpack.c.b16 %v7720, %v7715
          %v7861 = vpack.c.b16 %v7721, %v7716
          %v7862 = vpack.c.b16 %v7722, %v7717
          %v7863 = vpack.c.b16 %v7728, %v7723
          %v7864 = vpack.c.b16 %v7729, %v7724
          %v7865 = vpack.c.b16 %v7730, %v7725
          %v7866 = vpack.c.b16 %v7731, %v7726
          %v7867 = vpack.c.b16 %v7732, %v7727
          %v7868 = vpack.c.b16 %v7738, %v7733
          %v7869 = vpack.c.b16 %v7739, %v7734
          %v7870 = vpack.c.b16 %v7740, %v7735
          %v7871 = vpack.c.b16 %v7741, %v7736
          %v7872 = vpack.c.b16 %v7742, %v7737
          %v7873 = vpack.c.b16 %v7748, %v7743
          %v7874 = vpack.c.b16 %v7749, %v7744
          %v7875 = vpack.c.b16 %v7750, %v7745
          %v7876 = vpack.c.b16 %v7751, %v7746
          %v7877 = vpack.c.b16 %v7752, %v7747
          %v7878 = vpack.c.b16 %v7758, %v7753
          %v7879 = vpack.c.b16 %v7759, %v7754
          %v7880 = vpack.c.b16 %v7760, %v7755
          %v7881 = vpack.c.b16 %v7761, %v7756
          %v7882 = vpack.c.b16 %v7762, %v7757
          %v7883 = vpack.c.b16 %v7768, %v7763
          %v7884 = vpack.c.b16 %v7769, %v7764
          %v7885 = vpack.c.b16 %v7770, %v7765
          %v7886 = vpack.c.b16 %v7771, %v7766
          %v7887 = vpack.c.b16 %v7772, %v7767
          %v7888 = vpack.c.b16 %v7778, %v7773
          %v7889 = vpack.c.b16 %v7779, %v7774
          %v7890 = vpack.c.b16 %v7780, %v7775
          %v7891 = vpack.c.b16 %v7781, %v7776
          %v7892 = vpack.c.b16 %v7782, %v7777
          %v7893 = vpack.c.b16 %v7788, %v7783
          %v7894 = vpack.c.b16 %v7789, %v7784
          %v7895 = vpack.c.b16 %v7790, %v7785
          %v7896 = vpack.c.b16 %v7791, %v7786
          %v7897 = vpack.c.b16 %v7792, %v7787
          %v7898 = vpack.c.b16 %v7798, %v7793
          %v7899 = vpack.c.b16 %v7799, %v7794
          %v7900 = vpack.c.b16 %v7800, %v7795
          %v7901 = vpack.c.b16 %v7801, %v7796
          %v7902 = vpack.c.b16 %v7802, %v7797
          %v7903 = vpack.c.b16 %v7808, %v7803
          %v7904 = vpack.c.b16 %v7809, %v7804
          %v7905 = vpack.c.b16 %v7810, %v7805
          %v7906 = vpack.c.b16 %v7811, %v7806
          %v7907 = vpack.c.b16 %v7812, %v7807
          %v7908 = vpack.c.b16 %v7818, %v7813
          %v7909 = vpack.c.b16 %v7819, %v7814
          %v7910 = vpack.c.b16 %v7820, %v7815
          %v7911 = vpack.c.b16 %v7821, %v7816
          %v7912 = vpack.c.b16 %v7822, %v7817
          %v7913 = vpack.c.b16 %v7828, %v7823
          %v7914 = vpack.c.b16 %v7829, %v7824
          %v7915 = vpack.c.b16 %v7830, %v7825
          %v7916 = vpack.c.b16 %v7831, %v7826
          %v7917 = vpack.c.b16 %v7832, %v7827
          %v7918 = vpack.c.b16 %v7838, %v7833
          %v7919 = vpack.c.b16 %v7839, %v7834
          %v7920 = vpack.c.b16 %v7840, %v7835
          %v7921 = vpack.c.b16 %v7841, %v7836
          %v7922 = vpack.c.b16 %v7842, %v7837
          %v8059 = vunpack.c.l.b16 %v3324
          %v8060 = vunpack.c.l.b16 %v3325
          %v8061 = vunpack.c.l.b16 %v3326
          %v8062 = vunpack.c.l.b16 %v3327
          %v8063 = vunpack.c.l.b16 %v3328
          %v8064 = vunpack.c.l.b16 %v3329
          %v8065 = vunpack.c.l.b16 %v3330
          %v8066 = vunpack.c.l.b16 %v3331
          %v8067 = vunpack.c.l.b16 %v3332
          %v8068 = vunpack.c.l.b16 %v3333
          %v8069 = vunpack.c.l.b16 %v3334
          %v8070 = vunpack.c.l.b16 %v3335
          %v8071 = vunpack.c.l.b16 %v3336
          %v8072 = vunpack.c.l.b16 %v3337
          %v8073 = vunpack.c.l.b16 %v3338
          %v8074 = vunpack.c.l.b16 %v3339
          %v8075 = vunpack.c.l.b16 %v3340
          %v8076 = vunpack.c.l.b16 %v3341
          %v8077 = vunpack.c.l.b16 %v3342
          %v8078 = vunpack.c.l.b16 %v3343
          %v8079 = vunpack.c.l.b16 %v3344
          %v8080 = vunpack.c.l.b16 %v3345
          %v8081 = vunpack.c.l.b16 %v3346
          %v8082 = vunpack.c.l.b16 %v3347
          %v8083 = vunpack.c.l.b16 %v3348
          %v8084 = vunpack.c.l.b16 %v3349
          %v8085 = vunpack.c.l.b16 %v3350
          %v8086 = vunpack.c.l.b16 %v3351
          %v8087 = vunpack.c.l.b16 %v3352
          %v8088 = vunpack.c.l.b16 %v3353
          %v8089 = vunpack.c.l.b16 %v3354
          %v8090 = vunpack.c.l.b16 %v3355
          %v8091 = vunpack.c.l.b16 %v3356
          %v8092 = vunpack.c.l.b16 %v3357
          %v8093 = vunpack.c.l.b16 %v3358
          %v8094 = vunpack.c.l.b16 %v3359
          %v8095 = vunpack.c.l.b16 %v3360
          %v8096 = vunpack.c.l.b16 %v3361
          %v8097 = vunpack.c.l.b16 %v3362
          %v8098 = vunpack.c.l.b16 %v3363
          %v8099 = vunpack.c.l.b16 %v3364
          %v8100 = vunpack.c.l.b16 %v3365
          %v8101 = vunpack.c.l.b16 %v3366
          %v8102 = vunpack.c.l.b16 %v3367
          %v8103 = vunpack.c.l.b16 %v3368
          %v8104 = vunpack.c.l.b16 %v3369
          %v8105 = vunpack.c.l.b16 %v3370
          %v8106 = vunpack.c.l.b16 %v3371
          %v8107 = vunpack.c.l.b16 %v3372
          %v8108 = vunpack.c.l.b16 %v3373
          %v8109 = vunpack.c.l.b16 %v3374
          %v8110 = vunpack.c.l.b16 %v3375
          %v8111 = vunpack.c.l.b16 %v3376
          %v8112 = vunpack.c.l.b16 %v3377
          %v8113 = vunpack.c.l.b16 %v3378
          %v8114 = vunpack.c.l.b16 %v3379
          %v8115 = vunpack.c.l.b16 %v3380
          %v8116 = vunpack.c.l.b16 %v3381
          %v8117 = vunpack.c.l.b16 %v3382
          %v8118 = vunpack.c.l.b16 %v3383
          %v8119 = vunpack.c.l.b16 %v3384
          %v8120 = vunpack.c.l.b16 %v3385
          %v8121 = vunpack.c.l.b16 %v3386
          %v8122 = vunpack.c.l.b16 %v3387
          %v8123 = vunpack.c.l.b16 %v3388
          %v8124 = vunpack.c.l.b16 %v3389
          %v8125 = vunpack.c.l.b16 %v3390
          %v8126 = vunpack.c.l.b16 %v3391
          %v8127 = vunpack.c.l.b16 %v3392
          %v8128 = vunpack.c.l.b16 %v3393
          %v8129 = vunpack.c.l.b16 %v3394
          %v8130 = vunpack.c.l.b16 %v3395
          %v8131 = vpack.c.b16 %v8060, %v8059
          %v8132 = vpack.c.b16 %v8062, %v8061
          %v8133 = vpack.c.b16 %v8064, %v8063
          %v8134 = vpack.c.b16 %v8066, %v8065
          %v8135 = vpack.c.b16 %v8068, %v8067
          %v8136 = vpack.c.b16 %v8070, %v8069
          %v8137 = vpack.c.b16 %v8072, %v8071
          %v8138 = vpack.c.b16 %v8074, %v8073
          %v8139 = vpack.c.b16 %v8076, %v8075
          %v8140 = vpack.c.b16 %v8078, %v8077
          %v8141 = vpack.c.b16 %v8080, %v8079
          %v8142 = vpack.c.b16 %v8082, %v8081
          %v8143 = vpack.c.b16 %v8084, %v8083
          %v8144 = vpack.c.b16 %v8086, %v8085
          %v8145 = vpack.c.b16 %v8088, %v8087
          %v8146 = vpack.c.b16 %v8090, %v8089
          %v8147 = vpack.c.b16 %v8092, %v8091
          %v8148 = vpack.c.b16 %v8094, %v8093
          %v8149 = vpack.c.b16 %v8096, %v8095
          %v8150 = vpack.c.b16 %v8098, %v8097
          %v8151 = vpack.c.b16 %v8100, %v8099
          %v8152 = vpack.c.b16 %v8102, %v8101
          %v8153 = vpack.c.b16 %v8104, %v8103
          %v8154 = vpack.c.b16 %v8106, %v8105
          %v8155 = vpack.c.b16 %v8108, %v8107
          %v8156 = vpack.c.b16 %v8110, %v8109
          %v8157 = vpack.c.b16 %v8112, %v8111
          %v8158 = vpack.c.b16 %v8114, %v8113
          %v8159 = vpack.c.b16 %v8116, %v8115
          %v8160 = vpack.c.b16 %v8118, %v8117
          %v8161 = vpack.c.b16 %v8120, %v8119
          %v8162 = vpack.c.b16 %v8122, %v8121
          %v8163 = vpack.c.b16 %v8124, %v8123
          %v8164 = vpack.c.b16 %v8126, %v8125
          %v8165 = vpack.c.b16 %v8128, %v8127
          %v8166 = vpack.c.b16 %v8130, %v8129
          %v8204 = vsel %vm272, %v7847, 0
          %v8207 = vsel %vm272, %v7852, 0
          %v8210 = vsel %vm272, %v7857, 0
          %v8213 = vsel %vm272, %v7862, 0
          %v8216 = vsel %vm272, %v7867, 0
          %v8219 = vsel %vm272, %v7872, 0
          %v8222 = vsel %vm272, %v7877, 0
          %v8225 = vsel %vm272, %v7882, 0
          %v8228 = vsel %vm272, %v7887, 0
          %v8231 = vsel %vm272, %v7892, 0
          %v8234 = vsel %vm272, %v7897, 0
          %v8237 = vsel %vm272, %v7902, 0
          %v8240 = vsel %vm272, %v7907, 0
          %v8243 = vsel %vm272, %v7912, 0
          %v8246 = vsel %vm272, %v7917, 0
          %v8249 = vsel %vm272, %v7922, 0
          %8251 = vmatpush.bf16.msra.mxu0 %v8138
          %8252 = vmatpush.bf16.msra.mxu0 %v8137
          %8253 = vmatpush.bf16.msra.mxu0 %v8136
          %8254 = vmatpush.bf16.msra.mxu0 %v8135
          %8255 = vmatpush.bf16.msra.mxu0 %v8134
          %8256 = vmatpush.bf16.msra.mxu0 %v8133
          %8257 = vmatpush.bf16.msra.mxu0 %v8132
          %8258 = vmatpush.bf16.msra.mxu0 %v8131
          %8259 = vmatmul.bf16.gmra.mxu0 %v7843
          %v8260 = vpop.f32.mrf.mxu0
          %v8261 = vadd.f32 %v7585, %v8260
          %v8262 = vpop.f32.mrf.mxu0
          %v8263 = vadd.f32 %v7585, %v8262
          %8264 = vmatmul.bf16.gmra.mxu0 %v7848
          %v8265 = vpop.f32.mrf.mxu0
          %v8266 = vadd.f32 %v7585, %v8265
          %v8267 = vpop.f32.mrf.mxu0
          %v8268 = vadd.f32 %v7585, %v8267
          %8269 = vmatmul.bf16.gmra.mxu0 %v7853
          %v8270 = vpop.f32.mrf.mxu0
          %v8271 = vadd.f32 %v7585, %v8270
          %v8272 = vpop.f32.mrf.mxu0
          %v8273 = vadd.f32 %v7585, %v8272
          %8274 = vmatmul.bf16.gmra.mxu0 %v7858
          %v8275 = vpop.f32.mrf.mxu0
          %v8276 = vadd.f32 %v7585, %v8275
          %v8277 = vpop.f32.mrf.mxu0
          %v8278 = vadd.f32 %v7585, %v8277
          %8279 = vmatmul.bf16.gmra.mxu0 %v7863
          %v8280 = vpop.f32.mrf.mxu0
          %v8281 = vadd.f32 %v7585, %v8280
          %v8282 = vpop.f32.mrf.mxu0
          %v8283 = vadd.f32 %v7585, %v8282
          %8284 = vmatmul.bf16.gmra.mxu0 %v7868
          %v8285 = vpop.f32.mrf.mxu0
          %v8286 = vadd.f32 %v7585, %v8285
          %v8287 = vpop.f32.mrf.mxu0
          %v8288 = vadd.f32 %v7585, %v8287
          %8289 = vmatmul.bf16.gmra.mxu0 %v7873
          %v8290 = vpop.f32.mrf.mxu0
          %v8291 = vadd.f32 %v7585, %v8290
          %v8292 = vpop.f32.mrf.mxu0
          %v8293 = vadd.f32 %v7585, %v8292
          %8294 = vmatmul.bf16.gmra.mxu0 %v7878
          %v8295 = vpop.f32.mrf.mxu0
          %v8296 = vadd.f32 %v7585, %v8295
          %v8297 = vpop.f32.mrf.mxu0
          %v8298 = vadd.f32 %v7585, %v8297
          %8299 = vmatmul.bf16.gmra.mxu0 %v7883
          %v8300 = vpop.f32.mrf.mxu0
          %v8301 = vadd.f32 %v7585, %v8300
          %v8302 = vpop.f32.mrf.mxu0
          %v8303 = vadd.f32 %v7585, %v8302
          %8304 = vmatmul.bf16.gmra.mxu0 %v7888
          %v8305 = vpop.f32.mrf.mxu0
          %v8306 = vadd.f32 %v7585, %v8305
          %v8307 = vpop.f32.mrf.mxu0
          %v8308 = vadd.f32 %v7585, %v8307
          %8309 = vmatmul.bf16.gmra.mxu0 %v7893
          %v8310 = vpop.f32.mrf.mxu0
          %v8311 = vadd.f32 %v7585, %v8310
          %v8312 = vpop.f32.mrf.mxu0
          %v8313 = vadd.f32 %v7585, %v8312
          %8314 = vmatmul.bf16.gmra.mxu0 %v7898
          %v8315 = vpop.f32.mrf.mxu0
          %v8316 = vadd.f32 %v7585, %v8315
          %v8317 = vpop.f32.mrf.mxu0
          %v8318 = vadd.f32 %v7585, %v8317
          %8319 = vmatmul.bf16.gmra.mxu0 %v7903
          %v8320 = vpop.f32.mrf.mxu0
          %v8321 = vadd.f32 %v7585, %v8320
          %v8322 = vpop.f32.mrf.mxu0
          %v8323 = vadd.f32 %v7585, %v8322
          %8324 = vmatmul.bf16.gmra.mxu0 %v7908
          %v8325 = vpop.f32.mrf.mxu0
          %v8326 = vadd.f32 %v7585, %v8325
          %v8327 = vpop.f32.mrf.mxu0
          %v8328 = vadd.f32 %v7585, %v8327
          %8329 = vmatmul.bf16.gmra.mxu0 %v7913
          %v8330 = vpop.f32.mrf.mxu0
          %v8331 = vadd.f32 %v7585, %v8330
          %v8332 = vpop.f32.mrf.mxu0
          %v8333 = vadd.f32 %v7585, %v8332
          %8334 = vmatmul.bf16.gmra.mxu0 %v7918
          %v8335 = vpop.f32.mrf.mxu0
          %v8336 = vadd.f32 %v7585, %v8335
          %v8337 = vpop.f32.mrf.mxu0
          %v8338 = vadd.f32 %v7585, %v8337
          %8339 = vdwg.mxu0
          %8340 = vmatpush.bf16.msra.mxu0 %v8146
          %8341 = vmatpush.bf16.msra.mxu0 %v8145
          %8342 = vmatpush.bf16.msra.mxu0 %v8144
          %8343 = vmatpush.bf16.msra.mxu0 %v8143
          %8344 = vmatpush.bf16.msra.mxu0 %v8142
          %8345 = vmatpush.bf16.msra.mxu0 %v8141
          %8346 = vmatpush.bf16.msra.mxu0 %v8140
          %8347 = vmatpush.bf16.msra.mxu0 %v8139
          %8348 = vmatmul.bf16.gmra.mxu0 %v7844
          %v8349 = vpop.f32.mrf.mxu0
          %v8350 = vadd.f32 %v8261, %v8349
          %v8351 = vpop.f32.mrf.mxu0
          %v8352 = vadd.f32 %v8263, %v8351
          %8353 = vmatmul.bf16.gmra.mxu0 %v7849
          %v8354 = vpop.f32.mrf.mxu0
          %v8355 = vadd.f32 %v8266, %v8354
          %v8356 = vpop.f32.mrf.mxu0
          %v8357 = vadd.f32 %v8268, %v8356
          %8358 = vmatmul.bf16.gmra.mxu0 %v7854
          %v8359 = vpop.f32.mrf.mxu0
          %v8360 = vadd.f32 %v8271, %v8359
          %v8361 = vpop.f32.mrf.mxu0
          %v8362 = vadd.f32 %v8273, %v8361
          %8363 = vmatmul.bf16.gmra.mxu0 %v7859
          %v8364 = vpop.f32.mrf.mxu0
          %v8365 = vadd.f32 %v8276, %v8364
          %v8366 = vpop.f32.mrf.mxu0
          %v8367 = vadd.f32 %v8278, %v8366
          %8368 = vmatmul.bf16.gmra.mxu0 %v7864
          %v8369 = vpop.f32.mrf.mxu0
          %v8370 = vadd.f32 %v8281, %v8369
          %v8371 = vpop.f32.mrf.mxu0
          %v8372 = vadd.f32 %v8283, %v8371
          %8373 = vmatmul.bf16.gmra.mxu0 %v7869
          %v8374 = vpop.f32.mrf.mxu0
          %v8375 = vadd.f32 %v8286, %v8374
          %v8376 = vpop.f32.mrf.mxu0
          %v8377 = vadd.f32 %v8288, %v8376
          %8378 = vmatmul.bf16.gmra.mxu0 %v7874
          %v8379 = vpop.f32.mrf.mxu0
          %v8380 = vadd.f32 %v8291, %v8379
          %v8381 = vpop.f32.mrf.mxu0
          %v8382 = vadd.f32 %v8293, %v8381
          %8383 = vmatmul.bf16.gmra.mxu0 %v7879
          %v8384 = vpop.f32.mrf.mxu0
          %v8385 = vadd.f32 %v8296, %v8384
          %v8386 = vpop.f32.mrf.mxu0
          %v8387 = vadd.f32 %v8298, %v8386
          %8388 = vmatmul.bf16.gmra.mxu0 %v7884
          %v8389 = vpop.f32.mrf.mxu0
          %v8390 = vadd.f32 %v8301, %v8389
          %v8391 = vpop.f32.mrf.mxu0
          %v8392 = vadd.f32 %v8303, %v8391
          %8393 = vmatmul.bf16.gmra.mxu0 %v7889
          %v8394 = vpop.f32.mrf.mxu0
          %v8395 = vadd.f32 %v8306, %v8394
          %v8396 = vpop.f32.mrf.mxu0
          %v8397 = vadd.f32 %v8308, %v8396
          %8398 = vmatmul.bf16.gmra.mxu0 %v7894
          %v8399 = vpop.f32.mrf.mxu0
          %v8400 = vadd.f32 %v8311, %v8399
          %v8401 = vpop.f32.mrf.mxu0
          %v8402 = vadd.f32 %v8313, %v8401
          %8403 = vmatmul.bf16.gmra.mxu0 %v7899
          %v8404 = vpop.f32.mrf.mxu0
          %v8405 = vadd.f32 %v8316, %v8404
          %v8406 = vpop.f32.mrf.mxu0
          %v8407 = vadd.f32 %v8318, %v8406
          %8408 = vmatmul.bf16.gmra.mxu0 %v7904
          %v8409 = vpop.f32.mrf.mxu0
          %v8410 = vadd.f32 %v8321, %v8409
          %v8411 = vpop.f32.mrf.mxu0
          %v8412 = vadd.f32 %v8323, %v8411
          %8413 = vmatmul.bf16.gmra.mxu0 %v7909
          %v8414 = vpop.f32.mrf.mxu0
          %v8415 = vadd.f32 %v8326, %v8414
          %v8416 = vpop.f32.mrf.mxu0
          %v8417 = vadd.f32 %v8328, %v8416
          %8418 = vmatmul.bf16.gmra.mxu0 %v7914
          %v8419 = vpop.f32.mrf.mxu0
          %v8420 = vadd.f32 %v8331, %v8419
          %v8421 = vpop.f32.mrf.mxu0
          %v8422 = vadd.f32 %v8333, %v8421
          %8423 = vmatmul.bf16.gmra.mxu0 %v7919
          %v8424 = vpop.f32.mrf.mxu0
          %v8425 = vadd.f32 %v8336, %v8424
          %v8426 = vpop.f32.mrf.mxu0
          %v8427 = vadd.f32 %v8338, %v8426
          %8428 = vdwg.mxu0
          %8429 = vmatpush.bf16.msra.mxu0 %v8154
          %8430 = vmatpush.bf16.msra.mxu0 %v8153
          %8431 = vmatpush.bf16.msra.mxu0 %v8152
          %8432 = vmatpush.bf16.msra.mxu0 %v8151
          %8433 = vmatpush.bf16.msra.mxu0 %v8150
          %8434 = vmatpush.bf16.msra.mxu0 %v8149
          %8435 = vmatpush.bf16.msra.mxu0 %v8148
          %8436 = vmatpush.bf16.msra.mxu0 %v8147
          %8437 = vmatmul.bf16.gmra.mxu0 %v7845
          %v8438 = vpop.f32.mrf.mxu0
          %v8439 = vadd.f32 %v8350, %v8438
          %v8440 = vpop.f32.mrf.mxu0
          %v8441 = vadd.f32 %v8352, %v8440
          %8442 = vmatmul.bf16.gmra.mxu0 %v7850
          %v8443 = vpop.f32.mrf.mxu0
          %v8444 = vadd.f32 %v8355, %v8443
          %v8445 = vpop.f32.mrf.mxu0
          %v8446 = vadd.f32 %v8357, %v8445
          %8447 = vmatmul.bf16.gmra.mxu0 %v7855
          %v8448 = vpop.f32.mrf.mxu0
          %v8449 = vadd.f32 %v8360, %v8448
          %v8450 = vpop.f32.mrf.mxu0
          %v8451 = vadd.f32 %v8362, %v8450
          %8452 = vmatmul.bf16.gmra.mxu0 %v7860
          %v8453 = vpop.f32.mrf.mxu0
          %v8454 = vadd.f32 %v8365, %v8453
          %v8455 = vpop.f32.mrf.mxu0
          %v8456 = vadd.f32 %v8367, %v8455
          %8457 = vmatmul.bf16.gmra.mxu0 %v7865
          %v8458 = vpop.f32.mrf.mxu0
          %v8459 = vadd.f32 %v8370, %v8458
          %v8460 = vpop.f32.mrf.mxu0
          %v8461 = vadd.f32 %v8372, %v8460
          %8462 = vmatmul.bf16.gmra.mxu0 %v7870
          %v8463 = vpop.f32.mrf.mxu0
          %v8464 = vadd.f32 %v8375, %v8463
          %v8465 = vpop.f32.mrf.mxu0
          %v8466 = vadd.f32 %v8377, %v8465
          %8467 = vmatmul.bf16.gmra.mxu0 %v7875
          %v8468 = vpop.f32.mrf.mxu0
          %v8469 = vadd.f32 %v8380, %v8468
          %v8470 = vpop.f32.mrf.mxu0
          %v8471 = vadd.f32 %v8382, %v8470
          %8472 = vmatmul.bf16.gmra.mxu0 %v7880
          %v8473 = vpop.f32.mrf.mxu0
          %v8474 = vadd.f32 %v8385, %v8473
          %v8475 = vpop.f32.mrf.mxu0
          %v8476 = vadd.f32 %v8387, %v8475
          %8477 = vmatmul.bf16.gmra.mxu0 %v7885
          %v8478 = vpop.f32.mrf.mxu0
          %v8479 = vadd.f32 %v8390, %v8478
          %v8480 = vpop.f32.mrf.mxu0
          %v8481 = vadd.f32 %v8392, %v8480
          %8482 = vmatmul.bf16.gmra.mxu0 %v7890
          %v8483 = vpop.f32.mrf.mxu0
          %v8484 = vadd.f32 %v8395, %v8483
          %v8485 = vpop.f32.mrf.mxu0
          %v8486 = vadd.f32 %v8397, %v8485
          %8487 = vmatmul.bf16.gmra.mxu0 %v7895
          %v8488 = vpop.f32.mrf.mxu0
          %v8489 = vadd.f32 %v8400, %v8488
          %v8490 = vpop.f32.mrf.mxu0
          %v8491 = vadd.f32 %v8402, %v8490
          %8492 = vmatmul.bf16.gmra.mxu0 %v7900
          %v8493 = vpop.f32.mrf.mxu0
          %v8494 = vadd.f32 %v8405, %v8493
          %v8495 = vpop.f32.mrf.mxu0
          %v8496 = vadd.f32 %v8407, %v8495
          %8497 = vmatmul.bf16.gmra.mxu0 %v7905
          %v8498 = vpop.f32.mrf.mxu0
          %v8499 = vadd.f32 %v8410, %v8498
          %v8500 = vpop.f32.mrf.mxu0
          %v8501 = vadd.f32 %v8412, %v8500
          %8502 = vmatmul.bf16.gmra.mxu0 %v7910
          %v8503 = vpop.f32.mrf.mxu0
          %v8504 = vadd.f32 %v8415, %v8503
          %v8505 = vpop.f32.mrf.mxu0
          %v8506 = vadd.f32 %v8417, %v8505
          %8507 = vmatmul.bf16.gmra.mxu0 %v7915
          %v8508 = vpop.f32.mrf.mxu0
          %v8509 = vadd.f32 %v8420, %v8508
          %v8510 = vpop.f32.mrf.mxu0
          %v8511 = vadd.f32 %v8422, %v8510
          %8512 = vmatmul.bf16.gmra.mxu0 %v7920
          %v8513 = vpop.f32.mrf.mxu0
          %v8514 = vadd.f32 %v8425, %v8513
          %v8515 = vpop.f32.mrf.mxu0
          %v8516 = vadd.f32 %v8427, %v8515
          %8517 = vdwg.mxu0
          %8518 = vmatpush.bf16.msra.mxu0 %v8162
          %8519 = vmatpush.bf16.msra.mxu0 %v8161
          %8520 = vmatpush.bf16.msra.mxu0 %v8160
          %8521 = vmatpush.bf16.msra.mxu0 %v8159
          %8522 = vmatpush.bf16.msra.mxu0 %v8158
          %8523 = vmatpush.bf16.msra.mxu0 %v8157
          %8524 = vmatpush.bf16.msra.mxu0 %v8156
          %8525 = vmatpush.bf16.msra.mxu0 %v8155
          %8526 = vmatmul.bf16.gmra.mxu0 %v7846
          %v8527 = vpop.f32.mrf.mxu0
          %v8528 = vadd.f32 %v8439, %v8527
          %v8529 = vpop.f32.mrf.mxu0
          %v8530 = vadd.f32 %v8441, %v8529
          %8531 = vmatmul.bf16.gmra.mxu0 %v7851
          %v8532 = vpop.f32.mrf.mxu0
          %v8533 = vadd.f32 %v8444, %v8532
          %v8534 = vpop.f32.mrf.mxu0
          %v8535 = vadd.f32 %v8446, %v8534
          %8536 = vmatmul.bf16.gmra.mxu0 %v7856
          %v8537 = vpop.f32.mrf.mxu0
          %v8538 = vadd.f32 %v8449, %v8537
          %v8539 = vpop.f32.mrf.mxu0
          %v8540 = vadd.f32 %v8451, %v8539
          %8541 = vmatmul.bf16.gmra.mxu0 %v7861
          %v8542 = vpop.f32.mrf.mxu0
          %v8543 = vadd.f32 %v8454, %v8542
          %v8544 = vpop.f32.mrf.mxu0
          %v8545 = vadd.f32 %v8456, %v8544
          %8546 = vmatmul.bf16.gmra.mxu0 %v7866
          %v8547 = vpop.f32.mrf.mxu0
          %v8548 = vadd.f32 %v8459, %v8547
          %v8549 = vpop.f32.mrf.mxu0
          %v8550 = vadd.f32 %v8461, %v8549
          %8551 = vmatmul.bf16.gmra.mxu0 %v7871
          %v8552 = vpop.f32.mrf.mxu0
          %v8553 = vadd.f32 %v8464, %v8552
          %v8554 = vpop.f32.mrf.mxu0
          %v8555 = vadd.f32 %v8466, %v8554
          %8556 = vmatmul.bf16.gmra.mxu0 %v7876
          %v8557 = vpop.f32.mrf.mxu0
          %v8558 = vadd.f32 %v8469, %v8557
          %v8559 = vpop.f32.mrf.mxu0
          %v8560 = vadd.f32 %v8471, %v8559
          %8561 = vmatmul.bf16.gmra.mxu0 %v7881
          %v8562 = vpop.f32.mrf.mxu0
          %v8563 = vadd.f32 %v8474, %v8562
          %v8564 = vpop.f32.mrf.mxu0
          %v8565 = vadd.f32 %v8476, %v8564
          %8566 = vmatmul.bf16.gmra.mxu0 %v7886
          %v8567 = vpop.f32.mrf.mxu0
          %v8568 = vadd.f32 %v8479, %v8567
          %v8569 = vpop.f32.mrf.mxu0
          %v8570 = vadd.f32 %v8481, %v8569
          %8571 = vmatmul.bf16.gmra.mxu0 %v7891
          %v8572 = vpop.f32.mrf.mxu0
          %v8573 = vadd.f32 %v8484, %v8572
          %v8574 = vpop.f32.mrf.mxu0
          %v8575 = vadd.f32 %v8486, %v8574
          %8576 = vmatmul.bf16.gmra.mxu0 %v7896
          %v8577 = vpop.f32.mrf.mxu0
          %v8578 = vadd.f32 %v8489, %v8577
          %v8579 = vpop.f32.mrf.mxu0
          %v8580 = vadd.f32 %v8491, %v8579
          %8581 = vmatmul.bf16.gmra.mxu0 %v7901
          %v8582 = vpop.f32.mrf.mxu0
          %v8583 = vadd.f32 %v8494, %v8582
          %v8584 = vpop.f32.mrf.mxu0
          %v8585 = vadd.f32 %v8496, %v8584
          %8586 = vmatmul.bf16.gmra.mxu0 %v7906
          %v8587 = vpop.f32.mrf.mxu0
          %v8588 = vadd.f32 %v8499, %v8587
          %v8589 = vpop.f32.mrf.mxu0
          %v8590 = vadd.f32 %v8501, %v8589
          %8591 = vmatmul.bf16.gmra.mxu0 %v7911
          %v8592 = vpop.f32.mrf.mxu0
          %v8593 = vadd.f32 %v8504, %v8592
          %v8594 = vpop.f32.mrf.mxu0
          %v8595 = vadd.f32 %v8506, %v8594
          %8596 = vmatmul.bf16.gmra.mxu0 %v7916
          %v8597 = vpop.f32.mrf.mxu0
          %v8598 = vadd.f32 %v8509, %v8597
          %v8599 = vpop.f32.mrf.mxu0
          %v8600 = vadd.f32 %v8511, %v8599
          %8601 = vmatmul.bf16.gmra.mxu0 %v7921
          %v8602 = vpop.f32.mrf.mxu0
          %v8603 = vadd.f32 %v8514, %v8602
          %v8604 = vpop.f32.mrf.mxu0
          %v8605 = vadd.f32 %v8516, %v8604
          %8606 = vdwg.mxu0
          %8607 = vmatpush.bf16.msra.mxu0 0
          %8608 = vmatpush.bf16.msra.mxu0 0
          %8609 = vmatpush.bf16.msra.mxu0 0
          %8610 = vmatpush.bf16.msra.mxu0 0
          %8611 = vmatpush.bf16.msra.mxu0 %v8166
          %8612 = vmatpush.bf16.msra.mxu0 %v8165
          %8613 = vmatpush.bf16.msra.mxu0 %v8164
          %8614 = vmatpush.bf16.msra.mxu0 %v8163
          %8615 = vmatmul.bf16.gmra.mxu0 %v8204
          %v8616 = vpop.f32.mrf.mxu0
          %v8617 = vadd.f32 %v8528, %v8616
          %v8618 = vpop.f32.mrf.mxu0
          %v8619 = vadd.f32 %v8530, %v8618
          %8620 = vmatmul.bf16.gmra.mxu0 %v8207
          %v8621 = vpop.f32.mrf.mxu0
          %v8622 = vadd.f32 %v8533, %v8621
          %v8623 = vpop.f32.mrf.mxu0
          %v8624 = vadd.f32 %v8535, %v8623
          %8625 = vmatmul.bf16.gmra.mxu0 %v8210
          %v8626 = vpop.f32.mrf.mxu0
          %v8627 = vadd.f32 %v8538, %v8626
          %v8628 = vpop.f32.mrf.mxu0
          %v8629 = vadd.f32 %v8540, %v8628
          %8630 = vmatmul.bf16.gmra.mxu0 %v8213
          %v8631 = vpop.f32.mrf.mxu0
          %v8632 = vadd.f32 %v8543, %v8631
          %v8633 = vpop.f32.mrf.mxu0
          %v8634 = vadd.f32 %v8545, %v8633
          %8635 = vmatmul.bf16.gmra.mxu0 %v8216
          %v8636 = vpop.f32.mrf.mxu0
          %v8637 = vadd.f32 %v8548, %v8636
          %v8638 = vpop.f32.mrf.mxu0
          %v8639 = vadd.f32 %v8550, %v8638
          %8640 = vmatmul.bf16.gmra.mxu0 %v8219
          %v8641 = vpop.f32.mrf.mxu0
          %v8642 = vadd.f32 %v8553, %v8641
          %v8643 = vpop.f32.mrf.mxu0
          %v8644 = vadd.f32 %v8555, %v8643
          %8645 = vmatmul.bf16.gmra.mxu0 %v8222
          %v8646 = vpop.f32.mrf.mxu0
          %v8647 = vadd.f32 %v8558, %v8646
          %v8648 = vpop.f32.mrf.mxu0
          %v8649 = vadd.f32 %v8560, %v8648
          %8650 = vmatmul.bf16.gmra.mxu0 %v8225
          %v8651 = vpop.f32.mrf.mxu0
          %v8652 = vadd.f32 %v8563, %v8651
          %v8653 = vpop.f32.mrf.mxu0
          %v8654 = vadd.f32 %v8565, %v8653
          %8655 = vmatmul.bf16.gmra.mxu0 %v8228
          %v8656 = vpop.f32.mrf.mxu0
          %v8657 = vadd.f32 %v8568, %v8656
          %v8658 = vpop.f32.mrf.mxu0
          %v8659 = vadd.f32 %v8570, %v8658
          %8660 = vmatmul.bf16.gmra.mxu0 %v8231
          %v8661 = vpop.f32.mrf.mxu0
          %v8662 = vadd.f32 %v8573, %v8661
          %v8663 = vpop.f32.mrf.mxu0
          %v8664 = vadd.f32 %v8575, %v8663
          %8665 = vmatmul.bf16.gmra.mxu0 %v8234
          %v8666 = vpop.f32.mrf.mxu0
          %v8667 = vadd.f32 %v8578, %v8666
          %v8668 = vpop.f32.mrf.mxu0
          %v8669 = vadd.f32 %v8580, %v8668
          %8670 = vmatmul.bf16.gmra.mxu0 %v8237
          %v8671 = vpop.f32.mrf.mxu0
          %v8672 = vadd.f32 %v8583, %v8671
          %v8673 = vpop.f32.mrf.mxu0
          %v8674 = vadd.f32 %v8585, %v8673
          %8675 = vmatmul.bf16.gmra.mxu0 %v8240
          %v8676 = vpop.f32.mrf.mxu0
          %v8677 = vadd.f32 %v8588, %v8676
          %v8678 = vpop.f32.mrf.mxu0
          %v8679 = vadd.f32 %v8590, %v8678
          %8680 = vmatmul.bf16.gmra.mxu0 %v8243
          %v8681 = vpop.f32.mrf.mxu0
          %v8682 = vadd.f32 %v8593, %v8681
          %v8683 = vpop.f32.mrf.mxu0
          %v8684 = vadd.f32 %v8595, %v8683
          %8685 = vmatmul.bf16.gmra.mxu0 %v8246
          %v8686 = vpop.f32.mrf.mxu0
          %v8687 = vadd.f32 %v8598, %v8686
          %v8688 = vpop.f32.mrf.mxu0
          %v8689 = vadd.f32 %v8600, %v8688
          %8690 = vmatmul.bf16.gmra.mxu0 %v8249
          %v8691 = vpop.f32.mrf.mxu0
          %v8692 = vadd.f32 %v8603, %v8691
          %v8693 = vpop.f32.mrf.mxu0
          %v8694 = vadd.f32 %v8605, %v8693
          %8695 = vdwg.mxu0
          %v8696 = vld [vmem:[%s414 + $0x1] sm:$0xff]
          %v8697 = vld [vmem:[%s414 + $0x9] sm:$0xff]
          %v8698 = vld [vmem:[%s414 + $0x19] sm:$0xff]
          %v8699 = vld [vmem:[%s414 + $0x21] sm:$0xff]
          %v8700 = vld [vmem:[%s414 + $0x31] sm:$0xff]
          %v8701 = vld [vmem:[%s414 + $0x39] sm:$0xff]
          %v8702 = vld [vmem:[%s414 + $0x49] sm:$0xff]
          %v8703 = vld [vmem:[%s414 + $0x51] sm:$0xff]
          %v8704 = vld [vmem:[%s414 + $0x61] sm:$0xff]
          %v8705 = vld [vmem:[%s414 + $0x69] sm:$0xff]
          %v8706 = vld [vmem:[%s414 + $0x79] sm:$0xff]
          %v8707 = vld [vmem:[%s414 + $0x81] sm:$0xff]
          %v8708 = vld [vmem:[%s414 + $0x91] sm:$0xff]
          %v8709 = vld [vmem:[%s414 + $0x99] sm:$0xff]
          %v8710 = vld [vmem:[%s414 + $0xa9] sm:$0xff]
          %v8711 = vld [vmem:[%s414 + $0xb1] sm:$0xff]
          %v8712 = vld [vmem:[%s414 + $0xc1] sm:$0xff]
          %v8713 = vld [vmem:[%s414 + $0xc9] sm:$0xff]
          %v8714 = vld [vmem:[%s414 + $0xd9] sm:$0xff]
          %v8715 = vld [vmem:[%s414 + $0xe1] sm:$0xff]
          %v8716 = vld [vmem:[%s414 + $0xf1] sm:$0xff]
          %v8717 = vld [vmem:[%s414 + $0xf9] sm:$0xff]
          %v8718 = vld [vmem:[%s414 + $0x109] sm:$0xff]
          %v8719 = vld [vmem:[%s414 + $0x111] sm:$0xff]
          %v8720 = vld [vmem:[%s414 + $0x121] sm:$0xff]
          %v8721 = vld [vmem:[%s414 + $0x129] sm:$0xff]
          %v8722 = vld [vmem:[%s414 + $0x139] sm:$0xff]
          %v8723 = vld [vmem:[%s414 + $0x141] sm:$0xff]
          %v8724 = vld [vmem:[%s414 + $0x151] sm:$0xff]
          %v8725 = vld [vmem:[%s414 + $0x159] sm:$0xff]
          %v8726 = vld [vmem:[%s414 + $0x169] sm:$0xff]
          %v8727 = vld [vmem:[%s414 + $0x171] sm:$0xff]
          %v8728 = vadd.f32 %v8696, %v8617
          %v8729 = vadd.f32 %v8697, %v8619
          %v8730 = vadd.f32 %v8698, %v8622
          %v8731 = vadd.f32 %v8699, %v8624
          %v8732 = vadd.f32 %v8700, %v8627
          %v8733 = vadd.f32 %v8701, %v8629
          %v8734 = vadd.f32 %v8702, %v8632
          %v8735 = vadd.f32 %v8703, %v8634
          %v8736 = vadd.f32 %v8704, %v8637
          %v8737 = vadd.f32 %v8705, %v8639
          %v8738 = vadd.f32 %v8706, %v8642
          %v8739 = vadd.f32 %v8707, %v8644
          %v8740 = vadd.f32 %v8708, %v8647
          %v8741 = vadd.f32 %v8709, %v8649
          %v8742 = vadd.f32 %v8710, %v8652
          %v8743 = vadd.f32 %v8711, %v8654
          %v8744 = vadd.f32 %v8712, %v8657
          %v8745 = vadd.f32 %v8713, %v8659
          %v8746 = vadd.f32 %v8714, %v8662
          %v8747 = vadd.f32 %v8715, %v8664
          %v8748 = vadd.f32 %v8716, %v8667
          %v8749 = vadd.f32 %v8717, %v8669
          %v8750 = vadd.f32 %v8718, %v8672
          %v8751 = vadd.f32 %v8719, %v8674
          %v8752 = vadd.f32 %v8720, %v8677
          %v8753 = vadd.f32 %v8721, %v8679
          %v8754 = vadd.f32 %v8722, %v8682
          %v8755 = vadd.f32 %v8723, %v8684
          %v8756 = vadd.f32 %v8724, %v8687
          %v8757 = vadd.f32 %v8725, %v8689
          %v8758 = vadd.f32 %v8726, %v8692
          %v8759 = vadd.f32 %v8727, %v8694
          %8760 = vst.msk [vmem:[%s414 + $0x1] sm:$0xff] %vm272, %v8728
          %8761 = vst.msk [vmem:[%s414 + $0x9] sm:$0xff] %vm272, %v8729
          %8762 = vst.msk [vmem:[%s414 + $0x19] sm:$0xff] %vm272, %v8730
          %8763 = vst.msk [vmem:[%s414 + $0x21] sm:$0xff] %vm272, %v8731
          %8764 = vst.msk [vmem:[%s414 + $0x31] sm:$0xff] %vm272, %v8732
          %8765 = vst.msk [vmem:[%s414 + $0x39] sm:$0xff] %vm272, %v8733
          %8766 = vst.msk [vmem:[%s414 + $0x49] sm:$0xff] %vm272, %v8734
          %8767 = vst.msk [vmem:[%s414 + $0x51] sm:$0xff] %vm272, %v8735
          %8768 = vst.msk [vmem:[%s414 + $0x61] sm:$0xff] %vm272, %v8736
          %8769 = vst.msk [vmem:[%s414 + $0x69] sm:$0xff] %vm272, %v8737
          %8770 = vst.msk [vmem:[%s414 + $0x79] sm:$0xff] %vm272, %v8738
          %8771 = vst.msk [vmem:[%s414 + $0x81] sm:$0xff] %vm272, %v8739
          %8772 = vst.msk [vmem:[%s414 + $0x91] sm:$0xff] %vm272, %v8740
          %8773 = vst.msk [vmem:[%s414 + $0x99] sm:$0xff] %vm272, %v8741
          %8774 = vst.msk [vmem:[%s414 + $0xa9] sm:$0xff] %vm272, %v8742
          %8775 = vst.msk [vmem:[%s414 + $0xb1] sm:$0xff] %vm272, %v8743
          %8776 = vst.msk [vmem:[%s414 + $0xc1] sm:$0xff] %vm272, %v8744
          %8777 = vst.msk [vmem:[%s414 + $0xc9] sm:$0xff] %vm272, %v8745
          %8778 = vst.msk [vmem:[%s414 + $0xd9] sm:$0xff] %vm272, %v8746
          %8779 = vst.msk [vmem:[%s414 + $0xe1] sm:$0xff] %vm272, %v8747
          %8780 = vst.msk [vmem:[%s414 + $0xf1] sm:$0xff] %vm272, %v8748
          %8781 = vst.msk [vmem:[%s414 + $0xf9] sm:$0xff] %vm272, %v8749
          %8782 = vst.msk [vmem:[%s414 + $0x109] sm:$0xff] %vm272, %v8750
          %8783 = vst.msk [vmem:[%s414 + $0x111] sm:$0xff] %vm272, %v8751
          %8784 = vst.msk [vmem:[%s414 + $0x121] sm:$0xff] %vm272, %v8752
          %8785 = vst.msk [vmem:[%s414 + $0x129] sm:$0xff] %vm272, %v8753
          %8786 = vst.msk [vmem:[%s414 + $0x139] sm:$0xff] %vm272, %v8754
          %8787 = vst.msk [vmem:[%s414 + $0x141] sm:$0xff] %vm272, %v8755
          %8788 = vst.msk [vmem:[%s414 + $0x151] sm:$0xff] %vm272, %v8756
          %8789 = vst.msk [vmem:[%s414 + $0x159] sm:$0xff] %vm272, %v8757
          %8790 = vst.msk [vmem:[%s414 + $0x169] sm:$0xff] %vm272, %v8758
          %8791 = vst.msk [vmem:[%s414 + $0x171] sm:$0xff] %vm272, %v8759
        $region49: #{network_forward.1} parent=43 // loop_footer
          %s3240 = sadd.s32 1, %s3236
        $region50: #{network_forward.1} parent=43 // loop_footer_branch
          %3235 = sbr.rel target = $region46
        $region51: #{network_forward.1} parent=43 // loop_exit
          _
        %v8792 = vld [vmem:[%s4] sm:$0xff]
        %v8793 = vld [vmem:[%s4 + $0x8] sm:$0x1]
        %v8794 = vld [vmem:[#allocation2] sm:$0xff]
        %v8795 = vld [vmem:[#allocation2 + $0x8] sm:$0xff]
        %v8796 = vld [vmem:[#allocation2 + $0x18] sm:$0xff]
        %v8797 = vld [vmem:[#allocation2 + $0x20] sm:$0xff]
        %v8798 = vld [vmem:[#allocation2 + $0x30] sm:$0xff]
        %v8799 = vld [vmem:[#allocation2 + $0x38] sm:$0xff]
        %v8800 = vld [vmem:[#allocation2 + $0x48] sm:$0xff]
        %v8801 = vld [vmem:[#allocation2 + $0x50] sm:$0xff]
        %v8802 = vld [vmem:[#allocation2 + $0x60] sm:$0xff]
        %v8803 = vld [vmem:[#allocation2 + $0x68] sm:$0xff]
        %v8804 = vld [vmem:[#allocation2 + $0x78] sm:$0xff]
        %v8805 = vld [vmem:[#allocation2 + $0x80] sm:$0xff]
        %v8806 = vld [vmem:[#allocation2 + $0x90] sm:$0xff]
        %v8807 = vld [vmem:[#allocation2 + $0x98] sm:$0xff]
        %v8808 = vld [vmem:[#allocation2 + $0xa8] sm:$0xff]
        %v8809 = vld [vmem:[#allocation2 + $0xb0] sm:$0xff]
        %v8810 = vld [vmem:[#allocation2 + $0xc0] sm:$0xff]
        %v8811 = vld [vmem:[#allocation2 + $0xc8] sm:$0xff]
        %v8812 = vld [vmem:[#allocation2 + $0xd8] sm:$0xff]
        %v8813 = vld [vmem:[#allocation2 + $0xe0] sm:$0xff]
        %v8814 = vld [vmem:[#allocation2 + $0xf0] sm:$0xff]
        %v8815 = vld [vmem:[#allocation2 + $0xf8] sm:$0xff]
        %v8816 = vld [vmem:[#allocation2 + $0x108] sm:$0xff]
        %v8817 = vld [vmem:[#allocation2 + $0x110] sm:$0xff]
        %v8818 = vld [vmem:[#allocation2 + $0x120] sm:$0xff]
        %v8819 = vld [vmem:[#allocation2 + $0x128] sm:$0xff]
        %v8820 = vld [vmem:[#allocation2 + $0x138] sm:$0xff]
        %v8821 = vld [vmem:[#allocation2 + $0x140] sm:$0xff]
        %v8822 = vld [vmem:[#allocation2 + $0x150] sm:$0xff]
        %v8823 = vld [vmem:[#allocation2 + $0x158] sm:$0xff]
        %v8824 = vld [vmem:[#allocation2 + $0x168] sm:$0xff]
        %v8825 = vld [vmem:[#allocation2 + $0x170] sm:$0xff]
        %v8826 = vperm.slane %v8792, 0
        %v8827 = vmul.f32 %v8794, %v8826
        %v8828 = vmul.f32 %v8795, %v8826
        %v8829 = vmul.f32 %v8796, %v8826
        %v8830 = vmul.f32 %v8797, %v8826
        %v8831 = vmul.f32 %v8798, %v8826
        %v8832 = vmul.f32 %v8799, %v8826
        %v8833 = vmul.f32 %v8800, %v8826
        %v8834 = vmul.f32 %v8801, %v8826
        %v8835 = vmul.f32 %v8802, %v8826
        %v8836 = vmul.f32 %v8803, %v8826
        %v8837 = vmul.f32 %v8804, %v8826
        %v8838 = vmul.f32 %v8805, %v8826
        %v8839 = vmul.f32 %v8806, %v8826
        %v8840 = vmul.f32 %v8807, %v8826
        %v8841 = vmul.f32 %v8808, %v8826
        %v8842 = vmul.f32 %v8809, %v8826
        %v8843 = vmul.f32 %v8810, %v8826
        %v8844 = vmul.f32 %v8811, %v8826
        %v8845 = vmul.f32 %v8812, %v8826
        %v8846 = vmul.f32 %v8813, %v8826
        %v8847 = vmul.f32 %v8814, %v8826
        %v8848 = vmul.f32 %v8815, %v8826
        %v8849 = vmul.f32 %v8816, %v8826
        %v8850 = vmul.f32 %v8817, %v8826
        %v8851 = vmul.f32 %v8818, %v8826
        %v8852 = vmul.f32 %v8819, %v8826
        %v8853 = vmul.f32 %v8820, %v8826
        %v8854 = vmul.f32 %v8821, %v8826
        %v8855 = vmul.f32 %v8822, %v8826
        %v8856 = vmul.f32 %v8823, %v8826
        %v8857 = vmul.f32 %v8824, %v8826
        %v8858 = vmul.f32 %v8825, %v8826
        %v8859 = vadd.f32 %v8827, 0.0
        %v8860 = vadd.f32 %v8828, 0.0
        %v8861 = vadd.f32 %v8829, 0.0
        %v8862 = vadd.f32 %v8830, 0.0
        %v8863 = vadd.f32 %v8831, 0.0
        %v8864 = vadd.f32 %v8832, 0.0
        %v8865 = vadd.f32 %v8833, 0.0
        %v8866 = vadd.f32 %v8834, 0.0
        %v8867 = vadd.f32 %v8835, 0.0
        %v8868 = vadd.f32 %v8836, 0.0
        %v8869 = vadd.f32 %v8837, 0.0
        %v8870 = vadd.f32 %v8838, 0.0
        %v8871 = vadd.f32 %v8839, 0.0
        %v8872 = vadd.f32 %v8840, 0.0
        %v8873 = vadd.f32 %v8841, 0.0
        %v8874 = vadd.f32 %v8842, 0.0
        %v8875 = vadd.f32 %v8843, 0.0
        %v8876 = vadd.f32 %v8844, 0.0
        %v8877 = vadd.f32 %v8845, 0.0
        %v8878 = vadd.f32 %v8846, 0.0
        %v8879 = vadd.f32 %v8847, 0.0
        %v8880 = vadd.f32 %v8848, 0.0
        %v8881 = vadd.f32 %v8849, 0.0
        %v8882 = vadd.f32 %v8850, 0.0
        %v8883 = vadd.f32 %v8851, 0.0
        %v8884 = vadd.f32 %v8852, 0.0
        %v8885 = vadd.f32 %v8853, 0.0
        %v8886 = vadd.f32 %v8854, 0.0
        %v8887 = vadd.f32 %v8855, 0.0
        %v8888 = vadd.f32 %v8856, 0.0
        %v8889 = vadd.f32 %v8857, 0.0
        %v8890 = vadd.f32 %v8858, 0.0
        %v8891 = vld [vmem:[#allocation2 + $0x1] sm:$0xff]
        %v8892 = vld [vmem:[#allocation2 + $0x9] sm:$0xff]
        %v8893 = vld [vmem:[#allocation2 + $0x19] sm:$0xff]
        %v8894 = vld [vmem:[#allocation2 + $0x21] sm:$0xff]
        %v8895 = vld [vmem:[#allocation2 + $0x31] sm:$0xff]
        %v8896 = vld [vmem:[#allocation2 + $0x39] sm:$0xff]
        %v8897 = vld [vmem:[#allocation2 + $0x49] sm:$0xff]
        %v8898 = vld [vmem:[#allocation2 + $0x51] sm:$0xff]
        %v8899 = vld [vmem:[#allocation2 + $0x61] sm:$0xff]
        %v8900 = vld [vmem:[#allocation2 + $0x69] sm:$0xff]
        %v8901 = vld [vmem:[#allocation2 + $0x79] sm:$0xff]
        %v8902 = vld [vmem:[#allocation2 + $0x81] sm:$0xff]
        %v8903 = vld [vmem:[#allocation2 + $0x91] sm:$0xff]
        %v8904 = vld [vmem:[#allocation2 + $0x99] sm:$0xff]
        %v8905 = vld [vmem:[#allocation2 + $0xa9] sm:$0xff]
        %v8906 = vld [vmem:[#allocation2 + $0xb1] sm:$0xff]
        %v8907 = vld [vmem:[#allocation2 + $0xc1] sm:$0xff]
        %v8908 = vld [vmem:[#allocation2 + $0xc9] sm:$0xff]
        %v8909 = vld [vmem:[#allocation2 + $0xd9] sm:$0xff]
        %v8910 = vld [vmem:[#allocation2 + $0xe1] sm:$0xff]
        %v8911 = vld [vmem:[#allocation2 + $0xf1] sm:$0xff]
        %v8912 = vld [vmem:[#allocation2 + $0xf9] sm:$0xff]
        %v8913 = vld [vmem:[#allocation2 + $0x109] sm:$0xff]
        %v8914 = vld [vmem:[#allocation2 + $0x111] sm:$0xff]
        %v8915 = vld [vmem:[#allocation2 + $0x121] sm:$0xff]
        %v8916 = vld [vmem:[#allocation2 + $0x129] sm:$0xff]
        %v8917 = vld [vmem:[#allocation2 + $0x139] sm:$0xff]
        %v8918 = vld [vmem:[#allocation2 + $0x141] sm:$0xff]
        %v8919 = vld [vmem:[#allocation2 + $0x151] sm:$0xff]
        %v8920 = vld [vmem:[#allocation2 + $0x159] sm:$0xff]
        %v8921 = vld [vmem:[#allocation2 + $0x169] sm:$0xff]
        %v8922 = vld [vmem:[#allocation2 + $0x171] sm:$0xff]
        %v8923 = vperm.slane %v8792, 1
        %v8924 = vmul.f32 %v8891, %v8923
        %v8925 = vmul.f32 %v8892, %v8923
        %v8926 = vmul.f32 %v8893, %v8923
        %v8927 = vmul.f32 %v8894, %v8923
        %v8928 = vmul.f32 %v8895, %v8923
        %v8929 = vmul.f32 %v8896, %v8923
        %v8930 = vmul.f32 %v8897, %v8923
        %v8931 = vmul.f32 %v8898, %v8923
        %v8932 = vmul.f32 %v8899, %v8923
        %v8933 = vmul.f32 %v8900, %v8923
        %v8934 = vmul.f32 %v8901, %v8923
        %v8935 = vmul.f32 %v8902, %v8923
        %v8936 = vmul.f32 %v8903, %v8923
        %v8937 = vmul.f32 %v8904, %v8923
        %v8938 = vmul.f32 %v8905, %v8923
        %v8939 = vmul.f32 %v8906, %v8923
        %v8940 = vmul.f32 %v8907, %v8923
        %v8941 = vmul.f32 %v8908, %v8923
        %v8942 = vmul.f32 %v8909, %v8923
        %v8943 = vmul.f32 %v8910, %v8923
        %v8944 = vmul.f32 %v8911, %v8923
        %v8945 = vmul.f32 %v8912, %v8923
        %v8946 = vmul.f32 %v8913, %v8923
        %v8947 = vmul.f32 %v8914, %v8923
        %v8948 = vmul.f32 %v8915, %v8923
        %v8949 = vmul.f32 %v8916, %v8923
        %v8950 = vmul.f32 %v8917, %v8923
        %v8951 = vmul.f32 %v8918, %v8923
        %v8952 = vmul.f32 %v8919, %v8923
        %v8953 = vmul.f32 %v8920, %v8923
        %v8954 = vmul.f32 %v8921, %v8923
        %v8955 = vmul.f32 %v8922, %v8923
        %v8956 = vadd.f32 %v8859, %v8924
        %v8957 = vadd.f32 %v8860, %v8925
        %v8958 = vadd.f32 %v8861, %v8926
        %v8959 = vadd.f32 %v8862, %v8927
        %v8960 = vadd.f32 %v8863, %v8928
        %v8961 = vadd.f32 %v8864, %v8929
        %v8962 = vadd.f32 %v8865, %v8930
        %v8963 = vadd.f32 %v8866, %v8931
        %v8964 = vadd.f32 %v8867, %v8932
        %v8965 = vadd.f32 %v8868, %v8933
        %v8966 = vadd.f32 %v8869, %v8934
        %v8967 = vadd.f32 %v8870, %v8935
        %v8968 = vadd.f32 %v8871, %v8936
        %v8969 = vadd.f32 %v8872, %v8937
        %v8970 = vadd.f32 %v8873, %v8938
        %v8971 = vadd.f32 %v8874, %v8939
        %v8972 = vadd.f32 %v8875, %v8940
        %v8973 = vadd.f32 %v8876, %v8941
        %v8974 = vadd.f32 %v8877, %v8942
        %v8975 = vadd.f32 %v8878, %v8943
        %v8976 = vadd.f32 %v8879, %v8944
        %v8977 = vadd.f32 %v8880, %v8945
        %v8978 = vadd.f32 %v8881, %v8946
        %v8979 = vadd.f32 %v8882, %v8947
        %v8980 = vadd.f32 %v8883, %v8948
        %v8981 = vadd.f32 %v8884, %v8949
        %v8982 = vadd.f32 %v8885, %v8950
        %v8983 = vadd.f32 %v8886, %v8951
        %v8984 = vadd.f32 %v8887, %v8952
        %v8985 = vadd.f32 %v8888, %v8953
        %v8986 = vadd.f32 %v8889, %v8954
        %v8987 = vadd.f32 %v8890, %v8955
        %v8988 = vld [vmem:[#allocation2 + $0x2] sm:$0xff]
        %v8989 = vld [vmem:[#allocation2 + $0xa] sm:$0xff]
        %v8990 = vld [vmem:[#allocation2 + $0x1a] sm:$0xff]
        %v8991 = vld [vmem:[#allocation2 + $0x22] sm:$0xff]
        %v8992 = vld [vmem:[#allocation2 + $0x32] sm:$0xff]
        %v8993 = vld [vmem:[#allocation2 + $0x3a] sm:$0xff]
        %v8994 = vld [vmem:[#allocation2 + $0x4a] sm:$0xff]
        %v8995 = vld [vmem:[#allocation2 + $0x52] sm:$0xff]
        %v8996 = vld [vmem:[#allocation2 + $0x62] sm:$0xff]
        %v8997 = vld [vmem:[#allocation2 + $0x6a] sm:$0xff]
        %v8998 = vld [vmem:[#allocation2 + $0x7a] sm:$0xff]
        %v8999 = vld [vmem:[#allocation2 + $0x82] sm:$0xff]
        %v9000 = vld [vmem:[#allocation2 + $0x92] sm:$0xff]
        %v9001 = vld [vmem:[#allocation2 + $0x9a] sm:$0xff]
        %v9002 = vld [vmem:[#allocation2 + $0xaa] sm:$0xff]
        %v9003 = vld [vmem:[#allocation2 + $0xb2] sm:$0xff]
        %v9004 = vld [vmem:[#allocation2 + $0xc2] sm:$0xff]
        %v9005 = vld [vmem:[#allocation2 + $0xca] sm:$0xff]
        %v9006 = vld [vmem:[#allocation2 + $0xda] sm:$0xff]
        %v9007 = vld [vmem:[#allocation2 + $0xe2] sm:$0xff]
        %v9008 = vld [vmem:[#allocation2 + $0xf2] sm:$0xff]
        %v9009 = vld [vmem:[#allocation2 + $0xfa] sm:$0xff]
        %v9010 = vld [vmem:[#allocation2 + $0x10a] sm:$0xff]
        %v9011 = vld [vmem:[#allocation2 + $0x112] sm:$0xff]
        %v9012 = vld [vmem:[#allocation2 + $0x122] sm:$0xff]
        %v9013 = vld [vmem:[#allocation2 + $0x12a] sm:$0xff]
        %v9014 = vld [vmem:[#allocation2 + $0x13a] sm:$0xff]
        %v9015 = vld [vmem:[#allocation2 + $0x142] sm:$0xff]
        %v9016 = vld [vmem:[#allocation2 + $0x152] sm:$0xff]
        %v9017 = vld [vmem:[#allocation2 + $0x15a] sm:$0xff]
        %v9018 = vld [vmem:[#allocation2 + $0x16a] sm:$0xff]
        %v9019 = vld [vmem:[#allocation2 + $0x172] sm:$0xff]
        %v9020 = vperm.slane %v8792, 2
        %v9021 = vmul.f32 %v8988, %v9020
        %v9022 = vmul.f32 %v8989, %v9020
        %v9023 = vmul.f32 %v8990, %v9020
        %v9024 = vmul.f32 %v8991, %v9020
        %v9025 = vmul.f32 %v8992, %v9020
        %v9026 = vmul.f32 %v8993, %v9020
        %v9027 = vmul.f32 %v8994, %v9020
        %v9028 = vmul.f32 %v8995, %v9020
        %v9029 = vmul.f32 %v8996, %v9020
        %v9030 = vmul.f32 %v8997, %v9020
        %v9031 = vmul.f32 %v8998, %v9020
        %v9032 = vmul.f32 %v8999, %v9020
        %v9033 = vmul.f32 %v9000, %v9020
        %v9034 = vmul.f32 %v9001, %v9020
        %v9035 = vmul.f32 %v9002, %v9020
        %v9036 = vmul.f32 %v9003, %v9020
        %v9037 = vmul.f32 %v9004, %v9020
        %v9038 = vmul.f32 %v9005, %v9020
        %v9039 = vmul.f32 %v9006, %v9020
        %v9040 = vmul.f32 %v9007, %v9020
        %v9041 = vmul.f32 %v9008, %v9020
        %v9042 = vmul.f32 %v9009, %v9020
        %v9043 = vmul.f32 %v9010, %v9020
        %v9044 = vmul.f32 %v9011, %v9020
        %v9045 = vmul.f32 %v9012, %v9020
        %v9046 = vmul.f32 %v9013, %v9020
        %v9047 = vmul.f32 %v9014, %v9020
        %v9048 = vmul.f32 %v9015, %v9020
        %v9049 = vmul.f32 %v9016, %v9020
        %v9050 = vmul.f32 %v9017, %v9020
        %v9051 = vmul.f32 %v9018, %v9020
        %v9052 = vmul.f32 %v9019, %v9020
        %v9053 = vadd.f32 %v8956, %v9021
        %v9054 = vadd.f32 %v8957, %v9022
        %v9055 = vadd.f32 %v8958, %v9023
        %v9056 = vadd.f32 %v8959, %v9024
        %v9057 = vadd.f32 %v8960, %v9025
        %v9058 = vadd.f32 %v8961, %v9026
        %v9059 = vadd.f32 %v8962, %v9027
        %v9060 = vadd.f32 %v8963, %v9028
        %v9061 = vadd.f32 %v8964, %v9029
        %v9062 = vadd.f32 %v8965, %v9030
        %v9063 = vadd.f32 %v8966, %v9031
        %v9064 = vadd.f32 %v8967, %v9032
        %v9065 = vadd.f32 %v8968, %v9033
        %v9066 = vadd.f32 %v8969, %v9034
        %v9067 = vadd.f32 %v8970, %v9035
        %v9068 = vadd.f32 %v8971, %v9036
        %v9069 = vadd.f32 %v8972, %v9037
        %v9070 = vadd.f32 %v8973, %v9038
        %v9071 = vadd.f32 %v8974, %v9039
        %v9072 = vadd.f32 %v8975, %v9040
        %v9073 = vadd.f32 %v8976, %v9041
        %v9074 = vadd.f32 %v8977, %v9042
        %v9075 = vadd.f32 %v8978, %v9043
        %v9076 = vadd.f32 %v8979, %v9044
        %v9077 = vadd.f32 %v8980, %v9045
        %v9078 = vadd.f32 %v8981, %v9046
        %v9079 = vadd.f32 %v8982, %v9047
        %v9080 = vadd.f32 %v8983, %v9048
        %v9081 = vadd.f32 %v8984, %v9049
        %v9082 = vadd.f32 %v8985, %v9050
        %v9083 = vadd.f32 %v8986, %v9051
        %v9084 = vadd.f32 %v8987, %v9052
        %v9085 = vld [vmem:[%s414] sm:$0xff]
        %v9086 = vld [vmem:[%s414 + $0x8] sm:$0xff]
        %v9087 = vld [vmem:[%s414 + $0x18] sm:$0xff]
        %v9088 = vld [vmem:[%s414 + $0x20] sm:$0xff]
        %v9089 = vld [vmem:[%s414 + $0x30] sm:$0xff]
        %v9090 = vld [vmem:[%s414 + $0x38] sm:$0xff]
        %v9091 = vld [vmem:[%s414 + $0x48] sm:$0xff]
        %v9092 = vld [vmem:[%s414 + $0x50] sm:$0xff]
        %v9093 = vld [vmem:[%s414 + $0x60] sm:$0xff]
        %v9094 = vld [vmem:[%s414 + $0x68] sm:$0xff]
        %v9095 = vld [vmem:[%s414 + $0x78] sm:$0xff]
        %v9096 = vld [vmem:[%s414 + $0x80] sm:$0xff]
        %v9097 = vld [vmem:[%s414 + $0x90] sm:$0xff]
        %v9098 = vld [vmem:[%s414 + $0x98] sm:$0xff]
        %v9099 = vld [vmem:[%s414 + $0xa8] sm:$0xff]
        %v9100 = vld [vmem:[%s414 + $0xb0] sm:$0xff]
        %v9101 = vld [vmem:[%s414 + $0xc0] sm:$0xff]
        %v9102 = vld [vmem:[%s414 + $0xc8] sm:$0xff]
        %v9103 = vld [vmem:[%s414 + $0xd8] sm:$0xff]
        %v9104 = vld [vmem:[%s414 + $0xe0] sm:$0xff]
        %v9105 = vld [vmem:[%s414 + $0xf0] sm:$0xff]
        %v9106 = vld [vmem:[%s414 + $0xf8] sm:$0xff]
        %v9107 = vld [vmem:[%s414 + $0x108] sm:$0xff]
        %v9108 = vld [vmem:[%s414 + $0x110] sm:$0xff]
        %v9109 = vld [vmem:[%s414 + $0x120] sm:$0xff]
        %v9110 = vld [vmem:[%s414 + $0x128] sm:$0xff]
        %v9111 = vld [vmem:[%s414 + $0x138] sm:$0xff]
        %v9112 = vld [vmem:[%s414 + $0x140] sm:$0xff]
        %v9113 = vld [vmem:[%s414 + $0x150] sm:$0xff]
        %v9114 = vld [vmem:[%s414 + $0x158] sm:$0xff]
        %v9115 = vld [vmem:[%s414 + $0x168] sm:$0xff]
        %v9116 = vld [vmem:[%s414 + $0x170] sm:$0xff]
        %v9117 = vperm.slane %v8792, 3
        %v9118 = vmul.f32 %v9085, %v9117
        %v9119 = vmul.f32 %v9086, %v9117
        %v9120 = vmul.f32 %v9087, %v9117
        %v9121 = vmul.f32 %v9088, %v9117
        %v9122 = vmul.f32 %v9089, %v9117
        %v9123 = vmul.f32 %v9090, %v9117
        %v9124 = vmul.f32 %v9091, %v9117
        %v9125 = vmul.f32 %v9092, %v9117
        %v9126 = vmul.f32 %v9093, %v9117
        %v9127 = vmul.f32 %v9094, %v9117
        %v9128 = vmul.f32 %v9095, %v9117
        %v9129 = vmul.f32 %v9096, %v9117
        %v9130 = vmul.f32 %v9097, %v9117
        %v9131 = vmul.f32 %v9098, %v9117
        %v9132 = vmul.f32 %v9099, %v9117
        %v9133 = vmul.f32 %v9100, %v9117
        %v9134 = vmul.f32 %v9101, %v9117
        %v9135 = vmul.f32 %v9102, %v9117
        %v9136 = vmul.f32 %v9103, %v9117
        %v9137 = vmul.f32 %v9104, %v9117
        %v9138 = vmul.f32 %v9105, %v9117
        %v9139 = vmul.f32 %v9106, %v9117
        %v9140 = vmul.f32 %v9107, %v9117
        %v9141 = vmul.f32 %v9108, %v9117
        %v9142 = vmul.f32 %v9109, %v9117
        %v9143 = vmul.f32 %v9110, %v9117
        %v9144 = vmul.f32 %v9111, %v9117
        %v9145 = vmul.f32 %v9112, %v9117
        %v9146 = vmul.f32 %v9113, %v9117
        %v9147 = vmul.f32 %v9114, %v9117
        %v9148 = vmul.f32 %v9115, %v9117
        %v9149 = vmul.f32 %v9116, %v9117
        %v9150 = vadd.f32 %v9053, %v9118
        %v9151 = vadd.f32 %v9054, %v9119
        %v9152 = vadd.f32 %v9055, %v9120
        %v9153 = vadd.f32 %v9056, %v9121
        %v9154 = vadd.f32 %v9057, %v9122
        %v9155 = vadd.f32 %v9058, %v9123
        %v9156 = vadd.f32 %v9059, %v9124
        %v9157 = vadd.f32 %v9060, %v9125
        %v9158 = vadd.f32 %v9061, %v9126
        %v9159 = vadd.f32 %v9062, %v9127
        %v9160 = vadd.f32 %v9063, %v9128
        %v9161 = vadd.f32 %v9064, %v9129
        %v9162 = vadd.f32 %v9065, %v9130
        %v9163 = vadd.f32 %v9066, %v9131
        %v9164 = vadd.f32 %v9067, %v9132
        %v9165 = vadd.f32 %v9068, %v9133
        %v9166 = vadd.f32 %v9069, %v9134
        %v9167 = vadd.f32 %v9070, %v9135
        %v9168 = vadd.f32 %v9071, %v9136
        %v9169 = vadd.f32 %v9072, %v9137
        %v9170 = vadd.f32 %v9073, %v9138
        %v9171 = vadd.f32 %v9074, %v9139
        %v9172 = vadd.f32 %v9075, %v9140
        %v9173 = vadd.f32 %v9076, %v9141
        %v9174 = vadd.f32 %v9077, %v9142
        %v9175 = vadd.f32 %v9078, %v9143
        %v9176 = vadd.f32 %v9079, %v9144
        %v9177 = vadd.f32 %v9080, %v9145
        %v9178 = vadd.f32 %v9081, %v9146
        %v9179 = vadd.f32 %v9082, %v9147
        %v9180 = vadd.f32 %v9083, %v9148
        %v9181 = vadd.f32 %v9084, %v9149
        %v9182 = vld [vmem:[%s414 + $0x1] sm:$0xff]
        %v9183 = vld [vmem:[%s414 + $0x9] sm:$0xff]
        %v9184 = vld [vmem:[%s414 + $0x19] sm:$0xff]
        %v9185 = vld [vmem:[%s414 + $0x21] sm:$0xff]
        %v9186 = vld [vmem:[%s414 + $0x31] sm:$0xff]
        %v9187 = vld [vmem:[%s414 + $0x39] sm:$0xff]
        %v9188 = vld [vmem:[%s414 + $0x49] sm:$0xff]
        %v9189 = vld [vmem:[%s414 + $0x51] sm:$0xff]
        %v9190 = vld [vmem:[%s414 + $0x61] sm:$0xff]
        %v9191 = vld [vmem:[%s414 + $0x69] sm:$0xff]
        %v9192 = vld [vmem:[%s414 + $0x79] sm:$0xff]
        %v9193 = vld [vmem:[%s414 + $0x81] sm:$0xff]
        %v9194 = vld [vmem:[%s414 + $0x91] sm:$0xff]
        %v9195 = vld [vmem:[%s414 + $0x99] sm:$0xff]
        %v9196 = vld [vmem:[%s414 + $0xa9] sm:$0xff]
        %v9197 = vld [vmem:[%s414 + $0xb1] sm:$0xff]
        %v9198 = vld [vmem:[%s414 + $0xc1] sm:$0xff]
        %v9199 = vld [vmem:[%s414 + $0xc9] sm:$0xff]
        %v9200 = vld [vmem:[%s414 + $0xd9] sm:$0xff]
        %v9201 = vld [vmem:[%s414 + $0xe1] sm:$0xff]
        %v9202 = vld [vmem:[%s414 + $0xf1] sm:$0xff]
        %v9203 = vld [vmem:[%s414 + $0xf9] sm:$0xff]
        %v9204 = vld [vmem:[%s414 + $0x109] sm:$0xff]
        %v9205 = vld [vmem:[%s414 + $0x111] sm:$0xff]
        %v9206 = vld [vmem:[%s414 + $0x121] sm:$0xff]
        %v9207 = vld [vmem:[%s414 + $0x129] sm:$0xff]
        %v9208 = vld [vmem:[%s414 + $0x139] sm:$0xff]
        %v9209 = vld [vmem:[%s414 + $0x141] sm:$0xff]
        %v9210 = vld [vmem:[%s414 + $0x151] sm:$0xff]
        %v9211 = vld [vmem:[%s414 + $0x159] sm:$0xff]
        %v9212 = vld [vmem:[%s414 + $0x169] sm:$0xff]
        %v9213 = vld [vmem:[%s414 + $0x171] sm:$0xff]
        %v9214 = vperm.slane %v8792, 4
        %v9215 = vmul.f32 %v9182, %v9214
        %v9216 = vmul.f32 %v9183, %v9214
        %v9217 = vmul.f32 %v9184, %v9214
        %v9218 = vmul.f32 %v9185, %v9214
        %v9219 = vmul.f32 %v9186, %v9214
        %v9220 = vmul.f32 %v9187, %v9214
        %v9221 = vmul.f32 %v9188, %v9214
        %v9222 = vmul.f32 %v9189, %v9214
        %v9223 = vmul.f32 %v9190, %v9214
        %v9224 = vmul.f32 %v9191, %v9214
        %v9225 = vmul.f32 %v9192, %v9214
        %v9226 = vmul.f32 %v9193, %v9214
        %v9227 = vmul.f32 %v9194, %v9214
        %v9228 = vmul.f32 %v9195, %v9214
        %v9229 = vmul.f32 %v9196, %v9214
        %v9230 = vmul.f32 %v9197, %v9214
        %v9231 = vmul.f32 %v9198, %v9214
        %v9232 = vmul.f32 %v9199, %v9214
        %v9233 = vmul.f32 %v9200, %v9214
        %v9234 = vmul.f32 %v9201, %v9214
        %v9235 = vmul.f32 %v9202, %v9214
        %v9236 = vmul.f32 %v9203, %v9214
        %v9237 = vmul.f32 %v9204, %v9214
        %v9238 = vmul.f32 %v9205, %v9214
        %v9239 = vmul.f32 %v9206, %v9214
        %v9240 = vmul.f32 %v9207, %v9214
        %v9241 = vmul.f32 %v9208, %v9214
        %v9242 = vmul.f32 %v9209, %v9214
        %v9243 = vmul.f32 %v9210, %v9214
        %v9244 = vmul.f32 %v9211, %v9214
        %v9245 = vmul.f32 %v9212, %v9214
        %v9246 = vmul.f32 %v9213, %v9214
        %v9247 = vadd.f32 %v9150, %v9215
        %v9248 = vadd.f32 %v9151, %v9216
        %v9249 = vadd.f32 %v9152, %v9217
        %v9250 = vadd.f32 %v9153, %v9218
        %v9251 = vadd.f32 %v9154, %v9219
        %v9252 = vadd.f32 %v9155, %v9220
        %v9253 = vadd.f32 %v9156, %v9221
        %v9254 = vadd.f32 %v9157, %v9222
        %v9255 = vadd.f32 %v9158, %v9223
        %v9256 = vadd.f32 %v9159, %v9224
        %v9257 = vadd.f32 %v9160, %v9225
        %v9258 = vadd.f32 %v9161, %v9226
        %v9259 = vadd.f32 %v9162, %v9227
        %v9260 = vadd.f32 %v9163, %v9228
        %v9261 = vadd.f32 %v9164, %v9229
        %v9262 = vadd.f32 %v9165, %v9230
        %v9263 = vadd.f32 %v9166, %v9231
        %v9264 = vadd.f32 %v9167, %v9232
        %v9265 = vadd.f32 %v9168, %v9233
        %v9266 = vadd.f32 %v9169, %v9234
        %v9267 = vadd.f32 %v9170, %v9235
        %v9268 = vadd.f32 %v9171, %v9236
        %v9269 = vadd.f32 %v9172, %v9237
        %v9270 = vadd.f32 %v9173, %v9238
        %v9271 = vadd.f32 %v9174, %v9239
        %v9272 = vadd.f32 %v9175, %v9240
        %v9273 = vadd.f32 %v9176, %v9241
        %v9274 = vadd.f32 %v9177, %v9242
        %v9275 = vadd.f32 %v9178, %v9243
        %v9276 = vadd.f32 %v9179, %v9244
        %v9277 = vadd.f32 %v9180, %v9245
        %v9278 = vadd.f32 %v9181, %v9246
        %v9279 = vld [vmem:[%s414 + $0x2] sm:$0xff]
        %v9280 = vld [vmem:[%s414 + $0xa] sm:$0xff]
        %v9281 = vld [vmem:[%s414 + $0x1a] sm:$0xff]
        %v9282 = vld [vmem:[%s414 + $0x22] sm:$0xff]
        %v9283 = vld [vmem:[%s414 + $0x32] sm:$0xff]
        %v9284 = vld [vmem:[%s414 + $0x3a] sm:$0xff]
        %v9285 = vld [vmem:[%s414 + $0x4a] sm:$0xff]
        %v9286 = vld [vmem:[%s414 + $0x52] sm:$0xff]
        %v9287 = vld [vmem:[%s414 + $0x62] sm:$0xff]
        %v9288 = vld [vmem:[%s414 + $0x6a] sm:$0xff]
        %v9289 = vld [vmem:[%s414 + $0x7a] sm:$0xff]
        %v9290 = vld [vmem:[%s414 + $0x82] sm:$0xff]
        %v9291 = vld [vmem:[%s414 + $0x92] sm:$0xff]
        %v9292 = vld [vmem:[%s414 + $0x9a] sm:$0xff]
        %v9293 = vld [vmem:[%s414 + $0xaa] sm:$0xff]
        %v9294 = vld [vmem:[%s414 + $0xb2] sm:$0xff]
        %v9295 = vld [vmem:[%s414 + $0xc2] sm:$0xff]
        %v9296 = vld [vmem:[%s414 + $0xca] sm:$0xff]
        %v9297 = vld [vmem:[%s414 + $0xda] sm:$0xff]
        %v9298 = vld [vmem:[%s414 + $0xe2] sm:$0xff]
        %v9299 = vld [vmem:[%s414 + $0xf2] sm:$0xff]
        %v9300 = vld [vmem:[%s414 + $0xfa] sm:$0xff]
        %v9301 = vld [vmem:[%s414 + $0x10a] sm:$0xff]
        %v9302 = vld [vmem:[%s414 + $0x112] sm:$0xff]
        %v9303 = vld [vmem:[%s414 + $0x122] sm:$0xff]
        %v9304 = vld [vmem:[%s414 + $0x12a] sm:$0xff]
        %v9305 = vld [vmem:[%s414 + $0x13a] sm:$0xff]
        %v9306 = vld [vmem:[%s414 + $0x142] sm:$0xff]
        %v9307 = vld [vmem:[%s414 + $0x152] sm:$0xff]
        %v9308 = vld [vmem:[%s414 + $0x15a] sm:$0xff]
        %v9309 = vld [vmem:[%s414 + $0x16a] sm:$0xff]
        %v9310 = vld [vmem:[%s414 + $0x172] sm:$0xff]
        %v9311 = vperm.slane %v8792, 5
        %v9312 = vmul.f32 %v9279, %v9311
        %v9313 = vmul.f32 %v9280, %v9311
        %v9314 = vmul.f32 %v9281, %v9311
        %v9315 = vmul.f32 %v9282, %v9311
        %v9316 = vmul.f32 %v9283, %v9311
        %v9317 = vmul.f32 %v9284, %v9311
        %v9318 = vmul.f32 %v9285, %v9311
        %v9319 = vmul.f32 %v9286, %v9311
        %v9320 = vmul.f32 %v9287, %v9311
        %v9321 = vmul.f32 %v9288, %v9311
        %v9322 = vmul.f32 %v9289, %v9311
        %v9323 = vmul.f32 %v9290, %v9311
        %v9324 = vmul.f32 %v9291, %v9311
        %v9325 = vmul.f32 %v9292, %v9311
        %v9326 = vmul.f32 %v9293, %v9311
        %v9327 = vmul.f32 %v9294, %v9311
        %v9328 = vmul.f32 %v9295, %v9311
        %v9329 = vmul.f32 %v9296, %v9311
        %v9330 = vmul.f32 %v9297, %v9311
        %v9331 = vmul.f32 %v9298, %v9311
        %v9332 = vmul.f32 %v9299, %v9311
        %v9333 = vmul.f32 %v9300, %v9311
        %v9334 = vmul.f32 %v9301, %v9311
        %v9335 = vmul.f32 %v9302, %v9311
        %v9336 = vmul.f32 %v9303, %v9311
        %v9337 = vmul.f32 %v9304, %v9311
        %v9338 = vmul.f32 %v9305, %v9311
        %v9339 = vmul.f32 %v9306, %v9311
        %v9340 = vmul.f32 %v9307, %v9311
        %v9341 = vmul.f32 %v9308, %v9311
        %v9342 = vmul.f32 %v9309, %v9311
        %v9343 = vmul.f32 %v9310, %v9311
        %v9344 = vadd.f32 %v9247, %v9312
        %v9345 = vadd.f32 %v9248, %v9313
        %v9346 = vadd.f32 %v9249, %v9314
        %v9347 = vadd.f32 %v9250, %v9315
        %v9348 = vadd.f32 %v9251, %v9316
        %v9349 = vadd.f32 %v9252, %v9317
        %v9350 = vadd.f32 %v9253, %v9318
        %v9351 = vadd.f32 %v9254, %v9319
        %v9352 = vadd.f32 %v9255, %v9320
        %v9353 = vadd.f32 %v9256, %v9321
        %v9354 = vadd.f32 %v9257, %v9322
        %v9355 = vadd.f32 %v9258, %v9323
        %v9356 = vadd.f32 %v9259, %v9324
        %v9357 = vadd.f32 %v9260, %v9325
        %v9358 = vadd.f32 %v9261, %v9326
        %v9359 = vadd.f32 %v9262, %v9327
        %v9360 = vadd.f32 %v9263, %v9328
        %v9361 = vadd.f32 %v9264, %v9329
        %v9362 = vadd.f32 %v9265, %v9330
        %v9363 = vadd.f32 %v9266, %v9331
        %v9364 = vadd.f32 %v9267, %v9332
        %v9365 = vadd.f32 %v9268, %v9333
        %v9366 = vadd.f32 %v9269, %v9334
        %v9367 = vadd.f32 %v9270, %v9335
        %v9368 = vadd.f32 %v9271, %v9336
        %v9369 = vadd.f32 %v9272, %v9337
        %v9370 = vadd.f32 %v9273, %v9338
        %v9371 = vadd.f32 %v9274, %v9339
        %v9372 = vadd.f32 %v9275, %v9340
        %v9373 = vadd.f32 %v9276, %v9341
        %v9374 = vadd.f32 %v9277, %v9342
        %v9375 = vadd.f32 %v9278, %v9343
        %v9376 = vld [vmem:[%s1481] sm:$0xff]
        %v9377 = vld [vmem:[%s1481 + $0x8] sm:$0xff]
        %v9378 = vld [vmem:[%s1481 + $0x18] sm:$0xff]
        %v9379 = vld [vmem:[%s1481 + $0x20] sm:$0xff]
        %v9380 = vld [vmem:[%s1481 + $0x30] sm:$0xff]
        %v9381 = vld [vmem:[%s1481 + $0x38] sm:$0xff]
        %v9382 = vld [vmem:[%s1481 + $0x48] sm:$0xff]
        %v9383 = vld [vmem:[%s1481 + $0x50] sm:$0xff]
        %v9384 = vld [vmem:[%s1481 + $0x60] sm:$0xff]
        %v9385 = vld [vmem:[%s1481 + $0x68] sm:$0xff]
        %v9386 = vld [vmem:[%s1481 + $0x78] sm:$0xff]
        %v9387 = vld [vmem:[%s1481 + $0x80] sm:$0xff]
        %v9388 = vld [vmem:[%s1481 + $0x90] sm:$0xff]
        %v9389 = vld [vmem:[%s1481 + $0x98] sm:$0xff]
        %v9390 = vld [vmem:[%s1481 + $0xa8] sm:$0xff]
        %v9391 = vld [vmem:[%s1481 + $0xb0] sm:$0xff]
        %v9392 = vld [vmem:[%s1481 + $0xc0] sm:$0xff]
        %v9393 = vld [vmem:[%s1481 + $0xc8] sm:$0xff]
        %v9394 = vld [vmem:[%s1481 + $0xd8] sm:$0xff]
        %v9395 = vld [vmem:[%s1481 + $0xe0] sm:$0xff]
        %v9396 = vld [vmem:[%s1481 + $0xf0] sm:$0xff]
        %v9397 = vld [vmem:[%s1481 + $0xf8] sm:$0xff]
        %v9398 = vld [vmem:[%s1481 + $0x108] sm:$0xff]
        %v9399 = vld [vmem:[%s1481 + $0x110] sm:$0xff]
        %v9400 = vld [vmem:[%s1481 + $0x120] sm:$0xff]
        %v9401 = vld [vmem:[%s1481 + $0x128] sm:$0xff]
        %v9402 = vld [vmem:[%s1481 + $0x138] sm:$0xff]
        %v9403 = vld [vmem:[%s1481 + $0x140] sm:$0xff]
        %v9404 = vld [vmem:[%s1481 + $0x150] sm:$0xff]
        %v9405 = vld [vmem:[%s1481 + $0x158] sm:$0xff]
        %v9406 = vld [vmem:[%s1481 + $0x168] sm:$0xff]
        %v9407 = vld [vmem:[%s1481 + $0x170] sm:$0xff]
        %v9408 = vperm.slane %v8792, 6
        %v9409 = vmul.f32 %v9376, %v9408
        %v9410 = vmul.f32 %v9377, %v9408
        %v9411 = vmul.f32 %v9378, %v9408
        %v9412 = vmul.f32 %v9379, %v9408
        %v9413 = vmul.f32 %v9380, %v9408
        %v9414 = vmul.f32 %v9381, %v9408
        %v9415 = vmul.f32 %v9382, %v9408
        %v9416 = vmul.f32 %v9383, %v9408
        %v9417 = vmul.f32 %v9384, %v9408
        %v9418 = vmul.f32 %v9385, %v9408
        %v9419 = vmul.f32 %v9386, %v9408
        %v9420 = vmul.f32 %v9387, %v9408
        %v9421 = vmul.f32 %v9388, %v9408
        %v9422 = vmul.f32 %v9389, %v9408
        %v9423 = vmul.f32 %v9390, %v9408
        %v9424 = vmul.f32 %v9391, %v9408
        %v9425 = vmul.f32 %v9392, %v9408
        %v9426 = vmul.f32 %v9393, %v9408
        %v9427 = vmul.f32 %v9394, %v9408
        %v9428 = vmul.f32 %v9395, %v9408
        %v9429 = vmul.f32 %v9396, %v9408
        %v9430 = vmul.f32 %v9397, %v9408
        %v9431 = vmul.f32 %v9398, %v9408
        %v9432 = vmul.f32 %v9399, %v9408
        %v9433 = vmul.f32 %v9400, %v9408
        %v9434 = vmul.f32 %v9401, %v9408
        %v9435 = vmul.f32 %v9402, %v9408
        %v9436 = vmul.f32 %v9403, %v9408
        %v9437 = vmul.f32 %v9404, %v9408
        %v9438 = vmul.f32 %v9405, %v9408
        %v9439 = vmul.f32 %v9406, %v9408
        %v9440 = vmul.f32 %v9407, %v9408
        %v9441 = vadd.f32 %v9344, %v9409
        %v9442 = vadd.f32 %v9345, %v9410
        %v9443 = vadd.f32 %v9346, %v9411
        %v9444 = vadd.f32 %v9347, %v9412
        %v9445 = vadd.f32 %v9348, %v9413
        %v9446 = vadd.f32 %v9349, %v9414
        %v9447 = vadd.f32 %v9350, %v9415
        %v9448 = vadd.f32 %v9351, %v9416
        %v9449 = vadd.f32 %v9352, %v9417
        %v9450 = vadd.f32 %v9353, %v9418
        %v9451 = vadd.f32 %v9354, %v9419
        %v9452 = vadd.f32 %v9355, %v9420
        %v9453 = vadd.f32 %v9356, %v9421
        %v9454 = vadd.f32 %v9357, %v9422
        %v9455 = vadd.f32 %v9358, %v9423
        %v9456 = vadd.f32 %v9359, %v9424
        %v9457 = vadd.f32 %v9360, %v9425
        %v9458 = vadd.f32 %v9361, %v9426
        %v9459 = vadd.f32 %v9362, %v9427
        %v9460 = vadd.f32 %v9363, %v9428
        %v9461 = vadd.f32 %v9364, %v9429
        %v9462 = vadd.f32 %v9365, %v9430
        %v9463 = vadd.f32 %v9366, %v9431
        %v9464 = vadd.f32 %v9367, %v9432
        %v9465 = vadd.f32 %v9368, %v9433
        %v9466 = vadd.f32 %v9369, %v9434
        %v9467 = vadd.f32 %v9370, %v9435
        %v9468 = vadd.f32 %v9371, %v9436
        %v9469 = vadd.f32 %v9372, %v9437
        %v9470 = vadd.f32 %v9373, %v9438
        %v9471 = vadd.f32 %v9374, %v9439
        %v9472 = vadd.f32 %v9375, %v9440
        %v9473 = vld [vmem:[%s1481 + $0x1] sm:$0xff]
        %v9474 = vld [vmem:[%s1481 + $0x9] sm:$0xff]
        %v9475 = vld [vmem:[%s1481 + $0x19] sm:$0xff]
        %v9476 = vld [vmem:[%s1481 + $0x21] sm:$0xff]
        %v9477 = vld [vmem:[%s1481 + $0x31] sm:$0xff]
        %v9478 = vld [vmem:[%s1481 + $0x39] sm:$0xff]
        %v9479 = vld [vmem:[%s1481 + $0x49] sm:$0xff]
        %v9480 = vld [vmem:[%s1481 + $0x51] sm:$0xff]
        %v9481 = vld [vmem:[%s1481 + $0x61] sm:$0xff]
        %v9482 = vld [vmem:[%s1481 + $0x69] sm:$0xff]
        %v9483 = vld [vmem:[%s1481 + $0x79] sm:$0xff]
        %v9484 = vld [vmem:[%s1481 + $0x81] sm:$0xff]
        %v9485 = vld [vmem:[%s1481 + $0x91] sm:$0xff]
        %v9486 = vld [vmem:[%s1481 + $0x99] sm:$0xff]
        %v9487 = vld [vmem:[%s1481 + $0xa9] sm:$0xff]
        %v9488 = vld [vmem:[%s1481 + $0xb1] sm:$0xff]
        %v9489 = vld [vmem:[%s1481 + $0xc1] sm:$0xff]
        %v9490 = vld [vmem:[%s1481 + $0xc9] sm:$0xff]
        %v9491 = vld [vmem:[%s1481 + $0xd9] sm:$0xff]
        %v9492 = vld [vmem:[%s1481 + $0xe1] sm:$0xff]
        %v9493 = vld [vmem:[%s1481 + $0xf1] sm:$0xff]
        %v9494 = vld [vmem:[%s1481 + $0xf9] sm:$0xff]
        %v9495 = vld [vmem:[%s1481 + $0x109] sm:$0xff]
        %v9496 = vld [vmem:[%s1481 + $0x111] sm:$0xff]
        %v9497 = vld [vmem:[%s1481 + $0x121] sm:$0xff]
        %v9498 = vld [vmem:[%s1481 + $0x129] sm:$0xff]
        %v9499 = vld [vmem:[%s1481 + $0x139] sm:$0xff]
        %v9500 = vld [vmem:[%s1481 + $0x141] sm:$0xff]
        %v9501 = vld [vmem:[%s1481 + $0x151] sm:$0xff]
        %v9502 = vld [vmem:[%s1481 + $0x159] sm:$0xff]
        %v9503 = vld [vmem:[%s1481 + $0x169] sm:$0xff]
        %v9504 = vld [vmem:[%s1481 + $0x171] sm:$0xff]
        %v9505 = vperm.slane %v8792, 7
        %v9506 = vmul.f32 %v9473, %v9505
        %v9507 = vmul.f32 %v9474, %v9505
        %v9508 = vmul.f32 %v9475, %v9505
        %v9509 = vmul.f32 %v9476, %v9505
        %v9510 = vmul.f32 %v9477, %v9505
        %v9511 = vmul.f32 %v9478, %v9505
        %v9512 = vmul.f32 %v9479, %v9505
        %v9513 = vmul.f32 %v9480, %v9505
        %v9514 = vmul.f32 %v9481, %v9505
        %v9515 = vmul.f32 %v9482, %v9505
        %v9516 = vmul.f32 %v9483, %v9505
        %v9517 = vmul.f32 %v9484, %v9505
        %v9518 = vmul.f32 %v9485, %v9505
        %v9519 = vmul.f32 %v9486, %v9505
        %v9520 = vmul.f32 %v9487, %v9505
        %v9521 = vmul.f32 %v9488, %v9505
        %v9522 = vmul.f32 %v9489, %v9505
        %v9523 = vmul.f32 %v9490, %v9505
        %v9524 = vmul.f32 %v9491, %v9505
        %v9525 = vmul.f32 %v9492, %v9505
        %v9526 = vmul.f32 %v9493, %v9505
        %v9527 = vmul.f32 %v9494, %v9505
        %v9528 = vmul.f32 %v9495, %v9505
        %v9529 = vmul.f32 %v9496, %v9505
        %v9530 = vmul.f32 %v9497, %v9505
        %v9531 = vmul.f32 %v9498, %v9505
        %v9532 = vmul.f32 %v9499, %v9505
        %v9533 = vmul.f32 %v9500, %v9505
        %v9534 = vmul.f32 %v9501, %v9505
        %v9535 = vmul.f32 %v9502, %v9505
        %v9536 = vmul.f32 %v9503, %v9505
        %v9537 = vmul.f32 %v9504, %v9505
        %v9538 = vadd.f32 %v9441, %v9506
        %v9539 = vadd.f32 %v9442, %v9507
        %v9540 = vadd.f32 %v9443, %v9508
        %v9541 = vadd.f32 %v9444, %v9509
        %v9542 = vadd.f32 %v9445, %v9510
        %v9543 = vadd.f32 %v9446, %v9511
        %v9544 = vadd.f32 %v9447, %v9512
        %v9545 = vadd.f32 %v9448, %v9513
        %v9546 = vadd.f32 %v9449, %v9514
        %v9547 = vadd.f32 %v9450, %v9515
        %v9548 = vadd.f32 %v9451, %v9516
        %v9549 = vadd.f32 %v9452, %v9517
        %v9550 = vadd.f32 %v9453, %v9518
        %v9551 = vadd.f32 %v9454, %v9519
        %v9552 = vadd.f32 %v9455, %v9520
        %v9553 = vadd.f32 %v9456, %v9521
        %v9554 = vadd.f32 %v9457, %v9522
        %v9555 = vadd.f32 %v9458, %v9523
        %v9556 = vadd.f32 %v9459, %v9524
        %v9557 = vadd.f32 %v9460, %v9525
        %v9558 = vadd.f32 %v9461, %v9526
        %v9559 = vadd.f32 %v9462, %v9527
        %v9560 = vadd.f32 %v9463, %v9528
        %v9561 = vadd.f32 %v9464, %v9529
        %v9562 = vadd.f32 %v9465, %v9530
        %v9563 = vadd.f32 %v9466, %v9531
        %v9564 = vadd.f32 %v9467, %v9532
        %v9565 = vadd.f32 %v9468, %v9533
        %v9566 = vadd.f32 %v9469, %v9534
        %v9567 = vadd.f32 %v9470, %v9535
        %v9568 = vadd.f32 %v9471, %v9536
        %v9569 = vadd.f32 %v9472, %v9537
        %v9570 = vld [vmem:[%s1481 + $0x2] sm:$0xff]
        %v9571 = vld [vmem:[%s1481 + $0xa] sm:$0xff]
        %v9572 = vld [vmem:[%s1481 + $0x1a] sm:$0xff]
        %v9573 = vld [vmem:[%s1481 + $0x22] sm:$0xff]
        %v9574 = vld [vmem:[%s1481 + $0x32] sm:$0xff]
        %v9575 = vld [vmem:[%s1481 + $0x3a] sm:$0xff]
        %v9576 = vld [vmem:[%s1481 + $0x4a] sm:$0xff]
        %v9577 = vld [vmem:[%s1481 + $0x52] sm:$0xff]
        %v9578 = vld [vmem:[%s1481 + $0x62] sm:$0xff]
        %v9579 = vld [vmem:[%s1481 + $0x6a] sm:$0xff]
        %v9580 = vld [vmem:[%s1481 + $0x7a] sm:$0xff]
        %v9581 = vld [vmem:[%s1481 + $0x82] sm:$0xff]
        %v9582 = vld [vmem:[%s1481 + $0x92] sm:$0xff]
        %v9583 = vld [vmem:[%s1481 + $0x9a] sm:$0xff]
        %v9584 = vld [vmem:[%s1481 + $0xaa] sm:$0xff]
        %v9585 = vld [vmem:[%s1481 + $0xb2] sm:$0xff]
        %v9586 = vld [vmem:[%s1481 + $0xc2] sm:$0xff]
        %v9587 = vld [vmem:[%s1481 + $0xca] sm:$0xff]
        %v9588 = vld [vmem:[%s1481 + $0xda] sm:$0xff]
        %v9589 = vld [vmem:[%s1481 + $0xe2] sm:$0xff]
        %v9590 = vld [vmem:[%s1481 + $0xf2] sm:$0xff]
        %v9591 = vld [vmem:[%s1481 + $0xfa] sm:$0xff]
        %v9592 = vld [vmem:[%s1481 + $0x10a] sm:$0xff]
        %v9593 = vld [vmem:[%s1481 + $0x112] sm:$0xff]
        %v9594 = vld [vmem:[%s1481 + $0x122] sm:$0xff]
        %v9595 = vld [vmem:[%s1481 + $0x12a] sm:$0xff]
        %v9596 = vld [vmem:[%s1481 + $0x13a] sm:$0xff]
        %v9597 = vld [vmem:[%s1481 + $0x142] sm:$0xff]
        %v9598 = vld [vmem:[%s1481 + $0x152] sm:$0xff]
        %v9599 = vld [vmem:[%s1481 + $0x15a] sm:$0xff]
        %v9600 = vld [vmem:[%s1481 + $0x16a] sm:$0xff]
        %v9601 = vld [vmem:[%s1481 + $0x172] sm:$0xff]
        %v9602 = vperm.slane %v8793, 0
        %v9603 = vmul.f32 %v9570, %v9602
        %v9604 = vmul.f32 %v9571, %v9602
        %v9605 = vmul.f32 %v9572, %v9602
        %v9606 = vmul.f32 %v9573, %v9602
        %v9607 = vmul.f32 %v9574, %v9602
        %v9608 = vmul.f32 %v9575, %v9602
        %v9609 = vmul.f32 %v9576, %v9602
        %v9610 = vmul.f32 %v9577, %v9602
        %v9611 = vmul.f32 %v9578, %v9602
        %v9612 = vmul.f32 %v9579, %v9602
        %v9613 = vmul.f32 %v9580, %v9602
        %v9614 = vmul.f32 %v9581, %v9602
        %v9615 = vmul.f32 %v9582, %v9602
        %v9616 = vmul.f32 %v9583, %v9602
        %v9617 = vmul.f32 %v9584, %v9602
        %v9618 = vmul.f32 %v9585, %v9602
        %v9619 = vmul.f32 %v9586, %v9602
        %v9620 = vmul.f32 %v9587, %v9602
        %v9621 = vmul.f32 %v9588, %v9602
        %v9622 = vmul.f32 %v9589, %v9602
        %v9623 = vmul.f32 %v9590, %v9602
        %v9624 = vmul.f32 %v9591, %v9602
        %v9625 = vmul.f32 %v9592, %v9602
        %v9626 = vmul.f32 %v9593, %v9602
        %v9627 = vmul.f32 %v9594, %v9602
        %v9628 = vmul.f32 %v9595, %v9602
        %v9629 = vmul.f32 %v9596, %v9602
        %v9630 = vmul.f32 %v9597, %v9602
        %v9631 = vmul.f32 %v9598, %v9602
        %v9632 = vmul.f32 %v9599, %v9602
        %v9633 = vmul.f32 %v9600, %v9602
        %v9634 = vmul.f32 %v9601, %v9602
        %v9635 = vadd.f32 %v9538, %v9603
        %v9636 = vadd.f32 %v9539, %v9604
        %v9637 = vadd.f32 %v9540, %v9605
        %v9638 = vadd.f32 %v9541, %v9606
        %v9639 = vadd.f32 %v9542, %v9607
        %v9640 = vadd.f32 %v9543, %v9608
        %v9641 = vadd.f32 %v9544, %v9609
        %v9642 = vadd.f32 %v9545, %v9610
        %v9643 = vadd.f32 %v9546, %v9611
        %v9644 = vadd.f32 %v9547, %v9612
        %v9645 = vadd.f32 %v9548, %v9613
        %v9646 = vadd.f32 %v9549, %v9614
        %v9647 = vadd.f32 %v9550, %v9615
        %v9648 = vadd.f32 %v9551, %v9616
        %v9649 = vadd.f32 %v9552, %v9617
        %v9650 = vadd.f32 %v9553, %v9618
        %v9651 = vadd.f32 %v9554, %v9619
        %v9652 = vadd.f32 %v9555, %v9620
        %v9653 = vadd.f32 %v9556, %v9621
        %v9654 = vadd.f32 %v9557, %v9622
        %v9655 = vadd.f32 %v9558, %v9623
        %v9656 = vadd.f32 %v9559, %v9624
        %v9657 = vadd.f32 %v9560, %v9625
        %v9658 = vadd.f32 %v9561, %v9626
        %v9659 = vadd.f32 %v9562, %v9627
        %v9660 = vadd.f32 %v9563, %v9628
        %v9661 = vadd.f32 %v9564, %v9629
        %v9662 = vadd.f32 %v9565, %v9630
        %v9663 = vadd.f32 %v9566, %v9631
        %v9664 = vadd.f32 %v9567, %v9632
        %v9665 = vadd.f32 %v9568, %v9633
        %v9666 = vadd.f32 %v9569, %v9634
        %v9667 = vsel %vm272, %v9635, 0.0
        %9668 = vadd.xlane.f32.xlu0 %v9667
        %v9669 = vpop.xlane.xlu0 %9668
        %v9670 = vsel %vm272, %v9636, 0.0
        %9671 = vadd.xlane.f32.xlu0 %v9670
        %v9672 = vpop.xlane.xlu0 %9671
        %v9673 = vsel %vm272, %v9637, 0.0
        %9674 = vadd.xlane.f32.xlu0 %v9673
        %v9675 = vpop.xlane.xlu0 %9674
        %v9676 = vsel %vm272, %v9638, 0.0
        %9677 = vadd.xlane.f32.xlu0 %v9676
        %v9678 = vpop.xlane.xlu0 %9677
        %v9679 = vsel %vm272, %v9639, 0.0
        %9680 = vadd.xlane.f32.xlu0 %v9679
        %v9681 = vpop.xlane.xlu0 %9680
        %v9682 = vsel %vm272, %v9640, 0.0
        %9683 = vadd.xlane.f32.xlu0 %v9682
        %v9684 = vpop.xlane.xlu0 %9683
        %v9685 = vsel %vm272, %v9641, 0.0
        %9686 = vadd.xlane.f32.xlu0 %v9685
        %v9687 = vpop.xlane.xlu0 %9686
        %v9688 = vsel %vm272, %v9642, 0.0
        %9689 = vadd.xlane.f32.xlu0 %v9688
        %v9690 = vpop.xlane.xlu0 %9689
        %v9691 = vsel %vm272, %v9643, 0.0
        %9692 = vadd.xlane.f32.xlu0 %v9691
        %v9693 = vpop.xlane.xlu0 %9692
        %v9694 = vsel %vm272, %v9644, 0.0
        %9695 = vadd.xlane.f32.xlu0 %v9694
        %v9696 = vpop.xlane.xlu0 %9695
        %v9697 = vsel %vm272, %v9645, 0.0
        %9698 = vadd.xlane.f32.xlu0 %v9697
        %v9699 = vpop.xlane.xlu0 %9698
        %v9700 = vsel %vm272, %v9646, 0.0
        %9701 = vadd.xlane.f32.xlu0 %v9700
        %v9702 = vpop.xlane.xlu0 %9701
        %v9703 = vsel %vm272, %v9647, 0.0
        %9704 = vadd.xlane.f32.xlu0 %v9703
        %v9705 = vpop.xlane.xlu0 %9704
        %v9706 = vsel %vm272, %v9648, 0.0
        %9707 = vadd.xlane.f32.xlu0 %v9706
        %v9708 = vpop.xlane.xlu0 %9707
        %v9709 = vsel %vm272, %v9649, 0.0
        %9710 = vadd.xlane.f32.xlu0 %v9709
        %v9711 = vpop.xlane.xlu0 %9710
        %v9712 = vsel %vm272, %v9650, 0.0
        %9713 = vadd.xlane.f32.xlu0 %v9712
        %v9714 = vpop.xlane.xlu0 %9713
        %v9715 = vsel %vm272, %v9651, 0.0
        %9716 = vadd.xlane.f32.xlu0 %v9715
        %v9717 = vpop.xlane.xlu0 %9716
        %v9718 = vsel %vm272, %v9652, 0.0
        %9719 = vadd.xlane.f32.xlu0 %v9718
        %v9720 = vpop.xlane.xlu0 %9719
        %v9721 = vsel %vm272, %v9653, 0.0
        %9722 = vadd.xlane.f32.xlu0 %v9721
        %v9723 = vpop.xlane.xlu0 %9722
        %v9724 = vsel %vm272, %v9654, 0.0
        %9725 = vadd.xlane.f32.xlu0 %v9724
        %v9726 = vpop.xlane.xlu0 %9725
        %v9727 = vsel %vm272, %v9655, 0.0
        %9728 = vadd.xlane.f32.xlu0 %v9727
        %v9729 = vpop.xlane.xlu0 %9728
        %v9730 = vsel %vm272, %v9656, 0.0
        %9731 = vadd.xlane.f32.xlu0 %v9730
        %v9732 = vpop.xlane.xlu0 %9731
        %v9733 = vsel %vm272, %v9657, 0.0
        %9734 = vadd.xlane.f32.xlu0 %v9733
        %v9735 = vpop.xlane.xlu0 %9734
        %v9736 = vsel %vm272, %v9658, 0.0
        %9737 = vadd.xlane.f32.xlu0 %v9736
        %v9738 = vpop.xlane.xlu0 %9737
        %v9739 = vsel %vm272, %v9659, 0.0
        %9740 = vadd.xlane.f32.xlu0 %v9739
        %v9741 = vpop.xlane.xlu0 %9740
        %v9742 = vsel %vm272, %v9660, 0.0
        %9743 = vadd.xlane.f32.xlu0 %v9742
        %v9744 = vpop.xlane.xlu0 %9743
        %v9745 = vsel %vm272, %v9661, 0.0
        %9746 = vadd.xlane.f32.xlu0 %v9745
        %v9747 = vpop.xlane.xlu0 %9746
        %v9748 = vsel %vm272, %v9662, 0.0
        %9749 = vadd.xlane.f32.xlu0 %v9748
        %v9750 = vpop.xlane.xlu0 %9749
        %v9751 = vsel %vm272, %v9663, 0.0
        %9752 = vadd.xlane.f32.xlu0 %v9751
        %v9753 = vpop.xlane.xlu0 %9752
        %v9754 = vsel %vm272, %v9664, 0.0
        %9755 = vadd.xlane.f32.xlu0 %v9754
        %v9756 = vpop.xlane.xlu0 %9755
        %v9757 = vsel %vm272, %v9665, 0.0
        %9758 = vadd.xlane.f32.xlu0 %v9757
        %v9759 = vpop.xlane.xlu0 %9758
        %v9760 = vsel %vm272, %v9666, 0.0
        %9761 = vadd.xlane.f32.xlu0 %v9760
        %v9762 = vpop.xlane.xlu0 %9761
        %s9763 = sld [smem:[#allocation5]]
        %v9764 = vstv %s9763
        %v9765 = vadd.f32 %v9669, %v9764
        %v9766 = vadd.f32 %v9672, %v9764
        %v9767 = vadd.f32 %v9675, %v9764
        %v9768 = vadd.f32 %v9678, %v9764
        %v9769 = vadd.f32 %v9681, %v9764
        %v9770 = vadd.f32 %v9684, %v9764
        %v9771 = vadd.f32 %v9687, %v9764
        %v9772 = vadd.f32 %v9690, %v9764
        %v9773 = vadd.f32 %v9693, %v9764
        %v9774 = vadd.f32 %v9696, %v9764
        %v9775 = vadd.f32 %v9699, %v9764
        %v9776 = vadd.f32 %v9702, %v9764
        %v9777 = vadd.f32 %v9705, %v9764
        %v9778 = vadd.f32 %v9708, %v9764
        %v9779 = vadd.f32 %v9711, %v9764
        %v9780 = vadd.f32 %v9714, %v9764
        %v9781 = vadd.f32 %v9717, %v9764
        %v9782 = vadd.f32 %v9720, %v9764
        %v9783 = vadd.f32 %v9723, %v9764
        %v9784 = vadd.f32 %v9726, %v9764
        %v9785 = vadd.f32 %v9729, %v9764
        %v9786 = vadd.f32 %v9732, %v9764
        %v9787 = vadd.f32 %v9735, %v9764
        %v9788 = vadd.f32 %v9738, %v9764
        %v9789 = vadd.f32 %v9741, %v9764
        %v9790 = vadd.f32 %v9744, %v9764
        %v9791 = vadd.f32 %v9747, %v9764
        %v9792 = vadd.f32 %v9750, %v9764
        %v9793 = vadd.f32 %v9753, %v9764
        %v9794 = vadd.f32 %v9756, %v9764
        %v9795 = vadd.f32 %v9759, %v9764
        %v9796 = vadd.f32 %v9762, %v9764
        %v9797 = vld [vmem:[%s270] sm:$0xff]
        %v9798 = vld [vmem:[%s270 + $0x8] sm:$0xff]
        %v9831 = vlaneseq
        %v9832 = vand.u32 %v9831, 127
        %v9833 = vperm.slane %v9765, %v9832
        %v9834 = vadd.s32 %v9832, 4294967288
        %v9835 = vperm.slane %v9766, %v9834
        %vm9836 = vcmask 130112
        %v9837 = vsel %vm9836, %v9835, %v9833
        %v9838 = vperm.slane %v9767, %v9832
        %v9839 = vperm.slane %v9768, %v9834
        %v9840 = vsel %vm9836, %v9839, %v9838
        %v9841 = vperm.slane %v9769, %v9832
        %v9842 = vperm.slane %v9770, %v9834
        %v9843 = vsel %vm9836, %v9842, %v9841
        %v9844 = vperm.slane %v9771, %v9832
        %v9845 = vperm.slane %v9772, %v9834
        %v9846 = vsel %vm9836, %v9845, %v9844
        %v9847 = vperm.slane %v9773, %v9832
        %v9848 = vperm.slane %v9774, %v9834
        %v9849 = vsel %vm9836, %v9848, %v9847
        %v9850 = vperm.slane %v9775, %v9832
        %v9851 = vperm.slane %v9776, %v9834
        %v9852 = vsel %vm9836, %v9851, %v9850
        %v9853 = vperm.slane %v9777, %v9832
        %v9854 = vperm.slane %v9778, %v9834
        %v9855 = vsel %vm9836, %v9854, %v9853
        %v9856 = vperm.slane %v9779, %v9832
        %v9857 = vperm.slane %v9780, %v9834
        %v9858 = vsel %vm9836, %v9857, %v9856
        %v9859 = vperm.slane %v9781, %v9832
        %v9860 = vperm.slane %v9782, %v9834
        %v9861 = vsel %vm9836, %v9860, %v9859
        %v9862 = vperm.slane %v9783, %v9832
        %v9863 = vperm.slane %v9784, %v9834
        %v9864 = vsel %vm9836, %v9863, %v9862
        %v9865 = vperm.slane %v9785, %v9832
        %v9866 = vperm.slane %v9786, %v9834
        %v9867 = vsel %vm9836, %v9866, %v9865
        %v9868 = vperm.slane %v9787, %v9832
        %v9869 = vperm.slane %v9788, %v9834
        %v9870 = vsel %vm9836, %v9869, %v9868
        %v9871 = vperm.slane %v9789, %v9832
        %v9872 = vperm.slane %v9790, %v9834
        %v9873 = vsel %vm9836, %v9872, %v9871
        %v9874 = vperm.slane %v9791, %v9832
        %v9875 = vperm.slane %v9792, %v9834
        %v9876 = vsel %vm9836, %v9875, %v9874
        %v9877 = vperm.slane %v9793, %v9832
        %v9878 = vperm.slane %v9794, %v9834
        %v9879 = vsel %vm9836, %v9878, %v9877
        %v9880 = vperm.slane %v9795, %v9832
        %v9881 = vperm.slane %v9796, %v9834
        %v9882 = vsel %vm9836, %v9881, %v9880
        %vm9883 = vcmask 1041409
        %v9884 = vsel %vm9883, %v9840, %v9837
        %vm9885 = vcmask 1042434
        %v9886 = vsel %vm9885, %v9843, %v9884
        %vm9887 = vcmask 1043459
        %v9888 = vsel %vm9887, %v9846, %v9886
        %vm9889 = vcmask 1044484
        %v9890 = vsel %vm9889, %v9849, %v9888
        %vm9891 = vcmask 1045509
        %v9892 = vsel %vm9891, %v9852, %v9890
        %vm9893 = vcmask 1046534
        %v9894 = vsel %vm9893, %v9855, %v9892
        %vm9895 = vcmask 1047559
        %v9896 = vsel %vm9895, %v9858, %v9894
        %v9897 = vsel %vm9883, %v9864, %v9861
        %v9898 = vsel %vm9885, %v9867, %v9897
        %v9899 = vsel %vm9887, %v9870, %v9898
        %v9900 = vsel %vm9889, %v9873, %v9899
        %v9901 = vsel %vm9891, %v9876, %v9900
        %v9902 = vsel %vm9893, %v9879, %v9901
        %v9903 = vsel %vm9895, %v9882, %v9902
        %v9906 = vadd.f32 %v9797, %v9896
        %v9907 = vadd.f32 %v9798, %v9903
        %v9908 = vmax.f32 %v9906, 0.0
        %v9909 = vmax.f32 %v9907, 0.0
        %v9910 = vmin.f32 %v9908, 1.0
        %v9911 = vmin.f32 %v9909, 1.0
        %vm9912 = vcmask 130048
        %9913 = vst.msk [vmem:[%s260] sm:$0xff] %vm9912, %v9910
        %9914 = vst.msk [vmem:[%s260 + $0x8] sm:$0xff] %vm9912, %v9911
        %s9915 = sand.u32 %s165, 1
        %s9916 = scalar_lea.sflag [#allocation7], %s9915
        %s9917 = sand.u32 %s165, 1
        %s9918 = smul.addr %s9917, 16
        %s9919 = scalar_lea.vmem [#allocation6], %s9918
        // Predicated region
        $region52: #{network_forward.1} parent=43 // pred_check
          %p9920 = pneg %p175
        $region53: #{network_forward.1} parent=43 // pred_check_branch
          %9922 = sbr.rel (%p9920) target = $region55
        $region54: #{network_forward.1} parent=43 // pred_region
          %9924 = vsyncadd %s9916, 0
          %s9925 = smul.addr %s21, 2
          %s9926 = smul.addr %s9925, 8
          %s9927 = scalar_lea.hbm %s6, %s9926
          %s9928 = sshll.u32 %s9919, 4
          %s9929 = int_to_ptr.vmem [resolvable:$true] %s9928
          %s9930 = sshll.u32 %s9927, 4
          %s9931 = int_to_ptr.hbm [resolvable:$true] %s9930
          %9936 = dma.vmem_to_hbm [thread:$0]  %s9929, 256, %s9931, %s9916, 128, 128, 8
        $region55: #{network_forward.1} parent=43 // pred_fallthru
          _
      $region44: #{network_forward.1} parent=5 // pred_fallthru
        _
      %p9937 = scmp.le.s32.totalorder 2, %s16
      // Predicated region
      $region56: #{network_forward.1} parent=5 // pred_check
        %p9938 = pneg %p9937
      $region57: #{network_forward.1} parent=5 // pred_check_branch
        %9940 = sbr.rel (%p9938) target = $region59
      $region58: #{network_forward.1} parent=5 // pred_region
        %s9941 = ssub.s32 %s16, 2
        // Predicated region
        $region60: #{network_forward.1} parent=58 // pred_check
          %p9942 = pneg %p181
        $region61: #{network_forward.1} parent=58 // pred_check_branch
          %9944 = sbr.rel (%p9942) target = $region63
        $region62: #{network_forward.1} parent=58 // pred_region
          %s9945 = sand.u32 %s166, 1
          %s9946 = scalar_lea.sflag [#allocation7], %s9945
          %s9947 = sand.u32 %s166, 1
          %s9948 = smul.addr %s9947, 16
          %s9949 = scalar_lea.vmem [#allocation6], %s9948
          %9951 = dma.done %s9946, 256
        $region63: #{network_forward.1} parent=58 // pred_fallthru
          _
      $region59: #{network_forward.1} parent=5 // pred_fallthru
        _
    $region6: #{network_forward.1} parent=1 // loop_footer
      %s20 = sadd.s32 1, %s16
    $region7: #{network_forward.1} parent=1 // loop_footer_branch
      %15 = sbr.rel target = $region3
    $region8: #{network_forward.1} parent=1 // loop_exit
      _
    %9952 = vsyncpa [#allocation7], 1
    %s9953 = scalar_lea.sflag [#allocation7], 1
    %9954 = vsyncpa %s9953, 1

</llo_original>
